<compile_context>
chip_gen: v6e
topology: v6e:2x2x1
jax: 0.10.0
libtpu: 0.0.40
codegen_flags: <defaults>
</compile_context>

<pallas_src>
import functools

import jax
import jax.numpy as jnp
import numpy as np
from jax.experimental import pallas as pl
from jax.experimental.pallas import tpu as pltpu

# Full-precision f32 matmuls for the tiny f32 parts (CAE / embeddings) so the
# mean/var outputs match the f32 reference tightly.
jax.config.update("jax_default_matmul_precision", "highest")

# Native MXU dtype for the transformer/head matmul operands (accumulation is
# always f32).  Set to jnp.float32 for a bit-tight match against the reference.
MXU_DTYPE = jnp.bfloat16


def _vmem_spec():
    return pl.BlockSpec(memory_space=pltpu.MemorySpace.VMEM)


# ---------------------------------------------------------------------------
# In-kernel math helpers (VPU / EUP / MXU ops only)
# ---------------------------------------------------------------------------
def _layer_norm(x, gamma, beta, eps=1e-5):
    mu = jnp.mean(x, axis=-1, keepdims=True)
    xc = x - mu
    var = jnp.mean(xc * xc, axis=-1, keepdims=True)
    return xc * jax.lax.rsqrt(var + eps) * gamma + beta


def _erf_poly(x):
    # Abramowitz & Stegun 7.1.26 (max abs err ~1.5e-7); plain VPU + EUP ops.
    p = 0.3275911
    a1, a2, a3, a4, a5 = (0.254829592, -0.284496736, 1.421413741,
                          -1.453152027, 1.061405429)
    sgn = jnp.where(x >= 0.0, 1.0, -1.0)
    ax = jnp.abs(x)
    t = 1.0 / (1.0 + p * ax)
    poly = ((((a5 * t + a4) * t + a3) * t + a2) * t + a1) * t
    return sgn * (1.0 - poly * jnp.exp(-ax * ax))


def _probe_lax_erf_in_pallas():
    """Check whether jax.lax.erf lowers inside a Pallas TPU kernel."""
    def _k(x_ref, o_ref):
        o_ref[...] = jax.lax.erf(x_ref[...])
    try:
        x = jnp.linspace(-3.0, 3.0, 8 * 128, dtype=jnp.float32).reshape(8, 128)
        y = pl.pallas_call(
            _k, out_shape=jax.ShapeDtypeStruct((8, 128), jnp.float32))(x)
        y = jax.block_until_ready(y)
        return bool(jnp.all(jnp.isfinite(y)))
    except Exception:
        return False


_USE_LAX_ERF = _probe_lax_erf_in_pallas()


def _erf(x):
    return jax.lax.erf(x) if _USE_LAX_ERF else _erf_poly(x)


def _gelu_exact(x):
    # Matches torch.nn.GELU() (erf-based, not the tanh approximation).
    return 0.5 * x * (1.0 + _erf(x * (1.0 / np.sqrt(2.0))))


def _bdot(a, b):
    """MXU matmul with f32 accumulation (operands already bf16/f32)."""
    return jnp.dot(a, b, preferred_element_type=jnp.float32,
                   precision=jax.lax.Precision.DEFAULT)


# ---------------------------------------------------------------------------
# Fused forward kernel (single pallas_call, grid=())
# ---------------------------------------------------------------------------
def _fused_forward_kernel(
        # inputs
        attr_ref, seq_ref,
        cae_w1_ref, cae_b1_ref, cae_w2_ref, cae_b2_ref, cae_wh_ref, cae_bh_ref,
        fc_attr_w_ref, fc_attr_b_ref, fc_seq_w_ref, fc_seq_b_ref,
        pos0_ref, pos_seq_ref,
        w_qkv_ref, b_qkv_ref, wo_ref, bo_ref, ln1_g_ref, ln1_b_ref,
        w_up_ref, b_up_ref, w_dn_ref, b_dn_ref, ln2_g_ref, ln2_b_ref,
        head_w_ref, head_b_ref,
        # outputs
        cae_out_ref, head_out_ref,
        # scratch
        x_scr, qkv_scr, attn_scr,
        *, batch, seq_len, num_heads):
    f32 = jnp.float32
    B = batch
    S = seq_len
    S1 = S + 1
    attr_dim = attr_ref.shape[1]
    H = fc_attr_w_ref.shape[1]
    hd = H // num_heads
    inv_scale = 1.0 / float(np.sqrt(hd))
    n_layers = w_qkv_ref.shape[0]

    # ---- ConditionalAttributeEnhancer (f32; eval: sample == mean) ----------
    a = attr_ref[...]
    h = jnp.maximum(jnp.dot(a, cae_w1_ref[...], preferred_element_type=f32)
                    + cae_b1_ref[...], 0.0)
    h = jnp.maximum(jnp.dot(h, cae_w2_ref[...], preferred_element_type=f32)
                    + cae_b2_ref[...], 0.0)
    mv = jnp.dot(h, cae_wh_ref[...], preferred_element_type=f32) + cae_bh_ref[...]
    cae_out_ref[...] = mv                    # fused mean|logvar slab
    enhanced = mv[:, :attr_dim]              # eval-mode sample == mean
    # TODO(synk): train-mode sample = mean + sqrt(var) * eps not implemented.

    # ---- token embeddings + positions, assembled into flat (B*S1, H) -------
    attr_emb = (jnp.dot(enhanced, fc_attr_w_ref[...], preferred_element_type=f32)
                + fc_attr_b_ref[...] + pos0_ref[...])            # (B, H)
    seq_emb = (jnp.dot(seq_ref[...], fc_seq_w_ref[...], preferred_element_type=f32)
               + fc_seq_b_ref[...] + pos_seq_ref[...])           # (B*S, H)
    for b in range(B):
        x_scr[b * S1:b * S1 + 1, :] = attr_emb[b:b + 1, :]
        x_scr[b * S1 + 1:(b + 1) * S1, :] = seq_emb[b * S:(b + 1) * S, :]
    x = x_scr[...]                                               # (B*S1, H) f32

    # Causal mask (key <= query), shared by every layer / head.
    row = jax.lax.broadcasted_iota(jnp.int32, (S1, S1), 0)
    col = jax.lax.broadcasted_iota(jnp.int32, (S1, S1), 1)
    causal = col <= row

    # ---- transformer blocks -------------------------------------------------
    for l in range(n_layers):
        # Fused Q|K|V projection: one (B*S1, H) @ (H, 3H) matmul.
        qkv = _bdot(x.astype(MXU_DTYPE), w_qkv_ref[l]) + b_qkv_ref[l]
        qkv_scr[...] = qkv
        wo_l = wo_ref[l]                                         # (H, H) f32

        for b in range(B):
            qkv_b = qkv_scr[b * S1:(b + 1) * S1, :]              # (S1, 3H)
            attn_b = jnp.zeros((S1, H), f32)
            for hh in range(num_heads):
                c0 = hh * hd
                qh = qkv_b[:, c0:c0 + hd].astype(MXU_DTYPE)
                kh = qkv_b[:, H + c0:H + c0 + hd].astype(MXU_DTYPE)
                vh = qkv_b[:, 2 * H + c0:2 * H + c0 + hd].astype(MXU_DTYPE)
                s = jax.lax.dot_general(
                    qh, kh, (((1,), (1,)), ((), ())),
                    preferred_element_type=f32,
                    precision=jax.lax.Precision.DEFAULT) * inv_scale
                s = jnp.where(causal, s, jnp.float32(-1e30))
                m = jnp.max(s, axis=-1, keepdims=True)
                p = jnp.exp(s - m)
                denom = jnp.sum(p, axis=-1, keepdims=True)
                ctx = _bdot(p.astype(MXU_DTYPE), vh)
                ctx = ctx * pl.reciprocal(denom, approx=True)
                # Split-K of the output projection over heads (8-row-aligned
                # f32 weight slice, cast to bf16 at the matmul).
                attn_b = attn_b + _bdot(ctx.astype(MXU_DTYPE),
                                        wo_l[c0:c0 + hd, :].astype(MXU_DTYPE))
                # TODO(synk): train-mode attention dropout (p=0.1) not implemented.
            attn_scr[b * S1:(b + 1) * S1, :] = attn_b

        attn_out = attn_scr[...] + bo_ref[l]
        h1 = _layer_norm(x + attn_out, ln1_g_ref[l], ln1_b_ref[l])
        up = _bdot(h1.astype(MXU_DTYPE), w_up_ref[l]) + b_up_ref[l]
        up = _gelu_exact(up)
        dn = _bdot(up.astype(MXU_DTYPE), w_dn_ref[l]) + b_dn_ref[l]
        x = _layer_norm(h1 + dn, ln2_g_ref[l], ln2_b_ref[l])
        # TODO(synk): train-mode MLP dropout (p=0.1) not implemented.

    # ---- fused pi|mean|chol head (raw slab; softmax / cov done in wrapper) --
    head_out_ref[...] = (_bdot(x.astype(MXU_DTYPE), head_w_ref[...])
                         + head_b_ref[...])


# ---------------------------------------------------------------------------
# Plain-JAX pieces (tiny, no clean Pallas equivalent)
# ---------------------------------------------------------------------------
def _build_full_cov(chol, diag_bias):
    """Lower-triangular scatter + L @ L^T + 1e-5*I (matches the PyTorch code)."""
    G, A = diag_bias.shape
    B, S = chol.shape[0], chol.shape[1]
    tr, tc = np.tril_indices(A)                 # row-major == torch.tril_indices
    off = np.nonzero(tr != tc)[0]
    L = jnp.zeros((B, S, G, A, A), chol.dtype)
    L = L.at[..., tr[off], tc[off]].set(jnp.tanh(chol[..., off]) * 0.1)
    diag = jax.nn.softplus(chol[..., :A] + diag_bias[None, None, :, :]) + 0.1
    idx = np.arange(A)
    L = L.at[..., idx, idx].set(diag)
    cov = jnp.matmul(L, jnp.swapaxes(L, -1, -2))
    return cov + 1e-5 * jnp.eye(A, dtype=cov.dtype)


# ---------------------------------------------------------------------------
# Full forward pass (one pallas_call + tiny JAX epilogue)
# ---------------------------------------------------------------------------
def gpt_with_cae_forward(params, attributes, sequence, *, num_heads):
    f32 = jnp.float32
    B, _, attr_dim = attributes.shape
    S, action_dim = sequence.shape[1], sequence.shape[2]
    H = params["fc_attr_w"].shape[1]
    S1 = S + 1
    N = B * S1
    Dh = params["head_w"].shape[1]
    G, A = params["diag_bias"].shape
    T = A * (A + 1) // 2

    # Positional embedding split in the wrapper (attr-token row vs. sequence
    # rows pre-broadcast over batch) so the kernel never row-slices it.
    pos0 = params["pos_emb"][0:1, :]
    pos_seq = jnp.broadcast_to(params["pos_emb"][1:S1, :][None],
                               (B, S, H)).reshape(B * S, H)

    kernel = functools.partial(_fused_forward_kernel,
                               batch=B, seq_len=S, num_heads=num_heads)

    inputs = (
        attributes.reshape(B, attr_dim), sequence.reshape(B * S, action_dim),
        params["cae_w1"], params["cae_b1"], params["cae_w2"], params["cae_b2"],
        params["cae_wh"], params["cae_bh"],
        params["fc_attr_w"], params["fc_attr_b"],
        params["fc_seq_w"], params["fc_seq_b"],
        pos0, pos_seq,
        params["w_qkv"], params["b_qkv"], params["wo"], params["bo"],
        params["ln1_g"], params["ln1_b"],
        params["w_up"], params["b_up"], params["w_dn"], params["b_dn"],
        params["ln2_g"], params["ln2_b"],
        params["head_w"], params["head_b"],
    )

    # TODO(synk): on v7x, add a "parallel" grid axis over batch (or heads) to
    #             shard across the 2 TensorCores; grid=() is best on v5e/v6e.
    cae_out, head_out = pl.pallas_call(
        kernel,
        out_shape=(jax.ShapeDtypeStruct((B, 2 * attr_dim), f32),
                   jax.ShapeDtypeStruct((N, Dh), f32)),
        in_specs=[_vmem_spec()] * len(inputs),
        out_specs=(_vmem_spec(), _vmem_spec()),
        scratch_shapes=[pltpu.VMEM((N, H), f32),        # assembled x
                        pltpu.VMEM((N, 3 * H), f32),    # fused QKV staging
                        pltpu.VMEM((N, H), f32)],       # attention output
    )(*inputs)

    # Split the fused CAE slab (eval: sample == mean).
    mean = cae_out[:, :attr_dim].reshape(B, 1, attr_dim)
    var = jnp.exp(cae_out[:, attr_dim:]).reshape(B, 1, attr_dim)

    # Split the fused head slab; drop the last token per batch (hidden[:, :-1]).
    y = head_out.reshape(B, S1, Dh)[:, :S, :]
    pi = jax.nn.softmax(y[..., :G], axis=-1)
    mu = y[..., G:G + G * A].reshape(B, S, G, A)
    chol = y[..., G + G * A:].reshape(B, S, G, T)
    # TODO(synk): tril scatter + (A x A) covariance products stay in plain JAX.
    full_cov = _build_full_cov(chol, params["diag_bias"])
    return pi, mu, full_cov, mean, var


# ---------------------------------------------------------------------------
# Parameter init (PyTorch nn.Linear default: U(-1/sqrt(fan_in), 1/sqrt(fan_in)))
# ---------------------------------------------------------------------------
def _linear_init(key, fan_in, fan_out):
    kw, kb = jax.random.split(key)
    bound = 1.0 / np.sqrt(fan_in)
    w = jax.random.uniform(kw, (fan_in, fan_out), jnp.float32, -bound, bound)
    b = jax.random.uniform(kb, (1, fan_out), jnp.float32, -bound, bound)
    return w, b


def init_raw_params(key, attr_dim, hidden_dim, seq_len, action_dim,
                    num_layers, gaussian_num):
    keys = iter(jax.random.split(key, 64))
    raw = {}
    raw["cae_enc1_w"], raw["cae_enc1_b"] = _linear_init(next(keys), attr_dim, hidden_dim)
    raw["cae_enc2_w"], raw["cae_enc2_b"] = _linear_init(next(keys), hidden_dim, hidden_dim)
    raw["cae_mean_w"], raw["cae_mean_b"] = _linear_init(next(keys), hidden_dim, attr_dim)
    raw["cae_logvar_w"], raw["cae_logvar_b"] = _linear_init(next(keys), hidden_dim, attr_dim)
    raw["fc_attr_w"], raw["fc_attr_b"] = _linear_init(next(keys), attr_dim, hidden_dim)
    raw["fc_seq_w"], raw["fc_seq_b"] = _linear_init(next(keys), action_dim, hidden_dim)
    raw["pos_emb"] = jax.random.normal(next(keys), (seq_len + 1, hidden_dim), jnp.float32)
    layers = []
    for _ in range(num_layers):
        lp = {}
        lp["wq"], lp["bq"] = _linear_init(next(keys), hidden_dim, hidden_dim)
        lp["wk"], lp["bk"] = _linear_init(next(keys), hidden_dim, hidden_dim)
        lp["wv"], lp["bv"] = _linear_init(next(keys), hidden_dim, hidden_dim)
        lp["wo"], lp["bo"] = _linear_init(next(keys), hidden_dim, hidden_dim)
        lp["ln1_g"] = jnp.ones((1, hidden_dim), jnp.float32)
        lp["ln1_b"] = jnp.zeros((1, hidden_dim), jnp.float32)
        lp["w_up"], lp["b_up"] = _linear_init(next(keys), hidden_dim, 4 * hidden_dim)
        lp["w_dn"], lp["b_dn"] = _linear_init(next(keys), 4 * hidden_dim, hidden_dim)
        lp["ln2_g"] = jnp.ones((1, hidden_dim), jnp.float32)
        lp["ln2_b"] = jnp.zeros((1, hidden_dim), jnp.float32)
        layers.append(lp)
    raw["layers"] = layers
    tri = action_dim * (action_dim + 1) // 2
    raw["pi_w"], raw["pi_b"] = _linear_init(next(keys), hidden_dim, gaussian_num)
    raw["mean_w"], raw["mean_b"] = _linear_init(next(keys), hidden_dim, gaussian_num * action_dim)
    raw["chol_w"], raw["chol_b"] = _linear_init(next(keys), hidden_dim, gaussian_num * tri)
    raw["diag_bias"] = jnp.full((gaussian_num, action_dim), 0.1, jnp.float32)
    return raw


def prepare_kernel_params(raw, num_heads):
    """Fuse QKV / mean|logvar / pi|mean|chol heads, stack per-layer weights
    along a leading L dim, and store matmul weights in MXU_DTYPE (bf16)."""
    del num_heads  # attention scale is now applied in-kernel, not folded.
    layers = raw["layers"]
    stack = lambda k: jnp.stack([lp[k] for lp in layers], axis=0)
    kp = {
        "cae_w1": raw["cae_enc1_w"], "cae_b1": raw["cae_enc1_b"],
        "cae_w2": raw["cae_enc2_w"], "cae_b2": raw["cae_enc2_b"],
        "cae_wh": jnp.concatenate([raw["cae_mean_w"], raw["cae_logvar_w"]], axis=1),
        "cae_bh": jnp.concatenate([raw["cae_mean_b"], raw["cae_logvar_b"]], axis=1),
        "fc_attr_w": raw["fc_attr_w"], "fc_attr_b": raw["fc_attr_b"],
        "fc_seq_w": raw["fc_seq_w"], "fc_seq_b": raw["fc_seq_b"],
        "pos_emb": raw["pos_emb"],
        "w_qkv": jnp.stack([jnp.concatenate([lp["wq"], lp["wk"], lp["wv"]], axis=1)
                            for lp in layers], axis=0).astype(MXU_DTYPE),
        "b_qkv": jnp.stack([jnp.concatenate([lp["bq"], lp["bk"], lp["bv"]], axis=1)
                            for lp in layers], axis=0),
        # wo stays f32 so the per-head 8-row slices are tile-aligned; it is
        # cast to MXU_DTYPE at the matmul inside the kernel.
        "wo": stack("wo"), "bo": stack("bo"),
        "ln1_g": stack("ln1_g"), "ln1_b": stack("ln1_b"),
        "w_up": stack("w_up").astype(MXU_DTYPE), "b_up": stack("b_up"),
        "w_dn": stack("w_dn").astype(MXU_DTYPE), "b_dn": stack("b_dn"),
        "ln2_g": stack("ln2_g"), "ln2_b": stack("ln2_b"),
        "head_w": jnp.concatenate([raw["pi_w"], raw["mean_w"], raw["chol_w"]],
                                  axis=1).astype(MXU_DTYPE),
        "head_b": jnp.concatenate([raw["pi_b"], raw["mean_b"], raw["chol_b"]], axis=1),
        "diag_bias": raw["diag_bias"],
    }
    return kp


# ---------------------------------------------------------------------------
# Pure-JAX reference mirroring the PyTorch forward (eval mode).
# mm_dtype lets the reference use the same MXU operand precision as the kernel
# (bf16 operands, f32 accumulation) for a tight apples-to-apples check.
# ---------------------------------------------------------------------------
def reference_forward(raw, attributes, sequence, num_heads, mm_dtype=jnp.float32):
    f32 = jnp.float32
    mm = lambda t: t.astype(mm_dtype)

    def dot(a, b):
        return jnp.dot(mm(a), mm(b), preferred_element_type=f32,
                       precision=jax.lax.Precision.DEFAULT)

    def ln(t, g, b, eps=1e-5):
        mu = jnp.mean(t, axis=-1, keepdims=True)
        v = jnp.mean((t - mu) ** 2, axis=-1, keepdims=True)
        return (t - mu) / jnp.sqrt(v + eps) * g + b

    # ConditionalAttributeEnhancer (f32, eval: sample == mean)
    h = jnp.maximum(attributes @ raw["cae_enc1_w"] + raw["cae_enc1_b"], 0.0)
    h = jnp.maximum(h @ raw["cae_enc2_w"] + raw["cae_enc2_b"], 0.0)
    mean = h @ raw["cae_mean_w"] + raw["cae_mean_b"]
    logvar = h @ raw["cae_logvar_w"] + raw["cae_logvar_b"]
    var = jnp.exp(logvar)
    enhanced = mean

    # GPTModelBB
    attr_emb = enhanced @ raw["fc_attr_w"] + raw["fc_attr_b"]
    seq_emb = sequence @ raw["fc_seq_w"] + raw["fc_seq_b"]
    x = jnp.concatenate([attr_emb, seq_emb], axis=1)
    B, S1, H = x.shape
    x = x + raw["pos_emb"][None, :S1, :]
    hd = H // num_heads
    scale = hd ** 0.5
    masked = jnp.triu(jnp.ones((S1, S1), f32), k=1) == 1.0
    for lp in raw["layers"]:
        def heads(t):
            return t.reshape(B, S1, num_heads, hd).transpose(0, 2, 1, 3)
        q = heads(dot(x, lp["wq"]) + lp["bq"])
        k = heads(dot(x, lp["wk"]) + lp["bk"])
        v = heads(dot(x, lp["wv"]) + lp["bv"])
        scores = jnp.einsum("bhqd,bhkd->bhqk", mm(q), mm(k),
                            preferred_element_type=f32,
                            precision=jax.lax.Precision.DEFAULT) / scale
        scores = jnp.where(masked[None, None], -jnp.inf, scores)
        attn = jax.nn.softmax(scores, axis=-1)
        ctx = jnp.einsum("bhqk,bhkd->bhqd", mm(attn), mm(v),
                         preferred_element_type=f32,
                         precision=jax.lax.Precision.DEFAULT)
        ctx = ctx.transpose(0, 2, 1, 3).reshape(B, S1, H)
        attn_out = dot(ctx, lp["wo"]) + lp["bo"]
        x = ln(x + attn_out, lp["ln1_g"], lp["ln1_b"])
        ff = jax.nn.gelu(dot(x, lp["w_up"]) + lp["b_up"], approximate=False)
        ff = dot(ff, lp["w_dn"]) + lp["b_dn"]
        x = ln(x + ff, lp["ln2_g"], lp["ln2_b"])

    # ParameterPredictionLayer
    G, A = raw["diag_bias"].shape
    out_seq = x[:, :-1, :]
    S = out_seq.shape[1]
    pi = jax.nn.softmax(dot(out_seq, raw["pi_w"]) + raw["pi_b"], axis=-1)
    mu = (dot(out_seq, raw["mean_w"]) + raw["mean_b"]).reshape(B, S, G, A)
    chol = (dot(out_seq, raw["chol_w"]) + raw["chol_b"]).reshape(B, S, G, -1)
    full_cov = _build_full_cov(chol, raw["diag_bias"])
    return pi, mu, full_cov, mean, var


# ---------------------------------------------------------------------------
# Main
# ---------------------------------------------------------------------------
if __name__ == "__main__":
    ATTR_DIM = 8
    HIDDEN_DIM = 32
    SEQ_LEN = 8
    ACTION_DIM = 4
    NUM_HEADS = 4
    NUM_LAYERS = 2
    GAUSSIAN_NUM = 3
    BATCH = 2

    root = jax.random.PRNGKey(0)
    k_attr, k_seq, k_par = jax.random.split(root, 3)
    attributes = jax.random.normal(k_attr, (BATCH, 1, ATTR_DIM), jnp.float32)
    sequence = jax.random.normal(k_seq, (BATCH, SEQ_LEN, ACTION_DIM), jnp.float32)

    raw = init_raw_params(k_par, ATTR_DIM, HIDDEN_DIM, SEQ_LEN, ACTION_DIM,
                          NUM_LAYERS, GAUSSIAN_NUM)
    kparams = prepare_kernel_params(raw, NUM_HEADS)

    fwd = jax.jit(functools.partial(gpt_with_cae_forward, num_heads=NUM_HEADS))
    outs = jax.block_until_ready(fwd(kparams, attributes, sequence))
    pi, mu, full_cov, mean, var = outs

    assert pi.shape == (BATCH, SEQ_LEN, GAUSSIAN_NUM)
    assert mu.shape == (BATCH, SEQ_LEN, GAUSSIAN_NUM, ACTION_DIM)
    assert full_cov.shape == (BATCH, SEQ_LEN, GAUSSIAN_NUM, ACTION_DIM, ACTION_DIM)
    assert mean.shape == (BATCH, 1, ATTR_DIM) and var.shape == (BATCH, 1, ATTR_DIM)

    # CAE path runs in f32 -> tight check against the f32 reference.
    ref_f32 = reference_forward(raw, attributes, sequence, NUM_HEADS,
                                mm_dtype=jnp.float32)
    for name, got, want in (("mean", mean, ref_f32[3]), ("var", var, ref_f32[4])):
        assert got.shape == want.shape, f"{name}: shape {got.shape} vs {want.shape}"
        diff = float(jnp.max(jnp.abs(got - want)))
        assert bool(jnp.allclose(got, want, atol=2e-4, rtol=2e-4)), (
            f"{name} mismatch vs f32 reference (max abs diff {diff:.3e})")

    # Transformer/head path uses bf16 MXU operands -> check against a reference
    # that uses the same matmul-operand precision (f32 accumulation everywhere).
    ref_mm = reference_forward(raw, attributes, sequence, NUM_HEADS,
                               mm_dtype=MXU_DTYPE)
    for name, got, want in (("pi", pi, ref_mm[0]), ("mu", mu, ref_mm[1]),
                            ("full_cov", full_cov, ref_mm[2])):
        assert got.shape == want.shape, f"{name}: shape {got.shape} vs {want.shape}"
        diff = float(jnp.max(jnp.abs(got - want)))
        assert bool(jnp.allclose(got, want, atol=3e-2, rtol=3e-2)), (
            f"{name} mismatch vs reference (max abs diff {diff:.3e})")

    print("KERNEL_OK")
</pallas_src>

<mosaic_0001>
module attributes {stable_mosaic.version = 11 : i64} {
  func.func @_k(%arg0: memref<8x128xf32, #tpu.memory_space<vmem>>, %arg1: memref<8x128xf32, #tpu.memory_space<vmem>>) attributes {dimension_semantics = [], scalar_prefetch = 0 : i64, scratch_operands = 0 : i64, tpu.core_type = #tpu.core_type<tc>} {
    %c0 = arith.constant 0 : index
    %c0_0 = arith.constant 0 : index
    %0 = vector.load %arg0[%c0, %c0_0] : memref<8x128xf32, #tpu.memory_space<vmem>>, vector<8x128xf32>
    %1 = math.erf %0 : vector<8x128xf32>
    %c0_1 = arith.constant 0 : index
    %c0_2 = arith.constant 0 : index
    %2 = vector.load %arg1[%c0_1, %c0_2] : memref<8x128xf32, #tpu.memory_space<vmem>>, vector<8x128xf32>
    tpu.vector_store %arg1[%c0_1, %c0_2], %1 {strides = array<i32>} : memref<8x128xf32, #tpu.memory_space<vmem>>, vector<8x128xf32>,
    return
  }
}

module attributes {stable_mosaic.version = 11 : i64} {
  func.func @_fused_forward_kernel(%arg0: memref<2x8xf32, #tpu.memory_space<vmem>>, %arg1: memref<16x4xf32, #tpu.memory_space<vmem>>, %arg2: memref<8x32xf32, #tpu.memory_space<vmem>>, %arg3: memref<1x32xf32, #tpu.memory_space<vmem>>, %arg4: memref<32x32xf32, #tpu.memory_space<vmem>>, %arg5: memref<1x32xf32, #tpu.memory_space<vmem>>, %arg6: memref<32x16xf32, #tpu.memory_space<vmem>>, %arg7: memref<1x16xf32, #tpu.memory_space<vmem>>, %arg8: memref<8x32xf32, #tpu.memory_space<vmem>>, %arg9: memref<1x32xf32, #tpu.memory_space<vmem>>, %arg10: memref<4x32xf32, #tpu.memory_space<vmem>>, %arg11: memref<1x32xf32, #tpu.memory_space<vmem>>, %arg12: memref<1x32xf32, #tpu.memory_space<vmem>>, %arg13: memref<16x32xf32, #tpu.memory_space<vmem>>, %arg14: memref<2x32x96xbf16, #tpu.memory_space<vmem>>, %arg15: memref<2x1x96xf32, #tpu.memory_space<vmem>>, %arg16: memref<2x32x32xf32, #tpu.memory_space<vmem>>, %arg17: memref<2x1x32xf32, #tpu.memory_space<vmem>>, %arg18: memref<2x1x32xf32, #tpu.memory_space<vmem>>, %arg19: memref<2x1x32xf32, #tpu.memory_space<vmem>>, %arg20: memref<2x32x128xbf16, #tpu.memory_space<vmem>>, %arg21: memref<2x1x128xf32, #tpu.memory_space<vmem>>, %arg22: memref<2x128x32xbf16, #tpu.memory_space<vmem>>, %arg23: memref<2x1x32xf32, #tpu.memory_space<vmem>>, %arg24: memref<2x1x32xf32, #tpu.memory_space<vmem>>, %arg25: memref<2x1x32xf32, #tpu.memory_space<vmem>>, %arg26: memref<32x45xbf16, #tpu.memory_space<vmem>>, %arg27: memref<1x45xf32, #tpu.memory_space<vmem>>, %arg28: memref<2x16xf32, #tpu.memory_space<vmem>>, %arg29: memref<18x45xf32, #tpu.memory_space<vmem>>, %arg30: memref<18x32xf32, #tpu.memory_space<vmem>>, %arg31: memref<18x96xf32, #tpu.memory_space<vmem>>, %arg32: memref<18x32xf32, #tpu.memory_space<vmem>>) attributes {dimension_semantics = [], scalar_prefetch = 0 : i64, scratch_operands = 3 : i64, tpu.core_type = #tpu.core_type<tc>} {
    %c0 = arith.constant 0 : index
    %c0_0 = arith.constant 0 : index
    %0 = vector.load %arg0[%c0, %c0_0] : memref<2x8xf32, #tpu.memory_space<vmem>>, vector<2x8xf32>
    %c0_1 = arith.constant 0 : index
    %c0_2 = arith.constant 0 : index
    %1 = vector.load %arg2[%c0_1, %c0_2] : memref<8x32xf32, #tpu.memory_space<vmem>>, vector<8x32xf32>
    %cst = arith.constant dense<0.000000e+00> : vector<2x32xf32>
    %2 = tpu.matmul %0, %1, %cst {dimension_numbers = #tpu.dot_dimension_numbers<[1], [0], [0], [1], [0, 0, 1, 1], [], []>, precision = #tpu.contract_precision<fp32>} : vector<2x8xf32>, vector<8x32xf32>, vector<2x32xf32> -> vector<2x32xf32>
    %c0_3 = arith.constant 0 : index
    %c0_4 = arith.constant 0 : index
    %3 = vector.load %arg3[%c0_3, %c0_4] : memref<1x32xf32, #tpu.memory_space<vmem>>, vector<1x32xf32>
    %4 = vector.broadcast %3 : vector<1x32xf32> to vector<2x32xf32>
    %5 = arith.addf %2, %4 : vector<2x32xf32>
    %cst_5 = arith.constant 0.000000e+00 : f32
    %6 = vector.broadcast %cst_5 : f32 to vector<2x32xf32>
    %7 = arith.maximumf %5, %6 : vector<2x32xf32>
    %c0_6 = arith.constant 0 : index
    %c0_7 = arith.constant 0 : index
    %8 = vector.load %arg4[%c0_6, %c0_7] : memref<32x32xf32, #tpu.memory_space<vmem>>, vector<32x32xf32>
    %cst_8 = arith.constant dense<0.000000e+00> : vector<2x32xf32>
    %9 = tpu.matmul %7, %8, %cst_8 {dimension_numbers = #tpu.dot_dimension_numbers<[1], [0], [0], [1], [0, 0, 1, 1], [], []>, precision = #tpu.contract_precision<fp32>} : vector<2x32xf32>, vector<32x32xf32>, vector<2x32xf32> -> vector<2x32xf32>
    %c0_9 = arith.constant 0 : index
    %c0_10 = arith.constant 0 : index
    %10 = vector.load %arg5[%c0_9, %c0_10] : memref<1x32xf32, #tpu.memory_space<vmem>>, vector<1x32xf32>
    %11 = vector.broadcast %10 : vector<1x32xf32> to vector<2x32xf32>
    %12 = arith.addf %9, %11 : vector<2x32xf32>
    %cst_11 = arith.constant 0.000000e+00 : f32
    %13 = vector.broadcast %cst_11 : f32 to vector<2x32xf32>
    %14 = arith.maximumf %12, %13 : vector<2x32xf32>
    %c0_12 = arith.constant 0 : index
    %c0_13 = arith.constant 0 : index
    %15 = vector.load %arg6[%c0_12, %c0_13] : memref<32x16xf32, #tpu.memory_space<vmem>>, vector<32x16xf32>
    %cst_14 = arith.constant dense<0.000000e+00> : vector<2x16xf32>
    %16 = tpu.matmul %14, %15, %cst_14 {dimension_numbers = #tpu.dot_dimension_numbers<[1], [0], [0], [1], [0, 0, 1, 1], [], []>, precision = #tpu.contract_precision<fp32>} : vector<2x32xf32>, vector<32x16xf32>, vector<2x16xf32> -> vector<2x16xf32>
    %c0_15 = arith.constant 0 : index
    %c0_16 = arith.constant 0 : index
    %17 = vector.load %arg7[%c0_15, %c0_16] : memref<1x16xf32, #tpu.memory_space<vmem>>, vector<1x16xf32>
    %18 = vector.broadcast %17 : vector<1x16xf32> to vector<2x16xf32>
    %19 = arith.addf %16, %18 : vector<2x16xf32>
    %c0_17 = arith.constant 0 : index
    %c0_18 = arith.constant 0 : index
    %20 = vector.load %arg28[%c0_17, %c0_18] : memref<2x16xf32, #tpu.memory_space<vmem>>, vector<2x16xf32>
    tpu.vector_store %arg28[%c0_17, %c0_18], %19 {strides = array<i32>} : memref<2x16xf32, #tpu.memory_space<vmem>>, vector<2x16xf32>,
    %21 = vector.extract_strided_slice %19 {offsets = [0, 0], sizes = [2, 8], strides = [1, 1]} : vector<2x16xf32> to vector<2x8xf32>
    %c0_19 = arith.constant 0 : index
    %c0_20 = arith.constant 0 : index
    %22 = vector.load %arg8[%c0_19, %c0_20] : memref<8x32xf32, #tpu.memory_space<vmem>>, vector<8x32xf32>
    %cst_21 = arith.constant dense<0.000000e+00> : vector<2x32xf32>
    %23 = tpu.matmul %21, %22, %cst_21 {dimension_numbers = #tpu.dot_dimension_numbers<[1], [0], [0], [1], [0, 0, 1, 1], [], []>, precision = #tpu.contract_precision<fp32>} : vector<2x8xf32>, vector<8x32xf32>, vector<2x32xf32> -> vector<2x32xf32>
    %c0_22 = arith.constant 0 : index
    %c0_23 = arith.constant 0 : index
    %24 = vector.load %arg9[%c0_22, %c0_23] : memref<1x32xf32, #tpu.memory_space<vmem>>, vector<1x32xf32>
    %25 = vector.broadcast %24 : vector<1x32xf32> to vector<2x32xf32>
    %26 = arith.addf %23, %25 : vector<2x32xf32>
    %c0_24 = arith.constant 0 : index
    %c0_25 = arith.constant 0 : index
    %27 = vector.load %arg12[%c0_24, %c0_25] : memref<1x32xf32, #tpu.memory_space<vmem>>, vector<1x32xf32>
    %28 = vector.broadcast %27 : vector<1x32xf32> to vector<2x32xf32>
    %29 = arith.addf %26, %28 : vector<2x32xf32>
    %c0_26 = arith.constant 0 : index
    %c0_27 = arith.constant 0 : index
    %30 = vector.load %arg1[%c0_26, %c0_27] : memref<16x4xf32, #tpu.memory_space<vmem>>, vector<16x4xf32>
    %c0_28 = arith.constant 0 : index
    %c0_29 = arith.constant 0 : index
    %31 = vector.load %arg10[%c0_28, %c0_29] : memref<4x32xf32, #tpu.memory_space<vmem>>, vector<4x32xf32>
    %cst_30 = arith.constant dense<0.000000e+00> : vector<16x32xf32>
    %32 = tpu.matmul %30, %31, %cst_30 {dimension_numbers = #tpu.dot_dimension_numbers<[1], [0], [0], [1], [0, 0, 1, 1], [], []>, precision = #tpu.contract_precision<fp32>} : vector<16x4xf32>, vector<4x32xf32>, vector<16x32xf32> -> vector<16x32xf32>
    %c0_31 = arith.constant 0 : index
    %c0_32 = arith.constant 0 : index
    %33 = vector.load %arg11[%c0_31, %c0_32] : memref<1x32xf32, #tpu.memory_space<vmem>>, vector<1x32xf32>
    %34 = vector.broadcast %33 : vector<1x32xf32> to vector<16x32xf32>
    %35 = arith.addf %32, %34 : vector<16x32xf32>
    %c0_33 = arith.constant 0 : index
    %c0_34 = arith.constant 0 : index
    %36 = vector.load %arg13[%c0_33, %c0_34] : memref<16x32xf32, #tpu.memory_space<vmem>>, vector<16x32xf32>
    %37 = arith.addf %35, %36 : vector<16x32xf32>
    %38 = vector.extract_strided_slice %29 {offsets = [0, 0], sizes = [1, 32], strides = [1, 1]} : vector<2x32xf32> to vector<1x32xf32>
    %c0_35 = arith.constant 0 : index
    %c0_36 = arith.constant 0 : index
    %39 = vector.load %arg30[%c0_35, %c0_36] : memref<18x32xf32, #tpu.memory_space<vmem>>, vector<1x32xf32>
    tpu.vector_store %arg30[%c0_35, %c0_36], %38 {strides = array<i32>} : memref<18x32xf32, #tpu.memory_space<vmem>>, vector<1x32xf32>,
    %40 = vector.extract_strided_slice %37 {offsets = [0, 0], sizes = [8, 32], strides = [1, 1]} : vector<16x32xf32> to vector<8x32xf32>
    %c1 = arith.constant 1 : index
    %c0_37 = arith.constant 0 : index
    %41 = vector.load %arg30[%c1, %c0_37] : memref<18x32xf32, #tpu.memory_space<vmem>>, vector<8x32xf32>
    tpu.vector_store %arg30[%c1, %c0_37], %40 {strides = array<i32>} : memref<18x32xf32, #tpu.memory_space<vmem>>, vector<8x32xf32>,
    %42 = vector.extract_strided_slice %29 {offsets = [1, 0], sizes = [1, 32], strides = [1, 1]} : vector<2x32xf32> to vector<1x32xf32>
    %c9 = arith.constant 9 : index
    %c0_38 = arith.constant 0 : index
    %43 = vector.load %arg30[%c9, %c0_38] : memref<18x32xf32, #tpu.memory_space<vmem>>, vector<1x32xf32>
    tpu.vector_store %arg30[%c9, %c0_38], %42 {strides = array<i32>} : memref<18x32xf32, #tpu.memory_space<vmem>>, vector<1x32xf32>,
    %44 = vector.extract_strided_slice %37 {offsets = [8, 0], sizes = [8, 32], strides = [1, 1]} : vector<16x32xf32> to vector<8x32xf32>
    %c10 = arith.constant 10 : index
    %c0_39 = arith.constant 0 : index
    %45 = vector.load %arg30[%c10, %c0_39] : memref<18x32xf32, #tpu.memory_space<vmem>>, vector<8x32xf32>
    tpu.vector_store %arg30[%c10, %c0_39], %44 {strides = array<i32>} : memref<18x32xf32, #tpu.memory_space<vmem>>, vector<8x32xf32>,
    %c0_40 = arith.constant 0 : index
    %c0_41 = arith.constant 0 : index
    %46 = vector.load %arg30[%c0_40, %c0_41] : memref<18x32xf32, #tpu.memory_space<vmem>>, vector<18x32xf32>
    %47 = tpu.iota {dimensions = array<i32: 0>} : vector<9x9xi32>
    %48 = tpu.iota {dimensions = array<i32: 1>} : vector<9x9xi32>
    %49 = arith.cmpi sle, %48, %47 : vector<9x9xi32>
    %50 = arith.truncf %46 : vector<18x32xf32> to vector<18x32xbf16>
    %c0_42 = arith.constant 0 : index
    %c0_43 = arith.constant 0 : index
    %c0_44 = arith.constant 0 : index
    %51 = vector.load %arg14[%c0_42, %c0_43, %c0_44] : memref<2x32x96xbf16, #tpu.memory_space<vmem>>, vector<1x32x96xbf16>
    %52 = vector.shape_cast %51 : vector<1x32x96xbf16> to vector<32x96xbf16>
    %cst_45 = arith.constant dense<0.000000e+00> : vector<18x96xf32>
    %53 = tpu.matmul %50, %52, %cst_45 {dimension_numbers = #tpu.dot_dimension_numbers<[1], [0], [0], [1], [0, 0, 1, 1], [], []>} : vector<18x32xbf16>, vector<32x96xbf16>, vector<18x96xf32> -> vector<18x96xf32>
    %c0_46 = arith.constant 0 : index
    %c0_47 = arith.constant 0 : index
    %c0_48 = arith.constant 0 : index
    %54 = vector.load %arg15[%c0_46, %c0_47, %c0_48] : memref<2x1x96xf32, #tpu.memory_space<vmem>>, vector<1x1x96xf32>
    %55 = vector.shape_cast %54 : vector<1x1x96xf32> to vector<1x96xf32>
    %56 = vector.broadcast %55 : vector<1x96xf32> to vector<18x96xf32>
    %57 = arith.addf %53, %56 : vector<18x96xf32>
    %c0_49 = arith.constant 0 : index
    %c0_50 = arith.constant 0 : index
    %58 = vector.load %arg31[%c0_49, %c0_50] : memref<18x96xf32, #tpu.memory_space<vmem>>, vector<18x96xf32>
    tpu.vector_store %arg31[%c0_49, %c0_50], %57 {strides = array<i32>} : memref<18x96xf32, #tpu.memory_space<vmem>>, vector<18x96xf32>,
    %c0_51 = arith.constant 0 : index
    %c0_52 = arith.constant 0 : index
    %c0_53 = arith.constant 0 : index
    %59 = vector.load %arg16[%c0_51, %c0_52, %c0_53] : memref<2x32x32xf32, #tpu.memory_space<vmem>>, vector<1x32x32xf32>
    %60 = vector.shape_cast %59 : vector<1x32x32xf32> to vector<32x32xf32>
    %c0_54 = arith.constant 0 : index
    %c0_55 = arith.constant 0 : index
    %61 = vector.load %arg31[%c0_54, %c0_55] : memref<18x96xf32, #tpu.memory_space<vmem>>, vector<9x96xf32>
    %cst_56 = arith.constant 0.000000e+00 : f32
    %62 = vector.broadcast %cst_56 : f32 to vector<9x32xf32>
    %63 = vector.extract_strided_slice %61 {offsets = [0, 0], sizes = [9, 8], strides = [1, 1]} : vector<9x96xf32> to vector<9x8xf32>
    %64 = arith.truncf %63 : vector<9x8xf32> to vector<9x8xbf16>
    %65 = vector.extract_strided_slice %61 {offsets = [0, 32], sizes = [9, 8], strides = [1, 1]} : vector<9x96xf32> to vector<9x8xf32>
    %66 = arith.truncf %65 : vector<9x8xf32> to vector<9x8xbf16>
    %67 = vector.extract_strided_slice %61 {offsets = [0, 64], sizes = [9, 8], strides = [1, 1]} : vector<9x96xf32> to vector<9x8xf32>
    %68 = arith.truncf %67 : vector<9x8xf32> to vector<9x8xbf16>
    %cst_57 = arith.constant dense<0.000000e+00> : vector<9x9xf32>
    %69 = tpu.matmul %64, %66, %cst_57 {dimension_numbers = #tpu.dot_dimension_numbers<[1], [1], [0], [0], [0, 0, 1, 0], [], []>} : vector<9x8xbf16>, vector<9x8xbf16>, vector<9x9xf32> -> vector<9x9xf32>
    %cst_58 = arith.constant 0.353553385 : f32
    %70 = vector.broadcast %cst_58 : f32 to vector<9x9xf32>
    %71 = arith.mulf %69, %70 : vector<9x9xf32>
    %cst_59 = arith.constant -1.000000e+30 : f32
    %72 = vector.broadcast %cst_59 : f32 to vector<9x9xf32>
    %73 = arith.select %49, %71, %72 : vector<9x9xi1>, vector<9x9xf32>
    %cst_60 = arith.constant dense<0xFF800000> : vector<9xf32>
    %74 = vector.multi_reduction <maximumf>, %73, %cst_60 [1] : vector<9x9xf32> to vector<9xf32>
    %75 = vector.shape_cast %74 : vector<9xf32> to vector<9x1xf32>
    %76 = vector.broadcast %75 : vector<9x1xf32> to vector<9x9xf32>
    %77 = arith.subf %73, %76 : vector<9x9xf32>
    %78 = math.exp %77 : vector<9x9xf32>
    %cst_61 = arith.constant dense<0.000000e+00> : vector<9xf32>
    %79 = vector.multi_reduction <add>, %78, %cst_61 [1] : vector<9x9xf32> to vector<9xf32>
    %80 = vector.shape_cast %79 : vector<9xf32> to vector<9x1xf32>
    %81 = arith.truncf %78 : vector<9x9xf32> to vector<9x9xbf16>
    %cst_62 = arith.constant dense<0.000000e+00> : vector<9x8xf32>
    %82 = tpu.matmul %81, %68, %cst_62 {dimension_numbers = #tpu.dot_dimension_numbers<[1], [0], [0], [1], [0, 0, 1, 1], [], []>} : vector<9x9xbf16>, vector<9x8xbf16>, vector<9x8xf32> -> vector<9x8xf32>
    %83 = tpu.reciprocal %80 {approx = true} : vector<9x1xf32> -> vector<9x1xf32>
    %84 = vector.broadcast %83 : vector<9x1xf32> to vector<9x8xf32>
    %85 = arith.mulf %82, %84 : vector<9x8xf32>
    %86 = arith.truncf %85 : vector<9x8xf32> to vector<9x8xbf16>
    %87 = vector.extract_strided_slice %60 {offsets = [0, 0], sizes = [8, 32], strides = [1, 1]} : vector<32x32xf32> to vector<8x32xf32>
    %88 = arith.truncf %87 : vector<8x32xf32> to vector<8x32xbf16>
    %cst_63 = arith.constant dense<0.000000e+00> : vector<9x32xf32>
    %89 = tpu.matmul %86, %88, %cst_63 {dimension_numbers = #tpu.dot_dimension_numbers<[1], [0], [0], [1], [0, 0, 1, 1], [], []>} : vector<9x8xbf16>, vector<8x32xbf16>, vector<9x32xf32> -> vector<9x32xf32>
    %90 = arith.addf %62, %89 : vector<9x32xf32>
    %91 = vector.extract_strided_slice %61 {offsets = [0, 8], sizes = [9, 8], strides = [1, 1]} : vector<9x96xf32> to vector<9x8xf32>
    %92 = arith.truncf %91 : vector<9x8xf32> to vector<9x8xbf16>
    %93 = vector.extract_strided_slice %61 {offsets = [0, 40], sizes = [9, 8], strides = [1, 1]} : vector<9x96xf32> to vector<9x8xf32>
    %94 = arith.truncf %93 : vector<9x8xf32> to vector<9x8xbf16>
    %95 = vector.extract_strided_slice %61 {offsets = [0, 72], sizes = [9, 8], strides = [1, 1]} : vector<9x96xf32> to vector<9x8xf32>
    %96 = arith.truncf %95 : vector<9x8xf32> to vector<9x8xbf16>
    %cst_64 = arith.constant dense<0.000000e+00> : vector<9x9xf32>
    %97 = tpu.matmul %92, %94, %cst_64 {dimension_numbers = #tpu.dot_dimension_numbers<[1], [1], [0], [0], [0, 0, 1, 0], [], []>} : vector<9x8xbf16>, vector<9x8xbf16>, vector<9x9xf32> -> vector<9x9xf32>
    %cst_65 = arith.constant 0.353553385 : f32
    %98 = vector.broadcast %cst_65 : f32 to vector<9x9xf32>
    %99 = arith.mulf %97, %98 : vector<9x9xf32>
    %cst_66 = arith.constant -1.000000e+30 : f32
    %100 = vector.broadcast %cst_66 : f32 to vector<9x9xf32>
    %101 = arith.select %49, %99, %100 : vector<9x9xi1>, vector<9x9xf32>
    %cst_67 = arith.constant dense<0xFF800000> : vector<9xf32>
    %102 = vector.multi_reduction <maximumf>, %101, %cst_67 [1] : vector<9x9xf32> to vector<9xf32>
    %103 = vector.shape_cast %102 : vector<9xf32> to vector<9x1xf32>
    %104 = vector.broadcast %103 : vector<9x1xf32> to vector<9x9xf32>
    %105 = arith.subf %101, %104 : vector<9x9xf32>
    %106 = math.exp %105 : vector<9x9xf32>
    %cst_68 = arith.constant dense<0.000000e+00> : vector<9xf32>
    %107 = vector.multi_reduction <add>, %106, %cst_68 [1] : vector<9x9xf32> to vector<9xf32>
    %108 = vector.shape_cast %107 : vector<9xf32> to vector<9x1xf32>
    %109 = arith.truncf %106 : vector<9x9xf32> to vector<9x9xbf16>
    %cst_69 = arith.constant dense<0.000000e+00> : vector<9x8xf32>
    %110 = tpu.matmul %109, %96, %cst_69 {dimension_numbers = #tpu.dot_dimension_numbers<[1], [0], [0], [1], [0, 0, 1, 1], [], []>} : vector<9x9xbf16>, vector<9x8xbf16>, vector<9x8xf32> -> vector<9x8xf32>
    %111 = tpu.reciprocal %108 {approx = true} : vector<9x1xf32> -> vector<9x1xf32>
    %112 = vector.broadcast %111 : vector<9x1xf32> to vector<9x8xf32>
    %113 = arith.mulf %110, %112 : vector<9x8xf32>
    %114 = arith.truncf %113 : vector<9x8xf32> to vector<9x8xbf16>
    %115 = vector.extract_strided_slice %60 {offsets = [8, 0], sizes = [8, 32], strides = [1, 1]} : vector<32x32xf32> to vector<8x32xf32>
    %116 = arith.truncf %115 : vector<8x32xf32> to vector<8x32xbf16>
    %cst_70 = arith.constant dense<0.000000e+00> : vector<9x32xf32>
    %117 = tpu.matmul %114, %116, %cst_70 {dimension_numbers = #tpu.dot_dimension_numbers<[1], [0], [0], [1], [0, 0, 1, 1], [], []>} : vector<9x8xbf16>, vector<8x32xbf16>, vector<9x32xf32> -> vector<9x32xf32>
    %118 = arith.addf %90, %117 : vector<9x32xf32>
    %119 = vector.extract_strided_slice %61 {offsets = [0, 16], sizes = [9, 8], strides = [1, 1]} : vector<9x96xf32> to vector<9x8xf32>
    %120 = arith.truncf %119 : vector<9x8xf32> to vector<9x8xbf16>
    %121 = vector.extract_strided_slice %61 {offsets = [0, 48], sizes = [9, 8], strides = [1, 1]} : vector<9x96xf32> to vector<9x8xf32>
    %122 = arith.truncf %121 : vector<9x8xf32> to vector<9x8xbf16>
    %123 = vector.extract_strided_slice %61 {offsets = [0, 80], sizes = [9, 8], strides = [1, 1]} : vector<9x96xf32> to vector<9x8xf32>
    %124 = arith.truncf %123 : vector<9x8xf32> to vector<9x8xbf16>
    %cst_71 = arith.constant dense<0.000000e+00> : vector<9x9xf32>
    %125 = tpu.matmul %120, %122, %cst_71 {dimension_numbers = #tpu.dot_dimension_numbers<[1], [1], [0], [0], [0, 0, 1, 0], [], []>} : vector<9x8xbf16>, vector<9x8xbf16>, vector<9x9xf32> -> vector<9x9xf32>
    %cst_72 = arith.constant 0.353553385 : f32
    %126 = vector.broadcast %cst_72 : f32 to vector<9x9xf32>
    %127 = arith.mulf %125, %126 : vector<9x9xf32>
    %cst_73 = arith.constant -1.000000e+30 : f32
    %128 = vector.broadcast %cst_73 : f32 to vector<9x9xf32>
    %129 = arith.select %49, %127, %128 : vector<9x9xi1>, vector<9x9xf32>
    %cst_74 = arith.constant dense<0xFF800000> : vector<9xf32>
    %130 = vector.multi_reduction <maximumf>, %129, %cst_74 [1] : vector<9x9xf32> to vector<9xf32>
    %131 = vector.shape_cast %130 : vector<9xf32> to vector<9x1xf32>
    %132 = vector.broadcast %131 : vector<9x1xf32> to vector<9x9xf32>
    %133 = arith.subf %129, %132 : vector<9x9xf32>
    %134 = math.exp %133 : vector<9x9xf32>
    %cst_75 = arith.constant dense<0.000000e+00> : vector<9xf32>
    %135 = vector.multi_reduction <add>, %134, %cst_75 [1] : vector<9x9xf32> to vector<9xf32>
    %136 = vector.shape_cast %135 : vector<9xf32> to vector<9x1xf32>
    %137 = arith.truncf %134 : vector<9x9xf32> to vector<9x9xbf16>
    %cst_76 = arith.constant dense<0.000000e+00> : vector<9x8xf32>
    %138 = tpu.matmul %137, %124, %cst_76 {dimension_numbers = #tpu.dot_dimension_numbers<[1], [0], [0], [1], [0, 0, 1, 1], [], []>} : vector<9x9xbf16>, vector<9x8xbf16>, vector<9x8xf32> -> vector<9x8xf32>
    %139 = tpu.reciprocal %136 {approx = true} : vector<9x1xf32> -> vector<9x1xf32>
    %140 = vector.broadcast %139 : vector<9x1xf32> to vector<9x8xf32>
    %141 = arith.mulf %138, %140 : vector<9x8xf32>
    %142 = arith.truncf %141 : vector<9x8xf32> to vector<9x8xbf16>
    %143 = vector.extract_strided_slice %60 {offsets = [16, 0], sizes = [8, 32], strides = [1, 1]} : vector<32x32xf32> to vector<8x32xf32>
    %144 = arith.truncf %143 : vector<8x32xf32> to vector<8x32xbf16>
    %cst_77 = arith.constant dense<0.000000e+00> : vector<9x32xf32>
    %145 = tpu.matmul %142, %144, %cst_77 {dimension_numbers = #tpu.dot_dimension_numbers<[1], [0], [0], [1], [0, 0, 1, 1], [], []>} : vector<9x8xbf16>, vector<8x32xbf16>, vector<9x32xf32> -> vector<9x32xf32>
    %146 = arith.addf %118, %145 : vector<9x32xf32>
    %147 = vector.extract_strided_slice %61 {offsets = [0, 24], sizes = [9, 8], strides = [1, 1]} : vector<9x96xf32> to vector<9x8xf32>
    %148 = arith.truncf %147 : vector<9x8xf32> to vector<9x8xbf16>
    %149 = vector.extract_strided_slice %61 {offsets = [0, 56], sizes = [9, 8], strides = [1, 1]} : vector<9x96xf32> to vector<9x8xf32>
    %150 = arith.truncf %149 : vector<9x8xf32> to vector<9x8xbf16>
    %151 = vector.extract_strided_slice %61 {offsets = [0, 88], sizes = [9, 8], strides = [1, 1]} : vector<9x96xf32> to vector<9x8xf32>
    %152 = arith.truncf %151 : vector<9x8xf32> to vector<9x8xbf16>
    %cst_78 = arith.constant dense<0.000000e+00> : vector<9x9xf32>
    %153 = tpu.matmul %148, %150, %cst_78 {dimension_numbers = #tpu.dot_dimension_numbers<[1], [1], [0], [0], [0, 0, 1, 0], [], []>} : vector<9x8xbf16>, vector<9x8xbf16>, vector<9x9xf32> -> vector<9x9xf32>
    %cst_79 = arith.constant 0.353553385 : f32
    %154 = vector.broadcast %cst_79 : f32 to vector<9x9xf32>
    %155 = arith.mulf %153, %154 : vector<9x9xf32>
    %cst_80 = arith.constant -1.000000e+30 : f32
    %156 = vector.broadcast %cst_80 : f32 to vector<9x9xf32>
    %157 = arith.select %49, %155, %156 : vector<9x9xi1>, vector<9x9xf32>
    %cst_81 = arith.constant dense<0xFF800000> : vector<9xf32>
    %158 = vector.multi_reduction <maximumf>, %157, %cst_81 [1] : vector<9x9xf32> to vector<9xf32>
    %159 = vector.shape_cast %158 : vector<9xf32> to vector<9x1xf32>
    %160 = vector.broadcast %159 : vector<9x1xf32> to vector<9x9xf32>
    %161 = arith.subf %157, %160 : vector<9x9xf32>
    %162 = math.exp %161 : vector<9x9xf32>
    %cst_82 = arith.constant dense<0.000000e+00> : vector<9xf32>
    %163 = vector.multi_reduction <add>, %162, %cst_82 [1] : vector<9x9xf32> to vector<9xf32>
    %164 = vector.shape_cast %163 : vector<9xf32> to vector<9x1xf32>
    %165 = arith.truncf %162 : vector<9x9xf32> to vector<9x9xbf16>
    %cst_83 = arith.constant dense<0.000000e+00> : vector<9x8xf32>
    %166 = tpu.matmul %165, %152, %cst_83 {dimension_numbers = #tpu.dot_dimension_numbers<[1], [0], [0], [1], [0, 0, 1, 1], [], []>} : vector<9x9xbf16>, vector<9x8xbf16>, vector<9x8xf32> -> vector<9x8xf32>
    %167 = tpu.reciprocal %164 {approx = true} : vector<9x1xf32> -> vector<9x1xf32>
    %168 = vector.broadcast %167 : vector<9x1xf32> to vector<9x8xf32>
    %169 = arith.mulf %166, %168 : vector<9x8xf32>
    %170 = arith.truncf %169 : vector<9x8xf32> to vector<9x8xbf16>
    %171 = vector.extract_strided_slice %60 {offsets = [24, 0], sizes = [8, 32], strides = [1, 1]} : vector<32x32xf32> to vector<8x32xf32>
    %172 = arith.truncf %171 : vector<8x32xf32> to vector<8x32xbf16>
    %cst_84 = arith.constant dense<0.000000e+00> : vector<9x32xf32>
    %173 = tpu.matmul %170, %172, %cst_84 {dimension_numbers = #tpu.dot_dimension_numbers<[1], [0], [0], [1], [0, 0, 1, 1], [], []>} : vector<9x8xbf16>, vector<8x32xbf16>, vector<9x32xf32> -> vector<9x32xf32>
    %174 = arith.addf %146, %173 : vector<9x32xf32>
    %c0_85 = arith.constant 0 : index
    %c0_86 = arith.constant 0 : index
    %175 = vector.load %arg32[%c0_85, %c0_86] : memref<18x32xf32, #tpu.memory_space<vmem>>, vector<9x32xf32>
    tpu.vector_store %arg32[%c0_85, %c0_86], %174 {strides = array<i32>} : memref<18x32xf32, #tpu.memory_space<vmem>>, vector<9x32xf32>,
    %c9_87 = arith.constant 9 : index
    %c0_88 = arith.constant 0 : index
    %176 = vector.load %arg31[%c9_87, %c0_88] : memref<18x96xf32, #tpu.memory_space<vmem>>, vector<9x96xf32>
    %cst_89 = arith.constant 0.000000e+00 : f32
    %177 = vector.broadcast %cst_89 : f32 to vector<9x32xf32>
    %178 = vector.extract_strided_slice %176 {offsets = [0, 0], sizes = [9, 8], strides = [1, 1]} : vector<9x96xf32> to vector<9x8xf32>
    %179 = arith.truncf %178 : vector<9x8xf32> to vector<9x8xbf16>
    %180 = vector.extract_strided_slice %176 {offsets = [0, 32], sizes = [9, 8], strides = [1, 1]} : vector<9x96xf32> to vector<9x8xf32>
    %181 = arith.truncf %180 : vector<9x8xf32> to vector<9x8xbf16>
    %182 = vector.extract_strided_slice %176 {offsets = [0, 64], sizes = [9, 8], strides = [1, 1]} : vector<9x96xf32> to vector<9x8xf32>
    %183 = arith.truncf %182 : vector<9x8xf32> to vector<9x8xbf16>
    %cst_90 = arith.constant dense<0.000000e+00> : vector<9x9xf32>
    %184 = tpu.matmul %179, %181, %cst_90 {dimension_numbers = #tpu.dot_dimension_numbers<[1], [1], [0], [0], [0, 0, 1, 0], [], []>} : vector<9x8xbf16>, vector<9x8xbf16>, vector<9x9xf32> -> vector<9x9xf32>
    %cst_91 = arith.constant 0.353553385 : f32
    %185 = vector.broadcast %cst_91 : f32 to vector<9x9xf32>
    %186 = arith.mulf %184, %185 : vector<9x9xf32>
    %cst_92 = arith.constant -1.000000e+30 : f32
    %187 = vector.broadcast %cst_92 : f32 to vector<9x9xf32>
    %188 = arith.select %49, %186, %187 : vector<9x9xi1>, vector<9x9xf32>
    %cst_93 = arith.constant dense<0xFF800000> : vector<9xf32>
    %189 = vector.multi_reduction <maximumf>, %188, %cst_93 [1] : vector<9x9xf32> to vector<9xf32>
    %190 = vector.shape_cast %189 : vector<9xf32> to vector<9x1xf32>
    %191 = vector.broadcast %190 : vector<9x1xf32> to vector<9x9xf32>
    %192 = arith.subf %188, %191 : vector<9x9xf32>
    %193 = math.exp %192 : vector<9x9xf32>
    %cst_94 = arith.constant dense<0.000000e+00> : vector<9xf32>
    %194 = vector.multi_reduction <add>, %193, %cst_94 [1] : vector<9x9xf32> to vector<9xf32>
    %195 = vector.shape_cast %194 : vector<9xf32> to vector<9x1xf32>
    %196 = arith.truncf %193 : vector<9x9xf32> to vector<9x9xbf16>
    %cst_95 = arith.constant dense<0.000000e+00> : vector<9x8xf32>
    %197 = tpu.matmul %196, %183, %cst_95 {dimension_numbers = #tpu.dot_dimension_numbers<[1], [0], [0], [1], [0, 0, 1, 1], [], []>} : vector<9x9xbf16>, vector<9x8xbf16>, vector<9x8xf32> -> vector<9x8xf32>
    %198 = tpu.reciprocal %195 {approx = true} : vector<9x1xf32> -> vector<9x1xf32>
    %199 = vector.broadcast %198 : vector<9x1xf32> to vector<9x8xf32>
    %200 = arith.mulf %197, %199 : vector<9x8xf32>
    %201 = arith.truncf %200 : vector<9x8xf32> to vector<9x8xbf16>
    %202 = vector.extract_strided_slice %60 {offsets = [0, 0], sizes = [8, 32], strides = [1, 1]} : vector<32x32xf32> to vector<8x32xf32>
    %203 = arith.truncf %202 : vector<8x32xf32> to vector<8x32xbf16>
    %cst_96 = arith.constant dense<0.000000e+00> : vector<9x32xf32>
    %204 = tpu.matmul %201, %203, %cst_96 {dimension_numbers = #tpu.dot_dimension_numbers<[1], [0], [0], [1], [0, 0, 1, 1], [], []>} : vector<9x8xbf16>, vector<8x32xbf16>, vector<9x32xf32> -> vector<9x32xf32>
    %205 = arith.addf %177, %204 : vector<9x32xf32>
    %206 = vector.extract_strided_slice %176 {offsets = [0, 8], sizes = [9, 8], strides = [1, 1]} : vector<9x96xf32> to vector<9x8xf32>
    %207 = arith.truncf %206 : vector<9x8xf32> to vector<9x8xbf16>
    %208 = vector.extract_strided_slice %176 {offsets = [0, 40], sizes = [9, 8], strides = [1, 1]} : vector<9x96xf32> to vector<9x8xf32>
    %209 = arith.truncf %208 : vector<9x8xf32> to vector<9x8xbf16>
    %210 = vector.extract_strided_slice %176 {offsets = [0, 72], sizes = [9, 8], strides = [1, 1]} : vector<9x96xf32> to vector<9x8xf32>
    %211 = arith.truncf %210 : vector<9x8xf32> to vector<9x8xbf16>
    %cst_97 = arith.constant dense<0.000000e+00> : vector<9x9xf32>
    %212 = tpu.matmul %207, %209, %cst_97 {dimension_numbers = #tpu.dot_dimension_numbers<[1], [1], [0], [0], [0, 0, 1, 0], [], []>} : vector<9x8xbf16>, vector<9x8xbf16>, vector<9x9xf32> -> vector<9x9xf32>
    %cst_98 = arith.constant 0.353553385 : f32
    %213 = vector.broadcast %cst_98 : f32 to vector<9x9xf32>
    %214 = arith.mulf %212, %213 : vector<9x9xf32>
    %cst_99 = arith.constant -1.000000e+30 : f32
    %215 = vector.broadcast %cst_99 : f32 to vector<9x9xf32>
    %216 = arith.select %49, %214, %215 : vector<9x9xi1>, vector<9x9xf32>
    %cst_100 = arith.constant dense<0xFF800000> : vector<9xf32>
    %217 = vector.multi_reduction <maximumf>, %216, %cst_100 [1] : vector<9x9xf32> to vector<9xf32>
    %218 = vector.shape_cast %217 : vector<9xf32> to vector<9x1xf32>
    %219 = vector.broadcast %218 : vector<9x1xf32> to vector<9x9xf32>
    %220 = arith.subf %216, %219 : vector<9x9xf32>
    %221 = math.exp %220 : vector<9x9xf32>
    %cst_101 = arith.constant dense<0.000000e+00> : vector<9xf32>
    %222 = vector.multi_reduction <add>, %221, %cst_101 [1] : vector<9x9xf32> to vector<9xf32>
    %223 = vector.shape_cast %222 : vector<9xf32> to vector<9x1xf32>
    %224 = arith.truncf %221 : vector<9x9xf32> to vector<9x9xbf16>
    %cst_102 = arith.constant dense<0.000000e+00> : vector<9x8xf32>
    %225 = tpu.matmul %224, %211, %cst_102 {dimension_numbers = #tpu.dot_dimension_numbers<[1], [0], [0], [1], [0, 0, 1, 1], [], []>} : vector<9x9xbf16>, vector<9x8xbf16>, vector<9x8xf32> -> vector<9x8xf32>
    %226 = tpu.reciprocal %223 {approx = true} : vector<9x1xf32> -> vector<9x1xf32>
    %227 = vector.broadcast %226 : vector<9x1xf32> to vector<9x8xf32>
    %228 = arith.mulf %225, %227 : vector<9x8xf32>
    %229 = arith.truncf %228 : vector<9x8xf32> to vector<9x8xbf16>
    %230 = vector.extract_strided_slice %60 {offsets = [8, 0], sizes = [8, 32], strides = [1, 1]} : vector<32x32xf32> to vector<8x32xf32>
    %231 = arith.truncf %230 : vector<8x32xf32> to vector<8x32xbf16>
    %cst_103 = arith.constant dense<0.000000e+00> : vector<9x32xf32>
    %232 = tpu.matmul %229, %231, %cst_103 {dimension_numbers = #tpu.dot_dimension_numbers<[1], [0], [0], [1], [0, 0, 1, 1], [], []>} : vector<9x8xbf16>, vector<8x32xbf16>, vector<9x32xf32> -> vector<9x32xf32>
    %233 = arith.addf %205, %232 : vector<9x32xf32>
    %234 = vector.extract_strided_slice %176 {offsets = [0, 16], sizes = [9, 8], strides = [1, 1]} : vector<9x96xf32> to vector<9x8xf32>
    %235 = arith.truncf %234 : vector<9x8xf32> to vector<9x8xbf16>
    %236 = vector.extract_strided_slice %176 {offsets = [0, 48], sizes = [9, 8], strides = [1, 1]} : vector<9x96xf32> to vector<9x8xf32>
    %237 = arith.truncf %236 : vector<9x8xf32> to vector<9x8xbf16>
    %238 = vector.extract_strided_slice %176 {offsets = [0, 80], sizes = [9, 8], strides = [1, 1]} : vector<9x96xf32> to vector<9x8xf32>
    %239 = arith.truncf %238 : vector<9x8xf32> to vector<9x8xbf16>
    %cst_104 = arith.constant dense<0.000000e+00> : vector<9x9xf32>
    %240 = tpu.matmul %235, %237, %cst_104 {dimension_numbers = #tpu.dot_dimension_numbers<[1], [1], [0], [0], [0, 0, 1, 0], [], []>} : vector<9x8xbf16>, vector<9x8xbf16>, vector<9x9xf32> -> vector<9x9xf32>
    %cst_105 = arith.constant 0.353553385 : f32
    %241 = vector.broadcast %cst_105 : f32 to vector<9x9xf32>
    %242 = arith.mulf %240, %241 : vector<9x9xf32>
    %cst_106 = arith.constant -1.000000e+30 : f32
    %243 = vector.broadcast %cst_106 : f32 to vector<9x9xf32>
    %244 = arith.select %49, %242, %243 : vector<9x9xi1>, vector<9x9xf32>
    %cst_107 = arith.constant dense<0xFF800000> : vector<9xf32>
    %245 = vector.multi_reduction <maximumf>, %244, %cst_107 [1] : vector<9x9xf32> to vector<9xf32>
    %246 = vector.shape_cast %245 : vector<9xf32> to vector<9x1xf32>
    %247 = vector.broadcast %246 : vector<9x1xf32> to vector<9x9xf32>
    %248 = arith.subf %244, %247 : vector<9x9xf32>
    %249 = math.exp %248 : vector<9x9xf32>
    %cst_108 = arith.constant dense<0.000000e+00> : vector<9xf32>
    %250 = vector.multi_reduction <add>, %249, %cst_108 [1] : vector<9x9xf32> to vector<9xf32>
    %251 = vector.shape_cast %250 : vector<9xf32> to vector<9x1xf32>
    %252 = arith.truncf %249 : vector<9x9xf32> to vector<9x9xbf16>
    %cst_109 = arith.constant dense<0.000000e+00> : vector<9x8xf32>
    %253 = tpu.matmul %252, %239, %cst_109 {dimension_numbers = #tpu.dot_dimension_numbers<[1], [0], [0], [1], [0, 0, 1, 1], [], []>} : vector<9x9xbf16>, vector<9x8xbf16>, vector<9x8xf32> -> vector<9x8xf32>
    %254 = tpu.reciprocal %251 {approx = true} : vector<9x1xf32> -> vector<9x1xf32>
    %255 = vector.broadcast %254 : vector<9x1xf32> to vector<9x8xf32>
    %256 = arith.mulf %253, %255 : vector<9x8xf32>
    %257 = arith.truncf %256 : vector<9x8xf32> to vector<9x8xbf16>
    %258 = vector.extract_strided_slice %60 {offsets = [16, 0], sizes = [8, 32], strides = [1, 1]} : vector<32x32xf32> to vector<8x32xf32>
    %259 = arith.truncf %258 : vector<8x32xf32> to vector<8x32xbf16>
    %cst_110 = arith.constant dense<0.000000e+00> : vector<9x32xf32>
    %260 = tpu.matmul %257, %259, %cst_110 {dimension_numbers = #tpu.dot_dimension_numbers<[1], [0], [0], [1], [0, 0, 1, 1], [], []>} : vector<9x8xbf16>, vector<8x32xbf16>, vector<9x32xf32> -> vector<9x32xf32>
    %261 = arith.addf %233, %260 : vector<9x32xf32>
    %262 = vector.extract_strided_slice %176 {offsets = [0, 24], sizes = [9, 8], strides = [1, 1]} : vector<9x96xf32> to vector<9x8xf32>
    %263 = arith.truncf %262 : vector<9x8xf32> to vector<9x8xbf16>
    %264 = vector.extract_strided_slice %176 {offsets = [0, 56], sizes = [9, 8], strides = [1, 1]} : vector<9x96xf32> to vector<9x8xf32>
    %265 = arith.truncf %264 : vector<9x8xf32> to vector<9x8xbf16>
    %266 = vector.extract_strided_slice %176 {offsets = [0, 88], sizes = [9, 8], strides = [1, 1]} : vector<9x96xf32> to vector<9x8xf32>
    %267 = arith.truncf %266 : vector<9x8xf32> to vector<9x8xbf16>
    %cst_111 = arith.constant dense<0.000000e+00> : vector<9x9xf32>
    %268 = tpu.matmul %263, %265, %cst_111 {dimension_numbers = #tpu.dot_dimension_numbers<[1], [1], [0], [0], [0, 0, 1, 0], [], []>} : vector<9x8xbf16>, vector<9x8xbf16>, vector<9x9xf32> -> vector<9x9xf32>
    %cst_112 = arith.constant 0.353553385 : f32
    %269 = vector.broadcast %cst_112 : f32 to vector<9x9xf32>
    %270 = arith.mulf %268, %269 : vector<9x9xf32>
    %cst_113 = arith.constant -1.000000e+30 : f32
    %271 = vector.broadcast %cst_113 : f32 to vector<9x9xf32>
    %272 = arith.select %49, %270, %271 : vector<9x9xi1>, vector<9x9xf32>
    %cst_114 = arith.constant dense<0xFF800000> : vector<9xf32>
    %273 = vector.multi_reduction <maximumf>, %272, %cst_114 [1] : vector<9x9xf32> to vector<9xf32>
    %274 = vector.shape_cast %273 : vector<9xf32> to vector<9x1xf32>
    %275 = vector.broadcast %274 : vector<9x1xf32> to vector<9x9xf32>
    %276 = arith.subf %272, %275 : vector<9x9xf32>
    %277 = math.exp %276 : vector<9x9xf32>
    %cst_115 = arith.constant dense<0.000000e+00> : vector<9xf32>
    %278 = vector.multi_reduction <add>, %277, %cst_115 [1] : vector<9x9xf32> to vector<9xf32>
    %279 = vector.shape_cast %278 : vector<9xf32> to vector<9x1xf32>
    %280 = arith.truncf %277 : vector<9x9xf32> to vector<9x9xbf16>
    %cst_116 = arith.constant dense<0.000000e+00> : vector<9x8xf32>
    %281 = tpu.matmul %280, %267, %cst_116 {dimension_numbers = #tpu.dot_dimension_numbers<[1], [0], [0], [1], [0, 0, 1, 1], [], []>} : vector<9x9xbf16>, vector<9x8xbf16>, vector<9x8xf32> -> vector<9x8xf32>
    %282 = tpu.reciprocal %279 {approx = true} : vector<9x1xf32> -> vector<9x1xf32>
    %283 = vector.broadcast %282 : vector<9x1xf32> to vector<9x8xf32>
    %284 = arith.mulf %281, %283 : vector<9x8xf32>
    %285 = arith.truncf %284 : vector<9x8xf32> to vector<9x8xbf16>
    %286 = vector.extract_strided_slice %60 {offsets = [24, 0], sizes = [8, 32], strides = [1, 1]} : vector<32x32xf32> to vector<8x32xf32>
    %287 = arith.truncf %286 : vector<8x32xf32> to vector<8x32xbf16>
    %cst_117 = arith.constant dense<0.000000e+00> : vector<9x32xf32>
    %288 = tpu.matmul %285, %287, %cst_117 {dimension_numbers = #tpu.dot_dimension_numbers<[1], [0], [0], [1], [0, 0, 1, 1], [], []>} : vector<9x8xbf16>, vector<8x32xbf16>, vector<9x32xf32> -> vector<9x32xf32>
    %289 = arith.addf %261, %288 : vector<9x32xf32>
    %c9_118 = arith.constant 9 : index
    %c0_119 = arith.constant 0 : index
    %290 = vector.load %arg32[%c9_118, %c0_119] : memref<18x32xf32, #tpu.memory_space<vmem>>, vector<9x32xf32>
    tpu.vector_store %arg32[%c9_118, %c0_119], %289 {strides = array<i32>} : memref<18x32xf32, #tpu.memory_space<vmem>>, vector<9x32xf32>,
    %c0_120 = arith.constant 0 : index
    %c0_121 = arith.constant 0 : index
    %291 = vector.load %arg32[%c0_120, %c0_121] : memref<18x32xf32, #tpu.memory_space<vmem>>, vector<18x32xf32>
    %c0_122 = arith.constant 0 : index
    %c0_123 = arith.constant 0 : index
    %c0_124 = arith.constant 0 : index
    %292 = vector.load %arg17[%c0_122, %c0_123, %c0_124] : memref<2x1x32xf32, #tpu.memory_space<vmem>>, vector<1x1x32xf32>
    %293 = vector.shape_cast %292 : vector<1x1x32xf32> to vector<1x32xf32>
    %294 = vector.broadcast %293 : vector<1x32xf32> to vector<18x32xf32>
    %295 = arith.addf %291, %294 : vector<18x32xf32>
    %296 = arith.addf %46, %295 : vector<18x32xf32>
    %c0_125 = arith.constant 0 : index
    %c0_126 = arith.constant 0 : index
    %c0_127 = arith.constant 0 : index
    %297 = vector.load %arg18[%c0_125, %c0_126, %c0_127] : memref<2x1x32xf32, #tpu.memory_space<vmem>>, vector<1x1x32xf32>
    %298 = vector.shape_cast %297 : vector<1x1x32xf32> to vector<1x32xf32>
    %c0_128 = arith.constant 0 : index
    %c0_129 = arith.constant 0 : index
    %c0_130 = arith.constant 0 : index
    %299 = vector.load %arg19[%c0_128, %c0_129, %c0_130] : memref<2x1x32xf32, #tpu.memory_space<vmem>>, vector<1x1x32xf32>
    %300 = vector.shape_cast %299 : vector<1x1x32xf32> to vector<1x32xf32>
    %cst_131 = arith.constant dense<0.000000e+00> : vector<18xf32>
    %301 = vector.multi_reduction <add>, %296, %cst_131 [1] : vector<18x32xf32> to vector<18xf32>
    %302 = vector.shape_cast %301 : vector<18xf32> to vector<18x1xf32>
    %cst_132 = arith.constant 3.200000e+01 : f32
    %303 = vector.broadcast %cst_132 : f32 to vector<18x1xf32>
    %304 = arith.divf %302, %303 : vector<18x1xf32>
    %305 = vector.broadcast %304 : vector<18x1xf32> to vector<18x32xf32>
    %306 = arith.subf %296, %305 : vector<18x32xf32>
    %307 = arith.mulf %306, %306 : vector<18x32xf32>
    %cst_133 = arith.constant dense<0.000000e+00> : vector<18xf32>
    %308 = vector.multi_reduction <add>, %307, %cst_133 [1] : vector<18x32xf32> to vector<18xf32>
    %309 = vector.shape_cast %308 : vector<18xf32> to vector<18x1xf32>
    %cst_134 = arith.constant 3.200000e+01 : f32
    %310 = vector.broadcast %cst_134 : f32 to vector<18x1xf32>
    %311 = arith.divf %309, %310 : vector<18x1xf32>
    %cst_135 = arith.constant 9.99999974E-6 : f32
    %312 = vector.broadcast %cst_135 : f32 to vector<18x1xf32>
    %313 = arith.addf %311, %312 : vector<18x1xf32>
    %314 = math.rsqrt %313 : vector<18x1xf32>
    %315 = vector.broadcast %314 : vector<18x1xf32> to vector<18x32xf32>
    %316 = arith.mulf %306, %315 : vector<18x32xf32>
    %317 = vector.broadcast %298 : vector<1x32xf32> to vector<18x32xf32>
    %318 = arith.mulf %316, %317 : vector<18x32xf32>
    %319 = vector.broadcast %300 : vector<1x32xf32> to vector<18x32xf32>
    %320 = arith.addf %318, %319 : vector<18x32xf32>
    %321 = arith.truncf %320 : vector<18x32xf32> to vector<18x32xbf16>
    %c0_136 = arith.constant 0 : index
    %c0_137 = arith.constant 0 : index
    %c0_138 = arith.constant 0 : index
    %322 = vector.load %arg20[%c0_136, %c0_137, %c0_138] : memref<2x32x128xbf16, #tpu.memory_space<vmem>>, vector<1x32x128xbf16>
    %323 = vector.shape_cast %322 : vector<1x32x128xbf16> to vector<32x128xbf16>
    %cst_139 = arith.constant dense<0.000000e+00> : vector<18x128xf32>
    %324 = tpu.matmul %321, %323, %cst_139 {dimension_numbers = #tpu.dot_dimension_numbers<[1], [0], [0], [1], [0, 0, 1, 1], [], []>} : vector<18x32xbf16>, vector<32x128xbf16>, vector<18x128xf32> -> vector<18x128xf32>
    %c0_140 = arith.constant 0 : index
    %c0_141 = arith.constant 0 : index
    %c0_142 = arith.constant 0 : index
    %325 = vector.load %arg21[%c0_140, %c0_141, %c0_142] : memref<2x1x128xf32, #tpu.memory_space<vmem>>, vector<1x1x128xf32>
    %326 = vector.shape_cast %325 : vector<1x1x128xf32> to vector<1x128xf32>
    %327 = vector.broadcast %326 : vector<1x128xf32> to vector<18x128xf32>
    %328 = arith.addf %324, %327 : vector<18x128xf32>
    %cst_143 = arith.constant 5.000000e-01 : f32
    %329 = vector.broadcast %cst_143 : f32 to vector<18x128xf32>
    %330 = arith.mulf %329, %328 : vector<18x128xf32>
    %cst_144 = arith.constant 0.707106769 : f32
    %331 = vector.broadcast %cst_144 : f32 to vector<18x128xf32>
    %332 = arith.mulf %328, %331 : vector<18x128xf32>
    %cst_145 = arith.constant 0.000000e+00 : f32
    %333 = vector.broadcast %cst_145 : f32 to vector<18x128xf32>
    %334 = arith.cmpf oge, %332, %333 : vector<18x128xf32>
    %cst_146 = arith.constant 1.000000e+00 : f32
    %cst_147 = arith.constant -1.000000e+00 : f32
    %335 = vector.broadcast %cst_146 : f32 to vector<18x128xf32>
    %336 = vector.broadcast %cst_147 : f32 to vector<18x128xf32>
    %337 = arith.select %334, %335, %336 : vector<18x128xi1>, vector<18x128xf32>
    %338 = math.absf %332 : vector<18x128xf32>
    %cst_148 = arith.constant 0.327591091 : f32
    %339 = vector.broadcast %cst_148 : f32 to vector<18x128xf32>
    %340 = arith.mulf %339, %338 : vector<18x128xf32>
    %cst_149 = arith.constant 1.000000e+00 : f32
    %341 = vector.broadcast %cst_149 : f32 to vector<18x128xf32>
    %342 = arith.addf %341, %340 : vector<18x128xf32>
    %cst_150 = arith.constant 1.000000e+00 : f32
    %343 = vector.broadcast %cst_150 : f32 to vector<18x128xf32>
    %344 = arith.divf %343, %342 : vector<18x128xf32>
    %cst_151 = arith.constant 1.06140542 : f32
    %345 = vector.broadcast %cst_151 : f32 to vector<18x128xf32>
    %346 = arith.mulf %345, %344 : vector<18x128xf32>
    %cst_152 = arith.constant -1.45315206 : f32
    %347 = vector.broadcast %cst_152 : f32 to vector<18x128xf32>
    %348 = arith.addf %346, %347 : vector<18x128xf32>
    %349 = arith.mulf %348, %344 : vector<18x128xf32>
    %cst_153 = arith.constant 1.42141378 : f32
    %350 = vector.broadcast %cst_153 : f32 to vector<18x128xf32>
    %351 = arith.addf %349, %350 : vector<18x128xf32>
    %352 = arith.mulf %351, %344 : vector<18x128xf32>
    %cst_154 = arith.constant -0.284496725 : f32
    %353 = vector.broadcast %cst_154 : f32 to vector<18x128xf32>
    %354 = arith.addf %352, %353 : vector<18x128xf32>
    %355 = arith.mulf %354, %344 : vector<18x128xf32>
    %cst_155 = arith.constant 0.254829586 : f32
    %356 = vector.broadcast %cst_155 : f32 to vector<18x128xf32>
    %357 = arith.addf %355, %356 : vector<18x128xf32>
    %358 = arith.mulf %357, %344 : vector<18x128xf32>
    %cst_156 = arith.constant 0.000000e+00 : f32
    %359 = vector.broadcast %cst_156 : f32 to vector<18x128xf32>
    %360 = arith.subf %359, %338 : vector<18x128xf32>
    %361 = arith.mulf %360, %338 : vector<18x128xf32>
    %362 = math.exp %361 : vector<18x128xf32>
    %363 = arith.mulf %358, %362 : vector<18x128xf32>
    %cst_157 = arith.constant 1.000000e+00 : f32
    %364 = vector.broadcast %cst_157 : f32 to vector<18x128xf32>
    %365 = arith.subf %364, %363 : vector<18x128xf32>
    %366 = arith.mulf %337, %365 : vector<18x128xf32>
    %cst_158 = arith.constant 1.000000e+00 : f32
    %367 = vector.broadcast %cst_158 : f32 to vector<18x128xf32>
    %368 = arith.addf %367, %366 : vector<18x128xf32>
    %369 = arith.mulf %330, %368 : vector<18x128xf32>
    %370 = arith.truncf %369 : vector<18x128xf32> to vector<18x128xbf16>
    %c0_159 = arith.constant 0 : index
    %c0_160 = arith.constant 0 : index
    %c0_161 = arith.constant 0 : index
    %371 = vector.load %arg22[%c0_159, %c0_160, %c0_161] : memref<2x128x32xbf16, #tpu.memory_space<vmem>>, vector<1x128x32xbf16>
    %372 = vector.shape_cast %371 : vector<1x128x32xbf16> to vector<128x32xbf16>
    %cst_162 = arith.constant dense<0.000000e+00> : vector<18x32xf32>
    %373 = tpu.matmul %370, %372, %cst_162 {dimension_numbers = #tpu.dot_dimension_numbers<[1], [0], [0], [1], [0, 0, 1, 1], [], []>} : vector<18x128xbf16>, vector<128x32xbf16>, vector<18x32xf32> -> vector<18x32xf32>
    %c0_163 = arith.constant 0 : index
    %c0_164 = arith.constant 0 : index
    %c0_165 = arith.constant 0 : index
    %374 = vector.load %arg23[%c0_163, %c0_164, %c0_165] : memref<2x1x32xf32, #tpu.memory_space<vmem>>, vector<1x1x32xf32>
    %375 = vector.shape_cast %374 : vector<1x1x32xf32> to vector<1x32xf32>
    %376 = vector.broadcast %375 : vector<1x32xf32> to vector<18x32xf32>
    %377 = arith.addf %373, %376 : vector<18x32xf32>
    %378 = arith.addf %320, %377 : vector<18x32xf32>
    %c0_166 = arith.constant 0 : index
    %c0_167 = arith.constant 0 : index
    %c0_168 = arith.constant 0 : index
    %379 = vector.load %arg24[%c0_166, %c0_167, %c0_168] : memref<2x1x32xf32, #tpu.memory_space<vmem>>, vector<1x1x32xf32>
    %380 = vector.shape_cast %379 : vector<1x1x32xf32> to vector<1x32xf32>
    %c0_169 = arith.constant 0 : index
    %c0_170 = arith.constant 0 : index
    %c0_171 = arith.constant 0 : index
    %381 = vector.load %arg25[%c0_169, %c0_170, %c0_171] : memref<2x1x32xf32, #tpu.memory_space<vmem>>, vector<1x1x32xf32>
    %382 = vector.shape_cast %381 : vector<1x1x32xf32> to vector<1x32xf32>
    %cst_172 = arith.constant dense<0.000000e+00> : vector<18xf32>
    %383 = vector.multi_reduction <add>, %378, %cst_172 [1] : vector<18x32xf32> to vector<18xf32>
    %384 = vector.shape_cast %383 : vector<18xf32> to vector<18x1xf32>
    %cst_173 = arith.constant 3.200000e+01 : f32
    %385 = vector.broadcast %cst_173 : f32 to vector<18x1xf32>
    %386 = arith.divf %384, %385 : vector<18x1xf32>
    %387 = vector.broadcast %386 : vector<18x1xf32> to vector<18x32xf32>
    %388 = arith.subf %378, %387 : vector<18x32xf32>
    %389 = arith.mulf %388, %388 : vector<18x32xf32>
    %cst_174 = arith.constant dense<0.000000e+00> : vector<18xf32>
    %390 = vector.multi_reduction <add>, %389, %cst_174 [1] : vector<18x32xf32> to vector<18xf32>
    %391 = vector.shape_cast %390 : vector<18xf32> to vector<18x1xf32>
    %cst_175 = arith.constant 3.200000e+01 : f32
    %392 = vector.broadcast %cst_175 : f32 to vector<18x1xf32>
    %393 = arith.divf %391, %392 : vector<18x1xf32>
    %cst_176 = arith.constant 9.99999974E-6 : f32
    %394 = vector.broadcast %cst_176 : f32 to vector<18x1xf32>
    %395 = arith.addf %393, %394 : vector<18x1xf32>
    %396 = math.rsqrt %395 : vector<18x1xf32>
    %397 = vector.broadcast %396 : vector<18x1xf32> to vector<18x32xf32>
    %398 = arith.mulf %388, %397 : vector<18x32xf32>
    %399 = vector.broadcast %380 : vector<1x32xf32> to vector<18x32xf32>
    %400 = arith.mulf %398, %399 : vector<18x32xf32>
    %401 = vector.broadcast %382 : vector<1x32xf32> to vector<18x32xf32>
    %402 = arith.addf %400, %401 : vector<18x32xf32>
    %403 = arith.truncf %402 : vector<18x32xf32> to vector<18x32xbf16>
    %c1_177 = arith.constant 1 : index
    %c0_178 = arith.constant 0 : index
    %c0_179 = arith.constant 0 : index
    %404 = vector.load %arg14[%c1_177, %c0_178, %c0_179] : memref<2x32x96xbf16, #tpu.memory_space<vmem>>, vector<1x32x96xbf16>
    %405 = vector.shape_cast %404 : vector<1x32x96xbf16> to vector<32x96xbf16>
    %cst_180 = arith.constant dense<0.000000e+00> : vector<18x96xf32>
    %406 = tpu.matmul %403, %405, %cst_180 {dimension_numbers = #tpu.dot_dimension_numbers<[1], [0], [0], [1], [0, 0, 1, 1], [], []>} : vector<18x32xbf16>, vector<32x96xbf16>, vector<18x96xf32> -> vector<18x96xf32>
    %c1_181 = arith.constant 1 : index
    %c0_182 = arith.constant 0 : index
    %c0_183 = arith.constant 0 : index
    %407 = vector.load %arg15[%c1_181, %c0_182, %c0_183] : memref<2x1x96xf32, #tpu.memory_space<vmem>>, vector<1x1x96xf32>
    %408 = vector.shape_cast %407 : vector<1x1x96xf32> to vector<1x96xf32>
    %409 = vector.broadcast %408 : vector<1x96xf32> to vector<18x96xf32>
    %410 = arith.addf %406, %409 : vector<18x96xf32>
    %c0_184 = arith.constant 0 : index
    %c0_185 = arith.constant 0 : index
    %411 = vector.load %arg31[%c0_184, %c0_185] : memref<18x96xf32, #tpu.memory_space<vmem>>, vector<18x96xf32>
    tpu.vector_store %arg31[%c0_184, %c0_185], %410 {strides = array<i32>} : memref<18x96xf32, #tpu.memory_space<vmem>>, vector<18x96xf32>,
    %c1_186 = arith.constant 1 : index
    %c0_187 = arith.constant 0 : index
    %c0_188 = arith.constant 0 : index
    %412 = vector.load %arg16[%c1_186, %c0_187, %c0_188] : memref<2x32x32xf32, #tpu.memory_space<vmem>>, vector<1x32x32xf32>
    %413 = vector.shape_cast %412 : vector<1x32x32xf32> to vector<32x32xf32>
    %c0_189 = arith.constant 0 : index
    %c0_190 = arith.constant 0 : index
    %414 = vector.load %arg31[%c0_189, %c0_190] : memref<18x96xf32, #tpu.memory_space<vmem>>, vector<9x96xf32>
    %cst_191 = arith.constant 0.000000e+00 : f32
    %415 = vector.broadcast %cst_191 : f32 to vector<9x32xf32>
    %416 = vector.extract_strided_slice %414 {offsets = [0, 0], sizes = [9, 8], strides = [1, 1]} : vector<9x96xf32> to vector<9x8xf32>
    %417 = arith.truncf %416 : vector<9x8xf32> to vector<9x8xbf16>
    %418 = vector.extract_strided_slice %414 {offsets = [0, 32], sizes = [9, 8], strides = [1, 1]} : vector<9x96xf32> to vector<9x8xf32>
    %419 = arith.truncf %418 : vector<9x8xf32> to vector<9x8xbf16>
    %420 = vector.extract_strided_slice %414 {offsets = [0, 64], sizes = [9, 8], strides = [1, 1]} : vector<9x96xf32> to vector<9x8xf32>
    %421 = arith.truncf %420 : vector<9x8xf32> to vector<9x8xbf16>
    %cst_192 = arith.constant dense<0.000000e+00> : vector<9x9xf32>
    %422 = tpu.matmul %417, %419, %cst_192 {dimension_numbers = #tpu.dot_dimension_numbers<[1], [1], [0], [0], [0, 0, 1, 0], [], []>} : vector<9x8xbf16>, vector<9x8xbf16>, vector<9x9xf32> -> vector<9x9xf32>
    %cst_193 = arith.constant 0.353553385 : f32
    %423 = vector.broadcast %cst_193 : f32 to vector<9x9xf32>
    %424 = arith.mulf %422, %423 : vector<9x9xf32>
    %cst_194 = arith.constant -1.000000e+30 : f32
    %425 = vector.broadcast %cst_194 : f32 to vector<9x9xf32>
    %426 = arith.select %49, %424, %425 : vector<9x9xi1>, vector<9x9xf32>
    %cst_195 = arith.constant dense<0xFF800000> : vector<9xf32>
    %427 = vector.multi_reduction <maximumf>, %426, %cst_195 [1] : vector<9x9xf32> to vector<9xf32>
    %428 = vector.shape_cast %427 : vector<9xf32> to vector<9x1xf32>
    %429 = vector.broadcast %428 : vector<9x1xf32> to vector<9x9xf32>
    %430 = arith.subf %426, %429 : vector<9x9xf32>
    %431 = math.exp %430 : vector<9x9xf32>
    %cst_196 = arith.constant dense<0.000000e+00> : vector<9xf32>
    %432 = vector.multi_reduction <add>, %431, %cst_196 [1] : vector<9x9xf32> to vector<9xf32>
    %433 = vector.shape_cast %432 : vector<9xf32> to vector<9x1xf32>
    %434 = arith.truncf %431 : vector<9x9xf32> to vector<9x9xbf16>
    %cst_197 = arith.constant dense<0.000000e+00> : vector<9x8xf32>
    %435 = tpu.matmul %434, %421, %cst_197 {dimension_numbers = #tpu.dot_dimension_numbers<[1], [0], [0], [1], [0, 0, 1, 1], [], []>} : vector<9x9xbf16>, vector<9x8xbf16>, vector<9x8xf32> -> vector<9x8xf32>
    %436 = tpu.reciprocal %433 {approx = true} : vector<9x1xf32> -> vector<9x1xf32>
    %437 = vector.broadcast %436 : vector<9x1xf32> to vector<9x8xf32>
    %438 = arith.mulf %435, %437 : vector<9x8xf32>
    %439 = arith.truncf %438 : vector<9x8xf32> to vector<9x8xbf16>
    %440 = vector.extract_strided_slice %413 {offsets = [0, 0], sizes = [8, 32], strides = [1, 1]} : vector<32x32xf32> to vector<8x32xf32>
    %441 = arith.truncf %440 : vector<8x32xf32> to vector<8x32xbf16>
    %cst_198 = arith.constant dense<0.000000e+00> : vector<9x32xf32>
    %442 = tpu.matmul %439, %441, %cst_198 {dimension_numbers = #tpu.dot_dimension_numbers<[1], [0], [0], [1], [0, 0, 1, 1], [], []>} : vector<9x8xbf16>, vector<8x32xbf16>, vector<9x32xf32> -> vector<9x32xf32>
    %443 = arith.addf %415, %442 : vector<9x32xf32>
    %444 = vector.extract_strided_slice %414 {offsets = [0, 8], sizes = [9, 8], strides = [1, 1]} : vector<9x96xf32> to vector<9x8xf32>
    %445 = arith.truncf %444 : vector<9x8xf32> to vector<9x8xbf16>
    %446 = vector.extract_strided_slice %414 {offsets = [0, 40], sizes = [9, 8], strides = [1, 1]} : vector<9x96xf32> to vector<9x8xf32>
    %447 = arith.truncf %446 : vector<9x8xf32> to vector<9x8xbf16>
    %448 = vector.extract_strided_slice %414 {offsets = [0, 72], sizes = [9, 8], strides = [1, 1]} : vector<9x96xf32> to vector<9x8xf32>
    %449 = arith.truncf %448 : vector<9x8xf32> to vector<9x8xbf16>
    %cst_199 = arith.constant dense<0.000000e+00> : vector<9x9xf32>
    %450 = tpu.matmul %445, %447, %cst_199 {dimension_numbers = #tpu.dot_dimension_numbers<[1], [1], [0], [0], [0, 0, 1, 0], [], []>} : vector<9x8xbf16>, vector<9x8xbf16>, vector<9x9xf32> -> vector<9x9xf32>
    %cst_200 = arith.constant 0.353553385 : f32
    %451 = vector.broadcast %cst_200 : f32 to vector<9x9xf32>
    %452 = arith.mulf %450, %451 : vector<9x9xf32>
    %cst_201 = arith.constant -1.000000e+30 : f32
    %453 = vector.broadcast %cst_201 : f32 to vector<9x9xf32>
    %454 = arith.select %49, %452, %453 : vector<9x9xi1>, vector<9x9xf32>
    %cst_202 = arith.constant dense<0xFF800000> : vector<9xf32>
    %455 = vector.multi_reduction <maximumf>, %454, %cst_202 [1] : vector<9x9xf32> to vector<9xf32>
    %456 = vector.shape_cast %455 : vector<9xf32> to vector<9x1xf32>
    %457 = vector.broadcast %456 : vector<9x1xf32> to vector<9x9xf32>
    %458 = arith.subf %454, %457 : vector<9x9xf32>
    %459 = math.exp %458 : vector<9x9xf32>
    %cst_203 = arith.constant dense<0.000000e+00> : vector<9xf32>
    %460 = vector.multi_reduction <add>, %459, %cst_203 [1] : vector<9x9xf32> to vector<9xf32>
    %461 = vector.shape_cast %460 : vector<9xf32> to vector<9x1xf32>
    %462 = arith.truncf %459 : vector<9x9xf32> to vector<9x9xbf16>
    %cst_204 = arith.constant dense<0.000000e+00> : vector<9x8xf32>
    %463 = tpu.matmul %462, %449, %cst_204 {dimension_numbers = #tpu.dot_dimension_numbers<[1], [0], [0], [1], [0, 0, 1, 1], [], []>} : vector<9x9xbf16>, vector<9x8xbf16>, vector<9x8xf32> -> vector<9x8xf32>
    %464 = tpu.reciprocal %461 {approx = true} : vector<9x1xf32> -> vector<9x1xf32>
    %465 = vector.broadcast %464 : vector<9x1xf32> to vector<9x8xf32>
    %466 = arith.mulf %463, %465 : vector<9x8xf32>
    %467 = arith.truncf %466 : vector<9x8xf32> to vector<9x8xbf16>
    %468 = vector.extract_strided_slice %413 {offsets = [8, 0], sizes = [8, 32], strides = [1, 1]} : vector<32x32xf32> to vector<8x32xf32>
    %469 = arith.truncf %468 : vector<8x32xf32> to vector<8x32xbf16>
    %cst_205 = arith.constant dense<0.000000e+00> : vector<9x32xf32>
    %470 = tpu.matmul %467, %469, %cst_205 {dimension_numbers = #tpu.dot_dimension_numbers<[1], [0], [0], [1], [0, 0, 1, 1], [], []>} : vector<9x8xbf16>, vector<8x32xbf16>, vector<9x32xf32> -> vector<9x32xf32>
    %471 = arith.addf %443, %470 : vector<9x32xf32>
    %472 = vector.extract_strided_slice %414 {offsets = [0, 16], sizes = [9, 8], strides = [1, 1]} : vector<9x96xf32> to vector<9x8xf32>
    %473 = arith.truncf %472 : vector<9x8xf32> to vector<9x8xbf16>
    %474 = vector.extract_strided_slice %414 {offsets = [0, 48], sizes = [9, 8], strides = [1, 1]} : vector<9x96xf32> to vector<9x8xf32>
    %475 = arith.truncf %474 : vector<9x8xf32> to vector<9x8xbf16>
    %476 = vector.extract_strided_slice %414 {offsets = [0, 80], sizes = [9, 8], strides = [1, 1]} : vector<9x96xf32> to vector<9x8xf32>
    %477 = arith.truncf %476 : vector<9x8xf32> to vector<9x8xbf16>
    %cst_206 = arith.constant dense<0.000000e+00> : vector<9x9xf32>
    %478 = tpu.matmul %473, %475, %cst_206 {dimension_numbers = #tpu.dot_dimension_numbers<[1], [1], [0], [0], [0, 0, 1, 0], [], []>} : vector<9x8xbf16>, vector<9x8xbf16>, vector<9x9xf32> -> vector<9x9xf32>
    %cst_207 = arith.constant 0.353553385 : f32
    %479 = vector.broadcast %cst_207 : f32 to vector<9x9xf32>
    %480 = arith.mulf %478, %479 : vector<9x9xf32>
    %cst_208 = arith.constant -1.000000e+30 : f32
    %481 = vector.broadcast %cst_208 : f32 to vector<9x9xf32>
    %482 = arith.select %49, %480, %481 : vector<9x9xi1>, vector<9x9xf32>
    %cst_209 = arith.constant dense<0xFF800000> : vector<9xf32>
    %483 = vector.multi_reduction <maximumf>, %482, %cst_209 [1] : vector<9x9xf32> to vector<9xf32>
    %484 = vector.shape_cast %483 : vector<9xf32> to vector<9x1xf32>
    %485 = vector.broadcast %484 : vector<9x1xf32> to vector<9x9xf32>
    %486 = arith.subf %482, %485 : vector<9x9xf32>
    %487 = math.exp %486 : vector<9x9xf32>
    %cst_210 = arith.constant dense<0.000000e+00> : vector<9xf32>
    %488 = vector.multi_reduction <add>, %487, %cst_210 [1] : vector<9x9xf32> to vector<9xf32>
    %489 = vector.shape_cast %488 : vector<9xf32> to vector<9x1xf32>
    %490 = arith.truncf %487 : vector<9x9xf32> to vector<9x9xbf16>
    %cst_211 = arith.constant dense<0.000000e+00> : vector<9x8xf32>
    %491 = tpu.matmul %490, %477, %cst_211 {dimension_numbers = #tpu.dot_dimension_numbers<[1], [0], [0], [1], [0, 0, 1, 1], [], []>} : vector<9x9xbf16>, vector<9x8xbf16>, vector<9x8xf32> -> vector<9x8xf32>
    %492 = tpu.reciprocal %489 {approx = true} : vector<9x1xf32> -> vector<9x1xf32>
    %493 = vector.broadcast %492 : vector<9x1xf32> to vector<9x8xf32>
    %494 = arith.mulf %491, %493 : vector<9x8xf32>
    %495 = arith.truncf %494 : vector<9x8xf32> to vector<9x8xbf16>
    %496 = vector.extract_strided_slice %413 {offsets = [16, 0], sizes = [8, 32], strides = [1, 1]} : vector<32x32xf32> to vector<8x32xf32>
    %497 = arith.truncf %496 : vector<8x32xf32> to vector<8x32xbf16>
    %cst_212 = arith.constant dense<0.000000e+00> : vector<9x32xf32>
    %498 = tpu.matmul %495, %497, %cst_212 {dimension_numbers = #tpu.dot_dimension_numbers<[1], [0], [0], [1], [0, 0, 1, 1], [], []>} : vector<9x8xbf16>, vector<8x32xbf16>, vector<9x32xf32> -> vector<9x32xf32>
    %499 = arith.addf %471, %498 : vector<9x32xf32>
    %500 = vector.extract_strided_slice %414 {offsets = [0, 24], sizes = [9, 8], strides = [1, 1]} : vector<9x96xf32> to vector<9x8xf32>
    %501 = arith.truncf %500 : vector<9x8xf32> to vector<9x8xbf16>
    %502 = vector.extract_strided_slice %414 {offsets = [0, 56], sizes = [9, 8], strides = [1, 1]} : vector<9x96xf32> to vector<9x8xf32>
    %503 = arith.truncf %502 : vector<9x8xf32> to vector<9x8xbf16>
    %504 = vector.extract_strided_slice %414 {offsets = [0, 88], sizes = [9, 8], strides = [1, 1]} : vector<9x96xf32> to vector<9x8xf32>
    %505 = arith.truncf %504 : vector<9x8xf32> to vector<9x8xbf16>
    %cst_213 = arith.constant dense<0.000000e+00> : vector<9x9xf32>
    %506 = tpu.matmul %501, %503, %cst_213 {dimension_numbers = #tpu.dot_dimension_numbers<[1], [1], [0], [0], [0, 0, 1, 0], [], []>} : vector<9x8xbf16>, vector<9x8xbf16>, vector<9x9xf32> -> vector<9x9xf32>
    %cst_214 = arith.constant 0.353553385 : f32
    %507 = vector.broadcast %cst_214 : f32 to vector<9x9xf32>
    %508 = arith.mulf %506, %507 : vector<9x9xf32>
    %cst_215 = arith.constant -1.000000e+30 : f32
    %509 = vector.broadcast %cst_215 : f32 to vector<9x9xf32>
    %510 = arith.select %49, %508, %509 : vector<9x9xi1>, vector<9x9xf32>
    %cst_216 = arith.constant dense<0xFF800000> : vector<9xf32>
    %511 = vector.multi_reduction <maximumf>, %510, %cst_216 [1] : vector<9x9xf32> to vector<9xf32>
    %512 = vector.shape_cast %511 : vector<9xf32> to vector<9x1xf32>
    %513 = vector.broadcast %512 : vector<9x1xf32> to vector<9x9xf32>
    %514 = arith.subf %510, %513 : vector<9x9xf32>
    %515 = math.exp %514 : vector<9x9xf32>
    %cst_217 = arith.constant dense<0.000000e+00> : vector<9xf32>
    %516 = vector.multi_reduction <add>, %515, %cst_217 [1] : vector<9x9xf32> to vector<9xf32>
    %517 = vector.shape_cast %516 : vector<9xf32> to vector<9x1xf32>
    %518 = arith.truncf %515 : vector<9x9xf32> to vector<9x9xbf16>
    %cst_218 = arith.constant dense<0.000000e+00> : vector<9x8xf32>
    %519 = tpu.matmul %518, %505, %cst_218 {dimension_numbers = #tpu.dot_dimension_numbers<[1], [0], [0], [1], [0, 0, 1, 1], [], []>} : vector<9x9xbf16>, vector<9x8xbf16>, vector<9x8xf32> -> vector<9x8xf32>
    %520 = tpu.reciprocal %517 {approx = true} : vector<9x1xf32> -> vector<9x1xf32>
    %521 = vector.broadcast %520 : vector<9x1xf32> to vector<9x8xf32>
    %522 = arith.mulf %519, %521 : vector<9x8xf32>
    %523 = arith.truncf %522 : vector<9x8xf32> to vector<9x8xbf16>
    %524 = vector.extract_strided_slice %413 {offsets = [24, 0], sizes = [8, 32], strides = [1, 1]} : vector<32x32xf32> to vector<8x32xf32>
    %525 = arith.truncf %524 : vector<8x32xf32> to vector<8x32xbf16>
    %cst_219 = arith.constant dense<0.000000e+00> : vector<9x32xf32>
    %526 = tpu.matmul %523, %525, %cst_219 {dimension_numbers = #tpu.dot_dimension_numbers<[1], [0], [0], [1], [0, 0, 1, 1], [], []>} : vector<9x8xbf16>, vector<8x32xbf16>, vector<9x32xf32> -> vector<9x32xf32>
    %527 = arith.addf %499, %526 : vector<9x32xf32>
    %c0_220 = arith.constant 0 : index
    %c0_221 = arith.constant 0 : index
    %528 = vector.load %arg32[%c0_220, %c0_221] : memref<18x32xf32, #tpu.memory_space<vmem>>, vector<9x32xf32>
    tpu.vector_store %arg32[%c0_220, %c0_221], %527 {strides = array<i32>} : memref<18x32xf32, #tpu.memory_space<vmem>>, vector<9x32xf32>,
    %c9_222 = arith.constant 9 : index
    %c0_223 = arith.constant 0 : index
    %529 = vector.load %arg31[%c9_222, %c0_223] : memref<18x96xf32, #tpu.memory_space<vmem>>, vector<9x96xf32>
    %cst_224 = arith.constant 0.000000e+00 : f32
    %530 = vector.broadcast %cst_224 : f32 to vector<9x32xf32>
    %531 = vector.extract_strided_slice %529 {offsets = [0, 0], sizes = [9, 8], strides = [1, 1]} : vector<9x96xf32> to vector<9x8xf32>
    %532 = arith.truncf %531 : vector<9x8xf32> to vector<9x8xbf16>
    %533 = vector.extract_strided_slice %529 {offsets = [0, 32], sizes = [9, 8], strides = [1, 1]} : vector<9x96xf32> to vector<9x8xf32>
    %534 = arith.truncf %533 : vector<9x8xf32> to vector<9x8xbf16>
    %535 = vector.extract_strided_slice %529 {offsets = [0, 64], sizes = [9, 8], strides = [1, 1]} : vector<9x96xf32> to vector<9x8xf32>
    %536 = arith.truncf %535 : vector<9x8xf32> to vector<9x8xbf16>
    %cst_225 = arith.constant dense<0.000000e+00> : vector<9x9xf32>
    %537 = tpu.matmul %532, %534, %cst_225 {dimension_numbers = #tpu.dot_dimension_numbers<[1], [1], [0], [0], [0, 0, 1, 0], [], []>} : vector<9x8xbf16>, vector<9x8xbf16>, vector<9x9xf32> -> vector<9x9xf32>
    %cst_226 = arith.constant 0.353553385 : f32
    %538 = vector.broadcast %cst_226 : f32 to vector<9x9xf32>
    %539 = arith.mulf %537, %538 : vector<9x9xf32>
    %cst_227 = arith.constant -1.000000e+30 : f32
    %540 = vector.broadcast %cst_227 : f32 to vector<9x9xf32>
    %541 = arith.select %49, %539, %540 : vector<9x9xi1>, vector<9x9xf32>
    %cst_228 = arith.constant dense<0xFF800000> : vector<9xf32>
    %542 = vector.multi_reduction <maximumf>, %541, %cst_228 [1] : vector<9x9xf32> to vector<9xf32>
    %543 = vector.shape_cast %542 : vector<9xf32> to vector<9x1xf32>
    %544 = vector.broadcast %543 : vector<9x1xf32> to vector<9x9xf32>
    %545 = arith.subf %541, %544 : vector<9x9xf32>
    %546 = math.exp %545 : vector<9x9xf32>
    %cst_229 = arith.constant dense<0.000000e+00> : vector<9xf32>
    %547 = vector.multi_reduction <add>, %546, %cst_229 [1] : vector<9x9xf32> to vector<9xf32>
    %548 = vector.shape_cast %547 : vector<9xf32> to vector<9x1xf32>
    %549 = arith.truncf %546 : vector<9x9xf32> to vector<9x9xbf16>
    %cst_230 = arith.constant dense<0.000000e+00> : vector<9x8xf32>
    %550 = tpu.matmul %549, %536, %cst_230 {dimension_numbers = #tpu.dot_dimension_numbers<[1], [0], [0], [1], [0, 0, 1, 1], [], []>} : vector<9x9xbf16>, vector<9x8xbf16>, vector<9x8xf32> -> vector<9x8xf32>
    %551 = tpu.reciprocal %548 {approx = true} : vector<9x1xf32> -> vector<9x1xf32>
    %552 = vector.broadcast %551 : vector<9x1xf32> to vector<9x8xf32>
    %553 = arith.mulf %550, %552 : vector<9x8xf32>
    %554 = arith.truncf %553 : vector<9x8xf32> to vector<9x8xbf16>
    %555 = vector.extract_strided_slice %413 {offsets = [0, 0], sizes = [8, 32], strides = [1, 1]} : vector<32x32xf32> to vector<8x32xf32>
    %556 = arith.truncf %555 : vector<8x32xf32> to vector<8x32xbf16>
    %cst_231 = arith.constant dense<0.000000e+00> : vector<9x32xf32>
    %557 = tpu.matmul %554, %556, %cst_231 {dimension_numbers = #tpu.dot_dimension_numbers<[1], [0], [0], [1], [0, 0, 1, 1], [], []>} : vector<9x8xbf16>, vector<8x32xbf16>, vector<9x32xf32> -> vector<9x32xf32>
    %558 = arith.addf %530, %557 : vector<9x32xf32>
    %559 = vector.extract_strided_slice %529 {offsets = [0, 8], sizes = [9, 8], strides = [1, 1]} : vector<9x96xf32> to vector<9x8xf32>
    %560 = arith.truncf %559 : vector<9x8xf32> to vector<9x8xbf16>
    %561 = vector.extract_strided_slice %529 {offsets = [0, 40], sizes = [9, 8], strides = [1, 1]} : vector<9x96xf32> to vector<9x8xf32>
    %562 = arith.truncf %561 : vector<9x8xf32> to vector<9x8xbf16>
    %563 = vector.extract_strided_slice %529 {offsets = [0, 72], sizes = [9, 8], strides = [1, 1]} : vector<9x96xf32> to vector<9x8xf32>
    %564 = arith.truncf %563 : vector<9x8xf32> to vector<9x8xbf16>
    %cst_232 = arith.constant dense<0.000000e+00> : vector<9x9xf32>
    %565 = tpu.matmul %560, %562, %cst_232 {dimension_numbers = #tpu.dot_dimension_numbers<[1], [1], [0], [0], [0, 0, 1, 0], [], []>} : vector<9x8xbf16>, vector<9x8xbf16>, vector<9x9xf32> -> vector<9x9xf32>
    %cst_233 = arith.constant 0.353553385 : f32
    %566 = vector.broadcast %cst_233 : f32 to vector<9x9xf32>
    %567 = arith.mulf %565, %566 : vector<9x9xf32>
    %cst_234 = arith.constant -1.000000e+30 : f32
    %568 = vector.broadcast %cst_234 : f32 to vector<9x9xf32>
    %569 = arith.select %49, %567, %568 : vector<9x9xi1>, vector<9x9xf32>
    %cst_235 = arith.constant dense<0xFF800000> : vector<9xf32>
    %570 = vector.multi_reduction <maximumf>, %569, %cst_235 [1] : vector<9x9xf32> to vector<9xf32>
    %571 = vector.shape_cast %570 : vector<9xf32> to vector<9x1xf32>
    %572 = vector.broadcast %571 : vector<9x1xf32> to vector<9x9xf32>
    %573 = arith.subf %569, %572 : vector<9x9xf32>
    %574 = math.exp %573 : vector<9x9xf32>
    %cst_236 = arith.constant dense<0.000000e+00> : vector<9xf32>
    %575 = vector.multi_reduction <add>, %574, %cst_236 [1] : vector<9x9xf32> to vector<9xf32>
    %576 = vector.shape_cast %575 : vector<9xf32> to vector<9x1xf32>
    %577 = arith.truncf %574 : vector<9x9xf32> to vector<9x9xbf16>
    %cst_237 = arith.constant dense<0.000000e+00> : vector<9x8xf32>
    %578 = tpu.matmul %577, %564, %cst_237 {dimension_numbers = #tpu.dot_dimension_numbers<[1], [0], [0], [1], [0, 0, 1, 1], [], []>} : vector<9x9xbf16>, vector<9x8xbf16>, vector<9x8xf32> -> vector<9x8xf32>
    %579 = tpu.reciprocal %576 {approx = true} : vector<9x1xf32> -> vector<9x1xf32>
    %580 = vector.broadcast %579 : vector<9x1xf32> to vector<9x8xf32>
    %581 = arith.mulf %578, %580 : vector<9x8xf32>
    %582 = arith.truncf %581 : vector<9x8xf32> to vector<9x8xbf16>
    %583 = vector.extract_strided_slice %413 {offsets = [8, 0], sizes = [8, 32], strides = [1, 1]} : vector<32x32xf32> to vector<8x32xf32>
    %584 = arith.truncf %583 : vector<8x32xf32> to vector<8x32xbf16>
    %cst_238 = arith.constant dense<0.000000e+00> : vector<9x32xf32>
    %585 = tpu.matmul %582, %584, %cst_238 {dimension_numbers = #tpu.dot_dimension_numbers<[1], [0], [0], [1], [0, 0, 1, 1], [], []>} : vector<9x8xbf16>, vector<8x32xbf16>, vector<9x32xf32> -> vector<9x32xf32>
    %586 = arith.addf %558, %585 : vector<9x32xf32>
    %587 = vector.extract_strided_slice %529 {offsets = [0, 16], sizes = [9, 8], strides = [1, 1]} : vector<9x96xf32> to vector<9x8xf32>
    %588 = arith.truncf %587 : vector<9x8xf32> to vector<9x8xbf16>
    %589 = vector.extract_strided_slice %529 {offsets = [0, 48], sizes = [9, 8], strides = [1, 1]} : vector<9x96xf32> to vector<9x8xf32>
    %590 = arith.truncf %589 : vector<9x8xf32> to vector<9x8xbf16>
    %591 = vector.extract_strided_slice %529 {offsets = [0, 80], sizes = [9, 8], strides = [1, 1]} : vector<9x96xf32> to vector<9x8xf32>
    %592 = arith.truncf %591 : vector<9x8xf32> to vector<9x8xbf16>
    %cst_239 = arith.constant dense<0.000000e+00> : vector<9x9xf32>
    %593 = tpu.matmul %588, %590, %cst_239 {dimension_numbers = #tpu.dot_dimension_numbers<[1], [1], [0], [0], [0, 0, 1, 0], [], []>} : vector<9x8xbf16>, vector<9x8xbf16>, vector<9x9xf32> -> vector<9x9xf32>
    %cst_240 = arith.constant 0.353553385 : f32
    %594 = vector.broadcast %cst_240 : f32 to vector<9x9xf32>
    %595 = arith.mulf %593, %594 : vector<9x9xf32>
    %cst_241 = arith.constant -1.000000e+30 : f32
    %596 = vector.broadcast %cst_241 : f32 to vector<9x9xf32>
    %597 = arith.select %49, %595, %596 : vector<9x9xi1>, vector<9x9xf32>
    %cst_242 = arith.constant dense<0xFF800000> : vector<9xf32>
    %598 = vector.multi_reduction <maximumf>, %597, %cst_242 [1] : vector<9x9xf32> to vector<9xf32>
    %599 = vector.shape_cast %598 : vector<9xf32> to vector<9x1xf32>
    %600 = vector.broadcast %599 : vector<9x1xf32> to vector<9x9xf32>
    %601 = arith.subf %597, %600 : vector<9x9xf32>
    %602 = math.exp %601 : vector<9x9xf32>
    %cst_243 = arith.constant dense<0.000000e+00> : vector<9xf32>
    %603 = vector.multi_reduction <add>, %602, %cst_243 [1] : vector<9x9xf32> to vector<9xf32>
    %604 = vector.shape_cast %603 : vector<9xf32> to vector<9x1xf32>
    %605 = arith.truncf %602 : vector<9x9xf32> to vector<9x9xbf16>
    %cst_244 = arith.constant dense<0.000000e+00> : vector<9x8xf32>
    %606 = tpu.matmul %605, %592, %cst_244 {dimension_numbers = #tpu.dot_dimension_numbers<[1], [0], [0], [1], [0, 0, 1, 1], [], []>} : vector<9x9xbf16>, vector<9x8xbf16>, vector<9x8xf32> -> vector<9x8xf32>
    %607 = tpu.reciprocal %604 {approx = true} : vector<9x1xf32> -> vector<9x1xf32>
    %608 = vector.broadcast %607 : vector<9x1xf32> to vector<9x8xf32>
    %609 = arith.mulf %606, %608 : vector<9x8xf32>
    %610 = arith.truncf %609 : vector<9x8xf32> to vector<9x8xbf16>
    %611 = vector.extract_strided_slice %413 {offsets = [16, 0], sizes = [8, 32], strides = [1, 1]} : vector<32x32xf32> to vector<8x32xf32>
    %612 = arith.truncf %611 : vector<8x32xf32> to vector<8x32xbf16>
    %cst_245 = arith.constant dense<0.000000e+00> : vector<9x32xf32>
    %613 = tpu.matmul %610, %612, %cst_245 {dimension_numbers = #tpu.dot_dimension_numbers<[1], [0], [0], [1], [0, 0, 1, 1], [], []>} : vector<9x8xbf16>, vector<8x32xbf16>, vector<9x32xf32> -> vector<9x32xf32>
    %614 = arith.addf %586, %613 : vector<9x32xf32>
    %615 = vector.extract_strided_slice %529 {offsets = [0, 24], sizes = [9, 8], strides = [1, 1]} : vector<9x96xf32> to vector<9x8xf32>
    %616 = arith.truncf %615 : vector<9x8xf32> to vector<9x8xbf16>
    %617 = vector.extract_strided_slice %529 {offsets = [0, 56], sizes = [9, 8], strides = [1, 1]} : vector<9x96xf32> to vector<9x8xf32>
    %618 = arith.truncf %617 : vector<9x8xf32> to vector<9x8xbf16>
    %619 = vector.extract_strided_slice %529 {offsets = [0, 88], sizes = [9, 8], strides = [1, 1]} : vector<9x96xf32> to vector<9x8xf32>
    %620 = arith.truncf %619 : vector<9x8xf32> to vector<9x8xbf16>
    %cst_246 = arith.constant dense<0.000000e+00> : vector<9x9xf32>
    %621 = tpu.matmul %616, %618, %cst_246 {dimension_numbers = #tpu.dot_dimension_numbers<[1], [1], [0], [0], [0, 0, 1, 0], [], []>} : vector<9x8xbf16>, vector<9x8xbf16>, vector<9x9xf32> -> vector<9x9xf32>
    %cst_247 = arith.constant 0.353553385 : f32
    %622 = vector.broadcast %cst_247 : f32 to vector<9x9xf32>
    %623 = arith.mulf %621, %622 : vector<9x9xf32>
    %cst_248 = arith.constant -1.000000e+30 : f32
    %624 = vector.broadcast %cst_248 : f32 to vector<9x9xf32>
    %625 = arith.select %49, %623, %624 : vector<9x9xi1>, vector<9x9xf32>
    %cst_249 = arith.constant dense<0xFF800000> : vector<9xf32>
    %626 = vector.multi_reduction <maximumf>, %625, %cst_249 [1] : vector<9x9xf32> to vector<9xf32>
    %627 = vector.shape_cast %626 : vector<9xf32> to vector<9x1xf32>
    %628 = vector.broadcast %627 : vector<9x1xf32> to vector<9x9xf32>
    %629 = arith.subf %625, %628 : vector<9x9xf32>
    %630 = math.exp %629 : vector<9x9xf32>
    %cst_250 = arith.constant dense<0.000000e+00> : vector<9xf32>
    %631 = vector.multi_reduction <add>, %630, %cst_250 [1] : vector<9x9xf32> to vector<9xf32>
    %632 = vector.shape_cast %631 : vector<9xf32> to vector<9x1xf32>
    %633 = arith.truncf %630 : vector<9x9xf32> to vector<9x9xbf16>
    %cst_251 = arith.constant dense<0.000000e+00> : vector<9x8xf32>
    %634 = tpu.matmul %633, %620, %cst_251 {dimension_numbers = #tpu.dot_dimension_numbers<[1], [0], [0], [1], [0, 0, 1, 1], [], []>} : vector<9x9xbf16>, vector<9x8xbf16>, vector<9x8xf32> -> vector<9x8xf32>
    %635 = tpu.reciprocal %632 {approx = true} : vector<9x1xf32> -> vector<9x1xf32>
    %636 = vector.broadcast %635 : vector<9x1xf32> to vector<9x8xf32>
    %637 = arith.mulf %634, %636 : vector<9x8xf32>
    %638 = arith.truncf %637 : vector<9x8xf32> to vector<9x8xbf16>
    %639 = vector.extract_strided_slice %413 {offsets = [24, 0], sizes = [8, 32], strides = [1, 1]} : vector<32x32xf32> to vector<8x32xf32>
    %640 = arith.truncf %639 : vector<8x32xf32> to vector<8x32xbf16>
    %cst_252 = arith.constant dense<0.000000e+00> : vector<9x32xf32>
    %641 = tpu.matmul %638, %640, %cst_252 {dimension_numbers = #tpu.dot_dimension_numbers<[1], [0], [0], [1], [0, 0, 1, 1], [], []>} : vector<9x8xbf16>, vector<8x32xbf16>, vector<9x32xf32> -> vector<9x32xf32>
    %642 = arith.addf %614, %641 : vector<9x32xf32>
    %c9_253 = arith.constant 9 : index
    %c0_254 = arith.constant 0 : index
    %643 = vector.load %arg32[%c9_253, %c0_254] : memref<18x32xf32, #tpu.memory_space<vmem>>, vector<9x32xf32>
    tpu.vector_store %arg32[%c9_253, %c0_254], %642 {strides = array<i32>} : memref<18x32xf32, #tpu.memory_space<vmem>>, vector<9x32xf32>,
    %c0_255 = arith.constant 0 : index
    %c0_256 = arith.constant 0 : index
    %644 = vector.load %arg32[%c0_255, %c0_256] : memref<18x32xf32, #tpu.memory_space<vmem>>, vector<18x32xf32>
    %c1_257 = arith.constant 1 : index
    %c0_258 = arith.constant 0 : index
    %c0_259 = arith.constant 0 : index
    %645 = vector.load %arg17[%c1_257, %c0_258, %c0_259] : memref<2x1x32xf32, #tpu.memory_space<vmem>>, vector<1x1x32xf32>
    %646 = vector.shape_cast %645 : vector<1x1x32xf32> to vector<1x32xf32>
    %647 = vector.broadcast %646 : vector<1x32xf32> to vector<18x32xf32>
    %648 = arith.addf %644, %647 : vector<18x32xf32>
    %649 = arith.addf %402, %648 : vector<18x32xf32>
    %c1_260 = arith.constant 1 : index
    %c0_261 = arith.constant 0 : index
    %c0_262 = arith.constant 0 : index
    %650 = vector.load %arg18[%c1_260, %c0_261, %c0_262] : memref<2x1x32xf32, #tpu.memory_space<vmem>>, vector<1x1x32xf32>
    %651 = vector.shape_cast %650 : vector<1x1x32xf32> to vector<1x32xf32>
    %c1_263 = arith.constant 1 : index
    %c0_264 = arith.constant 0 : index
    %c0_265 = arith.constant 0 : index
    %652 = vector.load %arg19[%c1_263, %c0_264, %c0_265] : memref<2x1x32xf32, #tpu.memory_space<vmem>>, vector<1x1x32xf32>
    %653 = vector.shape_cast %652 : vector<1x1x32xf32> to vector<1x32xf32>
    %cst_266 = arith.constant dense<0.000000e+00> : vector<18xf32>
    %654 = vector.multi_reduction <add>, %649, %cst_266 [1] : vector<18x32xf32> to vector<18xf32>
    %655 = vector.shape_cast %654 : vector<18xf32> to vector<18x1xf32>
    %cst_267 = arith.constant 3.200000e+01 : f32
    %656 = vector.broadcast %cst_267 : f32 to vector<18x1xf32>
    %657 = arith.divf %655, %656 : vector<18x1xf32>
    %658 = vector.broadcast %657 : vector<18x1xf32> to vector<18x32xf32>
    %659 = arith.subf %649, %658 : vector<18x32xf32>
    %660 = arith.mulf %659, %659 : vector<18x32xf32>
    %cst_268 = arith.constant dense<0.000000e+00> : vector<18xf32>
    %661 = vector.multi_reduction <add>, %660, %cst_268 [1] : vector<18x32xf32> to vector<18xf32>
    %662 = vector.shape_cast %661 : vector<18xf32> to vector<18x1xf32>
    %cst_269 = arith.constant 3.200000e+01 : f32
    %663 = vector.broadcast %cst_269 : f32 to vector<18x1xf32>
    %664 = arith.divf %662, %663 : vector<18x1xf32>
    %cst_270 = arith.constant 9.99999974E-6 : f32
    %665 = vector.broadcast %cst_270 : f32 to vector<18x1xf32>
    %666 = arith.addf %664, %665 : vector<18x1xf32>
    %667 = math.rsqrt %666 : vector<18x1xf32>
    %668 = vector.broadcast %667 : vector<18x1xf32> to vector<18x32xf32>
    %669 = arith.mulf %659, %668 : vector<18x32xf32>
    %670 = vector.broadcast %651 : vector<1x32xf32> to vector<18x32xf32>
    %671 = arith.mulf %669, %670 : vector<18x32xf32>
    %672 = vector.broadcast %653 : vector<1x32xf32> to vector<18x32xf32>
    %673 = arith.addf %671, %672 : vector<18x32xf32>
    %674 = arith.truncf %673 : vector<18x32xf32> to vector<18x32xbf16>
    %c1_271 = arith.constant 1 : index
    %c0_272 = arith.constant 0 : index
    %c0_273 = arith.constant 0 : index
    %675 = vector.load %arg20[%c1_271, %c0_272, %c0_273] : memref<2x32x128xbf16, #tpu.memory_space<vmem>>, vector<1x32x128xbf16>
    %676 = vector.shape_cast %675 : vector<1x32x128xbf16> to vector<32x128xbf16>
    %cst_274 = arith.constant dense<0.000000e+00> : vector<18x128xf32>
    %677 = tpu.matmul %674, %676, %cst_274 {dimension_numbers = #tpu.dot_dimension_numbers<[1], [0], [0], [1], [0, 0, 1, 1], [], []>} : vector<18x32xbf16>, vector<32x128xbf16>, vector<18x128xf32> -> vector<18x128xf32>
    %c1_275 = arith.constant 1 : index
    %c0_276 = arith.constant 0 : index
    %c0_277 = arith.constant 0 : index
    %678 = vector.load %arg21[%c1_275, %c0_276, %c0_277] : memref<2x1x128xf32, #tpu.memory_space<vmem>>, vector<1x1x128xf32>
    %679 = vector.shape_cast %678 : vector<1x1x128xf32> to vector<1x128xf32>
    %680 = vector.broadcast %679 : vector<1x128xf32> to vector<18x128xf32>
    %681 = arith.addf %677, %680 : vector<18x128xf32>
    %cst_278 = arith.constant 5.000000e-01 : f32
    %682 = vector.broadcast %cst_278 : f32 to vector<18x128xf32>
    %683 = arith.mulf %682, %681 : vector<18x128xf32>
    %cst_279 = arith.constant 0.707106769 : f32
    %684 = vector.broadcast %cst_279 : f32 to vector<18x128xf32>
    %685 = arith.mulf %681, %684 : vector<18x128xf32>
    %cst_280 = arith.constant 0.000000e+00 : f32
    %686 = vector.broadcast %cst_280 : f32 to vector<18x128xf32>
    %687 = arith.cmpf oge, %685, %686 : vector<18x128xf32>
    %cst_281 = arith.constant 1.000000e+00 : f32
    %cst_282 = arith.constant -1.000000e+00 : f32
    %688 = vector.broadcast %cst_281 : f32 to vector<18x128xf32>
    %689 = vector.broadcast %cst_282 : f32 to vector<18x128xf32>
    %690 = arith.select %687, %688, %689 : vector<18x128xi1>, vector<18x128xf32>
    %691 = math.absf %685 : vector<18x128xf32>
    %cst_283 = arith.constant 0.327591091 : f32
    %692 = vector.broadcast %cst_283 : f32 to vector<18x128xf32>
    %693 = arith.mulf %692, %691 : vector<18x128xf32>
    %cst_284 = arith.constant 1.000000e+00 : f32
    %694 = vector.broadcast %cst_284 : f32 to vector<18x128xf32>
    %695 = arith.addf %694, %693 : vector<18x128xf32>
    %cst_285 = arith.constant 1.000000e+00 : f32
    %696 = vector.broadcast %cst_285 : f32 to vector<18x128xf32>
    %697 = arith.divf %696, %695 : vector<18x128xf32>
    %cst_286 = arith.constant 1.06140542 : f32
    %698 = vector.broadcast %cst_286 : f32 to vector<18x128xf32>
    %699 = arith.mulf %698, %697 : vector<18x128xf32>
    %cst_287 = arith.constant -1.45315206 : f32
    %700 = vector.broadcast %cst_287 : f32 to vector<18x128xf32>
    %701 = arith.addf %699, %700 : vector<18x128xf32>
    %702 = arith.mulf %701, %697 : vector<18x128xf32>
    %cst_288 = arith.constant 1.42141378 : f32
    %703 = vector.broadcast %cst_288 : f32 to vector<18x128xf32>
    %704 = arith.addf %702, %703 : vector<18x128xf32>
    %705 = arith.mulf %704, %697 : vector<18x128xf32>
    %cst_289 = arith.constant -0.284496725 : f32
    %706 = vector.broadcast %cst_289 : f32 to vector<18x128xf32>
    %707 = arith.addf %705, %706 : vector<18x128xf32>
    %708 = arith.mulf %707, %697 : vector<18x128xf32>
    %cst_290 = arith.constant 0.254829586 : f32
    %709 = vector.broadcast %cst_290 : f32 to vector<18x128xf32>
    %710 = arith.addf %708, %709 : vector<18x128xf32>
    %711 = arith.mulf %710, %697 : vector<18x128xf32>
    %cst_291 = arith.constant 0.000000e+00 : f32
    %712 = vector.broadcast %cst_291 : f32 to vector<18x128xf32>
    %713 = arith.subf %712, %691 : vector<18x128xf32>
    %714 = arith.mulf %713, %691 : vector<18x128xf32>
    %715 = math.exp %714 : vector<18x128xf32>
    %716 = arith.mulf %711, %715 : vector<18x128xf32>
    %cst_292 = arith.constant 1.000000e+00 : f32
    %717 = vector.broadcast %cst_292 : f32 to vector<18x128xf32>
    %718 = arith.subf %717, %716 : vector<18x128xf32>
    %719 = arith.mulf %690, %718 : vector<18x128xf32>
    %cst_293 = arith.constant 1.000000e+00 : f32
    %720 = vector.broadcast %cst_293 : f32 to vector<18x128xf32>
    %721 = arith.addf %720, %719 : vector<18x128xf32>
    %722 = arith.mulf %683, %721 : vector<18x128xf32>
    %723 = arith.truncf %722 : vector<18x128xf32> to vector<18x128xbf16>
    %c1_294 = arith.constant 1 : index
    %c0_295 = arith.constant 0 : index
    %c0_296 = arith.constant 0 : index
    %724 = vector.load %arg22[%c1_294, %c0_295, %c0_296] : memref<2x128x32xbf16, #tpu.memory_space<vmem>>, vector<1x128x32xbf16>
    %725 = vector.shape_cast %724 : vector<1x128x32xbf16> to vector<128x32xbf16>
    %cst_297 = arith.constant dense<0.000000e+00> : vector<18x32xf32>
    %726 = tpu.matmul %723, %725, %cst_297 {dimension_numbers = #tpu.dot_dimension_numbers<[1], [0], [0], [1], [0, 0, 1, 1], [], []>} : vector<18x128xbf16>, vector<128x32xbf16>, vector<18x32xf32> -> vector<18x32xf32>
    %c1_298 = arith.constant 1 : index
    %c0_299 = arith.constant 0 : index
    %c0_300 = arith.constant 0 : index
    %727 = vector.load %arg23[%c1_298, %c0_299, %c0_300] : memref<2x1x32xf32, #tpu.memory_space<vmem>>, vector<1x1x32xf32>
    %728 = vector.shape_cast %727 : vector<1x1x32xf32> to vector<1x32xf32>
    %729 = vector.broadcast %728 : vector<1x32xf32> to vector<18x32xf32>
    %730 = arith.addf %726, %729 : vector<18x32xf32>
    %731 = arith.addf %673, %730 : vector<18x32xf32>
    %c1_301 = arith.constant 1 : index
    %c0_302 = arith.constant 0 : index
    %c0_303 = arith.constant 0 : index
    %732 = vector.load %arg24[%c1_301, %c0_302, %c0_303] : memref<2x1x32xf32, #tpu.memory_space<vmem>>, vector<1x1x32xf32>
    %733 = vector.shape_cast %732 : vector<1x1x32xf32> to vector<1x32xf32>
    %c1_304 = arith.constant 1 : index
    %c0_305 = arith.constant 0 : index
    %c0_306 = arith.constant 0 : index
    %734 = vector.load %arg25[%c1_304, %c0_305, %c0_306] : memref<2x1x32xf32, #tpu.memory_space<vmem>>, vector<1x1x32xf32>
    %735 = vector.shape_cast %734 : vector<1x1x32xf32> to vector<1x32xf32>
    %cst_307 = arith.constant dense<0.000000e+00> : vector<18xf32>
    %736 = vector.multi_reduction <add>, %731, %cst_307 [1] : vector<18x32xf32> to vector<18xf32>
    %737 = vector.shape_cast %736 : vector<18xf32> to vector<18x1xf32>
    %cst_308 = arith.constant 3.200000e+01 : f32
    %738 = vector.broadcast %cst_308 : f32 to vector<18x1xf32>
    %739 = arith.divf %737, %738 : vector<18x1xf32>
    %740 = vector.broadcast %739 : vector<18x1xf32> to vector<18x32xf32>
    %741 = arith.subf %731, %740 : vector<18x32xf32>
    %742 = arith.mulf %741, %741 : vector<18x32xf32>
    %cst_309 = arith.constant dense<0.000000e+00> : vector<18xf32>
    %743 = vector.multi_reduction <add>, %742, %cst_309 [1] : vector<18x32xf32> to vector<18xf32>
    %744 = vector.shape_cast %743 : vector<18xf32> to vector<18x1xf32>
    %cst_310 = arith.constant 3.200000e+01 : f32
    %745 = vector.broadcast %cst_310 : f32 to vector<18x1xf32>
    %746 = arith.divf %744, %745 : vector<18x1xf32>
    %cst_311 = arith.constant 9.99999974E-6 : f32
    %747 = vector.broadcast %cst_311 : f32 to vector<18x1xf32>
    %748 = arith.addf %746, %747 : vector<18x1xf32>
    %749 = math.rsqrt %748 : vector<18x1xf32>
    %750 = vector.broadcast %749 : vector<18x1xf32> to vector<18x32xf32>
    %751 = arith.mulf %741, %750 : vector<18x32xf32>
    %752 = vector.broadcast %733 : vector<1x32xf32> to vector<18x32xf32>
    %753 = arith.mulf %751, %752 : vector<18x32xf32>
    %754 = vector.broadcast %735 : vector<1x32xf32> to vector<18x32xf32>
    %755 = arith.addf %753, %754 : vector<18x32xf32>
    %756 = arith.truncf %755 : vector<18x32xf32> to vector<18x32xbf16>
    %c0_312 = arith.constant 0 : index
    %c0_313 = arith.constant 0 : index
    %757 = vector.load %arg26[%c0_312, %c0_313] : memref<32x45xbf16, #tpu.memory_space<vmem>>, vector<32x45xbf16>
    %cst_314 = arith.constant dense<0.000000e+00> : vector<18x45xf32>
    %758 = tpu.matmul %756, %757, %cst_314 {dimension_numbers = #tpu.dot_dimension_numbers<[1], [0], [0], [1], [0, 0, 1, 1], [], []>} : vector<18x32xbf16>, vector<32x45xbf16>, vector<18x45xf32> -> vector<18x45xf32>
    %c0_315 = arith.constant 0 : index
    %c0_316 = arith.constant 0 : index
    %759 = vector.load %arg27[%c0_315, %c0_316] : memref<1x45xf32, #tpu.memory_space<vmem>>, vector<1x45xf32>
    %760 = vector.broadcast %759 : vector<1x45xf32> to vector<18x45xf32>
    %761 = arith.addf %758, %760 : vector<18x45xf32>
    %c0_317 = arith.constant 0 : index
    %c0_318 = arith.constant 0 : index
    %762 = vector.load %arg29[%c0_317, %c0_318] : memref<18x45xf32, #tpu.memory_space<vmem>>, vector<18x45xf32>
    tpu.vector_store %arg29[%c0_317, %c0_318], %761 {strides = array<i32>} : memref<18x45xf32, #tpu.memory_space<vmem>>, vector<18x45xf32>,
    return
  }
}

</mosaic_0001>

<llo_original>
// kernel: tpu_custom_call.1
$region0: #{tpu_custom_call.1}
  #allocation0 [shape = 'u32[]', space=smem, size = 0x4, offset = 0x4, fixed_abs, tag = 'smem constant byte address 0x4 - core index']
  #allocation1 [shape = 'u32[144,128]{1,0:T(1,128)}', space=vmem, size = 0x12000, scoped, tag = 'internal scratch']
  %s0 = inlined_call_operand.hbm [shape: f32[8,128], index: 0, kind: input, shape index: {}]
  %s1 = inlined_call_operand.hbm [shape: f32[8,128], index: 1, kind: output, shape index: {}]
  %s2 = sld [smem:[#allocation0]]
  $region18: #{tpu_custom_call.1} parent=0
    _
  %s4 = ssub.s32 1, %s2
  %s5 = scalar_select 0, %s4, %s2
  $region1: #{tpu_custom_call.1} parent=0
    #allocation2 [shape = 'u8[4096]{0}', space=vmem, size = 0x1000, scoped, tag = 'input window, operand 0, single buffered']
    #allocation3 [shape = 's32[1]{0}', space=sflag, size = 0x4, scoped, tag = 'scoped memory for tpu_custom_call.1']
    #allocation4 [shape = 's32[1]{0}', space=sflag, size = 0x4, scoped, tag = 'scoped memory for tpu_custom_call.1']
    #allocation5 [shape = 'u8[4096]{0}', space=vmem, size = 0x1000, scoped, tag = 'output window, operand 0, single buffered']
    %6 = vsyncpa [#allocation3], 0
    %7 = vsyncpa [#allocation4], 0
    // Predicated region
    $region2: #{tpu_custom_call.1} parent=1 // pred_check
      _
    $region3: #{tpu_custom_call.1} parent=1 // pred_check_branch
      %9 = sbr.rel (0) target = $region5
    $region4: #{tpu_custom_call.1} parent=1 // pred_region
      %s11 = ssub.s32 128, 128
      %12 = vsyncadd [#allocation3], %s11
      %s14 = sshll.u32 [#allocation2], 4
      %s15 = int_to_ptr.vmem [resolvable:$true] %s14
      %17 = dma.hbm_to_vmem [thread:$0]  %s0, 128, %s15, [#allocation3]
    $region5: #{tpu_custom_call.1} parent=1 // pred_fallthru
      _
    // Predicated region
    $region6: #{tpu_custom_call.1} parent=1 // pred_check
      _
    $region7: #{tpu_custom_call.1} parent=1 // pred_check_branch
      %19 = sbr.rel (0) target = $region9
    $region8: #{tpu_custom_call.1} parent=1 // pred_region
      %20 = dma.done [#allocation3], 128
    $region9: #{tpu_custom_call.1} parent=1 // pred_fallthru
      _
    %v21 = vld [vmem:[#allocation2] sm:$0xff]
    %v22 = verf.f32.pop %v21
    %23 = vst [vmem:[#allocation5] sm:$0xff] %v22
    // Predicated region
    $region10: #{tpu_custom_call.1} parent=1 // pred_check
      _
    $region11: #{tpu_custom_call.1} parent=1 // pred_check_branch
      %25 = sbr.rel (0) target = $region13
    $region12: #{tpu_custom_call.1} parent=1 // pred_region
      %s27 = ssub.s32 128, 128
      %28 = vsyncadd [#allocation4], %s27
      %s30 = sshll.u32 [#allocation5], 4
      %s31 = int_to_ptr.vmem [resolvable:$true] %s30
      %33 = dma.vmem_to_hbm [thread:$0]  %s31, 128, %s1, [#allocation4]
    $region13: #{tpu_custom_call.1} parent=1 // pred_fallthru
      _
    // Predicated region
    $region14: #{tpu_custom_call.1} parent=1 // pred_check
      _
    $region15: #{tpu_custom_call.1} parent=1 // pred_check_branch
      %35 = sbr.rel (0) target = $region17
    $region16: #{tpu_custom_call.1} parent=1 // pred_region
      %36 = dma.done [#allocation4], 128
    $region17: #{tpu_custom_call.1} parent=1 // pred_fallthru
      _
    %37 = vsyncpa [#allocation3], 1
    %38 = vsyncpa [#allocation4], 1

// kernel: gpt_with_cae_forward.1
$region0: #{gpt_with_cae_forward.1}
  #allocation0 [shape = 'u32[]', space=smem, size = 0x4, offset = 0x4, fixed_abs, tag = 'smem constant byte address 0x4 - core index']
  #allocation1 [shape = 'u32[144,128]{1,0:T(1,128)}', space=vmem, size = 0x12000, scoped, tag = 'internal scratch']
  #allocation2 [shape = 'f32[18,32]{1,0:T(8,128)}', space=vmem, size = 0x3000, scoped, tag = 'scratch operand']
  #allocation3 [shape = 'f32[18,96]{1,0:T(8,128)}', space=vmem, size = 0x3000, scoped, tag = 'scratch operand']
  #allocation4 [shape = 'f32[18,32]{1,0:T(8,128)}', space=vmem, size = 0x3000, scoped, tag = 'scratch operand']
  %s0 = inlined_call_operand.smem [shape: u32[30], index: -1, kind: input, shape index: {}]
  %s1 = sld [smem:[%s0]]
  %s2 = scalar_lea.smem %s0, 1
  %s3 = sld [smem:[%s2]]
  %s4 = scalar_lea.smem %s0, 2
  %s5 = sld [smem:[%s4]]
  %s6 = scalar_lea.smem %s0, 3
  %s7 = sld [smem:[%s6]]
  %s8 = scalar_lea.smem %s0, 4
  %s9 = sld [smem:[%s8]]
  %s10 = scalar_lea.smem %s0, 5
  %s11 = sld [smem:[%s10]]
  %s12 = scalar_lea.smem %s0, 6
  %s13 = sld [smem:[%s12]]
  %s14 = scalar_lea.smem %s0, 7
  %s15 = sld [smem:[%s14]]
  %s16 = scalar_lea.smem %s0, 8
  %s17 = sld [smem:[%s16]]
  %s18 = scalar_lea.smem %s0, 9
  %s19 = sld [smem:[%s18]]
  %s20 = scalar_lea.smem %s0, 10
  %s21 = sld [smem:[%s20]]
  %s22 = scalar_lea.smem %s0, 11
  %s23 = sld [smem:[%s22]]
  %s24 = scalar_lea.smem %s0, 12
  %s25 = sld [smem:[%s24]]
  %s26 = scalar_lea.smem %s0, 13
  %s27 = sld [smem:[%s26]]
  %s28 = scalar_lea.smem %s0, 14
  %s29 = sld [smem:[%s28]]
  %s30 = scalar_lea.smem %s0, 15
  %s31 = sld [smem:[%s30]]
  %s32 = scalar_lea.smem %s0, 16
  %s33 = sld [smem:[%s32]]
  %s34 = scalar_lea.smem %s0, 17
  %s35 = sld [smem:[%s34]]
  %s36 = scalar_lea.smem %s0, 18
  %s37 = sld [smem:[%s36]]
  %s38 = scalar_lea.smem %s0, 19
  %s39 = sld [smem:[%s38]]
  %s40 = scalar_lea.smem %s0, 20
  %s41 = sld [smem:[%s40]]
  %s42 = scalar_lea.smem %s0, 21
  %s43 = sld [smem:[%s42]]
  %s44 = scalar_lea.smem %s0, 22
  %s45 = sld [smem:[%s44]]
  %s46 = scalar_lea.smem %s0, 23
  %s47 = sld [smem:[%s46]]
  %s48 = scalar_lea.smem %s0, 24
  %s49 = sld [smem:[%s48]]
  %s50 = scalar_lea.smem %s0, 25
  %s51 = sld [smem:[%s50]]
  %s52 = scalar_lea.smem %s0, 26
  %s53 = sld [smem:[%s52]]
  %s54 = scalar_lea.smem %s0, 27
  %s55 = sld [smem:[%s54]]
  %s56 = scalar_lea.smem %s0, 28
  %s57 = sld [smem:[%s56]]
  %s58 = scalar_lea.smem %s0, 29
  %s59 = sld [smem:[%s58]]
  %60 = xla_tuple %s57, %s59
  %s61 = sld [smem:[#allocation0]]
  $region134: #{gpt_with_cae_forward.1} parent=0
    _
  %s63 = ssub.s32 1, %s61
  %s64 = scalar_select 0, %s63, %s61
  $region1: #{gpt_with_cae_forward.1} parent=0
    #allocation5 [shape = 'u8[512]{0}', space=vmem, size = 0x400, scoped, tag = 'input window, operand 27, single buffered']
    #allocation6 [shape = 's32[1]{0}', space=sflag, size = 0x4, scoped, tag = 'scoped memory for gpt_with_cae_forward.1']
    %65 = vsyncpa [#allocation6], 0
    // Predicated region
    $region2: #{gpt_with_cae_forward.1} parent=1 // pred_check
      _
    $region3: #{gpt_with_cae_forward.1} parent=1 // pred_check_branch
      %67 = sbr.rel (0) target = $region5
    $region4: #{gpt_with_cae_forward.1} parent=1 // pred_region
      _
    $region5: #{gpt_with_cae_forward.1} parent=1 // pred_fallthru
      _
    // Predicated region
    $region6: #{gpt_with_cae_forward.1} parent=1 // pred_check
      _
    $region7: #{gpt_with_cae_forward.1} parent=1 // pred_check_branch
      %69 = sbr.rel (0) target = $region9
    $region8: #{gpt_with_cae_forward.1} parent=1 // pred_region
      _
    $region9: #{gpt_with_cae_forward.1} parent=1 // pred_fallthru
      _
    // Predicated region
    $region10: #{gpt_with_cae_forward.1} parent=1 // pred_check
      _
    $region11: #{gpt_with_cae_forward.1} parent=1 // pred_check_branch
      %71 = sbr.rel (0) target = $region13
    $region12: #{gpt_with_cae_forward.1} parent=1 // pred_region
      _
    $region13: #{gpt_with_cae_forward.1} parent=1 // pred_fallthru
      _
    // Predicated region
    $region14: #{gpt_with_cae_forward.1} parent=1 // pred_check
      _
    $region15: #{gpt_with_cae_forward.1} parent=1 // pred_check_branch
      %73 = sbr.rel (0) target = $region17
    $region16: #{gpt_with_cae_forward.1} parent=1 // pred_region
      _
    $region17: #{gpt_with_cae_forward.1} parent=1 // pred_fallthru
      _
    // Predicated region
    $region18: #{gpt_with_cae_forward.1} parent=1 // pred_check
      _
    $region19: #{gpt_with_cae_forward.1} parent=1 // pred_check_branch
      %75 = sbr.rel (0) target = $region21
    $region20: #{gpt_with_cae_forward.1} parent=1 // pred_region
      _
    $region21: #{gpt_with_cae_forward.1} parent=1 // pred_fallthru
      _
    // Predicated region
    $region22: #{gpt_with_cae_forward.1} parent=1 // pred_check
      _
    $region23: #{gpt_with_cae_forward.1} parent=1 // pred_check_branch
      %77 = sbr.rel (0) target = $region25
    $region24: #{gpt_with_cae_forward.1} parent=1 // pred_region
      _
    $region25: #{gpt_with_cae_forward.1} parent=1 // pred_fallthru
      _
    // Predicated region
    $region26: #{gpt_with_cae_forward.1} parent=1 // pred_check
      _
    $region27: #{gpt_with_cae_forward.1} parent=1 // pred_check_branch
      %79 = sbr.rel (0) target = $region29
    $region28: #{gpt_with_cae_forward.1} parent=1 // pred_region
      _
    $region29: #{gpt_with_cae_forward.1} parent=1 // pred_fallthru
      _
    // Predicated region
    $region30: #{gpt_with_cae_forward.1} parent=1 // pred_check
      _
    $region31: #{gpt_with_cae_forward.1} parent=1 // pred_check_branch
      %81 = sbr.rel (0) target = $region33
    $region32: #{gpt_with_cae_forward.1} parent=1 // pred_region
      _
    $region33: #{gpt_with_cae_forward.1} parent=1 // pred_fallthru
      _
    // Predicated region
    $region34: #{gpt_with_cae_forward.1} parent=1 // pred_check
      _
    $region35: #{gpt_with_cae_forward.1} parent=1 // pred_check_branch
      %83 = sbr.rel (0) target = $region37
    $region36: #{gpt_with_cae_forward.1} parent=1 // pred_region
      _
    $region37: #{gpt_with_cae_forward.1} parent=1 // pred_fallthru
      _
    // Predicated region
    $region38: #{gpt_with_cae_forward.1} parent=1 // pred_check
      _
    $region39: #{gpt_with_cae_forward.1} parent=1 // pred_check_branch
      %85 = sbr.rel (0) target = $region41
    $region40: #{gpt_with_cae_forward.1} parent=1 // pred_region
      _
    $region41: #{gpt_with_cae_forward.1} parent=1 // pred_fallthru
      _
    // Predicated region
    $region42: #{gpt_with_cae_forward.1} parent=1 // pred_check
      _
    $region43: #{gpt_with_cae_forward.1} parent=1 // pred_check_branch
      %87 = sbr.rel (0) target = $region45
    $region44: #{gpt_with_cae_forward.1} parent=1 // pred_region
      _
    $region45: #{gpt_with_cae_forward.1} parent=1 // pred_fallthru
      _
    // Predicated region
    $region46: #{gpt_with_cae_forward.1} parent=1 // pred_check
      _
    $region47: #{gpt_with_cae_forward.1} parent=1 // pred_check_branch
      %89 = sbr.rel (0) target = $region49
    $region48: #{gpt_with_cae_forward.1} parent=1 // pred_region
      _
    $region49: #{gpt_with_cae_forward.1} parent=1 // pred_fallthru
      _
    // Predicated region
    $region50: #{gpt_with_cae_forward.1} parent=1 // pred_check
      _
    $region51: #{gpt_with_cae_forward.1} parent=1 // pred_check_branch
      %91 = sbr.rel (0) target = $region53
    $region52: #{gpt_with_cae_forward.1} parent=1 // pred_region
      _
    $region53: #{gpt_with_cae_forward.1} parent=1 // pred_fallthru
      _
    // Predicated region
    $region54: #{gpt_with_cae_forward.1} parent=1 // pred_check
      _
    $region55: #{gpt_with_cae_forward.1} parent=1 // pred_check_branch
      %93 = sbr.rel (0) target = $region57
    $region56: #{gpt_with_cae_forward.1} parent=1 // pred_region
      _
    $region57: #{gpt_with_cae_forward.1} parent=1 // pred_fallthru
      _
    // Predicated region
    $region58: #{gpt_with_cae_forward.1} parent=1 // pred_check
      _
    $region59: #{gpt_with_cae_forward.1} parent=1 // pred_check_branch
      %95 = sbr.rel (0) target = $region61
    $region60: #{gpt_with_cae_forward.1} parent=1 // pred_region
      _
    $region61: #{gpt_with_cae_forward.1} parent=1 // pred_fallthru
      _
    // Predicated region
    $region62: #{gpt_with_cae_forward.1} parent=1 // pred_check
      _
    $region63: #{gpt_with_cae_forward.1} parent=1 // pred_check_branch
      %97 = sbr.rel (0) target = $region65
    $region64: #{gpt_with_cae_forward.1} parent=1 // pred_region
      _
    $region65: #{gpt_with_cae_forward.1} parent=1 // pred_fallthru
      _
    // Predicated region
    $region66: #{gpt_with_cae_forward.1} parent=1 // pred_check
      _
    $region67: #{gpt_with_cae_forward.1} parent=1 // pred_check_branch
      %99 = sbr.rel (0) target = $region69
    $region68: #{gpt_with_cae_forward.1} parent=1 // pred_region
      _
    $region69: #{gpt_with_cae_forward.1} parent=1 // pred_fallthru
      _
    // Predicated region
    $region70: #{gpt_with_cae_forward.1} parent=1 // pred_check
      _
    $region71: #{gpt_with_cae_forward.1} parent=1 // pred_check_branch
      %101 = sbr.rel (0) target = $region73
    $region72: #{gpt_with_cae_forward.1} parent=1 // pred_region
      _
    $region73: #{gpt_with_cae_forward.1} parent=1 // pred_fallthru
      _
    // Predicated region
    $region74: #{gpt_with_cae_forward.1} parent=1 // pred_check
      _
    $region75: #{gpt_with_cae_forward.1} parent=1 // pred_check_branch
      %103 = sbr.rel (0) target = $region77
    $region76: #{gpt_with_cae_forward.1} parent=1 // pred_region
      _
    $region77: #{gpt_with_cae_forward.1} parent=1 // pred_fallthru
      _
    // Predicated region
    $region78: #{gpt_with_cae_forward.1} parent=1 // pred_check
      _
    $region79: #{gpt_with_cae_forward.1} parent=1 // pred_check_branch
      %105 = sbr.rel (0) target = $region81
    $region80: #{gpt_with_cae_forward.1} parent=1 // pred_region
      _
    $region81: #{gpt_with_cae_forward.1} parent=1 // pred_fallthru
      _
    // Predicated region
    $region82: #{gpt_with_cae_forward.1} parent=1 // pred_check
      _
    $region83: #{gpt_with_cae_forward.1} parent=1 // pred_check_branch
      %107 = sbr.rel (0) target = $region85
    $region84: #{gpt_with_cae_forward.1} parent=1 // pred_region
      _
    $region85: #{gpt_with_cae_forward.1} parent=1 // pred_fallthru
      _
    // Predicated region
    $region86: #{gpt_with_cae_forward.1} parent=1 // pred_check
      _
    $region87: #{gpt_with_cae_forward.1} parent=1 // pred_check_branch
      %109 = sbr.rel (0) target = $region89
    $region88: #{gpt_with_cae_forward.1} parent=1 // pred_region
      _
    $region89: #{gpt_with_cae_forward.1} parent=1 // pred_fallthru
      _
    // Predicated region
    $region90: #{gpt_with_cae_forward.1} parent=1 // pred_check
      _
    $region91: #{gpt_with_cae_forward.1} parent=1 // pred_check_branch
      %111 = sbr.rel (0) target = $region93
    $region92: #{gpt_with_cae_forward.1} parent=1 // pred_region
      _
    $region93: #{gpt_with_cae_forward.1} parent=1 // pred_fallthru
      _
    // Predicated region
    $region94: #{gpt_with_cae_forward.1} parent=1 // pred_check
      _
    $region95: #{gpt_with_cae_forward.1} parent=1 // pred_check_branch
      %113 = sbr.rel (0) target = $region97
    $region96: #{gpt_with_cae_forward.1} parent=1 // pred_region
      _
    $region97: #{gpt_with_cae_forward.1} parent=1 // pred_fallthru
      _
    // Predicated region
    $region98: #{gpt_with_cae_forward.1} parent=1 // pred_check
      _
    $region99: #{gpt_with_cae_forward.1} parent=1 // pred_check_branch
      %115 = sbr.rel (0) target = $region101
    $region100: #{gpt_with_cae_forward.1} parent=1 // pred_region
      _
    $region101: #{gpt_with_cae_forward.1} parent=1 // pred_fallthru
      _
    // Predicated region
    $region102: #{gpt_with_cae_forward.1} parent=1 // pred_check
      _
    $region103: #{gpt_with_cae_forward.1} parent=1 // pred_check_branch
      %117 = sbr.rel (0) target = $region105
    $region104: #{gpt_with_cae_forward.1} parent=1 // pred_region
      _
    $region105: #{gpt_with_cae_forward.1} parent=1 // pred_fallthru
      _
    // Predicated region
    $region106: #{gpt_with_cae_forward.1} parent=1 // pred_check
      _
    $region107: #{gpt_with_cae_forward.1} parent=1 // pred_check_branch
      %119 = sbr.rel (0) target = $region109
    $region108: #{gpt_with_cae_forward.1} parent=1 // pred_region
      _
    $region109: #{gpt_with_cae_forward.1} parent=1 // pred_fallthru
      _
    // Predicated region
    $region110: #{gpt_with_cae_forward.1} parent=1 // pred_check
      _
    $region111: #{gpt_with_cae_forward.1} parent=1 // pred_check_branch
      %121 = sbr.rel (0) target = $region113
    $region112: #{gpt_with_cae_forward.1} parent=1 // pred_region
      %s123 = ssub.s32 16, 16
      %124 = vsyncadd [#allocation6], %s123
      %s126 = sshll.u32 [#allocation5], 4
      %s127 = int_to_ptr.vmem [resolvable:$true] %s126
      %129 = dma.hbm_to_vmem [thread:$0]  %s55, 16, %s127, [#allocation6]
    $region113: #{gpt_with_cae_forward.1} parent=1 // pred_fallthru
      _
    // Predicated region
    $region114: #{gpt_with_cae_forward.1} parent=1 // pred_check
      _
    $region115: #{gpt_with_cae_forward.1} parent=1 // pred_check_branch
      %131 = sbr.rel (0) target = $region117
    $region116: #{gpt_with_cae_forward.1} parent=1 // pred_region
      %132 = dma.done [#allocation6], 16
    $region117: #{gpt_with_cae_forward.1} parent=1 // pred_fallthru
      _
    %v134 = vld [vmem:[%s1] sm:$0x3]
    %v135 = vld [vmem:[%s5] sm:$0xff]
    %v136 = vld [vmem:[%s7] sm:$0x1]
    %v138 = vlaneseq
    %v139 = vshrl.u32 %v138, 7
    %v140 = vsub.s32 0, %v139
    %v141 = vrot.slane %v136, %v140
    %vm143 = vcmask 64512
    %v145 = vsel %vm143, %v134, 0
    %147 = vmatprep.subr.mxu0 0.0
    %148 = vmatpush1.msra.mxu0 0.0
    %149 = vmatprep.subr.mxu0 0.0
    %150 = vmatpush1.msra.mxu0 0.0
    %151 = vmatprep.subr.mxu0 0.0
    %152 = vmatpush1.msra.mxu0 0.0
    %153 = vmatprep.subr.mxu0 0.0
    %154 = vmatpush1.msra.mxu0 0.0
    %155 = vmatprep.subr.mxu0 0.0
    %156 = vmatpush1.msra.mxu0 0.0
    %157 = vmatprep.subr.mxu0 0.0
    %158 = vmatpush1.msra.mxu0 0.0
    %159 = vmatprep.subr.mxu0 0.0
    %160 = vmatpush1.msra.mxu0 0.0
    %161 = vmatprep.subr.mxu0 0.0
    %162 = vmatpush1.msra.mxu0 0.0
    %163 = vmatprep.subr.mxu0 0.0
    %164 = vmatpush1.msra.mxu0 0.0
    %165 = vmatprep.subr.mxu0 0.0
    %166 = vmatpush1.msra.mxu0 0.0
    %167 = vmatprep.subr.mxu0 0.0
    %168 = vmatpush1.msra.mxu0 0.0
    %169 = vmatprep.subr.mxu0 0.0
    %170 = vmatpush1.msra.mxu0 0.0
    %171 = vmatprep.subr.mxu0 0.0
    %172 = vmatpush1.msra.mxu0 0.0
    %173 = vmatprep.subr.mxu0 0.0
    %174 = vmatpush1.msra.mxu0 0.0
    %175 = vmatprep.subr.mxu0 0.0
    %176 = vmatpush1.msra.mxu0 0.0
    %177 = vmatprep.subr.mxu0 0.0
    %v178 = vand.u32 %v135, 4294901760
    %179 = vmatpush1.msra.mxu0 %v178
    %180 = vmatprep.subr.mxu0 0.0
    %181 = vmatpush2.msra.mxu0 0.0
    %182 = vmatprep.subr.mxu0 0.0
    %183 = vmatpush2.msra.mxu0 0.0
    %184 = vmatprep.subr.mxu0 0.0
    %185 = vmatpush2.msra.mxu0 0.0
    %186 = vmatprep.subr.mxu0 0.0
    %187 = vmatpush2.msra.mxu0 0.0
    %188 = vmatprep.subr.mxu0 0.0
    %189 = vmatpush2.msra.mxu0 0.0
    %190 = vmatprep.subr.mxu0 0.0
    %191 = vmatpush2.msra.mxu0 0.0
    %192 = vmatprep.subr.mxu0 0.0
    %193 = vmatpush2.msra.mxu0 0.0
    %194 = vmatprep.subr.mxu0 0.0
    %195 = vmatpush2.msra.mxu0 0.0
    %196 = vmatprep.subr.mxu0 0.0
    %197 = vmatpush2.msra.mxu0 0.0
    %198 = vmatprep.subr.mxu0 0.0
    %199 = vmatpush2.msra.mxu0 0.0
    %200 = vmatprep.subr.mxu0 0.0
    %201 = vmatpush2.msra.mxu0 0.0
    %202 = vmatprep.subr.mxu0 0.0
    %203 = vmatpush2.msra.mxu0 0.0
    %204 = vmatprep.subr.mxu0 0.0
    %205 = vmatpush2.msra.mxu0 0.0
    %206 = vmatprep.subr.mxu0 0.0
    %207 = vmatpush2.msra.mxu0 0.0
    %208 = vmatprep.subr.mxu0 0.0
    %209 = vmatpush2.msra.mxu0 0.0
    %210 = vmatprep.subr.mxu0 0.0
    %211 = vmatpush2.msra.mxu0 0.0
    %212 = vmatprep.mubr.f32.mxu0 0.0
    %v213 = vand.u32 %v145, 4294901760
    %v214 = vsub.f32 %v145, %v213
    %v215 = vand.u32 %v214, 4294901760
    %v216 = vsub.f32 %v214, %v215
    %v217 = vand.u32 %v216, 4294901760
    %218 = vmatmul.mubr.f32.gmra.mxu0 %v217
    %v219 = vpop.f32.mrf.mxu0
    %v220 = vadd.f32 %v141, %v219
    %v221 = vpop.f32.mrf.mxu0
    %222 = vdwg.mxu0
    %223 = vmatprep.subr.mxu0 0.0
    %224 = vmatpush1.msra.mxu0 0.0
    %225 = vmatprep.subr.mxu0 0.0
    %226 = vmatpush1.msra.mxu0 0.0
    %227 = vmatprep.subr.mxu0 0.0
    %228 = vmatpush1.msra.mxu0 0.0
    %229 = vmatprep.subr.mxu0 0.0
    %230 = vmatpush1.msra.mxu0 0.0
    %231 = vmatprep.subr.mxu0 0.0
    %232 = vmatpush1.msra.mxu0 0.0
    %233 = vmatprep.subr.mxu0 0.0
    %234 = vmatpush1.msra.mxu0 0.0
    %235 = vmatprep.subr.mxu0 0.0
    %236 = vmatpush1.msra.mxu0 0.0
    %237 = vmatprep.subr.mxu0 0.0
    %238 = vmatpush1.msra.mxu0 0.0
    %239 = vmatprep.subr.mxu0 0.0
    %240 = vmatpush1.msra.mxu0 0.0
    %241 = vmatprep.subr.mxu0 0.0
    %242 = vmatpush1.msra.mxu0 0.0
    %243 = vmatprep.subr.mxu0 0.0
    %244 = vmatpush1.msra.mxu0 0.0
    %245 = vmatprep.subr.mxu0 0.0
    %246 = vmatpush1.msra.mxu0 0.0
    %247 = vmatprep.subr.mxu0 0.0
    %248 = vmatpush1.msra.mxu0 0.0
    %249 = vmatprep.subr.mxu0 0.0
    %250 = vmatpush1.msra.mxu0 0.0
    %251 = vmatprep.subr.mxu0 0.0
    %252 = vmatpush1.msra.mxu0 0.0
    %253 = vmatprep.subr.mxu0 0.0
    %v254 = vand.u32 %v135, 4294901760
    %v255 = vsub.f32 %v135, %v254
    %v256 = vand.u32 %v255, 4294901760
    %v257 = vsub.f32 %v255, %v256
    %v258 = vand.u32 %v257, 4294901760
    %259 = vmatpush1.msra.mxu0 %v258
    %260 = vmatprep.subr.mxu0 0.0
    %261 = vmatpush2.msra.mxu0 0.0
    %262 = vmatprep.subr.mxu0 0.0
    %263 = vmatpush2.msra.mxu0 0.0
    %264 = vmatprep.subr.mxu0 0.0
    %265 = vmatpush2.msra.mxu0 0.0
    %266 = vmatprep.subr.mxu0 0.0
    %267 = vmatpush2.msra.mxu0 0.0
    %268 = vmatprep.subr.mxu0 0.0
    %269 = vmatpush2.msra.mxu0 0.0
    %270 = vmatprep.subr.mxu0 0.0
    %271 = vmatpush2.msra.mxu0 0.0
    %272 = vmatprep.subr.mxu0 0.0
    %273 = vmatpush2.msra.mxu0 0.0
    %274 = vmatprep.subr.mxu0 0.0
    %275 = vmatpush2.msra.mxu0 0.0
    %276 = vmatprep.subr.mxu0 0.0
    %277 = vmatpush2.msra.mxu0 0.0
    %278 = vmatprep.subr.mxu0 0.0
    %279 = vmatpush2.msra.mxu0 0.0
    %280 = vmatprep.subr.mxu0 0.0
    %281 = vmatpush2.msra.mxu0 0.0
    %282 = vmatprep.subr.mxu0 0.0
    %283 = vmatpush2.msra.mxu0 0.0
    %284 = vmatprep.subr.mxu0 0.0
    %285 = vmatpush2.msra.mxu0 0.0
    %286 = vmatprep.subr.mxu0 0.0
    %287 = vmatpush2.msra.mxu0 0.0
    %288 = vmatprep.subr.mxu0 0.0
    %289 = vmatpush2.msra.mxu0 0.0
    %290 = vmatprep.subr.mxu0 0.0
    %291 = vmatpush2.msra.mxu0 0.0
    %292 = vmatprep.mubr.f32.mxu0 0.0
    %v293 = vand.u32 %v145, 4294901760
    %294 = vmatmul.mubr.f32.gmra.mxu0 %v293
    %v295 = vpop.f32.mrf.mxu0
    %v296 = vadd.f32 %v220, %v295
    %v297 = vpop.f32.mrf.mxu0
    %298 = vdwg.mxu0
    %299 = vmatprep.subr.mxu0 0.0
    %300 = vmatpush1.msra.mxu0 0.0
    %301 = vmatprep.subr.mxu0 0.0
    %302 = vmatpush1.msra.mxu0 0.0
    %303 = vmatprep.subr.mxu0 0.0
    %304 = vmatpush1.msra.mxu0 0.0
    %305 = vmatprep.subr.mxu0 0.0
    %306 = vmatpush1.msra.mxu0 0.0
    %307 = vmatprep.subr.mxu0 0.0
    %308 = vmatpush1.msra.mxu0 0.0
    %309 = vmatprep.subr.mxu0 0.0
    %310 = vmatpush1.msra.mxu0 0.0
    %311 = vmatprep.subr.mxu0 0.0
    %312 = vmatpush1.msra.mxu0 0.0
    %313 = vmatprep.subr.mxu0 0.0
    %314 = vmatpush1.msra.mxu0 0.0
    %315 = vmatprep.subr.mxu0 0.0
    %316 = vmatpush1.msra.mxu0 0.0
    %317 = vmatprep.subr.mxu0 0.0
    %318 = vmatpush1.msra.mxu0 0.0
    %319 = vmatprep.subr.mxu0 0.0
    %320 = vmatpush1.msra.mxu0 0.0
    %321 = vmatprep.subr.mxu0 0.0
    %322 = vmatpush1.msra.mxu0 0.0
    %323 = vmatprep.subr.mxu0 0.0
    %324 = vmatpush1.msra.mxu0 0.0
    %325 = vmatprep.subr.mxu0 0.0
    %326 = vmatpush1.msra.mxu0 0.0
    %327 = vmatprep.subr.mxu0 0.0
    %328 = vmatpush1.msra.mxu0 0.0
    %329 = vmatprep.subr.mxu0 0.0
    %v330 = vand.u32 %v135, 4294901760
    %v331 = vsub.f32 %v135, %v330
    %332 = vmatpush1.msra.mxu0 %v331
    %333 = vmatprep.subr.mxu0 0.0
    %334 = vmatpush2.msra.mxu0 0.0
    %335 = vmatprep.subr.mxu0 0.0
    %336 = vmatpush2.msra.mxu0 0.0
    %337 = vmatprep.subr.mxu0 0.0
    %338 = vmatpush2.msra.mxu0 0.0
    %339 = vmatprep.subr.mxu0 0.0
    %340 = vmatpush2.msra.mxu0 0.0
    %341 = vmatprep.subr.mxu0 0.0
    %342 = vmatpush2.msra.mxu0 0.0
    %343 = vmatprep.subr.mxu0 0.0
    %344 = vmatpush2.msra.mxu0 0.0
    %345 = vmatprep.subr.mxu0 0.0
    %346 = vmatpush2.msra.mxu0 0.0
    %347 = vmatprep.subr.mxu0 0.0
    %348 = vmatpush2.msra.mxu0 0.0
    %349 = vmatprep.subr.mxu0 0.0
    %350 = vmatpush2.msra.mxu0 0.0
    %351 = vmatprep.subr.mxu0 0.0
    %352 = vmatpush2.msra.mxu0 0.0
    %353 = vmatprep.subr.mxu0 0.0
    %354 = vmatpush2.msra.mxu0 0.0
    %355 = vmatprep.subr.mxu0 0.0
    %356 = vmatpush2.msra.mxu0 0.0
    %357 = vmatprep.subr.mxu0 0.0
    %358 = vmatpush2.msra.mxu0 0.0
    %359 = vmatprep.subr.mxu0 0.0
    %360 = vmatpush2.msra.mxu0 0.0
    %361 = vmatprep.subr.mxu0 0.0
    %362 = vmatpush2.msra.mxu0 0.0
    %363 = vmatprep.subr.mxu0 0.0
    %364 = vmatpush2.msra.mxu0 0.0
    %365 = vmatprep.mubr.f32.mxu0 0.0
    %v366 = vand.u32 %v145, 4294901760
    %v367 = vsub.f32 %v145, %v366
    %368 = vmatmul.mubr.f32.gmra.mxu0 %v367
    %v369 = vpop.f32.mrf.mxu0
    %v370 = vadd.f32 %v296, %v369
    %v371 = vpop.f32.mrf.mxu0
    %372 = vdwg.mxu0
    %373 = vmatprep.subr.mxu0 0.0
    %374 = vmatpush1.msra.mxu0 0.0
    %375 = vmatprep.subr.mxu0 0.0
    %376 = vmatpush1.msra.mxu0 0.0
    %377 = vmatprep.subr.mxu0 0.0
    %378 = vmatpush1.msra.mxu0 0.0
    %379 = vmatprep.subr.mxu0 0.0
    %380 = vmatpush1.msra.mxu0 0.0
    %381 = vmatprep.subr.mxu0 0.0
    %382 = vmatpush1.msra.mxu0 0.0
    %383 = vmatprep.subr.mxu0 0.0
    %384 = vmatpush1.msra.mxu0 0.0
    %385 = vmatprep.subr.mxu0 0.0
    %386 = vmatpush1.msra.mxu0 0.0
    %387 = vmatprep.subr.mxu0 0.0
    %388 = vmatpush1.msra.mxu0 0.0
    %389 = vmatprep.subr.mxu0 0.0
    %390 = vmatpush1.msra.mxu0 0.0
    %391 = vmatprep.subr.mxu0 0.0
    %392 = vmatpush1.msra.mxu0 0.0
    %393 = vmatprep.subr.mxu0 0.0
    %394 = vmatpush1.msra.mxu0 0.0
    %395 = vmatprep.subr.mxu0 0.0
    %396 = vmatpush1.msra.mxu0 0.0
    %397 = vmatprep.subr.mxu0 0.0
    %398 = vmatpush1.msra.mxu0 0.0
    %399 = vmatprep.subr.mxu0 0.0
    %400 = vmatpush1.msra.mxu0 0.0
    %401 = vmatprep.subr.mxu0 0.0
    %402 = vmatpush1.msra.mxu0 0.0
    %403 = vmatprep.subr.mxu0 0.0
    %v404 = vand.u32 %v135, 4294901760
    %405 = vmatpush1.msra.mxu0 %v404
    %406 = vmatprep.subr.mxu0 0.0
    %407 = vmatpush2.msra.mxu0 0.0
    %408 = vmatprep.subr.mxu0 0.0
    %409 = vmatpush2.msra.mxu0 0.0
    %410 = vmatprep.subr.mxu0 0.0
    %411 = vmatpush2.msra.mxu0 0.0
    %412 = vmatprep.subr.mxu0 0.0
    %413 = vmatpush2.msra.mxu0 0.0
    %414 = vmatprep.subr.mxu0 0.0
    %415 = vmatpush2.msra.mxu0 0.0
    %416 = vmatprep.subr.mxu0 0.0
    %417 = vmatpush2.msra.mxu0 0.0
    %418 = vmatprep.subr.mxu0 0.0
    %419 = vmatpush2.msra.mxu0 0.0
    %420 = vmatprep.subr.mxu0 0.0
    %421 = vmatpush2.msra.mxu0 0.0
    %422 = vmatprep.subr.mxu0 0.0
    %423 = vmatpush2.msra.mxu0 0.0
    %424 = vmatprep.subr.mxu0 0.0
    %425 = vmatpush2.msra.mxu0 0.0
    %426 = vmatprep.subr.mxu0 0.0
    %427 = vmatpush2.msra.mxu0 0.0
    %428 = vmatprep.subr.mxu0 0.0
    %429 = vmatpush2.msra.mxu0 0.0
    %430 = vmatprep.subr.mxu0 0.0
    %431 = vmatpush2.msra.mxu0 0.0
    %432 = vmatprep.subr.mxu0 0.0
    %433 = vmatpush2.msra.mxu0 0.0
    %434 = vmatprep.subr.mxu0 0.0
    %435 = vmatpush2.msra.mxu0 0.0
    %436 = vmatprep.subr.mxu0 0.0
    %437 = vmatpush2.msra.mxu0 0.0
    %438 = vmatprep.mubr.f32.mxu0 0.0
    %v439 = vand.u32 %v145, 4294901760
    %v440 = vsub.f32 %v145, %v439
    %v441 = vand.u32 %v440, 4294901760
    %442 = vmatmul.mubr.f32.gmra.mxu0 %v441
    %v443 = vpop.f32.mrf.mxu0
    %v444 = vadd.f32 %v370, %v443
    %v445 = vpop.f32.mrf.mxu0
    %446 = vdwg.mxu0
    %447 = vmatprep.subr.mxu0 0.0
    %448 = vmatpush1.msra.mxu0 0.0
    %449 = vmatprep.subr.mxu0 0.0
    %450 = vmatpush1.msra.mxu0 0.0
    %451 = vmatprep.subr.mxu0 0.0
    %452 = vmatpush1.msra.mxu0 0.0
    %453 = vmatprep.subr.mxu0 0.0
    %454 = vmatpush1.msra.mxu0 0.0
    %455 = vmatprep.subr.mxu0 0.0
    %456 = vmatpush1.msra.mxu0 0.0
    %457 = vmatprep.subr.mxu0 0.0
    %458 = vmatpush1.msra.mxu0 0.0
    %459 = vmatprep.subr.mxu0 0.0
    %460 = vmatpush1.msra.mxu0 0.0
    %461 = vmatprep.subr.mxu0 0.0
    %462 = vmatpush1.msra.mxu0 0.0
    %463 = vmatprep.subr.mxu0 0.0
    %464 = vmatpush1.msra.mxu0 0.0
    %465 = vmatprep.subr.mxu0 0.0
    %466 = vmatpush1.msra.mxu0 0.0
    %467 = vmatprep.subr.mxu0 0.0
    %468 = vmatpush1.msra.mxu0 0.0
    %469 = vmatprep.subr.mxu0 0.0
    %470 = vmatpush1.msra.mxu0 0.0
    %471 = vmatprep.subr.mxu0 0.0
    %472 = vmatpush1.msra.mxu0 0.0
    %473 = vmatprep.subr.mxu0 0.0
    %474 = vmatpush1.msra.mxu0 0.0
    %475 = vmatprep.subr.mxu0 0.0
    %476 = vmatpush1.msra.mxu0 0.0
    %477 = vmatprep.subr.mxu0 0.0
    %v478 = vand.u32 %v135, 4294901760
    %v479 = vsub.f32 %v135, %v478
    %v480 = vand.u32 %v479, 4294901760
    %481 = vmatpush1.msra.mxu0 %v480
    %482 = vmatprep.subr.mxu0 0.0
    %483 = vmatpush2.msra.mxu0 0.0
    %484 = vmatprep.subr.mxu0 0.0
    %485 = vmatpush2.msra.mxu0 0.0
    %486 = vmatprep.subr.mxu0 0.0
    %487 = vmatpush2.msra.mxu0 0.0
    %488 = vmatprep.subr.mxu0 0.0
    %489 = vmatpush2.msra.mxu0 0.0
    %490 = vmatprep.subr.mxu0 0.0
    %491 = vmatpush2.msra.mxu0 0.0
    %492 = vmatprep.subr.mxu0 0.0
    %493 = vmatpush2.msra.mxu0 0.0
    %494 = vmatprep.subr.mxu0 0.0
    %495 = vmatpush2.msra.mxu0 0.0
    %496 = vmatprep.subr.mxu0 0.0
    %497 = vmatpush2.msra.mxu0 0.0
    %498 = vmatprep.subr.mxu0 0.0
    %499 = vmatpush2.msra.mxu0 0.0
    %500 = vmatprep.subr.mxu0 0.0
    %501 = vmatpush2.msra.mxu0 0.0
    %502 = vmatprep.subr.mxu0 0.0
    %503 = vmatpush2.msra.mxu0 0.0
    %504 = vmatprep.subr.mxu0 0.0
    %505 = vmatpush2.msra.mxu0 0.0
    %506 = vmatprep.subr.mxu0 0.0
    %507 = vmatpush2.msra.mxu0 0.0
    %508 = vmatprep.subr.mxu0 0.0
    %509 = vmatpush2.msra.mxu0 0.0
    %510 = vmatprep.subr.mxu0 0.0
    %511 = vmatpush2.msra.mxu0 0.0
    %512 = vmatprep.subr.mxu0 0.0
    %513 = vmatpush2.msra.mxu0 0.0
    %514 = vmatprep.mubr.f32.mxu0 0.0
    %v515 = vand.u32 %v145, 4294901760
    %516 = vmatmul.mubr.f32.gmra.mxu0 %v515
    %v517 = vpop.f32.mrf.mxu0
    %v518 = vadd.f32 %v444, %v517
    %v519 = vpop.f32.mrf.mxu0
    %520 = vdwg.mxu0
    %521 = vmatprep.subr.mxu0 0.0
    %522 = vmatpush1.msra.mxu0 0.0
    %523 = vmatprep.subr.mxu0 0.0
    %524 = vmatpush1.msra.mxu0 0.0
    %525 = vmatprep.subr.mxu0 0.0
    %526 = vmatpush1.msra.mxu0 0.0
    %527 = vmatprep.subr.mxu0 0.0
    %528 = vmatpush1.msra.mxu0 0.0
    %529 = vmatprep.subr.mxu0 0.0
    %530 = vmatpush1.msra.mxu0 0.0
    %531 = vmatprep.subr.mxu0 0.0
    %532 = vmatpush1.msra.mxu0 0.0
    %533 = vmatprep.subr.mxu0 0.0
    %534 = vmatpush1.msra.mxu0 0.0
    %535 = vmatprep.subr.mxu0 0.0
    %536 = vmatpush1.msra.mxu0 0.0
    %537 = vmatprep.subr.mxu0 0.0
    %538 = vmatpush1.msra.mxu0 0.0
    %539 = vmatprep.subr.mxu0 0.0
    %540 = vmatpush1.msra.mxu0 0.0
    %541 = vmatprep.subr.mxu0 0.0
    %542 = vmatpush1.msra.mxu0 0.0
    %543 = vmatprep.subr.mxu0 0.0
    %544 = vmatpush1.msra.mxu0 0.0
    %545 = vmatprep.subr.mxu0 0.0
    %546 = vmatpush1.msra.mxu0 0.0
    %547 = vmatprep.subr.mxu0 0.0
    %548 = vmatpush1.msra.mxu0 0.0
    %549 = vmatprep.subr.mxu0 0.0
    %550 = vmatpush1.msra.mxu0 0.0
    %551 = vmatprep.subr.mxu0 0.0
    %v552 = vand.u32 %v135, 4294901760
    %553 = vmatpush1.msra.mxu0 %v552
    %554 = vmatprep.subr.mxu0 0.0
    %555 = vmatpush2.msra.mxu0 0.0
    %556 = vmatprep.subr.mxu0 0.0
    %557 = vmatpush2.msra.mxu0 0.0
    %558 = vmatprep.subr.mxu0 0.0
    %559 = vmatpush2.msra.mxu0 0.0
    %560 = vmatprep.subr.mxu0 0.0
    %561 = vmatpush2.msra.mxu0 0.0
    %562 = vmatprep.subr.mxu0 0.0
    %563 = vmatpush2.msra.mxu0 0.0
    %564 = vmatprep.subr.mxu0 0.0
    %565 = vmatpush2.msra.mxu0 0.0
    %566 = vmatprep.subr.mxu0 0.0
    %567 = vmatpush2.msra.mxu0 0.0
    %568 = vmatprep.subr.mxu0 0.0
    %569 = vmatpush2.msra.mxu0 0.0
    %570 = vmatprep.subr.mxu0 0.0
    %571 = vmatpush2.msra.mxu0 0.0
    %572 = vmatprep.subr.mxu0 0.0
    %573 = vmatpush2.msra.mxu0 0.0
    %574 = vmatprep.subr.mxu0 0.0
    %575 = vmatpush2.msra.mxu0 0.0
    %576 = vmatprep.subr.mxu0 0.0
    %577 = vmatpush2.msra.mxu0 0.0
    %578 = vmatprep.subr.mxu0 0.0
    %579 = vmatpush2.msra.mxu0 0.0
    %580 = vmatprep.subr.mxu0 0.0
    %581 = vmatpush2.msra.mxu0 0.0
    %582 = vmatprep.subr.mxu0 0.0
    %583 = vmatpush2.msra.mxu0 0.0
    %584 = vmatprep.subr.mxu0 0.0
    %585 = vmatpush2.msra.mxu0 0.0
    %586 = vmatprep.mubr.f32.mxu0 0.0
    %v587 = vand.u32 %v145, 4294901760
    %588 = vmatmul.mubr.f32.gmra.mxu0 %v587
    %v589 = vpop.f32.mrf.mxu0
    %v590 = vadd.f32 %v518, %v589
    %v591 = vpop.f32.mrf.mxu0
    %592 = vdwg.mxu0
    %v593 = vmax.f32 %v590, 0.0
    %v594 = vld [vmem:[%s9] sm:$0xff]
    %v595 = vld [vmem:[%s9 + $0x8] sm:$0xff]
    %v596 = vld [vmem:[%s9 + $0x10] sm:$0xff]
    %v597 = vld [vmem:[%s9 + $0x18] sm:$0xff]
    %v598 = vld [vmem:[%s11] sm:$0x1]
    %v600 = vlaneseq
    %v601 = vshrl.u32 %v600, 7
    %v602 = vsub.s32 0, %v601
    %v603 = vrot.slane %v598, %v602
    %vm605 = vcmask 261120
    %v607 = vsel %vm605, %v593, 0
    %609 = vmatprep.subr.mxu0 0.0
    %610 = vmatpush1.msra.mxu0 0.0
    %611 = vmatprep.subr.mxu0 0.0
    %612 = vmatpush1.msra.mxu0 0.0
    %613 = vmatprep.subr.mxu0 0.0
    %614 = vmatpush1.msra.mxu0 0.0
    %615 = vmatprep.subr.mxu0 0.0
    %616 = vmatpush1.msra.mxu0 0.0
    %617 = vmatprep.subr.mxu0 0.0
    %618 = vmatpush1.msra.mxu0 0.0
    %619 = vmatprep.subr.mxu0 0.0
    %620 = vmatpush1.msra.mxu0 0.0
    %621 = vmatprep.subr.mxu0 0.0
    %622 = vmatpush1.msra.mxu0 0.0
    %623 = vmatprep.subr.mxu0 0.0
    %624 = vmatpush1.msra.mxu0 0.0
    %625 = vmatprep.subr.mxu0 0.0
    %626 = vmatpush1.msra.mxu0 0.0
    %627 = vmatprep.subr.mxu0 0.0
    %628 = vmatpush1.msra.mxu0 0.0
    %629 = vmatprep.subr.mxu0 0.0
    %630 = vmatpush1.msra.mxu0 0.0
    %631 = vmatprep.subr.mxu0 0.0
    %632 = vmatpush1.msra.mxu0 0.0
    %633 = vmatprep.subr.mxu0 0.0
    %v634 = vand.u32 %v597, 4294901760
    %635 = vmatpush1.msra.mxu0 %v634
    %636 = vmatprep.subr.mxu0 0.0
    %v637 = vand.u32 %v596, 4294901760
    %638 = vmatpush1.msra.mxu0 %v637
    %639 = vmatprep.subr.mxu0 0.0
    %v640 = vand.u32 %v595, 4294901760
    %641 = vmatpush1.msra.mxu0 %v640
    %642 = vmatprep.subr.mxu0 0.0
    %v643 = vand.u32 %v594, 4294901760
    %644 = vmatpush1.msra.mxu0 %v643
    %645 = vmatprep.subr.mxu0 0.0
    %646 = vmatpush2.msra.mxu0 0.0
    %647 = vmatprep.subr.mxu0 0.0
    %648 = vmatpush2.msra.mxu0 0.0
    %649 = vmatprep.subr.mxu0 0.0
    %650 = vmatpush2.msra.mxu0 0.0
    %651 = vmatprep.subr.mxu0 0.0
    %652 = vmatpush2.msra.mxu0 0.0
    %653 = vmatprep.subr.mxu0 0.0
    %654 = vmatpush2.msra.mxu0 0.0
    %655 = vmatprep.subr.mxu0 0.0
    %656 = vmatpush2.msra.mxu0 0.0
    %657 = vmatprep.subr.mxu0 0.0
    %658 = vmatpush2.msra.mxu0 0.0
    %659 = vmatprep.subr.mxu0 0.0
    %660 = vmatpush2.msra.mxu0 0.0
    %661 = vmatprep.subr.mxu0 0.0
    %662 = vmatpush2.msra.mxu0 0.0
    %663 = vmatprep.subr.mxu0 0.0
    %664 = vmatpush2.msra.mxu0 0.0
    %665 = vmatprep.subr.mxu0 0.0
    %666 = vmatpush2.msra.mxu0 0.0
    %667 = vmatprep.subr.mxu0 0.0
    %668 = vmatpush2.msra.mxu0 0.0
    %669 = vmatprep.subr.mxu0 0.0
    %670 = vmatpush2.msra.mxu0 0.0
    %671 = vmatprep.subr.mxu0 0.0
    %672 = vmatpush2.msra.mxu0 0.0
    %673 = vmatprep.subr.mxu0 0.0
    %674 = vmatpush2.msra.mxu0 0.0
    %675 = vmatprep.subr.mxu0 0.0
    %676 = vmatpush2.msra.mxu0 0.0
    %677 = vmatprep.mubr.f32.mxu0 0.0
    %v678 = vand.u32 %v607, 4294901760
    %v679 = vsub.f32 %v607, %v678
    %v680 = vand.u32 %v679, 4294901760
    %v681 = vsub.f32 %v679, %v680
    %v682 = vand.u32 %v681, 4294901760
    %683 = vmatmul.mubr.f32.gmra.mxu0 %v682
    %v684 = vpop.f32.mrf.mxu0
    %v685 = vadd.f32 %v603, %v684
    %v686 = vpop.f32.mrf.mxu0
    %687 = vdwg.mxu0
    %688 = vmatprep.subr.mxu0 0.0
    %689 = vmatpush1.msra.mxu0 0.0
    %690 = vmatprep.subr.mxu0 0.0
    %691 = vmatpush1.msra.mxu0 0.0
    %692 = vmatprep.subr.mxu0 0.0
    %693 = vmatpush1.msra.mxu0 0.0
    %694 = vmatprep.subr.mxu0 0.0
    %695 = vmatpush1.msra.mxu0 0.0
    %696 = vmatprep.subr.mxu0 0.0
    %697 = vmatpush1.msra.mxu0 0.0
    %698 = vmatprep.subr.mxu0 0.0
    %699 = vmatpush1.msra.mxu0 0.0
    %700 = vmatprep.subr.mxu0 0.0
    %701 = vmatpush1.msra.mxu0 0.0
    %702 = vmatprep.subr.mxu0 0.0
    %703 = vmatpush1.msra.mxu0 0.0
    %704 = vmatprep.subr.mxu0 0.0
    %705 = vmatpush1.msra.mxu0 0.0
    %706 = vmatprep.subr.mxu0 0.0
    %707 = vmatpush1.msra.mxu0 0.0
    %708 = vmatprep.subr.mxu0 0.0
    %709 = vmatpush1.msra.mxu0 0.0
    %710 = vmatprep.subr.mxu0 0.0
    %711 = vmatpush1.msra.mxu0 0.0
    %712 = vmatprep.subr.mxu0 0.0
    %v713 = vand.u32 %v597, 4294901760
    %v714 = vsub.f32 %v597, %v713
    %v715 = vand.u32 %v714, 4294901760
    %v716 = vsub.f32 %v714, %v715
    %v717 = vand.u32 %v716, 4294901760
    %718 = vmatpush1.msra.mxu0 %v717
    %719 = vmatprep.subr.mxu0 0.0
    %v720 = vand.u32 %v596, 4294901760
    %v721 = vsub.f32 %v596, %v720
    %v722 = vand.u32 %v721, 4294901760
    %v723 = vsub.f32 %v721, %v722
    %v724 = vand.u32 %v723, 4294901760
    %725 = vmatpush1.msra.mxu0 %v724
    %726 = vmatprep.subr.mxu0 0.0
    %v727 = vand.u32 %v595, 4294901760
    %v728 = vsub.f32 %v595, %v727
    %v729 = vand.u32 %v728, 4294901760
    %v730 = vsub.f32 %v728, %v729
    %v731 = vand.u32 %v730, 4294901760
    %732 = vmatpush1.msra.mxu0 %v731
    %733 = vmatprep.subr.mxu0 0.0
    %v734 = vand.u32 %v594, 4294901760
    %v735 = vsub.f32 %v594, %v734
    %v736 = vand.u32 %v735, 4294901760
    %v737 = vsub.f32 %v735, %v736
    %v738 = vand.u32 %v737, 4294901760
    %739 = vmatpush1.msra.mxu0 %v738
    %740 = vmatprep.subr.mxu0 0.0
    %741 = vmatpush2.msra.mxu0 0.0
    %742 = vmatprep.subr.mxu0 0.0
    %743 = vmatpush2.msra.mxu0 0.0
    %744 = vmatprep.subr.mxu0 0.0
    %745 = vmatpush2.msra.mxu0 0.0
    %746 = vmatprep.subr.mxu0 0.0
    %747 = vmatpush2.msra.mxu0 0.0
    %748 = vmatprep.subr.mxu0 0.0
    %749 = vmatpush2.msra.mxu0 0.0
    %750 = vmatprep.subr.mxu0 0.0
    %751 = vmatpush2.msra.mxu0 0.0
    %752 = vmatprep.subr.mxu0 0.0
    %753 = vmatpush2.msra.mxu0 0.0
    %754 = vmatprep.subr.mxu0 0.0
    %755 = vmatpush2.msra.mxu0 0.0
    %756 = vmatprep.subr.mxu0 0.0
    %757 = vmatpush2.msra.mxu0 0.0
    %758 = vmatprep.subr.mxu0 0.0
    %759 = vmatpush2.msra.mxu0 0.0
    %760 = vmatprep.subr.mxu0 0.0
    %761 = vmatpush2.msra.mxu0 0.0
    %762 = vmatprep.subr.mxu0 0.0
    %763 = vmatpush2.msra.mxu0 0.0
    %764 = vmatprep.subr.mxu0 0.0
    %765 = vmatpush2.msra.mxu0 0.0
    %766 = vmatprep.subr.mxu0 0.0
    %767 = vmatpush2.msra.mxu0 0.0
    %768 = vmatprep.subr.mxu0 0.0
    %769 = vmatpush2.msra.mxu0 0.0
    %770 = vmatprep.subr.mxu0 0.0
    %771 = vmatpush2.msra.mxu0 0.0
    %772 = vmatprep.mubr.f32.mxu0 0.0
    %v773 = vand.u32 %v607, 4294901760
    %774 = vmatmul.mubr.f32.gmra.mxu0 %v773
    %v775 = vpop.f32.mrf.mxu0
    %v776 = vadd.f32 %v685, %v775
    %v777 = vpop.f32.mrf.mxu0
    %778 = vdwg.mxu0
    %779 = vmatprep.subr.mxu0 0.0
    %780 = vmatpush1.msra.mxu0 0.0
    %781 = vmatprep.subr.mxu0 0.0
    %782 = vmatpush1.msra.mxu0 0.0
    %783 = vmatprep.subr.mxu0 0.0
    %784 = vmatpush1.msra.mxu0 0.0
    %785 = vmatprep.subr.mxu0 0.0
    %786 = vmatpush1.msra.mxu0 0.0
    %787 = vmatprep.subr.mxu0 0.0
    %788 = vmatpush1.msra.mxu0 0.0
    %789 = vmatprep.subr.mxu0 0.0
    %790 = vmatpush1.msra.mxu0 0.0
    %791 = vmatprep.subr.mxu0 0.0
    %792 = vmatpush1.msra.mxu0 0.0
    %793 = vmatprep.subr.mxu0 0.0
    %794 = vmatpush1.msra.mxu0 0.0
    %795 = vmatprep.subr.mxu0 0.0
    %796 = vmatpush1.msra.mxu0 0.0
    %797 = vmatprep.subr.mxu0 0.0
    %798 = vmatpush1.msra.mxu0 0.0
    %799 = vmatprep.subr.mxu0 0.0
    %800 = vmatpush1.msra.mxu0 0.0
    %801 = vmatprep.subr.mxu0 0.0
    %802 = vmatpush1.msra.mxu0 0.0
    %803 = vmatprep.subr.mxu0 0.0
    %v804 = vand.u32 %v597, 4294901760
    %v805 = vsub.f32 %v597, %v804
    %806 = vmatpush1.msra.mxu0 %v805
    %807 = vmatprep.subr.mxu0 0.0
    %v808 = vand.u32 %v596, 4294901760
    %v809 = vsub.f32 %v596, %v808
    %810 = vmatpush1.msra.mxu0 %v809
    %811 = vmatprep.subr.mxu0 0.0
    %v812 = vand.u32 %v595, 4294901760
    %v813 = vsub.f32 %v595, %v812
    %814 = vmatpush1.msra.mxu0 %v813
    %815 = vmatprep.subr.mxu0 0.0
    %v816 = vand.u32 %v594, 4294901760
    %v817 = vsub.f32 %v594, %v816
    %818 = vmatpush1.msra.mxu0 %v817
    %819 = vmatprep.subr.mxu0 0.0
    %820 = vmatpush2.msra.mxu0 0.0
    %821 = vmatprep.subr.mxu0 0.0
    %822 = vmatpush2.msra.mxu0 0.0
    %823 = vmatprep.subr.mxu0 0.0
    %824 = vmatpush2.msra.mxu0 0.0
    %825 = vmatprep.subr.mxu0 0.0
    %826 = vmatpush2.msra.mxu0 0.0
    %827 = vmatprep.subr.mxu0 0.0
    %828 = vmatpush2.msra.mxu0 0.0
    %829 = vmatprep.subr.mxu0 0.0
    %830 = vmatpush2.msra.mxu0 0.0
    %831 = vmatprep.subr.mxu0 0.0
    %832 = vmatpush2.msra.mxu0 0.0
    %833 = vmatprep.subr.mxu0 0.0
    %834 = vmatpush2.msra.mxu0 0.0
    %835 = vmatprep.subr.mxu0 0.0
    %836 = vmatpush2.msra.mxu0 0.0
    %837 = vmatprep.subr.mxu0 0.0
    %838 = vmatpush2.msra.mxu0 0.0
    %839 = vmatprep.subr.mxu0 0.0
    %840 = vmatpush2.msra.mxu0 0.0
    %841 = vmatprep.subr.mxu0 0.0
    %842 = vmatpush2.msra.mxu0 0.0
    %843 = vmatprep.subr.mxu0 0.0
    %844 = vmatpush2.msra.mxu0 0.0
    %845 = vmatprep.subr.mxu0 0.0
    %846 = vmatpush2.msra.mxu0 0.0
    %847 = vmatprep.subr.mxu0 0.0
    %848 = vmatpush2.msra.mxu0 0.0
    %849 = vmatprep.subr.mxu0 0.0
    %850 = vmatpush2.msra.mxu0 0.0
    %851 = vmatprep.mubr.f32.mxu0 0.0
    %v852 = vand.u32 %v607, 4294901760
    %v853 = vsub.f32 %v607, %v852
    %854 = vmatmul.mubr.f32.gmra.mxu0 %v853
    %v855 = vpop.f32.mrf.mxu0
    %v856 = vadd.f32 %v776, %v855
    %v857 = vpop.f32.mrf.mxu0
    %858 = vdwg.mxu0
    %859 = vmatprep.subr.mxu0 0.0
    %860 = vmatpush1.msra.mxu0 0.0
    %861 = vmatprep.subr.mxu0 0.0
    %862 = vmatpush1.msra.mxu0 0.0
    %863 = vmatprep.subr.mxu0 0.0
    %864 = vmatpush1.msra.mxu0 0.0
    %865 = vmatprep.subr.mxu0 0.0
    %866 = vmatpush1.msra.mxu0 0.0
    %867 = vmatprep.subr.mxu0 0.0
    %868 = vmatpush1.msra.mxu0 0.0
    %869 = vmatprep.subr.mxu0 0.0
    %870 = vmatpush1.msra.mxu0 0.0
    %871 = vmatprep.subr.mxu0 0.0
    %872 = vmatpush1.msra.mxu0 0.0
    %873 = vmatprep.subr.mxu0 0.0
    %874 = vmatpush1.msra.mxu0 0.0
    %875 = vmatprep.subr.mxu0 0.0
    %876 = vmatpush1.msra.mxu0 0.0
    %877 = vmatprep.subr.mxu0 0.0
    %878 = vmatpush1.msra.mxu0 0.0
    %879 = vmatprep.subr.mxu0 0.0
    %880 = vmatpush1.msra.mxu0 0.0
    %881 = vmatprep.subr.mxu0 0.0
    %882 = vmatpush1.msra.mxu0 0.0
    %883 = vmatprep.subr.mxu0 0.0
    %v884 = vand.u32 %v597, 4294901760
    %885 = vmatpush1.msra.mxu0 %v884
    %886 = vmatprep.subr.mxu0 0.0
    %v887 = vand.u32 %v596, 4294901760
    %888 = vmatpush1.msra.mxu0 %v887
    %889 = vmatprep.subr.mxu0 0.0
    %v890 = vand.u32 %v595, 4294901760
    %891 = vmatpush1.msra.mxu0 %v890
    %892 = vmatprep.subr.mxu0 0.0
    %v893 = vand.u32 %v594, 4294901760
    %894 = vmatpush1.msra.mxu0 %v893
    %895 = vmatprep.subr.mxu0 0.0
    %896 = vmatpush2.msra.mxu0 0.0
    %897 = vmatprep.subr.mxu0 0.0
    %898 = vmatpush2.msra.mxu0 0.0
    %899 = vmatprep.subr.mxu0 0.0
    %900 = vmatpush2.msra.mxu0 0.0
    %901 = vmatprep.subr.mxu0 0.0
    %902 = vmatpush2.msra.mxu0 0.0
    %903 = vmatprep.subr.mxu0 0.0
    %904 = vmatpush2.msra.mxu0 0.0
    %905 = vmatprep.subr.mxu0 0.0
    %906 = vmatpush2.msra.mxu0 0.0
    %907 = vmatprep.subr.mxu0 0.0
    %908 = vmatpush2.msra.mxu0 0.0
    %909 = vmatprep.subr.mxu0 0.0
    %910 = vmatpush2.msra.mxu0 0.0
    %911 = vmatprep.subr.mxu0 0.0
    %912 = vmatpush2.msra.mxu0 0.0
    %913 = vmatprep.subr.mxu0 0.0
    %914 = vmatpush2.msra.mxu0 0.0
    %915 = vmatprep.subr.mxu0 0.0
    %916 = vmatpush2.msra.mxu0 0.0
    %917 = vmatprep.subr.mxu0 0.0
    %918 = vmatpush2.msra.mxu0 0.0
    %919 = vmatprep.subr.mxu0 0.0
    %920 = vmatpush2.msra.mxu0 0.0
    %921 = vmatprep.subr.mxu0 0.0
    %922 = vmatpush2.msra.mxu0 0.0
    %923 = vmatprep.subr.mxu0 0.0
    %924 = vmatpush2.msra.mxu0 0.0
    %925 = vmatprep.subr.mxu0 0.0
    %926 = vmatpush2.msra.mxu0 0.0
    %927 = vmatprep.mubr.f32.mxu0 0.0
    %v928 = vand.u32 %v607, 4294901760
    %v929 = vsub.f32 %v607, %v928
    %v930 = vand.u32 %v929, 4294901760
    %931 = vmatmul.mubr.f32.gmra.mxu0 %v930
    %v932 = vpop.f32.mrf.mxu0
    %v933 = vadd.f32 %v856, %v932
    %v934 = vpop.f32.mrf.mxu0
    %935 = vdwg.mxu0
    %936 = vmatprep.subr.mxu0 0.0
    %937 = vmatpush1.msra.mxu0 0.0
    %938 = vmatprep.subr.mxu0 0.0
    %939 = vmatpush1.msra.mxu0 0.0
    %940 = vmatprep.subr.mxu0 0.0
    %941 = vmatpush1.msra.mxu0 0.0
    %942 = vmatprep.subr.mxu0 0.0
    %943 = vmatpush1.msra.mxu0 0.0
    %944 = vmatprep.subr.mxu0 0.0
    %945 = vmatpush1.msra.mxu0 0.0
    %946 = vmatprep.subr.mxu0 0.0
    %947 = vmatpush1.msra.mxu0 0.0
    %948 = vmatprep.subr.mxu0 0.0
    %949 = vmatpush1.msra.mxu0 0.0
    %950 = vmatprep.subr.mxu0 0.0
    %951 = vmatpush1.msra.mxu0 0.0
    %952 = vmatprep.subr.mxu0 0.0
    %953 = vmatpush1.msra.mxu0 0.0
    %954 = vmatprep.subr.mxu0 0.0
    %955 = vmatpush1.msra.mxu0 0.0
    %956 = vmatprep.subr.mxu0 0.0
    %957 = vmatpush1.msra.mxu0 0.0
    %958 = vmatprep.subr.mxu0 0.0
    %959 = vmatpush1.msra.mxu0 0.0
    %960 = vmatprep.subr.mxu0 0.0
    %v961 = vand.u32 %v597, 4294901760
    %v962 = vsub.f32 %v597, %v961
    %v963 = vand.u32 %v962, 4294901760
    %964 = vmatpush1.msra.mxu0 %v963
    %965 = vmatprep.subr.mxu0 0.0
    %v966 = vand.u32 %v596, 4294901760
    %v967 = vsub.f32 %v596, %v966
    %v968 = vand.u32 %v967, 4294901760
    %969 = vmatpush1.msra.mxu0 %v968
    %970 = vmatprep.subr.mxu0 0.0
    %v971 = vand.u32 %v595, 4294901760
    %v972 = vsub.f32 %v595, %v971
    %v973 = vand.u32 %v972, 4294901760
    %974 = vmatpush1.msra.mxu0 %v973
    %975 = vmatprep.subr.mxu0 0.0
    %v976 = vand.u32 %v594, 4294901760
    %v977 = vsub.f32 %v594, %v976
    %v978 = vand.u32 %v977, 4294901760
    %979 = vmatpush1.msra.mxu0 %v978
    %980 = vmatprep.subr.mxu0 0.0
    %981 = vmatpush2.msra.mxu0 0.0
    %982 = vmatprep.subr.mxu0 0.0
    %983 = vmatpush2.msra.mxu0 0.0
    %984 = vmatprep.subr.mxu0 0.0
    %985 = vmatpush2.msra.mxu0 0.0
    %986 = vmatprep.subr.mxu0 0.0
    %987 = vmatpush2.msra.mxu0 0.0
    %988 = vmatprep.subr.mxu0 0.0
    %989 = vmatpush2.msra.mxu0 0.0
    %990 = vmatprep.subr.mxu0 0.0
    %991 = vmatpush2.msra.mxu0 0.0
    %992 = vmatprep.subr.mxu0 0.0
    %993 = vmatpush2.msra.mxu0 0.0
    %994 = vmatprep.subr.mxu0 0.0
    %995 = vmatpush2.msra.mxu0 0.0
    %996 = vmatprep.subr.mxu0 0.0
    %997 = vmatpush2.msra.mxu0 0.0
    %998 = vmatprep.subr.mxu0 0.0
    %999 = vmatpush2.msra.mxu0 0.0
    %1000 = vmatprep.subr.mxu0 0.0
    %1001 = vmatpush2.msra.mxu0 0.0
    %1002 = vmatprep.subr.mxu0 0.0
    %1003 = vmatpush2.msra.mxu0 0.0
    %1004 = vmatprep.subr.mxu0 0.0
    %1005 = vmatpush2.msra.mxu0 0.0
    %1006 = vmatprep.subr.mxu0 0.0
    %1007 = vmatpush2.msra.mxu0 0.0
    %1008 = vmatprep.subr.mxu0 0.0
    %1009 = vmatpush2.msra.mxu0 0.0
    %1010 = vmatprep.subr.mxu0 0.0
    %1011 = vmatpush2.msra.mxu0 0.0
    %1012 = vmatprep.mubr.f32.mxu0 0.0
    %v1013 = vand.u32 %v607, 4294901760
    %1014 = vmatmul.mubr.f32.gmra.mxu0 %v1013
    %v1015 = vpop.f32.mrf.mxu0
    %v1016 = vadd.f32 %v933, %v1015
    %v1017 = vpop.f32.mrf.mxu0
    %1018 = vdwg.mxu0
    %1019 = vmatprep.subr.mxu0 0.0
    %1020 = vmatpush1.msra.mxu0 0.0
    %1021 = vmatprep.subr.mxu0 0.0
    %1022 = vmatpush1.msra.mxu0 0.0
    %1023 = vmatprep.subr.mxu0 0.0
    %1024 = vmatpush1.msra.mxu0 0.0
    %1025 = vmatprep.subr.mxu0 0.0
    %1026 = vmatpush1.msra.mxu0 0.0
    %1027 = vmatprep.subr.mxu0 0.0
    %1028 = vmatpush1.msra.mxu0 0.0
    %1029 = vmatprep.subr.mxu0 0.0
    %1030 = vmatpush1.msra.mxu0 0.0
    %1031 = vmatprep.subr.mxu0 0.0
    %1032 = vmatpush1.msra.mxu0 0.0
    %1033 = vmatprep.subr.mxu0 0.0
    %1034 = vmatpush1.msra.mxu0 0.0
    %1035 = vmatprep.subr.mxu0 0.0
    %1036 = vmatpush1.msra.mxu0 0.0
    %1037 = vmatprep.subr.mxu0 0.0
    %1038 = vmatpush1.msra.mxu0 0.0
    %1039 = vmatprep.subr.mxu0 0.0
    %1040 = vmatpush1.msra.mxu0 0.0
    %1041 = vmatprep.subr.mxu0 0.0
    %1042 = vmatpush1.msra.mxu0 0.0
    %1043 = vmatprep.subr.mxu0 0.0
    %v1044 = vand.u32 %v597, 4294901760
    %1045 = vmatpush1.msra.mxu0 %v1044
    %1046 = vmatprep.subr.mxu0 0.0
    %v1047 = vand.u32 %v596, 4294901760
    %1048 = vmatpush1.msra.mxu0 %v1047
    %1049 = vmatprep.subr.mxu0 0.0
    %v1050 = vand.u32 %v595, 4294901760
    %1051 = vmatpush1.msra.mxu0 %v1050
    %1052 = vmatprep.subr.mxu0 0.0
    %v1053 = vand.u32 %v594, 4294901760
    %1054 = vmatpush1.msra.mxu0 %v1053
    %1055 = vmatprep.subr.mxu0 0.0
    %1056 = vmatpush2.msra.mxu0 0.0
    %1057 = vmatprep.subr.mxu0 0.0
    %1058 = vmatpush2.msra.mxu0 0.0
    %1059 = vmatprep.subr.mxu0 0.0
    %1060 = vmatpush2.msra.mxu0 0.0
    %1061 = vmatprep.subr.mxu0 0.0
    %1062 = vmatpush2.msra.mxu0 0.0
    %1063 = vmatprep.subr.mxu0 0.0
    %1064 = vmatpush2.msra.mxu0 0.0
    %1065 = vmatprep.subr.mxu0 0.0
    %1066 = vmatpush2.msra.mxu0 0.0
    %1067 = vmatprep.subr.mxu0 0.0
    %1068 = vmatpush2.msra.mxu0 0.0
    %1069 = vmatprep.subr.mxu0 0.0
    %1070 = vmatpush2.msra.mxu0 0.0
    %1071 = vmatprep.subr.mxu0 0.0
    %1072 = vmatpush2.msra.mxu0 0.0
    %1073 = vmatprep.subr.mxu0 0.0
    %1074 = vmatpush2.msra.mxu0 0.0
    %1075 = vmatprep.subr.mxu0 0.0
    %1076 = vmatpush2.msra.mxu0 0.0
    %1077 = vmatprep.subr.mxu0 0.0
    %1078 = vmatpush2.msra.mxu0 0.0
    %1079 = vmatprep.subr.mxu0 0.0
    %1080 = vmatpush2.msra.mxu0 0.0
    %1081 = vmatprep.subr.mxu0 0.0
    %1082 = vmatpush2.msra.mxu0 0.0
    %1083 = vmatprep.subr.mxu0 0.0
    %1084 = vmatpush2.msra.mxu0 0.0
    %1085 = vmatprep.subr.mxu0 0.0
    %1086 = vmatpush2.msra.mxu0 0.0
    %1087 = vmatprep.mubr.f32.mxu0 0.0
    %v1088 = vand.u32 %v607, 4294901760
    %1089 = vmatmul.mubr.f32.gmra.mxu0 %v1088
    %v1090 = vpop.f32.mrf.mxu0
    %v1091 = vadd.f32 %v1016, %v1090
    %v1092 = vpop.f32.mrf.mxu0
    %1093 = vdwg.mxu0
    %v1094 = vmax.f32 %v1091, 0.0
    %v1095 = vld [vmem:[%s13] sm:$0xff]
    %v1096 = vld [vmem:[%s13 + $0x8] sm:$0xff]
    %v1097 = vld [vmem:[%s13 + $0x10] sm:$0xff]
    %v1098 = vld [vmem:[%s13 + $0x18] sm:$0xff]
    %v1099 = vld [vmem:[%s15] sm:$0x1]
    %v1101 = vlaneseq
    %v1102 = vshrl.u32 %v1101, 7
    %v1103 = vsub.s32 0, %v1102
    %v1104 = vrot.slane %v1099, %v1103
    %v1107 = vsel %vm605, %v1094, 0
    %1109 = vmatprep.subr.mxu0 0.0
    %1110 = vmatpush1.msra.mxu0 0.0
    %1111 = vmatprep.subr.mxu0 0.0
    %1112 = vmatpush1.msra.mxu0 0.0
    %1113 = vmatprep.subr.mxu0 0.0
    %1114 = vmatpush1.msra.mxu0 0.0
    %1115 = vmatprep.subr.mxu0 0.0
    %1116 = vmatpush1.msra.mxu0 0.0
    %1117 = vmatprep.subr.mxu0 0.0
    %1118 = vmatpush1.msra.mxu0 0.0
    %1119 = vmatprep.subr.mxu0 0.0
    %1120 = vmatpush1.msra.mxu0 0.0
    %1121 = vmatprep.subr.mxu0 0.0
    %1122 = vmatpush1.msra.mxu0 0.0
    %1123 = vmatprep.subr.mxu0 0.0
    %1124 = vmatpush1.msra.mxu0 0.0
    %1125 = vmatprep.subr.mxu0 0.0
    %1126 = vmatpush1.msra.mxu0 0.0
    %1127 = vmatprep.subr.mxu0 0.0
    %1128 = vmatpush1.msra.mxu0 0.0
    %1129 = vmatprep.subr.mxu0 0.0
    %1130 = vmatpush1.msra.mxu0 0.0
    %1131 = vmatprep.subr.mxu0 0.0
    %1132 = vmatpush1.msra.mxu0 0.0
    %1133 = vmatprep.subr.mxu0 0.0
    %v1134 = vand.u32 %v1098, 4294901760
    %1135 = vmatpush1.msra.mxu0 %v1134
    %1136 = vmatprep.subr.mxu0 0.0
    %v1137 = vand.u32 %v1097, 4294901760
    %1138 = vmatpush1.msra.mxu0 %v1137
    %1139 = vmatprep.subr.mxu0 0.0
    %v1140 = vand.u32 %v1096, 4294901760
    %1141 = vmatpush1.msra.mxu0 %v1140
    %1142 = vmatprep.subr.mxu0 0.0
    %v1143 = vand.u32 %v1095, 4294901760
    %1144 = vmatpush1.msra.mxu0 %v1143
    %1145 = vmatprep.subr.mxu0 0.0
    %1146 = vmatpush2.msra.mxu0 0.0
    %1147 = vmatprep.subr.mxu0 0.0
    %1148 = vmatpush2.msra.mxu0 0.0
    %1149 = vmatprep.subr.mxu0 0.0
    %1150 = vmatpush2.msra.mxu0 0.0
    %1151 = vmatprep.subr.mxu0 0.0
    %1152 = vmatpush2.msra.mxu0 0.0
    %1153 = vmatprep.subr.mxu0 0.0
    %1154 = vmatpush2.msra.mxu0 0.0
    %1155 = vmatprep.subr.mxu0 0.0
    %1156 = vmatpush2.msra.mxu0 0.0
    %1157 = vmatprep.subr.mxu0 0.0
    %1158 = vmatpush2.msra.mxu0 0.0
    %1159 = vmatprep.subr.mxu0 0.0
    %1160 = vmatpush2.msra.mxu0 0.0
    %1161 = vmatprep.subr.mxu0 0.0
    %1162 = vmatpush2.msra.mxu0 0.0
    %1163 = vmatprep.subr.mxu0 0.0
    %1164 = vmatpush2.msra.mxu0 0.0
    %1165 = vmatprep.subr.mxu0 0.0
    %1166 = vmatpush2.msra.mxu0 0.0
    %1167 = vmatprep.subr.mxu0 0.0
    %1168 = vmatpush2.msra.mxu0 0.0
    %1169 = vmatprep.subr.mxu0 0.0
    %1170 = vmatpush2.msra.mxu0 0.0
    %1171 = vmatprep.subr.mxu0 0.0
    %1172 = vmatpush2.msra.mxu0 0.0
    %1173 = vmatprep.subr.mxu0 0.0
    %1174 = vmatpush2.msra.mxu0 0.0
    %1175 = vmatprep.subr.mxu0 0.0
    %1176 = vmatpush2.msra.mxu0 0.0
    %1177 = vmatprep.mubr.f32.mxu0 0.0
    %v1178 = vand.u32 %v1107, 4294901760
    %v1179 = vsub.f32 %v1107, %v1178
    %v1180 = vand.u32 %v1179, 4294901760
    %v1181 = vsub.f32 %v1179, %v1180
    %v1182 = vand.u32 %v1181, 4294901760
    %1183 = vmatmul.mubr.f32.gmra.mxu0 %v1182
    %v1184 = vpop.f32.mrf.mxu0
    %v1185 = vadd.f32 %v1104, %v1184
    %v1186 = vpop.f32.mrf.mxu0
    %1187 = vdwg.mxu0
    %1188 = vmatprep.subr.mxu0 0.0
    %1189 = vmatpush1.msra.mxu0 0.0
    %1190 = vmatprep.subr.mxu0 0.0
    %1191 = vmatpush1.msra.mxu0 0.0
    %1192 = vmatprep.subr.mxu0 0.0
    %1193 = vmatpush1.msra.mxu0 0.0
    %1194 = vmatprep.subr.mxu0 0.0
    %1195 = vmatpush1.msra.mxu0 0.0
    %1196 = vmatprep.subr.mxu0 0.0
    %1197 = vmatpush1.msra.mxu0 0.0
    %1198 = vmatprep.subr.mxu0 0.0
    %1199 = vmatpush1.msra.mxu0 0.0
    %1200 = vmatprep.subr.mxu0 0.0
    %1201 = vmatpush1.msra.mxu0 0.0
    %1202 = vmatprep.subr.mxu0 0.0
    %1203 = vmatpush1.msra.mxu0 0.0
    %1204 = vmatprep.subr.mxu0 0.0
    %1205 = vmatpush1.msra.mxu0 0.0
    %1206 = vmatprep.subr.mxu0 0.0
    %1207 = vmatpush1.msra.mxu0 0.0
    %1208 = vmatprep.subr.mxu0 0.0
    %1209 = vmatpush1.msra.mxu0 0.0
    %1210 = vmatprep.subr.mxu0 0.0
    %1211 = vmatpush1.msra.mxu0 0.0
    %1212 = vmatprep.subr.mxu0 0.0
    %v1213 = vand.u32 %v1098, 4294901760
    %v1214 = vsub.f32 %v1098, %v1213
    %v1215 = vand.u32 %v1214, 4294901760
    %v1216 = vsub.f32 %v1214, %v1215
    %v1217 = vand.u32 %v1216, 4294901760
    %1218 = vmatpush1.msra.mxu0 %v1217
    %1219 = vmatprep.subr.mxu0 0.0
    %v1220 = vand.u32 %v1097, 4294901760
    %v1221 = vsub.f32 %v1097, %v1220
    %v1222 = vand.u32 %v1221, 4294901760
    %v1223 = vsub.f32 %v1221, %v1222
    %v1224 = vand.u32 %v1223, 4294901760
    %1225 = vmatpush1.msra.mxu0 %v1224
    %1226 = vmatprep.subr.mxu0 0.0
    %v1227 = vand.u32 %v1096, 4294901760
    %v1228 = vsub.f32 %v1096, %v1227
    %v1229 = vand.u32 %v1228, 4294901760
    %v1230 = vsub.f32 %v1228, %v1229
    %v1231 = vand.u32 %v1230, 4294901760
    %1232 = vmatpush1.msra.mxu0 %v1231
    %1233 = vmatprep.subr.mxu0 0.0
    %v1234 = vand.u32 %v1095, 4294901760
    %v1235 = vsub.f32 %v1095, %v1234
    %v1236 = vand.u32 %v1235, 4294901760
    %v1237 = vsub.f32 %v1235, %v1236
    %v1238 = vand.u32 %v1237, 4294901760
    %1239 = vmatpush1.msra.mxu0 %v1238
    %1240 = vmatprep.subr.mxu0 0.0
    %1241 = vmatpush2.msra.mxu0 0.0
    %1242 = vmatprep.subr.mxu0 0.0
    %1243 = vmatpush2.msra.mxu0 0.0
    %1244 = vmatprep.subr.mxu0 0.0
    %1245 = vmatpush2.msra.mxu0 0.0
    %1246 = vmatprep.subr.mxu0 0.0
    %1247 = vmatpush2.msra.mxu0 0.0
    %1248 = vmatprep.subr.mxu0 0.0
    %1249 = vmatpush2.msra.mxu0 0.0
    %1250 = vmatprep.subr.mxu0 0.0
    %1251 = vmatpush2.msra.mxu0 0.0
    %1252 = vmatprep.subr.mxu0 0.0
    %1253 = vmatpush2.msra.mxu0 0.0
    %1254 = vmatprep.subr.mxu0 0.0
    %1255 = vmatpush2.msra.mxu0 0.0
    %1256 = vmatprep.subr.mxu0 0.0
    %1257 = vmatpush2.msra.mxu0 0.0
    %1258 = vmatprep.subr.mxu0 0.0
    %1259 = vmatpush2.msra.mxu0 0.0
    %1260 = vmatprep.subr.mxu0 0.0
    %1261 = vmatpush2.msra.mxu0 0.0
    %1262 = vmatprep.subr.mxu0 0.0
    %1263 = vmatpush2.msra.mxu0 0.0
    %1264 = vmatprep.subr.mxu0 0.0
    %1265 = vmatpush2.msra.mxu0 0.0
    %1266 = vmatprep.subr.mxu0 0.0
    %1267 = vmatpush2.msra.mxu0 0.0
    %1268 = vmatprep.subr.mxu0 0.0
    %1269 = vmatpush2.msra.mxu0 0.0
    %1270 = vmatprep.subr.mxu0 0.0
    %1271 = vmatpush2.msra.mxu0 0.0
    %1272 = vmatprep.mubr.f32.mxu0 0.0
    %v1273 = vand.u32 %v1107, 4294901760
    %1274 = vmatmul.mubr.f32.gmra.mxu0 %v1273
    %v1275 = vpop.f32.mrf.mxu0
    %v1276 = vadd.f32 %v1185, %v1275
    %v1277 = vpop.f32.mrf.mxu0
    %1278 = vdwg.mxu0
    %1279 = vmatprep.subr.mxu0 0.0
    %1280 = vmatpush1.msra.mxu0 0.0
    %1281 = vmatprep.subr.mxu0 0.0
    %1282 = vmatpush1.msra.mxu0 0.0
    %1283 = vmatprep.subr.mxu0 0.0
    %1284 = vmatpush1.msra.mxu0 0.0
    %1285 = vmatprep.subr.mxu0 0.0
    %1286 = vmatpush1.msra.mxu0 0.0
    %1287 = vmatprep.subr.mxu0 0.0
    %1288 = vmatpush1.msra.mxu0 0.0
    %1289 = vmatprep.subr.mxu0 0.0
    %1290 = vmatpush1.msra.mxu0 0.0
    %1291 = vmatprep.subr.mxu0 0.0
    %1292 = vmatpush1.msra.mxu0 0.0
    %1293 = vmatprep.subr.mxu0 0.0
    %1294 = vmatpush1.msra.mxu0 0.0
    %1295 = vmatprep.subr.mxu0 0.0
    %1296 = vmatpush1.msra.mxu0 0.0
    %1297 = vmatprep.subr.mxu0 0.0
    %1298 = vmatpush1.msra.mxu0 0.0
    %1299 = vmatprep.subr.mxu0 0.0
    %1300 = vmatpush1.msra.mxu0 0.0
    %1301 = vmatprep.subr.mxu0 0.0
    %1302 = vmatpush1.msra.mxu0 0.0
    %1303 = vmatprep.subr.mxu0 0.0
    %v1304 = vand.u32 %v1098, 4294901760
    %v1305 = vsub.f32 %v1098, %v1304
    %1306 = vmatpush1.msra.mxu0 %v1305
    %1307 = vmatprep.subr.mxu0 0.0
    %v1308 = vand.u32 %v1097, 4294901760
    %v1309 = vsub.f32 %v1097, %v1308
    %1310 = vmatpush1.msra.mxu0 %v1309
    %1311 = vmatprep.subr.mxu0 0.0
    %v1312 = vand.u32 %v1096, 4294901760
    %v1313 = vsub.f32 %v1096, %v1312
    %1314 = vmatpush1.msra.mxu0 %v1313
    %1315 = vmatprep.subr.mxu0 0.0
    %v1316 = vand.u32 %v1095, 4294901760
    %v1317 = vsub.f32 %v1095, %v1316
    %1318 = vmatpush1.msra.mxu0 %v1317
    %1319 = vmatprep.subr.mxu0 0.0
    %1320 = vmatpush2.msra.mxu0 0.0
    %1321 = vmatprep.subr.mxu0 0.0
    %1322 = vmatpush2.msra.mxu0 0.0
    %1323 = vmatprep.subr.mxu0 0.0
    %1324 = vmatpush2.msra.mxu0 0.0
    %1325 = vmatprep.subr.mxu0 0.0
    %1326 = vmatpush2.msra.mxu0 0.0
    %1327 = vmatprep.subr.mxu0 0.0
    %1328 = vmatpush2.msra.mxu0 0.0
    %1329 = vmatprep.subr.mxu0 0.0
    %1330 = vmatpush2.msra.mxu0 0.0
    %1331 = vmatprep.subr.mxu0 0.0
    %1332 = vmatpush2.msra.mxu0 0.0
    %1333 = vmatprep.subr.mxu0 0.0
    %1334 = vmatpush2.msra.mxu0 0.0
    %1335 = vmatprep.subr.mxu0 0.0
    %1336 = vmatpush2.msra.mxu0 0.0
    %1337 = vmatprep.subr.mxu0 0.0
    %1338 = vmatpush2.msra.mxu0 0.0
    %1339 = vmatprep.subr.mxu0 0.0
    %1340 = vmatpush2.msra.mxu0 0.0
    %1341 = vmatprep.subr.mxu0 0.0
    %1342 = vmatpush2.msra.mxu0 0.0
    %1343 = vmatprep.subr.mxu0 0.0
    %1344 = vmatpush2.msra.mxu0 0.0
    %1345 = vmatprep.subr.mxu0 0.0
    %1346 = vmatpush2.msra.mxu0 0.0
    %1347 = vmatprep.subr.mxu0 0.0
    %1348 = vmatpush2.msra.mxu0 0.0
    %1349 = vmatprep.subr.mxu0 0.0
    %1350 = vmatpush2.msra.mxu0 0.0
    %1351 = vmatprep.mubr.f32.mxu0 0.0
    %v1352 = vand.u32 %v1107, 4294901760
    %v1353 = vsub.f32 %v1107, %v1352
    %1354 = vmatmul.mubr.f32.gmra.mxu0 %v1353
    %v1355 = vpop.f32.mrf.mxu0
    %v1356 = vadd.f32 %v1276, %v1355
    %v1357 = vpop.f32.mrf.mxu0
    %1358 = vdwg.mxu0
    %1359 = vmatprep.subr.mxu0 0.0
    %1360 = vmatpush1.msra.mxu0 0.0
    %1361 = vmatprep.subr.mxu0 0.0
    %1362 = vmatpush1.msra.mxu0 0.0
    %1363 = vmatprep.subr.mxu0 0.0
    %1364 = vmatpush1.msra.mxu0 0.0
    %1365 = vmatprep.subr.mxu0 0.0
    %1366 = vmatpush1.msra.mxu0 0.0
    %1367 = vmatprep.subr.mxu0 0.0
    %1368 = vmatpush1.msra.mxu0 0.0
    %1369 = vmatprep.subr.mxu0 0.0
    %1370 = vmatpush1.msra.mxu0 0.0
    %1371 = vmatprep.subr.mxu0 0.0
    %1372 = vmatpush1.msra.mxu0 0.0
    %1373 = vmatprep.subr.mxu0 0.0
    %1374 = vmatpush1.msra.mxu0 0.0
    %1375 = vmatprep.subr.mxu0 0.0
    %1376 = vmatpush1.msra.mxu0 0.0
    %1377 = vmatprep.subr.mxu0 0.0
    %1378 = vmatpush1.msra.mxu0 0.0
    %1379 = vmatprep.subr.mxu0 0.0
    %1380 = vmatpush1.msra.mxu0 0.0
    %1381 = vmatprep.subr.mxu0 0.0
    %1382 = vmatpush1.msra.mxu0 0.0
    %1383 = vmatprep.subr.mxu0 0.0
    %v1384 = vand.u32 %v1098, 4294901760
    %1385 = vmatpush1.msra.mxu0 %v1384
    %1386 = vmatprep.subr.mxu0 0.0
    %v1387 = vand.u32 %v1097, 4294901760
    %1388 = vmatpush1.msra.mxu0 %v1387
    %1389 = vmatprep.subr.mxu0 0.0
    %v1390 = vand.u32 %v1096, 4294901760
    %1391 = vmatpush1.msra.mxu0 %v1390
    %1392 = vmatprep.subr.mxu0 0.0
    %v1393 = vand.u32 %v1095, 4294901760
    %1394 = vmatpush1.msra.mxu0 %v1393
    %1395 = vmatprep.subr.mxu0 0.0
    %1396 = vmatpush2.msra.mxu0 0.0
    %1397 = vmatprep.subr.mxu0 0.0
    %1398 = vmatpush2.msra.mxu0 0.0
    %1399 = vmatprep.subr.mxu0 0.0
    %1400 = vmatpush2.msra.mxu0 0.0
    %1401 = vmatprep.subr.mxu0 0.0
    %1402 = vmatpush2.msra.mxu0 0.0
    %1403 = vmatprep.subr.mxu0 0.0
    %1404 = vmatpush2.msra.mxu0 0.0
    %1405 = vmatprep.subr.mxu0 0.0
    %1406 = vmatpush2.msra.mxu0 0.0
    %1407 = vmatprep.subr.mxu0 0.0
    %1408 = vmatpush2.msra.mxu0 0.0
    %1409 = vmatprep.subr.mxu0 0.0
    %1410 = vmatpush2.msra.mxu0 0.0
    %1411 = vmatprep.subr.mxu0 0.0
    %1412 = vmatpush2.msra.mxu0 0.0
    %1413 = vmatprep.subr.mxu0 0.0
    %1414 = vmatpush2.msra.mxu0 0.0
    %1415 = vmatprep.subr.mxu0 0.0
    %1416 = vmatpush2.msra.mxu0 0.0
    %1417 = vmatprep.subr.mxu0 0.0
    %1418 = vmatpush2.msra.mxu0 0.0
    %1419 = vmatprep.subr.mxu0 0.0
    %1420 = vmatpush2.msra.mxu0 0.0
    %1421 = vmatprep.subr.mxu0 0.0
    %1422 = vmatpush2.msra.mxu0 0.0
    %1423 = vmatprep.subr.mxu0 0.0
    %1424 = vmatpush2.msra.mxu0 0.0
    %1425 = vmatprep.subr.mxu0 0.0
    %1426 = vmatpush2.msra.mxu0 0.0
    %1427 = vmatprep.mubr.f32.mxu0 0.0
    %v1428 = vand.u32 %v1107, 4294901760
    %v1429 = vsub.f32 %v1107, %v1428
    %v1430 = vand.u32 %v1429, 4294901760
    %1431 = vmatmul.mubr.f32.gmra.mxu0 %v1430
    %v1432 = vpop.f32.mrf.mxu0
    %v1433 = vadd.f32 %v1356, %v1432
    %v1434 = vpop.f32.mrf.mxu0
    %1435 = vdwg.mxu0
    %1436 = vmatprep.subr.mxu0 0.0
    %1437 = vmatpush1.msra.mxu0 0.0
    %1438 = vmatprep.subr.mxu0 0.0
    %1439 = vmatpush1.msra.mxu0 0.0
    %1440 = vmatprep.subr.mxu0 0.0
    %1441 = vmatpush1.msra.mxu0 0.0
    %1442 = vmatprep.subr.mxu0 0.0
    %1443 = vmatpush1.msra.mxu0 0.0
    %1444 = vmatprep.subr.mxu0 0.0
    %1445 = vmatpush1.msra.mxu0 0.0
    %1446 = vmatprep.subr.mxu0 0.0
    %1447 = vmatpush1.msra.mxu0 0.0
    %1448 = vmatprep.subr.mxu0 0.0
    %1449 = vmatpush1.msra.mxu0 0.0
    %1450 = vmatprep.subr.mxu0 0.0
    %1451 = vmatpush1.msra.mxu0 0.0
    %1452 = vmatprep.subr.mxu0 0.0
    %1453 = vmatpush1.msra.mxu0 0.0
    %1454 = vmatprep.subr.mxu0 0.0
    %1455 = vmatpush1.msra.mxu0 0.0
    %1456 = vmatprep.subr.mxu0 0.0
    %1457 = vmatpush1.msra.mxu0 0.0
    %1458 = vmatprep.subr.mxu0 0.0
    %1459 = vmatpush1.msra.mxu0 0.0
    %1460 = vmatprep.subr.mxu0 0.0
    %v1461 = vand.u32 %v1098, 4294901760
    %v1462 = vsub.f32 %v1098, %v1461
    %v1463 = vand.u32 %v1462, 4294901760
    %1464 = vmatpush1.msra.mxu0 %v1463
    %1465 = vmatprep.subr.mxu0 0.0
    %v1466 = vand.u32 %v1097, 4294901760
    %v1467 = vsub.f32 %v1097, %v1466
    %v1468 = vand.u32 %v1467, 4294901760
    %1469 = vmatpush1.msra.mxu0 %v1468
    %1470 = vmatprep.subr.mxu0 0.0
    %v1471 = vand.u32 %v1096, 4294901760
    %v1472 = vsub.f32 %v1096, %v1471
    %v1473 = vand.u32 %v1472, 4294901760
    %1474 = vmatpush1.msra.mxu0 %v1473
    %1475 = vmatprep.subr.mxu0 0.0
    %v1476 = vand.u32 %v1095, 4294901760
    %v1477 = vsub.f32 %v1095, %v1476
    %v1478 = vand.u32 %v1477, 4294901760
    %1479 = vmatpush1.msra.mxu0 %v1478
    %1480 = vmatprep.subr.mxu0 0.0
    %1481 = vmatpush2.msra.mxu0 0.0
    %1482 = vmatprep.subr.mxu0 0.0
    %1483 = vmatpush2.msra.mxu0 0.0
    %1484 = vmatprep.subr.mxu0 0.0
    %1485 = vmatpush2.msra.mxu0 0.0
    %1486 = vmatprep.subr.mxu0 0.0
    %1487 = vmatpush2.msra.mxu0 0.0
    %1488 = vmatprep.subr.mxu0 0.0
    %1489 = vmatpush2.msra.mxu0 0.0
    %1490 = vmatprep.subr.mxu0 0.0
    %1491 = vmatpush2.msra.mxu0 0.0
    %1492 = vmatprep.subr.mxu0 0.0
    %1493 = vmatpush2.msra.mxu0 0.0
    %1494 = vmatprep.subr.mxu0 0.0
    %1495 = vmatpush2.msra.mxu0 0.0
    %1496 = vmatprep.subr.mxu0 0.0
    %1497 = vmatpush2.msra.mxu0 0.0
    %1498 = vmatprep.subr.mxu0 0.0
    %1499 = vmatpush2.msra.mxu0 0.0
    %1500 = vmatprep.subr.mxu0 0.0
    %1501 = vmatpush2.msra.mxu0 0.0
    %1502 = vmatprep.subr.mxu0 0.0
    %1503 = vmatpush2.msra.mxu0 0.0
    %1504 = vmatprep.subr.mxu0 0.0
    %1505 = vmatpush2.msra.mxu0 0.0
    %1506 = vmatprep.subr.mxu0 0.0
    %1507 = vmatpush2.msra.mxu0 0.0
    %1508 = vmatprep.subr.mxu0 0.0
    %1509 = vmatpush2.msra.mxu0 0.0
    %1510 = vmatprep.subr.mxu0 0.0
    %1511 = vmatpush2.msra.mxu0 0.0
    %1512 = vmatprep.mubr.f32.mxu0 0.0
    %v1513 = vand.u32 %v1107, 4294901760
    %1514 = vmatmul.mubr.f32.gmra.mxu0 %v1513
    %v1515 = vpop.f32.mrf.mxu0
    %v1516 = vadd.f32 %v1433, %v1515
    %v1517 = vpop.f32.mrf.mxu0
    %1518 = vdwg.mxu0
    %1519 = vmatprep.subr.mxu0 0.0
    %1520 = vmatpush1.msra.mxu0 0.0
    %1521 = vmatprep.subr.mxu0 0.0
    %1522 = vmatpush1.msra.mxu0 0.0
    %1523 = vmatprep.subr.mxu0 0.0
    %1524 = vmatpush1.msra.mxu0 0.0
    %1525 = vmatprep.subr.mxu0 0.0
    %1526 = vmatpush1.msra.mxu0 0.0
    %1527 = vmatprep.subr.mxu0 0.0
    %1528 = vmatpush1.msra.mxu0 0.0
    %1529 = vmatprep.subr.mxu0 0.0
    %1530 = vmatpush1.msra.mxu0 0.0
    %1531 = vmatprep.subr.mxu0 0.0
    %1532 = vmatpush1.msra.mxu0 0.0
    %1533 = vmatprep.subr.mxu0 0.0
    %1534 = vmatpush1.msra.mxu0 0.0
    %1535 = vmatprep.subr.mxu0 0.0
    %1536 = vmatpush1.msra.mxu0 0.0
    %1537 = vmatprep.subr.mxu0 0.0
    %1538 = vmatpush1.msra.mxu0 0.0
    %1539 = vmatprep.subr.mxu0 0.0
    %1540 = vmatpush1.msra.mxu0 0.0
    %1541 = vmatprep.subr.mxu0 0.0
    %1542 = vmatpush1.msra.mxu0 0.0
    %1543 = vmatprep.subr.mxu0 0.0
    %v1544 = vand.u32 %v1098, 4294901760
    %1545 = vmatpush1.msra.mxu0 %v1544
    %1546 = vmatprep.subr.mxu0 0.0
    %v1547 = vand.u32 %v1097, 4294901760
    %1548 = vmatpush1.msra.mxu0 %v1547
    %1549 = vmatprep.subr.mxu0 0.0
    %v1550 = vand.u32 %v1096, 4294901760
    %1551 = vmatpush1.msra.mxu0 %v1550
    %1552 = vmatprep.subr.mxu0 0.0
    %v1553 = vand.u32 %v1095, 4294901760
    %1554 = vmatpush1.msra.mxu0 %v1553
    %1555 = vmatprep.subr.mxu0 0.0
    %1556 = vmatpush2.msra.mxu0 0.0
    %1557 = vmatprep.subr.mxu0 0.0
    %1558 = vmatpush2.msra.mxu0 0.0
    %1559 = vmatprep.subr.mxu0 0.0
    %1560 = vmatpush2.msra.mxu0 0.0
    %1561 = vmatprep.subr.mxu0 0.0
    %1562 = vmatpush2.msra.mxu0 0.0
    %1563 = vmatprep.subr.mxu0 0.0
    %1564 = vmatpush2.msra.mxu0 0.0
    %1565 = vmatprep.subr.mxu0 0.0
    %1566 = vmatpush2.msra.mxu0 0.0
    %1567 = vmatprep.subr.mxu0 0.0
    %1568 = vmatpush2.msra.mxu0 0.0
    %1569 = vmatprep.subr.mxu0 0.0
    %1570 = vmatpush2.msra.mxu0 0.0
    %1571 = vmatprep.subr.mxu0 0.0
    %1572 = vmatpush2.msra.mxu0 0.0
    %1573 = vmatprep.subr.mxu0 0.0
    %1574 = vmatpush2.msra.mxu0 0.0
    %1575 = vmatprep.subr.mxu0 0.0
    %1576 = vmatpush2.msra.mxu0 0.0
    %1577 = vmatprep.subr.mxu0 0.0
    %1578 = vmatpush2.msra.mxu0 0.0
    %1579 = vmatprep.subr.mxu0 0.0
    %1580 = vmatpush2.msra.mxu0 0.0
    %1581 = vmatprep.subr.mxu0 0.0
    %1582 = vmatpush2.msra.mxu0 0.0
    %1583 = vmatprep.subr.mxu0 0.0
    %1584 = vmatpush2.msra.mxu0 0.0
    %1585 = vmatprep.subr.mxu0 0.0
    %1586 = vmatpush2.msra.mxu0 0.0
    %1587 = vmatprep.mubr.f32.mxu0 0.0
    %v1588 = vand.u32 %v1107, 4294901760
    %1589 = vmatmul.mubr.f32.gmra.mxu0 %v1588
    %v1590 = vpop.f32.mrf.mxu0
    %v1591 = vadd.f32 %v1516, %v1590
    %v1592 = vpop.f32.mrf.mxu0
    %1593 = vdwg.mxu0
    %vm1594 = vcmask 123904
    %1595 = vst.msk [vmem:[%s57] sm:$0x3] %vm1594, %v1591
    %v1596 = vld [vmem:[%s17] sm:$0xff]
    %v1597 = vld [vmem:[%s19] sm:$0x1]
    %v1599 = vlaneseq
    %v1600 = vshrl.u32 %v1599, 7
    %v1601 = vsub.s32 0, %v1600
    %v1602 = vrot.slane %v1597, %v1601
    %v1605 = vsel %vm143, %v1591, 0
    %1607 = vmatprep.subr.mxu0 0.0
    %1608 = vmatpush1.msra.mxu0 0.0
    %1609 = vmatprep.subr.mxu0 0.0
    %1610 = vmatpush1.msra.mxu0 0.0
    %1611 = vmatprep.subr.mxu0 0.0
    %1612 = vmatpush1.msra.mxu0 0.0
    %1613 = vmatprep.subr.mxu0 0.0
    %1614 = vmatpush1.msra.mxu0 0.0
    %1615 = vmatprep.subr.mxu0 0.0
    %1616 = vmatpush1.msra.mxu0 0.0
    %1617 = vmatprep.subr.mxu0 0.0
    %1618 = vmatpush1.msra.mxu0 0.0
    %1619 = vmatprep.subr.mxu0 0.0
    %1620 = vmatpush1.msra.mxu0 0.0
    %1621 = vmatprep.subr.mxu0 0.0
    %1622 = vmatpush1.msra.mxu0 0.0
    %1623 = vmatprep.subr.mxu0 0.0
    %1624 = vmatpush1.msra.mxu0 0.0
    %1625 = vmatprep.subr.mxu0 0.0
    %1626 = vmatpush1.msra.mxu0 0.0
    %1627 = vmatprep.subr.mxu0 0.0
    %1628 = vmatpush1.msra.mxu0 0.0
    %1629 = vmatprep.subr.mxu0 0.0
    %1630 = vmatpush1.msra.mxu0 0.0
    %1631 = vmatprep.subr.mxu0 0.0
    %1632 = vmatpush1.msra.mxu0 0.0
    %1633 = vmatprep.subr.mxu0 0.0
    %1634 = vmatpush1.msra.mxu0 0.0
    %1635 = vmatprep.subr.mxu0 0.0
    %1636 = vmatpush1.msra.mxu0 0.0
    %1637 = vmatprep.subr.mxu0 0.0
    %v1638 = vand.u32 %v1596, 4294901760
    %1639 = vmatpush1.msra.mxu0 %v1638
    %1640 = vmatprep.subr.mxu0 0.0
    %1641 = vmatpush2.msra.mxu0 0.0
    %1642 = vmatprep.subr.mxu0 0.0
    %1643 = vmatpush2.msra.mxu0 0.0
    %1644 = vmatprep.subr.mxu0 0.0
    %1645 = vmatpush2.msra.mxu0 0.0
    %1646 = vmatprep.subr.mxu0 0.0
    %1647 = vmatpush2.msra.mxu0 0.0
    %1648 = vmatprep.subr.mxu0 0.0
    %1649 = vmatpush2.msra.mxu0 0.0
    %1650 = vmatprep.subr.mxu0 0.0
    %1651 = vmatpush2.msra.mxu0 0.0
    %1652 = vmatprep.subr.mxu0 0.0
    %1653 = vmatpush2.msra.mxu0 0.0
    %1654 = vmatprep.subr.mxu0 0.0
    %1655 = vmatpush2.msra.mxu0 0.0
    %1656 = vmatprep.subr.mxu0 0.0
    %1657 = vmatpush2.msra.mxu0 0.0
    %1658 = vmatprep.subr.mxu0 0.0
    %1659 = vmatpush2.msra.mxu0 0.0
    %1660 = vmatprep.subr.mxu0 0.0
    %1661 = vmatpush2.msra.mxu0 0.0
    %1662 = vmatprep.subr.mxu0 0.0
    %1663 = vmatpush2.msra.mxu0 0.0
    %1664 = vmatprep.subr.mxu0 0.0
    %1665 = vmatpush2.msra.mxu0 0.0
    %1666 = vmatprep.subr.mxu0 0.0
    %1667 = vmatpush2.msra.mxu0 0.0
    %1668 = vmatprep.subr.mxu0 0.0
    %1669 = vmatpush2.msra.mxu0 0.0
    %1670 = vmatprep.subr.mxu0 0.0
    %1671 = vmatpush2.msra.mxu0 0.0
    %1672 = vmatprep.mubr.f32.mxu0 0.0
    %v1673 = vand.u32 %v1605, 4294901760
    %v1674 = vsub.f32 %v1605, %v1673
    %v1675 = vand.u32 %v1674, 4294901760
    %v1676 = vsub.f32 %v1674, %v1675
    %v1677 = vand.u32 %v1676, 4294901760
    %1678 = vmatmul.mubr.f32.gmra.mxu0 %v1677
    %v1679 = vpop.f32.mrf.mxu0
    %v1680 = vadd.f32 %v1602, %v1679
    %v1681 = vpop.f32.mrf.mxu0
    %1682 = vdwg.mxu0
    %1683 = vmatprep.subr.mxu0 0.0
    %1684 = vmatpush1.msra.mxu0 0.0
    %1685 = vmatprep.subr.mxu0 0.0
    %1686 = vmatpush1.msra.mxu0 0.0
    %1687 = vmatprep.subr.mxu0 0.0
    %1688 = vmatpush1.msra.mxu0 0.0
    %1689 = vmatprep.subr.mxu0 0.0
    %1690 = vmatpush1.msra.mxu0 0.0
    %1691 = vmatprep.subr.mxu0 0.0
    %1692 = vmatpush1.msra.mxu0 0.0
    %1693 = vmatprep.subr.mxu0 0.0
    %1694 = vmatpush1.msra.mxu0 0.0
    %1695 = vmatprep.subr.mxu0 0.0
    %1696 = vmatpush1.msra.mxu0 0.0
    %1697 = vmatprep.subr.mxu0 0.0
    %1698 = vmatpush1.msra.mxu0 0.0
    %1699 = vmatprep.subr.mxu0 0.0
    %1700 = vmatpush1.msra.mxu0 0.0
    %1701 = vmatprep.subr.mxu0 0.0
    %1702 = vmatpush1.msra.mxu0 0.0
    %1703 = vmatprep.subr.mxu0 0.0
    %1704 = vmatpush1.msra.mxu0 0.0
    %1705 = vmatprep.subr.mxu0 0.0
    %1706 = vmatpush1.msra.mxu0 0.0
    %1707 = vmatprep.subr.mxu0 0.0
    %1708 = vmatpush1.msra.mxu0 0.0
    %1709 = vmatprep.subr.mxu0 0.0
    %1710 = vmatpush1.msra.mxu0 0.0
    %1711 = vmatprep.subr.mxu0 0.0
    %1712 = vmatpush1.msra.mxu0 0.0
    %1713 = vmatprep.subr.mxu0 0.0
    %v1714 = vand.u32 %v1596, 4294901760
    %v1715 = vsub.f32 %v1596, %v1714
    %v1716 = vand.u32 %v1715, 4294901760
    %v1717 = vsub.f32 %v1715, %v1716
    %v1718 = vand.u32 %v1717, 4294901760
    %1719 = vmatpush1.msra.mxu0 %v1718
    %1720 = vmatprep.subr.mxu0 0.0
    %1721 = vmatpush2.msra.mxu0 0.0
    %1722 = vmatprep.subr.mxu0 0.0
    %1723 = vmatpush2.msra.mxu0 0.0
    %1724 = vmatprep.subr.mxu0 0.0
    %1725 = vmatpush2.msra.mxu0 0.0
    %1726 = vmatprep.subr.mxu0 0.0
    %1727 = vmatpush2.msra.mxu0 0.0
    %1728 = vmatprep.subr.mxu0 0.0
    %1729 = vmatpush2.msra.mxu0 0.0
    %1730 = vmatprep.subr.mxu0 0.0
    %1731 = vmatpush2.msra.mxu0 0.0
    %1732 = vmatprep.subr.mxu0 0.0
    %1733 = vmatpush2.msra.mxu0 0.0
    %1734 = vmatprep.subr.mxu0 0.0
    %1735 = vmatpush2.msra.mxu0 0.0
    %1736 = vmatprep.subr.mxu0 0.0
    %1737 = vmatpush2.msra.mxu0 0.0
    %1738 = vmatprep.subr.mxu0 0.0
    %1739 = vmatpush2.msra.mxu0 0.0
    %1740 = vmatprep.subr.mxu0 0.0
    %1741 = vmatpush2.msra.mxu0 0.0
    %1742 = vmatprep.subr.mxu0 0.0
    %1743 = vmatpush2.msra.mxu0 0.0
    %1744 = vmatprep.subr.mxu0 0.0
    %1745 = vmatpush2.msra.mxu0 0.0
    %1746 = vmatprep.subr.mxu0 0.0
    %1747 = vmatpush2.msra.mxu0 0.0
    %1748 = vmatprep.subr.mxu0 0.0
    %1749 = vmatpush2.msra.mxu0 0.0
    %1750 = vmatprep.subr.mxu0 0.0
    %1751 = vmatpush2.msra.mxu0 0.0
    %1752 = vmatprep.mubr.f32.mxu0 0.0
    %v1753 = vand.u32 %v1605, 4294901760
    %1754 = vmatmul.mubr.f32.gmra.mxu0 %v1753
    %v1755 = vpop.f32.mrf.mxu0
    %v1756 = vadd.f32 %v1680, %v1755
    %v1757 = vpop.f32.mrf.mxu0
    %1758 = vdwg.mxu0
    %1759 = vmatprep.subr.mxu0 0.0
    %1760 = vmatpush1.msra.mxu0 0.0
    %1761 = vmatprep.subr.mxu0 0.0
    %1762 = vmatpush1.msra.mxu0 0.0
    %1763 = vmatprep.subr.mxu0 0.0
    %1764 = vmatpush1.msra.mxu0 0.0
    %1765 = vmatprep.subr.mxu0 0.0
    %1766 = vmatpush1.msra.mxu0 0.0
    %1767 = vmatprep.subr.mxu0 0.0
    %1768 = vmatpush1.msra.mxu0 0.0
    %1769 = vmatprep.subr.mxu0 0.0
    %1770 = vmatpush1.msra.mxu0 0.0
    %1771 = vmatprep.subr.mxu0 0.0
    %1772 = vmatpush1.msra.mxu0 0.0
    %1773 = vmatprep.subr.mxu0 0.0
    %1774 = vmatpush1.msra.mxu0 0.0
    %1775 = vmatprep.subr.mxu0 0.0
    %1776 = vmatpush1.msra.mxu0 0.0
    %1777 = vmatprep.subr.mxu0 0.0
    %1778 = vmatpush1.msra.mxu0 0.0
    %1779 = vmatprep.subr.mxu0 0.0
    %1780 = vmatpush1.msra.mxu0 0.0
    %1781 = vmatprep.subr.mxu0 0.0
    %1782 = vmatpush1.msra.mxu0 0.0
    %1783 = vmatprep.subr.mxu0 0.0
    %1784 = vmatpush1.msra.mxu0 0.0
    %1785 = vmatprep.subr.mxu0 0.0
    %1786 = vmatpush1.msra.mxu0 0.0
    %1787 = vmatprep.subr.mxu0 0.0
    %1788 = vmatpush1.msra.mxu0 0.0
    %1789 = vmatprep.subr.mxu0 0.0
    %v1790 = vand.u32 %v1596, 4294901760
    %v1791 = vsub.f32 %v1596, %v1790
    %1792 = vmatpush1.msra.mxu0 %v1791
    %1793 = vmatprep.subr.mxu0 0.0
    %1794 = vmatpush2.msra.mxu0 0.0
    %1795 = vmatprep.subr.mxu0 0.0
    %1796 = vmatpush2.msra.mxu0 0.0
    %1797 = vmatprep.subr.mxu0 0.0
    %1798 = vmatpush2.msra.mxu0 0.0
    %1799 = vmatprep.subr.mxu0 0.0
    %1800 = vmatpush2.msra.mxu0 0.0
    %1801 = vmatprep.subr.mxu0 0.0
    %1802 = vmatpush2.msra.mxu0 0.0
    %1803 = vmatprep.subr.mxu0 0.0
    %1804 = vmatpush2.msra.mxu0 0.0
    %1805 = vmatprep.subr.mxu0 0.0
    %1806 = vmatpush2.msra.mxu0 0.0
    %1807 = vmatprep.subr.mxu0 0.0
    %1808 = vmatpush2.msra.mxu0 0.0
    %1809 = vmatprep.subr.mxu0 0.0
    %1810 = vmatpush2.msra.mxu0 0.0
    %1811 = vmatprep.subr.mxu0 0.0
    %1812 = vmatpush2.msra.mxu0 0.0
    %1813 = vmatprep.subr.mxu0 0.0
    %1814 = vmatpush2.msra.mxu0 0.0
    %1815 = vmatprep.subr.mxu0 0.0
    %1816 = vmatpush2.msra.mxu0 0.0
    %1817 = vmatprep.subr.mxu0 0.0
    %1818 = vmatpush2.msra.mxu0 0.0
    %1819 = vmatprep.subr.mxu0 0.0
    %1820 = vmatpush2.msra.mxu0 0.0
    %1821 = vmatprep.subr.mxu0 0.0
    %1822 = vmatpush2.msra.mxu0 0.0
    %1823 = vmatprep.subr.mxu0 0.0
    %1824 = vmatpush2.msra.mxu0 0.0
    %1825 = vmatprep.mubr.f32.mxu0 0.0
    %v1826 = vand.u32 %v1605, 4294901760
    %v1827 = vsub.f32 %v1605, %v1826
    %1828 = vmatmul.mubr.f32.gmra.mxu0 %v1827
    %v1829 = vpop.f32.mrf.mxu0
    %v1830 = vadd.f32 %v1756, %v1829
    %v1831 = vpop.f32.mrf.mxu0
    %1832 = vdwg.mxu0
    %1833 = vmatprep.subr.mxu0 0.0
    %1834 = vmatpush1.msra.mxu0 0.0
    %1835 = vmatprep.subr.mxu0 0.0
    %1836 = vmatpush1.msra.mxu0 0.0
    %1837 = vmatprep.subr.mxu0 0.0
    %1838 = vmatpush1.msra.mxu0 0.0
    %1839 = vmatprep.subr.mxu0 0.0
    %1840 = vmatpush1.msra.mxu0 0.0
    %1841 = vmatprep.subr.mxu0 0.0
    %1842 = vmatpush1.msra.mxu0 0.0
    %1843 = vmatprep.subr.mxu0 0.0
    %1844 = vmatpush1.msra.mxu0 0.0
    %1845 = vmatprep.subr.mxu0 0.0
    %1846 = vmatpush1.msra.mxu0 0.0
    %1847 = vmatprep.subr.mxu0 0.0
    %1848 = vmatpush1.msra.mxu0 0.0
    %1849 = vmatprep.subr.mxu0 0.0
    %1850 = vmatpush1.msra.mxu0 0.0
    %1851 = vmatprep.subr.mxu0 0.0
    %1852 = vmatpush1.msra.mxu0 0.0
    %1853 = vmatprep.subr.mxu0 0.0
    %1854 = vmatpush1.msra.mxu0 0.0
    %1855 = vmatprep.subr.mxu0 0.0
    %1856 = vmatpush1.msra.mxu0 0.0
    %1857 = vmatprep.subr.mxu0 0.0
    %1858 = vmatpush1.msra.mxu0 0.0
    %1859 = vmatprep.subr.mxu0 0.0
    %1860 = vmatpush1.msra.mxu0 0.0
    %1861 = vmatprep.subr.mxu0 0.0
    %1862 = vmatpush1.msra.mxu0 0.0
    %1863 = vmatprep.subr.mxu0 0.0
    %v1864 = vand.u32 %v1596, 4294901760
    %1865 = vmatpush1.msra.mxu0 %v1864
    %1866 = vmatprep.subr.mxu0 0.0
    %1867 = vmatpush2.msra.mxu0 0.0
    %1868 = vmatprep.subr.mxu0 0.0
    %1869 = vmatpush2.msra.mxu0 0.0
    %1870 = vmatprep.subr.mxu0 0.0
    %1871 = vmatpush2.msra.mxu0 0.0
    %1872 = vmatprep.subr.mxu0 0.0
    %1873 = vmatpush2.msra.mxu0 0.0
    %1874 = vmatprep.subr.mxu0 0.0
    %1875 = vmatpush2.msra.mxu0 0.0
    %1876 = vmatprep.subr.mxu0 0.0
    %1877 = vmatpush2.msra.mxu0 0.0
    %1878 = vmatprep.subr.mxu0 0.0
    %1879 = vmatpush2.msra.mxu0 0.0
    %1880 = vmatprep.subr.mxu0 0.0
    %1881 = vmatpush2.msra.mxu0 0.0
    %1882 = vmatprep.subr.mxu0 0.0
    %1883 = vmatpush2.msra.mxu0 0.0
    %1884 = vmatprep.subr.mxu0 0.0
    %1885 = vmatpush2.msra.mxu0 0.0
    %1886 = vmatprep.subr.mxu0 0.0
    %1887 = vmatpush2.msra.mxu0 0.0
    %1888 = vmatprep.subr.mxu0 0.0
    %1889 = vmatpush2.msra.mxu0 0.0
    %1890 = vmatprep.subr.mxu0 0.0
    %1891 = vmatpush2.msra.mxu0 0.0
    %1892 = vmatprep.subr.mxu0 0.0
    %1893 = vmatpush2.msra.mxu0 0.0
    %1894 = vmatprep.subr.mxu0 0.0
    %1895 = vmatpush2.msra.mxu0 0.0
    %1896 = vmatprep.subr.mxu0 0.0
    %1897 = vmatpush2.msra.mxu0 0.0
    %1898 = vmatprep.mubr.f32.mxu0 0.0
    %v1899 = vand.u32 %v1605, 4294901760
    %v1900 = vsub.f32 %v1605, %v1899
    %v1901 = vand.u32 %v1900, 4294901760
    %1902 = vmatmul.mubr.f32.gmra.mxu0 %v1901
    %v1903 = vpop.f32.mrf.mxu0
    %v1904 = vadd.f32 %v1830, %v1903
    %v1905 = vpop.f32.mrf.mxu0
    %1906 = vdwg.mxu0
    %1907 = vmatprep.subr.mxu0 0.0
    %1908 = vmatpush1.msra.mxu0 0.0
    %1909 = vmatprep.subr.mxu0 0.0
    %1910 = vmatpush1.msra.mxu0 0.0
    %1911 = vmatprep.subr.mxu0 0.0
    %1912 = vmatpush1.msra.mxu0 0.0
    %1913 = vmatprep.subr.mxu0 0.0
    %1914 = vmatpush1.msra.mxu0 0.0
    %1915 = vmatprep.subr.mxu0 0.0
    %1916 = vmatpush1.msra.mxu0 0.0
    %1917 = vmatprep.subr.mxu0 0.0
    %1918 = vmatpush1.msra.mxu0 0.0
    %1919 = vmatprep.subr.mxu0 0.0
    %1920 = vmatpush1.msra.mxu0 0.0
    %1921 = vmatprep.subr.mxu0 0.0
    %1922 = vmatpush1.msra.mxu0 0.0
    %1923 = vmatprep.subr.mxu0 0.0
    %1924 = vmatpush1.msra.mxu0 0.0
    %1925 = vmatprep.subr.mxu0 0.0
    %1926 = vmatpush1.msra.mxu0 0.0
    %1927 = vmatprep.subr.mxu0 0.0
    %1928 = vmatpush1.msra.mxu0 0.0
    %1929 = vmatprep.subr.mxu0 0.0
    %1930 = vmatpush1.msra.mxu0 0.0
    %1931 = vmatprep.subr.mxu0 0.0
    %1932 = vmatpush1.msra.mxu0 0.0
    %1933 = vmatprep.subr.mxu0 0.0
    %1934 = vmatpush1.msra.mxu0 0.0
    %1935 = vmatprep.subr.mxu0 0.0
    %1936 = vmatpush1.msra.mxu0 0.0
    %1937 = vmatprep.subr.mxu0 0.0
    %v1938 = vand.u32 %v1596, 4294901760
    %v1939 = vsub.f32 %v1596, %v1938
    %v1940 = vand.u32 %v1939, 4294901760
    %1941 = vmatpush1.msra.mxu0 %v1940
    %1942 = vmatprep.subr.mxu0 0.0
    %1943 = vmatpush2.msra.mxu0 0.0
    %1944 = vmatprep.subr.mxu0 0.0
    %1945 = vmatpush2.msra.mxu0 0.0
    %1946 = vmatprep.subr.mxu0 0.0
    %1947 = vmatpush2.msra.mxu0 0.0
    %1948 = vmatprep.subr.mxu0 0.0
    %1949 = vmatpush2.msra.mxu0 0.0
    %1950 = vmatprep.subr.mxu0 0.0
    %1951 = vmatpush2.msra.mxu0 0.0
    %1952 = vmatprep.subr.mxu0 0.0
    %1953 = vmatpush2.msra.mxu0 0.0
    %1954 = vmatprep.subr.mxu0 0.0
    %1955 = vmatpush2.msra.mxu0 0.0
    %1956 = vmatprep.subr.mxu0 0.0
    %1957 = vmatpush2.msra.mxu0 0.0
    %1958 = vmatprep.subr.mxu0 0.0
    %1959 = vmatpush2.msra.mxu0 0.0
    %1960 = vmatprep.subr.mxu0 0.0
    %1961 = vmatpush2.msra.mxu0 0.0
    %1962 = vmatprep.subr.mxu0 0.0
    %1963 = vmatpush2.msra.mxu0 0.0
    %1964 = vmatprep.subr.mxu0 0.0
    %1965 = vmatpush2.msra.mxu0 0.0
    %1966 = vmatprep.subr.mxu0 0.0
    %1967 = vmatpush2.msra.mxu0 0.0
    %1968 = vmatprep.subr.mxu0 0.0
    %1969 = vmatpush2.msra.mxu0 0.0
    %1970 = vmatprep.subr.mxu0 0.0
    %1971 = vmatpush2.msra.mxu0 0.0
    %1972 = vmatprep.subr.mxu0 0.0
    %1973 = vmatpush2.msra.mxu0 0.0
    %1974 = vmatprep.mubr.f32.mxu0 0.0
    %v1975 = vand.u32 %v1605, 4294901760
    %1976 = vmatmul.mubr.f32.gmra.mxu0 %v1975
    %v1977 = vpop.f32.mrf.mxu0
    %v1978 = vadd.f32 %v1904, %v1977
    %v1979 = vpop.f32.mrf.mxu0
    %1980 = vdwg.mxu0
    %1981 = vmatprep.subr.mxu0 0.0
    %1982 = vmatpush1.msra.mxu0 0.0
    %1983 = vmatprep.subr.mxu0 0.0
    %1984 = vmatpush1.msra.mxu0 0.0
    %1985 = vmatprep.subr.mxu0 0.0
    %1986 = vmatpush1.msra.mxu0 0.0
    %1987 = vmatprep.subr.mxu0 0.0
    %1988 = vmatpush1.msra.mxu0 0.0
    %1989 = vmatprep.subr.mxu0 0.0
    %1990 = vmatpush1.msra.mxu0 0.0
    %1991 = vmatprep.subr.mxu0 0.0
    %1992 = vmatpush1.msra.mxu0 0.0
    %1993 = vmatprep.subr.mxu0 0.0
    %1994 = vmatpush1.msra.mxu0 0.0
    %1995 = vmatprep.subr.mxu0 0.0
    %1996 = vmatpush1.msra.mxu0 0.0
    %1997 = vmatprep.subr.mxu0 0.0
    %1998 = vmatpush1.msra.mxu0 0.0
    %1999 = vmatprep.subr.mxu0 0.0
    %2000 = vmatpush1.msra.mxu0 0.0
    %2001 = vmatprep.subr.mxu0 0.0
    %2002 = vmatpush1.msra.mxu0 0.0
    %2003 = vmatprep.subr.mxu0 0.0
    %2004 = vmatpush1.msra.mxu0 0.0
    %2005 = vmatprep.subr.mxu0 0.0
    %2006 = vmatpush1.msra.mxu0 0.0
    %2007 = vmatprep.subr.mxu0 0.0
    %2008 = vmatpush1.msra.mxu0 0.0
    %2009 = vmatprep.subr.mxu0 0.0
    %2010 = vmatpush1.msra.mxu0 0.0
    %2011 = vmatprep.subr.mxu0 0.0
    %v2012 = vand.u32 %v1596, 4294901760
    %2013 = vmatpush1.msra.mxu0 %v2012
    %2014 = vmatprep.subr.mxu0 0.0
    %2015 = vmatpush2.msra.mxu0 0.0
    %2016 = vmatprep.subr.mxu0 0.0
    %2017 = vmatpush2.msra.mxu0 0.0
    %2018 = vmatprep.subr.mxu0 0.0
    %2019 = vmatpush2.msra.mxu0 0.0
    %2020 = vmatprep.subr.mxu0 0.0
    %2021 = vmatpush2.msra.mxu0 0.0
    %2022 = vmatprep.subr.mxu0 0.0
    %2023 = vmatpush2.msra.mxu0 0.0
    %2024 = vmatprep.subr.mxu0 0.0
    %2025 = vmatpush2.msra.mxu0 0.0
    %2026 = vmatprep.subr.mxu0 0.0
    %2027 = vmatpush2.msra.mxu0 0.0
    %2028 = vmatprep.subr.mxu0 0.0
    %2029 = vmatpush2.msra.mxu0 0.0
    %2030 = vmatprep.subr.mxu0 0.0
    %2031 = vmatpush2.msra.mxu0 0.0
    %2032 = vmatprep.subr.mxu0 0.0
    %2033 = vmatpush2.msra.mxu0 0.0
    %2034 = vmatprep.subr.mxu0 0.0
    %2035 = vmatpush2.msra.mxu0 0.0
    %2036 = vmatprep.subr.mxu0 0.0
    %2037 = vmatpush2.msra.mxu0 0.0
    %2038 = vmatprep.subr.mxu0 0.0
    %2039 = vmatpush2.msra.mxu0 0.0
    %2040 = vmatprep.subr.mxu0 0.0
    %2041 = vmatpush2.msra.mxu0 0.0
    %2042 = vmatprep.subr.mxu0 0.0
    %2043 = vmatpush2.msra.mxu0 0.0
    %2044 = vmatprep.subr.mxu0 0.0
    %2045 = vmatpush2.msra.mxu0 0.0
    %2046 = vmatprep.mubr.f32.mxu0 0.0
    %v2047 = vand.u32 %v1605, 4294901760
    %2048 = vmatmul.mubr.f32.gmra.mxu0 %v2047
    %v2049 = vpop.f32.mrf.mxu0
    %v2050 = vadd.f32 %v1978, %v2049
    %v2051 = vpop.f32.mrf.mxu0
    %2052 = vdwg.mxu0
    %v2053 = vld [vmem:[%s25] sm:$0x1]
    %v2055 = vlaneseq
    %v2056 = vshrl.u32 %v2055, 7
    %v2057 = vsub.s32 0, %v2056
    %v2058 = vrot.slane %v2053, %v2057
    %v2060 = vadd.f32 %v2050, %v2058
    %v2061 = vld [vmem:[%s3] sm:$0xff]
    %v2062 = vld [vmem:[%s3 + $0x8] sm:$0xff]
    %v2063 = vld [vmem:[%s21] sm:$0xf]
    %v2064 = vld [vmem:[%s23] sm:$0x1]
    %v2066 = vlaneseq
    %v2067 = vshrl.u32 %v2066, 7
    %v2068 = vsub.s32 0, %v2067
    %v2069 = vrot.slane %v2064, %v2068
    %vm2071 = vcmask 31744
    %v2073 = vsel %vm2071, %v2061, 0
    %v2076 = vsel %vm2071, %v2062, 0
    %vm2078 = vcmask 1043456
    %v2080 = vsel %vm2078, %v2063, 0
    %2082 = vmatprep.subr.mxu0 0.0
    %2083 = vmatpush1.msra.mxu0 0.0
    %2084 = vmatprep.subr.mxu0 0.0
    %2085 = vmatpush1.msra.mxu0 0.0
    %2086 = vmatprep.subr.mxu0 0.0
    %2087 = vmatpush1.msra.mxu0 0.0
    %2088 = vmatprep.subr.mxu0 0.0
    %2089 = vmatpush1.msra.mxu0 0.0
    %2090 = vmatprep.subr.mxu0 0.0
    %2091 = vmatpush1.msra.mxu0 0.0
    %2092 = vmatprep.subr.mxu0 0.0
    %2093 = vmatpush1.msra.mxu0 0.0
    %2094 = vmatprep.subr.mxu0 0.0
    %2095 = vmatpush1.msra.mxu0 0.0
    %2096 = vmatprep.subr.mxu0 0.0
    %2097 = vmatpush1.msra.mxu0 0.0
    %2098 = vmatprep.subr.mxu0 0.0
    %2099 = vmatpush1.msra.mxu0 0.0
    %2100 = vmatprep.subr.mxu0 0.0
    %2101 = vmatpush1.msra.mxu0 0.0
    %2102 = vmatprep.subr.mxu0 0.0
    %2103 = vmatpush1.msra.mxu0 0.0
    %2104 = vmatprep.subr.mxu0 0.0
    %2105 = vmatpush1.msra.mxu0 0.0
    %2106 = vmatprep.subr.mxu0 0.0
    %2107 = vmatpush1.msra.mxu0 0.0
    %2108 = vmatprep.subr.mxu0 0.0
    %2109 = vmatpush1.msra.mxu0 0.0
    %2110 = vmatprep.subr.mxu0 0.0
    %2111 = vmatpush1.msra.mxu0 0.0
    %2112 = vmatprep.subr.mxu0 0.0
    %v2113 = vand.u32 %v2080, 4294901760
    %2114 = vmatpush1.msra.mxu0 %v2113
    %2115 = vmatprep.subr.mxu0 0.0
    %2116 = vmatpush2.msra.mxu0 0.0
    %2117 = vmatprep.subr.mxu0 0.0
    %2118 = vmatpush2.msra.mxu0 0.0
    %2119 = vmatprep.subr.mxu0 0.0
    %2120 = vmatpush2.msra.mxu0 0.0
    %2121 = vmatprep.subr.mxu0 0.0
    %2122 = vmatpush2.msra.mxu0 0.0
    %2123 = vmatprep.subr.mxu0 0.0
    %2124 = vmatpush2.msra.mxu0 0.0
    %2125 = vmatprep.subr.mxu0 0.0
    %2126 = vmatpush2.msra.mxu0 0.0
    %2127 = vmatprep.subr.mxu0 0.0
    %2128 = vmatpush2.msra.mxu0 0.0
    %2129 = vmatprep.subr.mxu0 0.0
    %2130 = vmatpush2.msra.mxu0 0.0
    %2131 = vmatprep.subr.mxu0 0.0
    %2132 = vmatpush2.msra.mxu0 0.0
    %2133 = vmatprep.subr.mxu0 0.0
    %2134 = vmatpush2.msra.mxu0 0.0
    %2135 = vmatprep.subr.mxu0 0.0
    %2136 = vmatpush2.msra.mxu0 0.0
    %2137 = vmatprep.subr.mxu0 0.0
    %2138 = vmatpush2.msra.mxu0 0.0
    %2139 = vmatprep.subr.mxu0 0.0
    %2140 = vmatpush2.msra.mxu0 0.0
    %2141 = vmatprep.subr.mxu0 0.0
    %2142 = vmatpush2.msra.mxu0 0.0
    %2143 = vmatprep.subr.mxu0 0.0
    %2144 = vmatpush2.msra.mxu0 0.0
    %2145 = vmatprep.subr.mxu0 0.0
    %2146 = vmatpush2.msra.mxu0 0.0
    %2147 = vmatprep.mubr.f32.mxu0 0.0
    %v2148 = vand.u32 %v2073, 4294901760
    %v2149 = vsub.f32 %v2073, %v2148
    %v2150 = vand.u32 %v2149, 4294901760
    %v2151 = vsub.f32 %v2149, %v2150
    %v2152 = vand.u32 %v2151, 4294901760
    %2153 = vmatmul.mubr.f32.gmra.mxu0 %v2152
    %v2154 = vpop.f32.mrf.mxu0
    %v2155 = vadd.f32 %v2069, %v2154
    %v2156 = vpop.f32.mrf.mxu0
    %2157 = vmatprep.mubr.f32.mxu0 0.0
    %v2158 = vand.u32 %v2076, 4294901760
    %v2159 = vsub.f32 %v2076, %v2158
    %v2160 = vand.u32 %v2159, 4294901760
    %v2161 = vsub.f32 %v2159, %v2160
    %v2162 = vand.u32 %v2161, 4294901760
    %2163 = vmatmul.mubr.f32.gmra.mxu0 %v2162
    %v2164 = vpop.f32.mrf.mxu0
    %v2165 = vadd.f32 %v2069, %v2164
    %v2166 = vpop.f32.mrf.mxu0
    %2167 = vdwg.mxu0
    %2168 = vmatprep.subr.mxu0 0.0
    %2169 = vmatpush1.msra.mxu0 0.0
    %2170 = vmatprep.subr.mxu0 0.0
    %2171 = vmatpush1.msra.mxu0 0.0
    %2172 = vmatprep.subr.mxu0 0.0
    %2173 = vmatpush1.msra.mxu0 0.0
    %2174 = vmatprep.subr.mxu0 0.0
    %2175 = vmatpush1.msra.mxu0 0.0
    %2176 = vmatprep.subr.mxu0 0.0
    %2177 = vmatpush1.msra.mxu0 0.0
    %2178 = vmatprep.subr.mxu0 0.0
    %2179 = vmatpush1.msra.mxu0 0.0
    %2180 = vmatprep.subr.mxu0 0.0
    %2181 = vmatpush1.msra.mxu0 0.0
    %2182 = vmatprep.subr.mxu0 0.0
    %2183 = vmatpush1.msra.mxu0 0.0
    %2184 = vmatprep.subr.mxu0 0.0
    %2185 = vmatpush1.msra.mxu0 0.0
    %2186 = vmatprep.subr.mxu0 0.0
    %2187 = vmatpush1.msra.mxu0 0.0
    %2188 = vmatprep.subr.mxu0 0.0
    %2189 = vmatpush1.msra.mxu0 0.0
    %2190 = vmatprep.subr.mxu0 0.0
    %2191 = vmatpush1.msra.mxu0 0.0
    %2192 = vmatprep.subr.mxu0 0.0
    %2193 = vmatpush1.msra.mxu0 0.0
    %2194 = vmatprep.subr.mxu0 0.0
    %2195 = vmatpush1.msra.mxu0 0.0
    %2196 = vmatprep.subr.mxu0 0.0
    %2197 = vmatpush1.msra.mxu0 0.0
    %2198 = vmatprep.subr.mxu0 0.0
    %v2199 = vand.u32 %v2080, 4294901760
    %v2200 = vsub.f32 %v2080, %v2199
    %v2201 = vand.u32 %v2200, 4294901760
    %v2202 = vsub.f32 %v2200, %v2201
    %v2203 = vand.u32 %v2202, 4294901760
    %2204 = vmatpush1.msra.mxu0 %v2203
    %2205 = vmatprep.subr.mxu0 0.0
    %2206 = vmatpush2.msra.mxu0 0.0
    %2207 = vmatprep.subr.mxu0 0.0
    %2208 = vmatpush2.msra.mxu0 0.0
    %2209 = vmatprep.subr.mxu0 0.0
    %2210 = vmatpush2.msra.mxu0 0.0
    %2211 = vmatprep.subr.mxu0 0.0
    %2212 = vmatpush2.msra.mxu0 0.0
    %2213 = vmatprep.subr.mxu0 0.0
    %2214 = vmatpush2.msra.mxu0 0.0
    %2215 = vmatprep.subr.mxu0 0.0
    %2216 = vmatpush2.msra.mxu0 0.0
    %2217 = vmatprep.subr.mxu0 0.0
    %2218 = vmatpush2.msra.mxu0 0.0
    %2219 = vmatprep.subr.mxu0 0.0
    %2220 = vmatpush2.msra.mxu0 0.0
    %2221 = vmatprep.subr.mxu0 0.0
    %2222 = vmatpush2.msra.mxu0 0.0
    %2223 = vmatprep.subr.mxu0 0.0
    %2224 = vmatpush2.msra.mxu0 0.0
    %2225 = vmatprep.subr.mxu0 0.0
    %2226 = vmatpush2.msra.mxu0 0.0
    %2227 = vmatprep.subr.mxu0 0.0
    %2228 = vmatpush2.msra.mxu0 0.0
    %2229 = vmatprep.subr.mxu0 0.0
    %2230 = vmatpush2.msra.mxu0 0.0
    %2231 = vmatprep.subr.mxu0 0.0
    %2232 = vmatpush2.msra.mxu0 0.0
    %2233 = vmatprep.subr.mxu0 0.0
    %2234 = vmatpush2.msra.mxu0 0.0
    %2235 = vmatprep.subr.mxu0 0.0
    %2236 = vmatpush2.msra.mxu0 0.0
    %2237 = vmatprep.mubr.f32.mxu0 0.0
    %v2238 = vand.u32 %v2073, 4294901760
    %2239 = vmatmul.mubr.f32.gmra.mxu0 %v2238
    %v2240 = vpop.f32.mrf.mxu0
    %v2241 = vadd.f32 %v2155, %v2240
    %v2242 = vpop.f32.mrf.mxu0
    %2243 = vmatprep.mubr.f32.mxu0 0.0
    %v2244 = vand.u32 %v2076, 4294901760
    %2245 = vmatmul.mubr.f32.gmra.mxu0 %v2244
    %v2246 = vpop.f32.mrf.mxu0
    %v2247 = vadd.f32 %v2165, %v2246
    %v2248 = vpop.f32.mrf.mxu0
    %2249 = vdwg.mxu0
    %2250 = vmatprep.subr.mxu0 0.0
    %2251 = vmatpush1.msra.mxu0 0.0
    %2252 = vmatprep.subr.mxu0 0.0
    %2253 = vmatpush1.msra.mxu0 0.0
    %2254 = vmatprep.subr.mxu0 0.0
    %2255 = vmatpush1.msra.mxu0 0.0
    %2256 = vmatprep.subr.mxu0 0.0
    %2257 = vmatpush1.msra.mxu0 0.0
    %2258 = vmatprep.subr.mxu0 0.0
    %2259 = vmatpush1.msra.mxu0 0.0
    %2260 = vmatprep.subr.mxu0 0.0
    %2261 = vmatpush1.msra.mxu0 0.0
    %2262 = vmatprep.subr.mxu0 0.0
    %2263 = vmatpush1.msra.mxu0 0.0
    %2264 = vmatprep.subr.mxu0 0.0
    %2265 = vmatpush1.msra.mxu0 0.0
    %2266 = vmatprep.subr.mxu0 0.0
    %2267 = vmatpush1.msra.mxu0 0.0
    %2268 = vmatprep.subr.mxu0 0.0
    %2269 = vmatpush1.msra.mxu0 0.0
    %2270 = vmatprep.subr.mxu0 0.0
    %2271 = vmatpush1.msra.mxu0 0.0
    %2272 = vmatprep.subr.mxu0 0.0
    %2273 = vmatpush1.msra.mxu0 0.0
    %2274 = vmatprep.subr.mxu0 0.0
    %2275 = vmatpush1.msra.mxu0 0.0
    %2276 = vmatprep.subr.mxu0 0.0
    %2277 = vmatpush1.msra.mxu0 0.0
    %2278 = vmatprep.subr.mxu0 0.0
    %2279 = vmatpush1.msra.mxu0 0.0
    %2280 = vmatprep.subr.mxu0 0.0
    %v2281 = vand.u32 %v2080, 4294901760
    %v2282 = vsub.f32 %v2080, %v2281
    %2283 = vmatpush1.msra.mxu0 %v2282
    %2284 = vmatprep.subr.mxu0 0.0
    %2285 = vmatpush2.msra.mxu0 0.0
    %2286 = vmatprep.subr.mxu0 0.0
    %2287 = vmatpush2.msra.mxu0 0.0
    %2288 = vmatprep.subr.mxu0 0.0
    %2289 = vmatpush2.msra.mxu0 0.0
    %2290 = vmatprep.subr.mxu0 0.0
    %2291 = vmatpush2.msra.mxu0 0.0
    %2292 = vmatprep.subr.mxu0 0.0
    %2293 = vmatpush2.msra.mxu0 0.0
    %2294 = vmatprep.subr.mxu0 0.0
    %2295 = vmatpush2.msra.mxu0 0.0
    %2296 = vmatprep.subr.mxu0 0.0
    %2297 = vmatpush2.msra.mxu0 0.0
    %2298 = vmatprep.subr.mxu0 0.0
    %2299 = vmatpush2.msra.mxu0 0.0
    %2300 = vmatprep.subr.mxu0 0.0
    %2301 = vmatpush2.msra.mxu0 0.0
    %2302 = vmatprep.subr.mxu0 0.0
    %2303 = vmatpush2.msra.mxu0 0.0
    %2304 = vmatprep.subr.mxu0 0.0
    %2305 = vmatpush2.msra.mxu0 0.0
    %2306 = vmatprep.subr.mxu0 0.0
    %2307 = vmatpush2.msra.mxu0 0.0
    %2308 = vmatprep.subr.mxu0 0.0
    %2309 = vmatpush2.msra.mxu0 0.0
    %2310 = vmatprep.subr.mxu0 0.0
    %2311 = vmatpush2.msra.mxu0 0.0
    %2312 = vmatprep.subr.mxu0 0.0
    %2313 = vmatpush2.msra.mxu0 0.0
    %2314 = vmatprep.subr.mxu0 0.0
    %2315 = vmatpush2.msra.mxu0 0.0
    %2316 = vmatprep.mubr.f32.mxu0 0.0
    %v2317 = vand.u32 %v2073, 4294901760
    %v2318 = vsub.f32 %v2073, %v2317
    %2319 = vmatmul.mubr.f32.gmra.mxu0 %v2318
    %v2320 = vpop.f32.mrf.mxu0
    %v2321 = vadd.f32 %v2241, %v2320
    %v2322 = vpop.f32.mrf.mxu0
    %2323 = vmatprep.mubr.f32.mxu0 0.0
    %v2324 = vand.u32 %v2076, 4294901760
    %v2325 = vsub.f32 %v2076, %v2324
    %2326 = vmatmul.mubr.f32.gmra.mxu0 %v2325
    %v2327 = vpop.f32.mrf.mxu0
    %v2328 = vadd.f32 %v2247, %v2327
    %v2329 = vpop.f32.mrf.mxu0
    %2330 = vdwg.mxu0
    %2331 = vmatprep.subr.mxu0 0.0
    %2332 = vmatpush1.msra.mxu0 0.0
    %2333 = vmatprep.subr.mxu0 0.0
    %2334 = vmatpush1.msra.mxu0 0.0
    %2335 = vmatprep.subr.mxu0 0.0
    %2336 = vmatpush1.msra.mxu0 0.0
    %2337 = vmatprep.subr.mxu0 0.0
    %2338 = vmatpush1.msra.mxu0 0.0
    %2339 = vmatprep.subr.mxu0 0.0
    %2340 = vmatpush1.msra.mxu0 0.0
    %2341 = vmatprep.subr.mxu0 0.0
    %2342 = vmatpush1.msra.mxu0 0.0
    %2343 = vmatprep.subr.mxu0 0.0
    %2344 = vmatpush1.msra.mxu0 0.0
    %2345 = vmatprep.subr.mxu0 0.0
    %2346 = vmatpush1.msra.mxu0 0.0
    %2347 = vmatprep.subr.mxu0 0.0
    %2348 = vmatpush1.msra.mxu0 0.0
    %2349 = vmatprep.subr.mxu0 0.0
    %2350 = vmatpush1.msra.mxu0 0.0
    %2351 = vmatprep.subr.mxu0 0.0
    %2352 = vmatpush1.msra.mxu0 0.0
    %2353 = vmatprep.subr.mxu0 0.0
    %2354 = vmatpush1.msra.mxu0 0.0
    %2355 = vmatprep.subr.mxu0 0.0
    %2356 = vmatpush1.msra.mxu0 0.0
    %2357 = vmatprep.subr.mxu0 0.0
    %2358 = vmatpush1.msra.mxu0 0.0
    %2359 = vmatprep.subr.mxu0 0.0
    %2360 = vmatpush1.msra.mxu0 0.0
    %2361 = vmatprep.subr.mxu0 0.0
    %v2362 = vand.u32 %v2080, 4294901760
    %2363 = vmatpush1.msra.mxu0 %v2362
    %2364 = vmatprep.subr.mxu0 0.0
    %2365 = vmatpush2.msra.mxu0 0.0
    %2366 = vmatprep.subr.mxu0 0.0
    %2367 = vmatpush2.msra.mxu0 0.0
    %2368 = vmatprep.subr.mxu0 0.0
    %2369 = vmatpush2.msra.mxu0 0.0
    %2370 = vmatprep.subr.mxu0 0.0
    %2371 = vmatpush2.msra.mxu0 0.0
    %2372 = vmatprep.subr.mxu0 0.0
    %2373 = vmatpush2.msra.mxu0 0.0
    %2374 = vmatprep.subr.mxu0 0.0
    %2375 = vmatpush2.msra.mxu0 0.0
    %2376 = vmatprep.subr.mxu0 0.0
    %2377 = vmatpush2.msra.mxu0 0.0
    %2378 = vmatprep.subr.mxu0 0.0
    %2379 = vmatpush2.msra.mxu0 0.0
    %2380 = vmatprep.subr.mxu0 0.0
    %2381 = vmatpush2.msra.mxu0 0.0
    %2382 = vmatprep.subr.mxu0 0.0
    %2383 = vmatpush2.msra.mxu0 0.0
    %2384 = vmatprep.subr.mxu0 0.0
    %2385 = vmatpush2.msra.mxu0 0.0
    %2386 = vmatprep.subr.mxu0 0.0
    %2387 = vmatpush2.msra.mxu0 0.0
    %2388 = vmatprep.subr.mxu0 0.0
    %2389 = vmatpush2.msra.mxu0 0.0
    %2390 = vmatprep.subr.mxu0 0.0
    %2391 = vmatpush2.msra.mxu0 0.0
    %2392 = vmatprep.subr.mxu0 0.0
    %2393 = vmatpush2.msra.mxu0 0.0
    %2394 = vmatprep.subr.mxu0 0.0
    %2395 = vmatpush2.msra.mxu0 0.0
    %2396 = vmatprep.mubr.f32.mxu0 0.0
    %v2397 = vand.u32 %v2073, 4294901760
    %v2398 = vsub.f32 %v2073, %v2397
    %v2399 = vand.u32 %v2398, 4294901760
    %2400 = vmatmul.mubr.f32.gmra.mxu0 %v2399
    %v2401 = vpop.f32.mrf.mxu0
    %v2402 = vadd.f32 %v2321, %v2401
    %v2403 = vpop.f32.mrf.mxu0
    %2404 = vmatprep.mubr.f32.mxu0 0.0
    %v2405 = vand.u32 %v2076, 4294901760
    %v2406 = vsub.f32 %v2076, %v2405
    %v2407 = vand.u32 %v2406, 4294901760
    %2408 = vmatmul.mubr.f32.gmra.mxu0 %v2407
    %v2409 = vpop.f32.mrf.mxu0
    %v2410 = vadd.f32 %v2328, %v2409
    %v2411 = vpop.f32.mrf.mxu0
    %2412 = vdwg.mxu0
    %2413 = vmatprep.subr.mxu0 0.0
    %2414 = vmatpush1.msra.mxu0 0.0
    %2415 = vmatprep.subr.mxu0 0.0
    %2416 = vmatpush1.msra.mxu0 0.0
    %2417 = vmatprep.subr.mxu0 0.0
    %2418 = vmatpush1.msra.mxu0 0.0
    %2419 = vmatprep.subr.mxu0 0.0
    %2420 = vmatpush1.msra.mxu0 0.0
    %2421 = vmatprep.subr.mxu0 0.0
    %2422 = vmatpush1.msra.mxu0 0.0
    %2423 = vmatprep.subr.mxu0 0.0
    %2424 = vmatpush1.msra.mxu0 0.0
    %2425 = vmatprep.subr.mxu0 0.0
    %2426 = vmatpush1.msra.mxu0 0.0
    %2427 = vmatprep.subr.mxu0 0.0
    %2428 = vmatpush1.msra.mxu0 0.0
    %2429 = vmatprep.subr.mxu0 0.0
    %2430 = vmatpush1.msra.mxu0 0.0
    %2431 = vmatprep.subr.mxu0 0.0
    %2432 = vmatpush1.msra.mxu0 0.0
    %2433 = vmatprep.subr.mxu0 0.0
    %2434 = vmatpush1.msra.mxu0 0.0
    %2435 = vmatprep.subr.mxu0 0.0
    %2436 = vmatpush1.msra.mxu0 0.0
    %2437 = vmatprep.subr.mxu0 0.0
    %2438 = vmatpush1.msra.mxu0 0.0
    %2439 = vmatprep.subr.mxu0 0.0
    %2440 = vmatpush1.msra.mxu0 0.0
    %2441 = vmatprep.subr.mxu0 0.0
    %2442 = vmatpush1.msra.mxu0 0.0
    %2443 = vmatprep.subr.mxu0 0.0
    %v2444 = vand.u32 %v2080, 4294901760
    %v2445 = vsub.f32 %v2080, %v2444
    %v2446 = vand.u32 %v2445, 4294901760
    %2447 = vmatpush1.msra.mxu0 %v2446
    %2448 = vmatprep.subr.mxu0 0.0
    %2449 = vmatpush2.msra.mxu0 0.0
    %2450 = vmatprep.subr.mxu0 0.0
    %2451 = vmatpush2.msra.mxu0 0.0
    %2452 = vmatprep.subr.mxu0 0.0
    %2453 = vmatpush2.msra.mxu0 0.0
    %2454 = vmatprep.subr.mxu0 0.0
    %2455 = vmatpush2.msra.mxu0 0.0
    %2456 = vmatprep.subr.mxu0 0.0
    %2457 = vmatpush2.msra.mxu0 0.0
    %2458 = vmatprep.subr.mxu0 0.0
    %2459 = vmatpush2.msra.mxu0 0.0
    %2460 = vmatprep.subr.mxu0 0.0
    %2461 = vmatpush2.msra.mxu0 0.0
    %2462 = vmatprep.subr.mxu0 0.0
    %2463 = vmatpush2.msra.mxu0 0.0
    %2464 = vmatprep.subr.mxu0 0.0
    %2465 = vmatpush2.msra.mxu0 0.0
    %2466 = vmatprep.subr.mxu0 0.0
    %2467 = vmatpush2.msra.mxu0 0.0
    %2468 = vmatprep.subr.mxu0 0.0
    %2469 = vmatpush2.msra.mxu0 0.0
    %2470 = vmatprep.subr.mxu0 0.0
    %2471 = vmatpush2.msra.mxu0 0.0
    %2472 = vmatprep.subr.mxu0 0.0
    %2473 = vmatpush2.msra.mxu0 0.0
    %2474 = vmatprep.subr.mxu0 0.0
    %2475 = vmatpush2.msra.mxu0 0.0
    %2476 = vmatprep.subr.mxu0 0.0
    %2477 = vmatpush2.msra.mxu0 0.0
    %2478 = vmatprep.subr.mxu0 0.0
    %2479 = vmatpush2.msra.mxu0 0.0
    %2480 = vmatprep.mubr.f32.mxu0 0.0
    %v2481 = vand.u32 %v2073, 4294901760
    %2482 = vmatmul.mubr.f32.gmra.mxu0 %v2481
    %v2483 = vpop.f32.mrf.mxu0
    %v2484 = vadd.f32 %v2402, %v2483
    %v2485 = vpop.f32.mrf.mxu0
    %2486 = vmatprep.mubr.f32.mxu0 0.0
    %v2487 = vand.u32 %v2076, 4294901760
    %2488 = vmatmul.mubr.f32.gmra.mxu0 %v2487
    %v2489 = vpop.f32.mrf.mxu0
    %v2490 = vadd.f32 %v2410, %v2489
    %v2491 = vpop.f32.mrf.mxu0
    %2492 = vdwg.mxu0
    %2493 = vmatprep.subr.mxu0 0.0
    %2494 = vmatpush1.msra.mxu0 0.0
    %2495 = vmatprep.subr.mxu0 0.0
    %2496 = vmatpush1.msra.mxu0 0.0
    %2497 = vmatprep.subr.mxu0 0.0
    %2498 = vmatpush1.msra.mxu0 0.0
    %2499 = vmatprep.subr.mxu0 0.0
    %2500 = vmatpush1.msra.mxu0 0.0
    %2501 = vmatprep.subr.mxu0 0.0
    %2502 = vmatpush1.msra.mxu0 0.0
    %2503 = vmatprep.subr.mxu0 0.0
    %2504 = vmatpush1.msra.mxu0 0.0
    %2505 = vmatprep.subr.mxu0 0.0
    %2506 = vmatpush1.msra.mxu0 0.0
    %2507 = vmatprep.subr.mxu0 0.0
    %2508 = vmatpush1.msra.mxu0 0.0
    %2509 = vmatprep.subr.mxu0 0.0
    %2510 = vmatpush1.msra.mxu0 0.0
    %2511 = vmatprep.subr.mxu0 0.0
    %2512 = vmatpush1.msra.mxu0 0.0
    %2513 = vmatprep.subr.mxu0 0.0
    %2514 = vmatpush1.msra.mxu0 0.0
    %2515 = vmatprep.subr.mxu0 0.0
    %2516 = vmatpush1.msra.mxu0 0.0
    %2517 = vmatprep.subr.mxu0 0.0
    %2518 = vmatpush1.msra.mxu0 0.0
    %2519 = vmatprep.subr.mxu0 0.0
    %2520 = vmatpush1.msra.mxu0 0.0
    %2521 = vmatprep.subr.mxu0 0.0
    %2522 = vmatpush1.msra.mxu0 0.0
    %2523 = vmatprep.subr.mxu0 0.0
    %v2524 = vand.u32 %v2080, 4294901760
    %2525 = vmatpush1.msra.mxu0 %v2524
    %2526 = vmatprep.subr.mxu0 0.0
    %2527 = vmatpush2.msra.mxu0 0.0
    %2528 = vmatprep.subr.mxu0 0.0
    %2529 = vmatpush2.msra.mxu0 0.0
    %2530 = vmatprep.subr.mxu0 0.0
    %2531 = vmatpush2.msra.mxu0 0.0
    %2532 = vmatprep.subr.mxu0 0.0
    %2533 = vmatpush2.msra.mxu0 0.0
    %2534 = vmatprep.subr.mxu0 0.0
    %2535 = vmatpush2.msra.mxu0 0.0
    %2536 = vmatprep.subr.mxu0 0.0
    %2537 = vmatpush2.msra.mxu0 0.0
    %2538 = vmatprep.subr.mxu0 0.0
    %2539 = vmatpush2.msra.mxu0 0.0
    %2540 = vmatprep.subr.mxu0 0.0
    %2541 = vmatpush2.msra.mxu0 0.0
    %2542 = vmatprep.subr.mxu0 0.0
    %2543 = vmatpush2.msra.mxu0 0.0
    %2544 = vmatprep.subr.mxu0 0.0
    %2545 = vmatpush2.msra.mxu0 0.0
    %2546 = vmatprep.subr.mxu0 0.0
    %2547 = vmatpush2.msra.mxu0 0.0
    %2548 = vmatprep.subr.mxu0 0.0
    %2549 = vmatpush2.msra.mxu0 0.0
    %2550 = vmatprep.subr.mxu0 0.0
    %2551 = vmatpush2.msra.mxu0 0.0
    %2552 = vmatprep.subr.mxu0 0.0
    %2553 = vmatpush2.msra.mxu0 0.0
    %2554 = vmatprep.subr.mxu0 0.0
    %2555 = vmatpush2.msra.mxu0 0.0
    %2556 = vmatprep.subr.mxu0 0.0
    %2557 = vmatpush2.msra.mxu0 0.0
    %2558 = vmatprep.mubr.f32.mxu0 0.0
    %v2559 = vand.u32 %v2073, 4294901760
    %2560 = vmatmul.mubr.f32.gmra.mxu0 %v2559
    %v2561 = vpop.f32.mrf.mxu0
    %v2562 = vadd.f32 %v2484, %v2561
    %v2563 = vpop.f32.mrf.mxu0
    %2564 = vmatprep.mubr.f32.mxu0 0.0
    %v2565 = vand.u32 %v2076, 4294901760
    %2566 = vmatmul.mubr.f32.gmra.mxu0 %v2565
    %v2567 = vpop.f32.mrf.mxu0
    %v2568 = vadd.f32 %v2490, %v2567
    %v2569 = vpop.f32.mrf.mxu0
    %2570 = vdwg.mxu0
    %v2571 = vld [vmem:[%s27] sm:$0xff]
    %v2572 = vld [vmem:[%s27 + $0x8] sm:$0xff]
    %v2573 = vadd.f32 %v2562, %v2571
    %v2574 = vadd.f32 %v2568, %v2572
    %vm2575 = vcmask 253952
    %2576 = vst.msk [vmem:[#allocation2] sm:$0x1] %vm2575, %v2060
    %2577 = vst.msk [vmem:[#allocation2 + $0x1] sm:$0xff] %vm605, %v2573
    %vm2578 = vcmask 254977
    %2579 = vst.msk [vmem:[#allocation2 + $0x8] sm:$0x2] %vm2578, %v2060
    %2580 = vst.msk [vmem:[#allocation2 + $0xa] sm:$0xff] %vm605, %v2574
    %v2581 = vld [vmem:[#allocation2] sm:$0xff]
    %v2582 = vld [vmem:[#allocation2 + $0x8] sm:$0xff]
    %v2583 = vld [vmem:[#allocation2 + $0x10] sm:$0x3]
    %v2584 = vlaneseq
    %v2585 = vshrl.u32 %v2584, 7
    %v2586 = vadd.s32 %v2585, 8
    %v2587 = vlaneseq
    %v2588 = vand.u32 %v2587, 127
    %vm2589 = vcmp.le.s32.totalorder %v2588, %v2585
    %vm2590 = vcmp.le.s32.totalorder %v2588, %v2586
    %v2591 = vpack.c.bf16 %v2582, %v2581
    %v2592 = vpack.c.bf16 %v2583, %v2583
    %v2593 = vld [vmem:[%s29] sm:$0xf]
    %v2594 = vld [vmem:[%s29 + $0x4] sm:$0xf]
    %v2595 = vld [vmem:[%s29 + $0x8] sm:$0xf]
    %v2596 = vld [vmem:[%s29 + $0xc] sm:$0xf]
    %v2597 = vld [vmem:[%s31] sm:$0x1]
    %v2599 = vlaneseq
    %v2600 = vshrl.u32 %v2599, 7
    %v2601 = vsub.s32 0, %v2600
    %v2602 = vrot.slane %v2597, %v2601
    %v2608 = vunpack.c.l.b16 %v2593
    %v2609 = vunpack.c.l.b16 %v2594
    %v2610 = vunpack.c.l.b16 %v2595
    %v2611 = vunpack.c.l.b16 %v2596
    %v2612 = vpack.c.b16 %v2609, %v2608
    %v2613 = vpack.c.b16 %v2611, %v2610
    %v2617 = vsel %vm605, %v2591, 0
    %v2620 = vsel %vm605, %v2592, 0
    %2622 = vmatprep.subr.bf16.mxu0 0
    %2623 = vmatpush1.bf16.msra.mxu0 0
    %2624 = vmatprep.subr.bf16.mxu0 0
    %2625 = vmatpush1.bf16.msra.mxu0 0
    %2626 = vmatprep.subr.bf16.mxu0 0
    %2627 = vmatpush1.bf16.msra.mxu0 0
    %2628 = vmatprep.subr.bf16.mxu0 0
    %2629 = vmatpush1.bf16.msra.mxu0 0
    %2630 = vmatprep.subr.bf16.mxu0 0
    %2631 = vmatpush1.bf16.msra.mxu0 0
    %2632 = vmatprep.subr.bf16.mxu0 0
    %2633 = vmatpush1.bf16.msra.mxu0 0
    %2634 = vmatprep.subr.bf16.mxu0 0
    %2635 = vmatpush1.bf16.msra.mxu0 %v2613
    %2636 = vmatprep.subr.bf16.mxu0 0
    %2637 = vmatpush1.bf16.msra.mxu0 %v2612
    %2638 = vmatprep.subr.bf16.mxu0 0
    %2639 = vmatpush2.bf16.msra.mxu0 0
    %2640 = vmatprep.subr.bf16.mxu0 0
    %2641 = vmatpush2.bf16.msra.mxu0 0
    %2642 = vmatprep.subr.bf16.mxu0 0
    %2643 = vmatpush2.bf16.msra.mxu0 0
    %2644 = vmatprep.subr.bf16.mxu0 0
    %2645 = vmatpush2.bf16.msra.mxu0 0
    %2646 = vmatprep.subr.bf16.mxu0 0
    %2647 = vmatpush2.bf16.msra.mxu0 0
    %2648 = vmatprep.subr.bf16.mxu0 0
    %2649 = vmatpush2.bf16.msra.mxu0 0
    %2650 = vmatprep.subr.bf16.mxu0 0
    %2651 = vmatpush2.bf16.msra.mxu0 0
    %2652 = vmatprep.subr.bf16.mxu0 0
    %2653 = vmatpush2.bf16.msra.mxu0 0
    %2654 = vmatprep.mubr.bf16.mxu0 0
    %2655 = vmatmul.mubr.bf16.gmra.mxu0 %v2617
    %v2656 = vpop.f32.mrf.mxu0
    %v2657 = vadd.f32 %v2602, %v2656
    %v2658 = vpop.f32.mrf.mxu0
    %v2659 = vpop.f32.mrf.mxu0
    %v2660 = vadd.f32 %v2602, %v2659
    %v2661 = vpop.f32.mrf.mxu0
    %2662 = vmatprep.mubr.bf16.mxu0 0
    %2663 = vmatmul.mubr.bf16.gmra.mxu0 %v2620
    %v2664 = vpop.f32.mrf.mxu0
    %v2665 = vadd.f32 %v2602, %v2664
    %v2666 = vpop.f32.mrf.mxu0
    %v2667 = vpop.f32.mrf.mxu0
    %v2668 = vpop.f32.mrf.mxu0
    %2669 = vdwg.mxu0
    %vm2670 = vcmask 785408
    %2671 = vst.msk [vmem:[#allocation3] sm:$0xff] %vm2670, %v2657
    %2672 = vst.msk [vmem:[#allocation3 + $0x8] sm:$0xff] %vm2670, %v2660
    %vm2673 = vcmask 779264
    %2674 = vst.msk [vmem:[#allocation3 + $0x10] sm:$0x3] %vm2673, %v2665
    %v2675 = vld [vmem:[%s33] sm:$0xff]
    %v2676 = vld [vmem:[%s33 + $0x8] sm:$0xff]
    %v2677 = vld [vmem:[%s33 + $0x10] sm:$0xff]
    %v2678 = vld [vmem:[%s33 + $0x18] sm:$0xff]
    %v2679 = vld [vmem:[#allocation3] sm:$0xff]
    %v2680 = vld [vmem:[#allocation3 + $0x8] sm:$0x1]
    %v2681 = vpack.c.bf16 %v2680, %v2679
    %2683 = vrot.lane.b32.xlu0 %v2681, 96
    %v2684 = vpop.permute.xlu0 %2683
    %v2686 = vsel %vm143, %v2681, 0
    %v2689 = vsel %vm143, %v2684, 0
    %2691 = vmatprep.subr.bf16.mxu0 0
    %2692 = vmatpush1.bf16.xpose.msra.mxu0 0
    %2693 = vmatprep.subr.bf16.mxu0 0
    %2694 = vmatpush1.bf16.xpose.msra.mxu0 0
    %2695 = vmatprep.subr.bf16.mxu0 0
    %2696 = vmatpush1.bf16.xpose.msra.mxu0 0
    %2697 = vmatprep.subr.bf16.mxu0 0
    %2698 = vmatpush1.bf16.xpose.msra.mxu0 0
    %2699 = vmatprep.subr.bf16.mxu0 0
    %2700 = vmatpush1.bf16.xpose.msra.mxu0 0
    %2701 = vmatprep.subr.bf16.mxu0 0
    %2702 = vmatpush1.bf16.xpose.msra.mxu0 0
    %2703 = vmatprep.subr.bf16.mxu0 0
    %2704 = vmatpush1.bf16.xpose.msra.mxu0 0
    %2705 = vmatprep.subr.bf16.mxu0 0
    %2706 = vmatpush1.bf16.xpose.msra.mxu0 %v2689
    %2707 = vmatprep.subr.bf16.mxu0 0
    %2708 = vmatpush2.bf16.xpose.msra.mxu0 0
    %2709 = vmatprep.subr.bf16.mxu0 0
    %2710 = vmatpush2.bf16.xpose.msra.mxu0 0
    %2711 = vmatprep.subr.bf16.mxu0 0
    %2712 = vmatpush2.bf16.xpose.msra.mxu0 0
    %2713 = vmatprep.subr.bf16.mxu0 0
    %2714 = vmatpush2.bf16.xpose.msra.mxu0 0
    %2715 = vmatprep.subr.bf16.mxu0 0
    %2716 = vmatpush2.bf16.xpose.msra.mxu0 0
    %2717 = vmatprep.subr.bf16.mxu0 0
    %2718 = vmatpush2.bf16.xpose.msra.mxu0 0
    %2719 = vmatprep.subr.bf16.mxu0 0
    %2720 = vmatpush2.bf16.xpose.msra.mxu0 0
    %2721 = vmatprep.subr.bf16.mxu0 0
    %2722 = vmatpush2.bf16.xpose.msra.mxu0 0
    %2723 = vmatprep.mubr.bf16.mxu0 0
    %2724 = vmatmul.mubr.bf16.gmra.mxu0 %v2686
    %v2725 = vpop.f32.mrf.mxu0
    %v2726 = vadd.f32 0.0, %v2725
    %v2727 = vpop.f32.mrf.mxu0
    %v2728 = vpop.f32.mrf.mxu0
    %v2729 = vadd.f32 0.0, %v2728
    %v2730 = vpop.f32.mrf.mxu0
    %2731 = vdwg.mxu0
    %v2732 = vmul.f32 %v2726, 0.35355338
    %v2733 = vmul.f32 %v2729, 0.35355338
    %v2734 = vsel %vm2589, %v2732, -1e+30
    %v2735 = vsel %vm2590, %v2733, -1e+30
    %vm2736 = vcmask 72704
    %v2737 = vsel %vm2736, %v2734, -inf
    %2738 = vmax.xlane.f32.xlu0 %v2737
    %v2739 = vpop.xlane.xlu0 %2738
    %vm2740 = vcmask 65536
    %v2741 = vsel %vm2740, %v2735, -inf
    %2742 = vmax.xlane.f32.xlu0 %v2741
    %v2743 = vpop.xlane.xlu0 %2742
    %v2744 = vsub.f32 %v2734, %v2739
    %v2745 = vsub.f32 %v2735, %v2743
    %v2746 = vmul.f32 %v2744, 1.442695
    %v2747 = vpow.pop %v2746
    %v2748 = vmul.f32 %v2745, 1.442695
    %v2749 = vpow.pop %v2748
    %v2750 = vsel %vm2736, %v2747, 0.0
    %2751 = vadd.xlane.f32.xlu0 %v2750
    %v2752 = vpop.xlane.xlu0 %2751
    %v2753 = vsel %vm2740, %v2749, 0.0
    %2754 = vadd.xlane.f32.xlu0 %v2753
    %v2755 = vpop.xlane.xlu0 %2754
    %v2756 = vpack.c.bf16 %v2749, %v2747
    %2757 = vrot.lane.b32.xlu0 %v2681, 64
    %v2758 = vpop.permute.xlu0 %2757
    %v2760 = vsel %vm2736, %v2756, 0
    %vm2762 = vcmask 1044480
    %v2763 = vsel %vm2078, 4294967295, 65535
    %v2764 = vsel %vm2762, %v2763, 0
    %v2766 = vand.u32 %v2758, %v2764
    %2768 = vmatprep.subr.bf16.mxu0 0
    %2769 = vmatpush1.bf16.msra.mxu0 0
    %2770 = vmatprep.subr.bf16.mxu0 0
    %2771 = vmatpush1.bf16.msra.mxu0 0
    %2772 = vmatprep.subr.bf16.mxu0 0
    %2773 = vmatpush1.bf16.msra.mxu0 0
    %2774 = vmatprep.subr.bf16.mxu0 0
    %2775 = vmatpush1.bf16.msra.mxu0 0
    %2776 = vmatprep.subr.bf16.mxu0 0
    %2777 = vmatpush1.bf16.msra.mxu0 0
    %2778 = vmatprep.subr.bf16.mxu0 0
    %2779 = vmatpush1.bf16.msra.mxu0 0
    %2780 = vmatprep.subr.bf16.mxu0 0
    %2781 = vmatpush1.bf16.msra.mxu0 0
    %2782 = vmatprep.subr.bf16.mxu0 0
    %2783 = vmatpush1.bf16.msra.mxu0 %v2766
    %2784 = vmatprep.subr.bf16.mxu0 0
    %2785 = vmatpush2.bf16.msra.mxu0 0
    %2786 = vmatprep.subr.bf16.mxu0 0
    %2787 = vmatpush2.bf16.msra.mxu0 0
    %2788 = vmatprep.subr.bf16.mxu0 0
    %2789 = vmatpush2.bf16.msra.mxu0 0
    %2790 = vmatprep.subr.bf16.mxu0 0
    %2791 = vmatpush2.bf16.msra.mxu0 0
    %2792 = vmatprep.subr.bf16.mxu0 0
    %2793 = vmatpush2.bf16.msra.mxu0 0
    %2794 = vmatprep.subr.bf16.mxu0 0
    %2795 = vmatpush2.bf16.msra.mxu0 0
    %2796 = vmatprep.subr.bf16.mxu0 0
    %2797 = vmatpush2.bf16.msra.mxu0 0
    %2798 = vmatprep.subr.bf16.mxu0 0
    %2799 = vmatpush2.bf16.msra.mxu0 0
    %2800 = vmatprep.mubr.bf16.mxu0 0
    %2801 = vmatmul.mubr.bf16.gmra.mxu0 %v2760
    %v2802 = vpop.f32.mrf.mxu0
    %v2803 = vadd.f32 0.0, %v2802
    %v2804 = vpop.f32.mrf.mxu0
    %v2805 = vpop.f32.mrf.mxu0
    %v2806 = vadd.f32 0.0, %v2805
    %v2807 = vpop.f32.mrf.mxu0
    %2808 = vdwg.mxu0
    %v2809 = vrcp.pop %v2752
    %v2810 = vrcp.pop %v2755
    %v2811 = vmul.f32 %v2803, %v2809
    %v2812 = vmul.f32 %v2806, %v2810
    %v2813 = vpack.c.bf16 %v2812, %v2811
    %v2814 = vpack.c.bf16 %v2675, %v2675
    %2815 = vrot.lane.b32.xlu0 %v2681, 120
    %v2816 = vpop.permute.xlu0 %2815
    %2817 = vrot.lane.b32.xlu0 %v2681, 88
    %v2818 = vpop.permute.xlu0 %2817
    %v2820 = vsel %vm143, %v2816, 0
    %v2823 = vsel %vm143, %v2818, 0
    %2825 = vmatprep.subr.bf16.mxu0 0
    %2826 = vmatpush1.bf16.xpose.msra.mxu0 0
    %2827 = vmatprep.subr.bf16.mxu0 0
    %2828 = vmatpush1.bf16.xpose.msra.mxu0 0
    %2829 = vmatprep.subr.bf16.mxu0 0
    %2830 = vmatpush1.bf16.xpose.msra.mxu0 0
    %2831 = vmatprep.subr.bf16.mxu0 0
    %2832 = vmatpush1.bf16.xpose.msra.mxu0 0
    %2833 = vmatprep.subr.bf16.mxu0 0
    %2834 = vmatpush1.bf16.xpose.msra.mxu0 0
    %2835 = vmatprep.subr.bf16.mxu0 0
    %2836 = vmatpush1.bf16.xpose.msra.mxu0 0
    %2837 = vmatprep.subr.bf16.mxu0 0
    %2838 = vmatpush1.bf16.xpose.msra.mxu0 0
    %2839 = vmatprep.subr.bf16.mxu0 0
    %2840 = vmatpush1.bf16.xpose.msra.mxu0 %v2823
    %2841 = vmatprep.subr.bf16.mxu0 0
    %2842 = vmatpush2.bf16.xpose.msra.mxu0 0
    %2843 = vmatprep.subr.bf16.mxu0 0
    %2844 = vmatpush2.bf16.xpose.msra.mxu0 0
    %2845 = vmatprep.subr.bf16.mxu0 0
    %2846 = vmatpush2.bf16.xpose.msra.mxu0 0
    %2847 = vmatprep.subr.bf16.mxu0 0
    %2848 = vmatpush2.bf16.xpose.msra.mxu0 0
    %2849 = vmatprep.subr.bf16.mxu0 0
    %2850 = vmatpush2.bf16.xpose.msra.mxu0 0
    %2851 = vmatprep.subr.bf16.mxu0 0
    %2852 = vmatpush2.bf16.xpose.msra.mxu0 0
    %2853 = vmatprep.subr.bf16.mxu0 0
    %2854 = vmatpush2.bf16.xpose.msra.mxu0 0
    %2855 = vmatprep.subr.bf16.mxu0 0
    %2856 = vmatpush2.bf16.xpose.msra.mxu0 0
    %2857 = vmatprep.mubr.bf16.mxu0 0
    %2858 = vmatmul.mubr.bf16.gmra.mxu0 %v2820
    %v2859 = vpop.f32.mrf.mxu0
    %v2860 = vadd.f32 0.0, %v2859
    %v2861 = vpop.f32.mrf.mxu0
    %v2862 = vpop.f32.mrf.mxu0
    %v2863 = vadd.f32 0.0, %v2862
    %v2864 = vpop.f32.mrf.mxu0
    %2865 = vdwg.mxu0
    %v2866 = vmul.f32 %v2860, 0.35355338
    %v2867 = vmul.f32 %v2863, 0.35355338
    %v2868 = vsel %vm2589, %v2866, -1e+30
    %v2869 = vsel %vm2590, %v2867, -1e+30
    %v2870 = vsel %vm2736, %v2868, -inf
    %2871 = vmax.xlane.f32.xlu0 %v2870
    %v2872 = vpop.xlane.xlu0 %2871
    %v2873 = vsel %vm2740, %v2869, -inf
    %2874 = vmax.xlane.f32.xlu0 %v2873
    %v2875 = vpop.xlane.xlu0 %2874
    %v2876 = vsub.f32 %v2868, %v2872
    %v2877 = vsub.f32 %v2869, %v2875
    %v2878 = vmul.f32 %v2876, 1.442695
    %v2879 = vpow.pop %v2878
    %v2880 = vmul.f32 %v2877, 1.442695
    %v2881 = vpow.pop %v2880
    %v2882 = vsel %vm2736, %v2879, 0.0
    %2883 = vadd.xlane.f32.xlu0 %v2882
    %v2884 = vpop.xlane.xlu0 %2883
    %v2885 = vsel %vm2740, %v2881, 0.0
    %2886 = vadd.xlane.f32.xlu0 %v2885
    %v2887 = vpop.xlane.xlu0 %2886
    %v2888 = vpack.c.bf16 %v2881, %v2879
    %2889 = vrot.lane.b32.xlu0 %v2681, 56
    %v2890 = vpop.permute.xlu0 %2889
    %v2892 = vsel %vm2736, %v2888, 0
    %v2895 = vand.u32 %v2890, %v2764
    %2897 = vmatprep.subr.bf16.mxu0 0
    %2898 = vmatpush1.bf16.msra.mxu0 0
    %2899 = vmatprep.subr.bf16.mxu0 0
    %2900 = vmatpush1.bf16.msra.mxu0 0
    %2901 = vmatprep.subr.bf16.mxu0 0
    %2902 = vmatpush1.bf16.msra.mxu0 0
    %2903 = vmatprep.subr.bf16.mxu0 0
    %2904 = vmatpush1.bf16.msra.mxu0 0
    %2905 = vmatprep.subr.bf16.mxu0 0
    %2906 = vmatpush1.bf16.msra.mxu0 0
    %2907 = vmatprep.subr.bf16.mxu0 0
    %2908 = vmatpush1.bf16.msra.mxu0 0
    %2909 = vmatprep.subr.bf16.mxu0 0
    %2910 = vmatpush1.bf16.msra.mxu0 0
    %2911 = vmatprep.subr.bf16.mxu0 0
    %2912 = vmatpush1.bf16.msra.mxu0 %v2895
    %2913 = vmatprep.subr.bf16.mxu0 0
    %2914 = vmatpush2.bf16.msra.mxu0 0
    %2915 = vmatprep.subr.bf16.mxu0 0
    %2916 = vmatpush2.bf16.msra.mxu0 0
    %2917 = vmatprep.subr.bf16.mxu0 0
    %2918 = vmatpush2.bf16.msra.mxu0 0
    %2919 = vmatprep.subr.bf16.mxu0 0
    %2920 = vmatpush2.bf16.msra.mxu0 0
    %2921 = vmatprep.subr.bf16.mxu0 0
    %2922 = vmatpush2.bf16.msra.mxu0 0
    %2923 = vmatprep.subr.bf16.mxu0 0
    %2924 = vmatpush2.bf16.msra.mxu0 0
    %2925 = vmatprep.subr.bf16.mxu0 0
    %2926 = vmatpush2.bf16.msra.mxu0 0
    %2927 = vmatprep.subr.bf16.mxu0 0
    %2928 = vmatpush2.bf16.msra.mxu0 0
    %2929 = vmatprep.mubr.bf16.mxu0 0
    %2930 = vmatmul.mubr.bf16.gmra.mxu0 %v2892
    %v2931 = vpop.f32.mrf.mxu0
    %v2932 = vadd.f32 0.0, %v2931
    %v2933 = vpop.f32.mrf.mxu0
    %v2934 = vpop.f32.mrf.mxu0
    %v2935 = vadd.f32 0.0, %v2934
    %v2936 = vpop.f32.mrf.mxu0
    %2937 = vdwg.mxu0
    %v2938 = vrcp.pop %v2884
    %v2939 = vrcp.pop %v2887
    %v2940 = vmul.f32 %v2932, %v2938
    %v2941 = vmul.f32 %v2935, %v2939
    %v2942 = vpack.c.bf16 %v2941, %v2940
    %v2943 = vpack.c.bf16 %v2676, %v2676
    %v2945 = vsel %vm143, %v2942, 0
    %v2948 = vsel %vm2078, %v2943, 0
    %2950 = vmatprep.subr.bf16.mxu0 0
    %2951 = vmatpush1.bf16.msra.mxu0 0
    %2952 = vmatprep.subr.bf16.mxu0 0
    %2953 = vmatpush1.bf16.msra.mxu0 0
    %2954 = vmatprep.subr.bf16.mxu0 0
    %2955 = vmatpush1.bf16.msra.mxu0 0
    %2956 = vmatprep.subr.bf16.mxu0 0
    %2957 = vmatpush1.bf16.msra.mxu0 0
    %2958 = vmatprep.subr.bf16.mxu0 0
    %2959 = vmatpush1.bf16.msra.mxu0 0
    %2960 = vmatprep.subr.bf16.mxu0 0
    %2961 = vmatpush1.bf16.msra.mxu0 0
    %2962 = vmatprep.subr.bf16.mxu0 0
    %2963 = vmatpush1.bf16.msra.mxu0 0
    %2964 = vmatprep.subr.bf16.mxu0 0
    %2965 = vmatpush1.bf16.msra.mxu0 %v2948
    %2966 = vmatprep.subr.bf16.mxu0 0
    %2967 = vmatpush2.bf16.msra.mxu0 0
    %2968 = vmatprep.subr.bf16.mxu0 0
    %2969 = vmatpush2.bf16.msra.mxu0 0
    %2970 = vmatprep.subr.bf16.mxu0 0
    %2971 = vmatpush2.bf16.msra.mxu0 0
    %2972 = vmatprep.subr.bf16.mxu0 0
    %2973 = vmatpush2.bf16.msra.mxu0 0
    %2974 = vmatprep.subr.bf16.mxu0 0
    %2975 = vmatpush2.bf16.msra.mxu0 0
    %2976 = vmatprep.subr.bf16.mxu0 0
    %2977 = vmatpush2.bf16.msra.mxu0 0
    %2978 = vmatprep.subr.bf16.mxu0 0
    %2979 = vmatpush2.bf16.msra.mxu0 0
    %2980 = vmatprep.subr.bf16.mxu0 0
    %2981 = vmatpush2.bf16.msra.mxu0 0
    %2982 = vmatprep.mubr.bf16.mxu0 0
    %2983 = vmatmul.mubr.bf16.gmra.mxu0 %v2945
    %v2984 = vpop.f32.mrf.mxu0
    %v2985 = vadd.f32 0.0, %v2984
    %v2986 = vpop.f32.mrf.mxu0
    %v2987 = vpop.f32.mrf.mxu0
    %v2988 = vadd.f32 0.0, %v2987
    %v2989 = vpop.f32.mrf.mxu0
    %2990 = vdwg.mxu0
    %v2992 = vsel %vm143, %v2813, 0
    %v2995 = vsel %vm2078, %v2814, 0
    %2997 = vmatprep.subr.bf16.mxu0 0
    %2998 = vmatpush1.bf16.msra.mxu0 0
    %2999 = vmatprep.subr.bf16.mxu0 0
    %3000 = vmatpush1.bf16.msra.mxu0 0
    %3001 = vmatprep.subr.bf16.mxu0 0
    %3002 = vmatpush1.bf16.msra.mxu0 0
    %3003 = vmatprep.subr.bf16.mxu0 0
    %3004 = vmatpush1.bf16.msra.mxu0 0
    %3005 = vmatprep.subr.bf16.mxu0 0
    %3006 = vmatpush1.bf16.msra.mxu0 0
    %3007 = vmatprep.subr.bf16.mxu0 0
    %3008 = vmatpush1.bf16.msra.mxu0 0
    %3009 = vmatprep.subr.bf16.mxu0 0
    %3010 = vmatpush1.bf16.msra.mxu0 0
    %3011 = vmatprep.subr.bf16.mxu0 0
    %3012 = vmatpush1.bf16.msra.mxu0 %v2995
    %3013 = vmatprep.subr.bf16.mxu0 0
    %3014 = vmatpush2.bf16.msra.mxu0 0
    %3015 = vmatprep.subr.bf16.mxu0 0
    %3016 = vmatpush2.bf16.msra.mxu0 0
    %3017 = vmatprep.subr.bf16.mxu0 0
    %3018 = vmatpush2.bf16.msra.mxu0 0
    %3019 = vmatprep.subr.bf16.mxu0 0
    %3020 = vmatpush2.bf16.msra.mxu0 0
    %3021 = vmatprep.subr.bf16.mxu0 0
    %3022 = vmatpush2.bf16.msra.mxu0 0
    %3023 = vmatprep.subr.bf16.mxu0 0
    %3024 = vmatpush2.bf16.msra.mxu0 0
    %3025 = vmatprep.subr.bf16.mxu0 0
    %3026 = vmatpush2.bf16.msra.mxu0 0
    %3027 = vmatprep.subr.bf16.mxu0 0
    %3028 = vmatpush2.bf16.msra.mxu0 0
    %3029 = vmatprep.mubr.bf16.mxu0 0
    %3030 = vmatmul.mubr.bf16.gmra.mxu0 %v2992
    %v3031 = vpop.f32.mrf.mxu0
    %v3032 = vadd.f32 %v2985, %v3031
    %v3033 = vpop.f32.mrf.mxu0
    %v3034 = vpop.f32.mrf.mxu0
    %v3035 = vadd.f32 %v2988, %v3034
    %v3036 = vpop.f32.mrf.mxu0
    %3037 = vdwg.mxu0
    %3038 = vrot.lane.b32.xlu0 %v2681, 112
    %v3039 = vpop.permute.xlu0 %3038
    %3040 = vrot.lane.b32.xlu0 %v2681, 80
    %v3041 = vpop.permute.xlu0 %3040
    %v3043 = vsel %vm143, %v3039, 0
    %v3046 = vsel %vm143, %v3041, 0
    %3048 = vmatprep.subr.bf16.mxu0 0
    %3049 = vmatpush1.bf16.xpose.msra.mxu0 0
    %3050 = vmatprep.subr.bf16.mxu0 0
    %3051 = vmatpush1.bf16.xpose.msra.mxu0 0
    %3052 = vmatprep.subr.bf16.mxu0 0
    %3053 = vmatpush1.bf16.xpose.msra.mxu0 0
    %3054 = vmatprep.subr.bf16.mxu0 0
    %3055 = vmatpush1.bf16.xpose.msra.mxu0 0
    %3056 = vmatprep.subr.bf16.mxu0 0
    %3057 = vmatpush1.bf16.xpose.msra.mxu0 0
    %3058 = vmatprep.subr.bf16.mxu0 0
    %3059 = vmatpush1.bf16.xpose.msra.mxu0 0
    %3060 = vmatprep.subr.bf16.mxu0 0
    %3061 = vmatpush1.bf16.xpose.msra.mxu0 0
    %3062 = vmatprep.subr.bf16.mxu0 0
    %3063 = vmatpush1.bf16.xpose.msra.mxu0 %v3046
    %3064 = vmatprep.subr.bf16.mxu0 0
    %3065 = vmatpush2.bf16.xpose.msra.mxu0 0
    %3066 = vmatprep.subr.bf16.mxu0 0
    %3067 = vmatpush2.bf16.xpose.msra.mxu0 0
    %3068 = vmatprep.subr.bf16.mxu0 0
    %3069 = vmatpush2.bf16.xpose.msra.mxu0 0
    %3070 = vmatprep.subr.bf16.mxu0 0
    %3071 = vmatpush2.bf16.xpose.msra.mxu0 0
    %3072 = vmatprep.subr.bf16.mxu0 0
    %3073 = vmatpush2.bf16.xpose.msra.mxu0 0
    %3074 = vmatprep.subr.bf16.mxu0 0
    %3075 = vmatpush2.bf16.xpose.msra.mxu0 0
    %3076 = vmatprep.subr.bf16.mxu0 0
    %3077 = vmatpush2.bf16.xpose.msra.mxu0 0
    %3078 = vmatprep.subr.bf16.mxu0 0
    %3079 = vmatpush2.bf16.xpose.msra.mxu0 0
    %3080 = vmatprep.mubr.bf16.mxu0 0
    %3081 = vmatmul.mubr.bf16.gmra.mxu0 %v3043
    %v3082 = vpop.f32.mrf.mxu0
    %v3083 = vadd.f32 0.0, %v3082
    %v3084 = vpop.f32.mrf.mxu0
    %v3085 = vpop.f32.mrf.mxu0
    %v3086 = vadd.f32 0.0, %v3085
    %v3087 = vpop.f32.mrf.mxu0
    %3088 = vdwg.mxu0
    %v3089 = vmul.f32 %v3083, 0.35355338
    %v3090 = vmul.f32 %v3086, 0.35355338
    %v3091 = vsel %vm2589, %v3089, -1e+30
    %v3092 = vsel %vm2590, %v3090, -1e+30
    %v3093 = vsel %vm2736, %v3091, -inf
    %3094 = vmax.xlane.f32.xlu0 %v3093
    %v3095 = vpop.xlane.xlu0 %3094
    %v3096 = vsel %vm2740, %v3092, -inf
    %3097 = vmax.xlane.f32.xlu0 %v3096
    %v3098 = vpop.xlane.xlu0 %3097
    %v3099 = vsub.f32 %v3091, %v3095
    %v3100 = vsub.f32 %v3092, %v3098
    %v3101 = vmul.f32 %v3099, 1.442695
    %v3102 = vpow.pop %v3101
    %v3103 = vmul.f32 %v3100, 1.442695
    %v3104 = vpow.pop %v3103
    %v3105 = vsel %vm2736, %v3102, 0.0
    %3106 = vadd.xlane.f32.xlu0 %v3105
    %v3107 = vpop.xlane.xlu0 %3106
    %v3108 = vsel %vm2740, %v3104, 0.0
    %3109 = vadd.xlane.f32.xlu0 %v3108
    %v3110 = vpop.xlane.xlu0 %3109
    %v3111 = vpack.c.bf16 %v3104, %v3102
    %3112 = vrot.lane.b32.xlu0 %v2681, 48
    %v3113 = vpop.permute.xlu0 %3112
    %v3115 = vsel %vm2736, %v3111, 0
    %v3118 = vand.u32 %v3113, %v2764
    %3120 = vmatprep.subr.bf16.mxu0 0
    %3121 = vmatpush1.bf16.msra.mxu0 0
    %3122 = vmatprep.subr.bf16.mxu0 0
    %3123 = vmatpush1.bf16.msra.mxu0 0
    %3124 = vmatprep.subr.bf16.mxu0 0
    %3125 = vmatpush1.bf16.msra.mxu0 0
    %3126 = vmatprep.subr.bf16.mxu0 0
    %3127 = vmatpush1.bf16.msra.mxu0 0
    %3128 = vmatprep.subr.bf16.mxu0 0
    %3129 = vmatpush1.bf16.msra.mxu0 0
    %3130 = vmatprep.subr.bf16.mxu0 0
    %3131 = vmatpush1.bf16.msra.mxu0 0
    %3132 = vmatprep.subr.bf16.mxu0 0
    %3133 = vmatpush1.bf16.msra.mxu0 0
    %3134 = vmatprep.subr.bf16.mxu0 0
    %3135 = vmatpush1.bf16.msra.mxu0 %v3118
    %3136 = vmatprep.subr.bf16.mxu0 0
    %3137 = vmatpush2.bf16.msra.mxu0 0
    %3138 = vmatprep.subr.bf16.mxu0 0
    %3139 = vmatpush2.bf16.msra.mxu0 0
    %3140 = vmatprep.subr.bf16.mxu0 0
    %3141 = vmatpush2.bf16.msra.mxu0 0
    %3142 = vmatprep.subr.bf16.mxu0 0
    %3143 = vmatpush2.bf16.msra.mxu0 0
    %3144 = vmatprep.subr.bf16.mxu0 0
    %3145 = vmatpush2.bf16.msra.mxu0 0
    %3146 = vmatprep.subr.bf16.mxu0 0
    %3147 = vmatpush2.bf16.msra.mxu0 0
    %3148 = vmatprep.subr.bf16.mxu0 0
    %3149 = vmatpush2.bf16.msra.mxu0 0
    %3150 = vmatprep.subr.bf16.mxu0 0
    %3151 = vmatpush2.bf16.msra.mxu0 0
    %3152 = vmatprep.mubr.bf16.mxu0 0
    %3153 = vmatmul.mubr.bf16.gmra.mxu0 %v3115
    %v3154 = vpop.f32.mrf.mxu0
    %v3155 = vadd.f32 0.0, %v3154
    %v3156 = vpop.f32.mrf.mxu0
    %v3157 = vpop.f32.mrf.mxu0
    %v3158 = vadd.f32 0.0, %v3157
    %v3159 = vpop.f32.mrf.mxu0
    %3160 = vdwg.mxu0
    %v3161 = vrcp.pop %v3107
    %v3162 = vrcp.pop %v3110
    %v3163 = vmul.f32 %v3155, %v3161
    %v3164 = vmul.f32 %v3158, %v3162
    %v3165 = vpack.c.bf16 %v3164, %v3163
    %v3166 = vpack.c.bf16 %v2677, %v2677
    %v3168 = vsel %vm143, %v3165, 0
    %v3171 = vsel %vm2078, %v3166, 0
    %3173 = vmatprep.subr.bf16.mxu0 0
    %3174 = vmatpush1.bf16.msra.mxu0 0
    %3175 = vmatprep.subr.bf16.mxu0 0
    %3176 = vmatpush1.bf16.msra.mxu0 0
    %3177 = vmatprep.subr.bf16.mxu0 0
    %3178 = vmatpush1.bf16.msra.mxu0 0
    %3179 = vmatprep.subr.bf16.mxu0 0
    %3180 = vmatpush1.bf16.msra.mxu0 0
    %3181 = vmatprep.subr.bf16.mxu0 0
    %3182 = vmatpush1.bf16.msra.mxu0 0
    %3183 = vmatprep.subr.bf16.mxu0 0
    %3184 = vmatpush1.bf16.msra.mxu0 0
    %3185 = vmatprep.subr.bf16.mxu0 0
    %3186 = vmatpush1.bf16.msra.mxu0 0
    %3187 = vmatprep.subr.bf16.mxu0 0
    %3188 = vmatpush1.bf16.msra.mxu0 %v3171
    %3189 = vmatprep.subr.bf16.mxu0 0
    %3190 = vmatpush2.bf16.msra.mxu0 0
    %3191 = vmatprep.subr.bf16.mxu0 0
    %3192 = vmatpush2.bf16.msra.mxu0 0
    %3193 = vmatprep.subr.bf16.mxu0 0
    %3194 = vmatpush2.bf16.msra.mxu0 0
    %3195 = vmatprep.subr.bf16.mxu0 0
    %3196 = vmatpush2.bf16.msra.mxu0 0
    %3197 = vmatprep.subr.bf16.mxu0 0
    %3198 = vmatpush2.bf16.msra.mxu0 0
    %3199 = vmatprep.subr.bf16.mxu0 0
    %3200 = vmatpush2.bf16.msra.mxu0 0
    %3201 = vmatprep.subr.bf16.mxu0 0
    %3202 = vmatpush2.bf16.msra.mxu0 0
    %3203 = vmatprep.subr.bf16.mxu0 0
    %3204 = vmatpush2.bf16.msra.mxu0 0
    %3205 = vmatprep.mubr.bf16.mxu0 0
    %3206 = vmatmul.mubr.bf16.gmra.mxu0 %v3168
    %v3207 = vpop.f32.mrf.mxu0
    %v3208 = vadd.f32 0.0, %v3207
    %v3209 = vpop.f32.mrf.mxu0
    %v3210 = vpop.f32.mrf.mxu0
    %v3211 = vadd.f32 0.0, %v3210
    %v3212 = vpop.f32.mrf.mxu0
    %3213 = vdwg.mxu0
    %v3214 = vadd.f32 %v3032, %v3208
    %v3215 = vadd.f32 %v3035, %v3211
    %3216 = vrot.lane.b32.xlu0 %v2681, 104
    %v3217 = vpop.permute.xlu0 %3216
    %3218 = vrot.lane.b32.xlu0 %v2681, 72
    %v3219 = vpop.permute.xlu0 %3218
    %v3221 = vsel %vm143, %v3217, 0
    %v3224 = vsel %vm143, %v3219, 0
    %3226 = vmatprep.subr.bf16.mxu0 0
    %3227 = vmatpush1.bf16.xpose.msra.mxu0 0
    %3228 = vmatprep.subr.bf16.mxu0 0
    %3229 = vmatpush1.bf16.xpose.msra.mxu0 0
    %3230 = vmatprep.subr.bf16.mxu0 0
    %3231 = vmatpush1.bf16.xpose.msra.mxu0 0
    %3232 = vmatprep.subr.bf16.mxu0 0
    %3233 = vmatpush1.bf16.xpose.msra.mxu0 0
    %3234 = vmatprep.subr.bf16.mxu0 0
    %3235 = vmatpush1.bf16.xpose.msra.mxu0 0
    %3236 = vmatprep.subr.bf16.mxu0 0
    %3237 = vmatpush1.bf16.xpose.msra.mxu0 0
    %3238 = vmatprep.subr.bf16.mxu0 0
    %3239 = vmatpush1.bf16.xpose.msra.mxu0 0
    %3240 = vmatprep.subr.bf16.mxu0 0
    %3241 = vmatpush1.bf16.xpose.msra.mxu0 %v3224
    %3242 = vmatprep.subr.bf16.mxu0 0
    %3243 = vmatpush2.bf16.xpose.msra.mxu0 0
    %3244 = vmatprep.subr.bf16.mxu0 0
    %3245 = vmatpush2.bf16.xpose.msra.mxu0 0
    %3246 = vmatprep.subr.bf16.mxu0 0
    %3247 = vmatpush2.bf16.xpose.msra.mxu0 0
    %3248 = vmatprep.subr.bf16.mxu0 0
    %3249 = vmatpush2.bf16.xpose.msra.mxu0 0
    %3250 = vmatprep.subr.bf16.mxu0 0
    %3251 = vmatpush2.bf16.xpose.msra.mxu0 0
    %3252 = vmatprep.subr.bf16.mxu0 0
    %3253 = vmatpush2.bf16.xpose.msra.mxu0 0
    %3254 = vmatprep.subr.bf16.mxu0 0
    %3255 = vmatpush2.bf16.xpose.msra.mxu0 0
    %3256 = vmatprep.subr.bf16.mxu0 0
    %3257 = vmatpush2.bf16.xpose.msra.mxu0 0
    %3258 = vmatprep.mubr.bf16.mxu0 0
    %3259 = vmatmul.mubr.bf16.gmra.mxu0 %v3221
    %v3260 = vpop.f32.mrf.mxu0
    %v3261 = vadd.f32 0.0, %v3260
    %v3262 = vpop.f32.mrf.mxu0
    %v3263 = vpop.f32.mrf.mxu0
    %v3264 = vadd.f32 0.0, %v3263
    %v3265 = vpop.f32.mrf.mxu0
    %3266 = vdwg.mxu0
    %v3267 = vmul.f32 %v3261, 0.35355338
    %v3268 = vmul.f32 %v3264, 0.35355338
    %v3269 = vsel %vm2589, %v3267, -1e+30
    %v3270 = vsel %vm2590, %v3268, -1e+30
    %v3271 = vsel %vm2736, %v3269, -inf
    %3272 = vmax.xlane.f32.xlu0 %v3271
    %v3273 = vpop.xlane.xlu0 %3272
    %v3274 = vsel %vm2740, %v3270, -inf
    %3275 = vmax.xlane.f32.xlu0 %v3274
    %v3276 = vpop.xlane.xlu0 %3275
    %v3277 = vsub.f32 %v3269, %v3273
    %v3278 = vsub.f32 %v3270, %v3276
    %v3279 = vmul.f32 %v3277, 1.442695
    %v3280 = vpow.pop %v3279
    %v3281 = vmul.f32 %v3278, 1.442695
    %v3282 = vpow.pop %v3281
    %v3283 = vsel %vm2736, %v3280, 0.0
    %3284 = vadd.xlane.f32.xlu0 %v3283
    %v3285 = vpop.xlane.xlu0 %3284
    %v3286 = vsel %vm2740, %v3282, 0.0
    %3287 = vadd.xlane.f32.xlu0 %v3286
    %v3288 = vpop.xlane.xlu0 %3287
    %v3289 = vpack.c.bf16 %v3282, %v3280
    %3290 = vrot.lane.b32.xlu0 %v2681, 40
    %v3291 = vpop.permute.xlu0 %3290
    %v3293 = vsel %vm2736, %v3289, 0
    %v3296 = vand.u32 %v3291, %v2764
    %3298 = vmatprep.subr.bf16.mxu0 0
    %3299 = vmatpush1.bf16.msra.mxu0 0
    %3300 = vmatprep.subr.bf16.mxu0 0
    %3301 = vmatpush1.bf16.msra.mxu0 0
    %3302 = vmatprep.subr.bf16.mxu0 0
    %3303 = vmatpush1.bf16.msra.mxu0 0
    %3304 = vmatprep.subr.bf16.mxu0 0
    %3305 = vmatpush1.bf16.msra.mxu0 0
    %3306 = vmatprep.subr.bf16.mxu0 0
    %3307 = vmatpush1.bf16.msra.mxu0 0
    %3308 = vmatprep.subr.bf16.mxu0 0
    %3309 = vmatpush1.bf16.msra.mxu0 0
    %3310 = vmatprep.subr.bf16.mxu0 0
    %3311 = vmatpush1.bf16.msra.mxu0 0
    %3312 = vmatprep.subr.bf16.mxu0 0
    %3313 = vmatpush1.bf16.msra.mxu0 %v3296
    %3314 = vmatprep.subr.bf16.mxu0 0
    %3315 = vmatpush2.bf16.msra.mxu0 0
    %3316 = vmatprep.subr.bf16.mxu0 0
    %3317 = vmatpush2.bf16.msra.mxu0 0
    %3318 = vmatprep.subr.bf16.mxu0 0
    %3319 = vmatpush2.bf16.msra.mxu0 0
    %3320 = vmatprep.subr.bf16.mxu0 0
    %3321 = vmatpush2.bf16.msra.mxu0 0
    %3322 = vmatprep.subr.bf16.mxu0 0
    %3323 = vmatpush2.bf16.msra.mxu0 0
    %3324 = vmatprep.subr.bf16.mxu0 0
    %3325 = vmatpush2.bf16.msra.mxu0 0
    %3326 = vmatprep.subr.bf16.mxu0 0
    %3327 = vmatpush2.bf16.msra.mxu0 0
    %3328 = vmatprep.subr.bf16.mxu0 0
    %3329 = vmatpush2.bf16.msra.mxu0 0
    %3330 = vmatprep.mubr.bf16.mxu0 0
    %3331 = vmatmul.mubr.bf16.gmra.mxu0 %v3293
    %v3332 = vpop.f32.mrf.mxu0
    %v3333 = vadd.f32 0.0, %v3332
    %v3334 = vpop.f32.mrf.mxu0
    %v3335 = vpop.f32.mrf.mxu0
    %v3336 = vadd.f32 0.0, %v3335
    %v3337 = vpop.f32.mrf.mxu0
    %3338 = vdwg.mxu0
    %v3339 = vrcp.pop %v3285
    %v3340 = vrcp.pop %v3288
    %v3341 = vmul.f32 %v3333, %v3339
    %v3342 = vmul.f32 %v3336, %v3340
    %v3343 = vpack.c.bf16 %v3342, %v3341
    %v3344 = vpack.c.bf16 %v2678, %v2678
    %v3346 = vsel %vm143, %v3343, 0
    %v3349 = vsel %vm2078, %v3344, 0
    %3351 = vmatprep.subr.bf16.mxu0 0
    %3352 = vmatpush1.bf16.msra.mxu0 0
    %3353 = vmatprep.subr.bf16.mxu0 0
    %3354 = vmatpush1.bf16.msra.mxu0 0
    %3355 = vmatprep.subr.bf16.mxu0 0
    %3356 = vmatpush1.bf16.msra.mxu0 0
    %3357 = vmatprep.subr.bf16.mxu0 0
    %3358 = vmatpush1.bf16.msra.mxu0 0
    %3359 = vmatprep.subr.bf16.mxu0 0
    %3360 = vmatpush1.bf16.msra.mxu0 0
    %3361 = vmatprep.subr.bf16.mxu0 0
    %3362 = vmatpush1.bf16.msra.mxu0 0
    %3363 = vmatprep.subr.bf16.mxu0 0
    %3364 = vmatpush1.bf16.msra.mxu0 0
    %3365 = vmatprep.subr.bf16.mxu0 0
    %3366 = vmatpush1.bf16.msra.mxu0 %v3349
    %3367 = vmatprep.subr.bf16.mxu0 0
    %3368 = vmatpush2.bf16.msra.mxu0 0
    %3369 = vmatprep.subr.bf16.mxu0 0
    %3370 = vmatpush2.bf16.msra.mxu0 0
    %3371 = vmatprep.subr.bf16.mxu0 0
    %3372 = vmatpush2.bf16.msra.mxu0 0
    %3373 = vmatprep.subr.bf16.mxu0 0
    %3374 = vmatpush2.bf16.msra.mxu0 0
    %3375 = vmatprep.subr.bf16.mxu0 0
    %3376 = vmatpush2.bf16.msra.mxu0 0
    %3377 = vmatprep.subr.bf16.mxu0 0
    %3378 = vmatpush2.bf16.msra.mxu0 0
    %3379 = vmatprep.subr.bf16.mxu0 0
    %3380 = vmatpush2.bf16.msra.mxu0 0
    %3381 = vmatprep.subr.bf16.mxu0 0
    %3382 = vmatpush2.bf16.msra.mxu0 0
    %3383 = vmatprep.mubr.bf16.mxu0 0
    %3384 = vmatmul.mubr.bf16.gmra.mxu0 %v3346
    %v3385 = vpop.f32.mrf.mxu0
    %v3386 = vadd.f32 0.0, %v3385
    %v3387 = vpop.f32.mrf.mxu0
    %v3388 = vpop.f32.mrf.mxu0
    %v3389 = vadd.f32 0.0, %v3388
    %v3390 = vpop.f32.mrf.mxu0
    %3391 = vdwg.mxu0
    %v3392 = vadd.f32 %v3214, %v3386
    %v3393 = vadd.f32 %v3215, %v3389
    %3394 = vst.msk [vmem:[#allocation4] sm:$0xff] %vm605, %v3392
    %3395 = vst.msk [vmem:[#allocation4 + $0x8] sm:$0x1] %vm2575, %v3393
    %v3396 = vld [vmem:[#allocation3 + $0x9] sm:$0xff]
    %v3397 = vld [vmem:[#allocation3 + $0x11] sm:$0x1]
    %v3398 = vpack.c.bf16 %v3397, %v3396
    %3400 = vrot.lane.b32.xlu0 %v3398, 96
    %v3401 = vpop.permute.xlu0 %3400
    %v3403 = vsel %vm143, %v3398, 0
    %v3406 = vsel %vm143, %v3401, 0
    %3408 = vmatprep.subr.bf16.mxu0 0
    %3409 = vmatpush1.bf16.xpose.msra.mxu0 0
    %3410 = vmatprep.subr.bf16.mxu0 0
    %3411 = vmatpush1.bf16.xpose.msra.mxu0 0
    %3412 = vmatprep.subr.bf16.mxu0 0
    %3413 = vmatpush1.bf16.xpose.msra.mxu0 0
    %3414 = vmatprep.subr.bf16.mxu0 0
    %3415 = vmatpush1.bf16.xpose.msra.mxu0 0
    %3416 = vmatprep.subr.bf16.mxu0 0
    %3417 = vmatpush1.bf16.xpose.msra.mxu0 0
    %3418 = vmatprep.subr.bf16.mxu0 0
    %3419 = vmatpush1.bf16.xpose.msra.mxu0 0
    %3420 = vmatprep.subr.bf16.mxu0 0
    %3421 = vmatpush1.bf16.xpose.msra.mxu0 0
    %3422 = vmatprep.subr.bf16.mxu0 0
    %3423 = vmatpush1.bf16.xpose.msra.mxu0 %v3406
    %3424 = vmatprep.subr.bf16.mxu0 0
    %3425 = vmatpush2.bf16.xpose.msra.mxu0 0
    %3426 = vmatprep.subr.bf16.mxu0 0
    %3427 = vmatpush2.bf16.xpose.msra.mxu0 0
    %3428 = vmatprep.subr.bf16.mxu0 0
    %3429 = vmatpush2.bf16.xpose.msra.mxu0 0
    %3430 = vmatprep.subr.bf16.mxu0 0
    %3431 = vmatpush2.bf16.xpose.msra.mxu0 0
    %3432 = vmatprep.subr.bf16.mxu0 0
    %3433 = vmatpush2.bf16.xpose.msra.mxu0 0
    %3434 = vmatprep.subr.bf16.mxu0 0
    %3435 = vmatpush2.bf16.xpose.msra.mxu0 0
    %3436 = vmatprep.subr.bf16.mxu0 0
    %3437 = vmatpush2.bf16.xpose.msra.mxu0 0
    %3438 = vmatprep.subr.bf16.mxu0 0
    %3439 = vmatpush2.bf16.xpose.msra.mxu0 0
    %3440 = vmatprep.mubr.bf16.mxu0 0
    %3441 = vmatmul.mubr.bf16.gmra.mxu0 %v3403
    %v3442 = vpop.f32.mrf.mxu0
    %v3443 = vadd.f32 0.0, %v3442
    %v3444 = vpop.f32.mrf.mxu0
    %v3445 = vpop.f32.mrf.mxu0
    %v3446 = vadd.f32 0.0, %v3445
    %v3447 = vpop.f32.mrf.mxu0
    %3448 = vdwg.mxu0
    %v3449 = vmul.f32 %v3443, 0.35355338
    %v3450 = vmul.f32 %v3446, 0.35355338
    %v3451 = vsel %vm2589, %v3449, -1e+30
    %v3452 = vsel %vm2590, %v3450, -1e+30
    %v3453 = vsel %vm2736, %v3451, -inf
    %3454 = vmax.xlane.f32.xlu0 %v3453
    %v3455 = vpop.xlane.xlu0 %3454
    %v3456 = vsel %vm2740, %v3452, -inf
    %3457 = vmax.xlane.f32.xlu0 %v3456
    %v3458 = vpop.xlane.xlu0 %3457
    %v3459 = vsub.f32 %v3451, %v3455
    %v3460 = vsub.f32 %v3452, %v3458
    %v3461 = vmul.f32 %v3459, 1.442695
    %v3462 = vpow.pop %v3461
    %v3463 = vmul.f32 %v3460, 1.442695
    %v3464 = vpow.pop %v3463
    %v3465 = vsel %vm2736, %v3462, 0.0
    %3466 = vadd.xlane.f32.xlu0 %v3465
    %v3467 = vpop.xlane.xlu0 %3466
    %v3468 = vsel %vm2740, %v3464, 0.0
    %3469 = vadd.xlane.f32.xlu0 %v3468
    %v3470 = vpop.xlane.xlu0 %3469
    %v3471 = vpack.c.bf16 %v3464, %v3462
    %3472 = vrot.lane.b32.xlu0 %v3398, 64
    %v3473 = vpop.permute.xlu0 %3472
    %v3475 = vsel %vm2736, %v3471, 0
    %v3478 = vand.u32 %v3473, %v2764
    %3480 = vmatprep.subr.bf16.mxu0 0
    %3481 = vmatpush1.bf16.msra.mxu0 0
    %3482 = vmatprep.subr.bf16.mxu0 0
    %3483 = vmatpush1.bf16.msra.mxu0 0
    %3484 = vmatprep.subr.bf16.mxu0 0
    %3485 = vmatpush1.bf16.msra.mxu0 0
    %3486 = vmatprep.subr.bf16.mxu0 0
    %3487 = vmatpush1.bf16.msra.mxu0 0
    %3488 = vmatprep.subr.bf16.mxu0 0
    %3489 = vmatpush1.bf16.msra.mxu0 0
    %3490 = vmatprep.subr.bf16.mxu0 0
    %3491 = vmatpush1.bf16.msra.mxu0 0
    %3492 = vmatprep.subr.bf16.mxu0 0
    %3493 = vmatpush1.bf16.msra.mxu0 0
    %3494 = vmatprep.subr.bf16.mxu0 0
    %3495 = vmatpush1.bf16.msra.mxu0 %v3478
    %3496 = vmatprep.subr.bf16.mxu0 0
    %3497 = vmatpush2.bf16.msra.mxu0 0
    %3498 = vmatprep.subr.bf16.mxu0 0
    %3499 = vmatpush2.bf16.msra.mxu0 0
    %3500 = vmatprep.subr.bf16.mxu0 0
    %3501 = vmatpush2.bf16.msra.mxu0 0
    %3502 = vmatprep.subr.bf16.mxu0 0
    %3503 = vmatpush2.bf16.msra.mxu0 0
    %3504 = vmatprep.subr.bf16.mxu0 0
    %3505 = vmatpush2.bf16.msra.mxu0 0
    %3506 = vmatprep.subr.bf16.mxu0 0
    %3507 = vmatpush2.bf16.msra.mxu0 0
    %3508 = vmatprep.subr.bf16.mxu0 0
    %3509 = vmatpush2.bf16.msra.mxu0 0
    %3510 = vmatprep.subr.bf16.mxu0 0
    %3511 = vmatpush2.bf16.msra.mxu0 0
    %3512 = vmatprep.mubr.bf16.mxu0 0
    %3513 = vmatmul.mubr.bf16.gmra.mxu0 %v3475
    %v3514 = vpop.f32.mrf.mxu0
    %v3515 = vadd.f32 0.0, %v3514
    %v3516 = vpop.f32.mrf.mxu0
    %v3517 = vpop.f32.mrf.mxu0
    %v3518 = vadd.f32 0.0, %v3517
    %v3519 = vpop.f32.mrf.mxu0
    %3520 = vdwg.mxu0
    %v3521 = vrcp.pop %v3467
    %v3522 = vrcp.pop %v3470
    %v3523 = vmul.f32 %v3515, %v3521
    %v3524 = vmul.f32 %v3518, %v3522
    %v3525 = vpack.c.bf16 %v3524, %v3523
    %3526 = vrot.lane.b32.xlu0 %v3398, 120
    %v3527 = vpop.permute.xlu0 %3526
    %3528 = vrot.lane.b32.xlu0 %v3398, 88
    %v3529 = vpop.permute.xlu0 %3528
    %v3531 = vsel %vm143, %v3527, 0
    %v3534 = vsel %vm143, %v3529, 0
    %3536 = vmatprep.subr.bf16.mxu0 0
    %3537 = vmatpush1.bf16.xpose.msra.mxu0 0
    %3538 = vmatprep.subr.bf16.mxu0 0
    %3539 = vmatpush1.bf16.xpose.msra.mxu0 0
    %3540 = vmatprep.subr.bf16.mxu0 0
    %3541 = vmatpush1.bf16.xpose.msra.mxu0 0
    %3542 = vmatprep.subr.bf16.mxu0 0
    %3543 = vmatpush1.bf16.xpose.msra.mxu0 0
    %3544 = vmatprep.subr.bf16.mxu0 0
    %3545 = vmatpush1.bf16.xpose.msra.mxu0 0
    %3546 = vmatprep.subr.bf16.mxu0 0
    %3547 = vmatpush1.bf16.xpose.msra.mxu0 0
    %3548 = vmatprep.subr.bf16.mxu0 0
    %3549 = vmatpush1.bf16.xpose.msra.mxu0 0
    %3550 = vmatprep.subr.bf16.mxu0 0
    %3551 = vmatpush1.bf16.xpose.msra.mxu0 %v3534
    %3552 = vmatprep.subr.bf16.mxu0 0
    %3553 = vmatpush2.bf16.xpose.msra.mxu0 0
    %3554 = vmatprep.subr.bf16.mxu0 0
    %3555 = vmatpush2.bf16.xpose.msra.mxu0 0
    %3556 = vmatprep.subr.bf16.mxu0 0
    %3557 = vmatpush2.bf16.xpose.msra.mxu0 0
    %3558 = vmatprep.subr.bf16.mxu0 0
    %3559 = vmatpush2.bf16.xpose.msra.mxu0 0
    %3560 = vmatprep.subr.bf16.mxu0 0
    %3561 = vmatpush2.bf16.xpose.msra.mxu0 0
    %3562 = vmatprep.subr.bf16.mxu0 0
    %3563 = vmatpush2.bf16.xpose.msra.mxu0 0
    %3564 = vmatprep.subr.bf16.mxu0 0
    %3565 = vmatpush2.bf16.xpose.msra.mxu0 0
    %3566 = vmatprep.subr.bf16.mxu0 0
    %3567 = vmatpush2.bf16.xpose.msra.mxu0 0
    %3568 = vmatprep.mubr.bf16.mxu0 0
    %3569 = vmatmul.mubr.bf16.gmra.mxu0 %v3531
    %v3570 = vpop.f32.mrf.mxu0
    %v3571 = vadd.f32 0.0, %v3570
    %v3572 = vpop.f32.mrf.mxu0
    %v3573 = vpop.f32.mrf.mxu0
    %v3574 = vadd.f32 0.0, %v3573
    %v3575 = vpop.f32.mrf.mxu0
    %3576 = vdwg.mxu0
    %v3577 = vmul.f32 %v3571, 0.35355338
    %v3578 = vmul.f32 %v3574, 0.35355338
    %v3579 = vsel %vm2589, %v3577, -1e+30
    %v3580 = vsel %vm2590, %v3578, -1e+30
    %v3581 = vsel %vm2736, %v3579, -inf
    %3582 = vmax.xlane.f32.xlu0 %v3581
    %v3583 = vpop.xlane.xlu0 %3582
    %v3584 = vsel %vm2740, %v3580, -inf
    %3585 = vmax.xlane.f32.xlu0 %v3584
    %v3586 = vpop.xlane.xlu0 %3585
    %v3587 = vsub.f32 %v3579, %v3583
    %v3588 = vsub.f32 %v3580, %v3586
    %v3589 = vmul.f32 %v3587, 1.442695
    %v3590 = vpow.pop %v3589
    %v3591 = vmul.f32 %v3588, 1.442695
    %v3592 = vpow.pop %v3591
    %v3593 = vsel %vm2736, %v3590, 0.0
    %3594 = vadd.xlane.f32.xlu0 %v3593
    %v3595 = vpop.xlane.xlu0 %3594
    %v3596 = vsel %vm2740, %v3592, 0.0
    %3597 = vadd.xlane.f32.xlu0 %v3596
    %v3598 = vpop.xlane.xlu0 %3597
    %v3599 = vpack.c.bf16 %v3592, %v3590
    %3600 = vrot.lane.b32.xlu0 %v3398, 56
    %v3601 = vpop.permute.xlu0 %3600
    %v3603 = vsel %vm2736, %v3599, 0
    %v3606 = vand.u32 %v3601, %v2764
    %3608 = vmatprep.subr.bf16.mxu0 0
    %3609 = vmatpush1.bf16.msra.mxu0 0
    %3610 = vmatprep.subr.bf16.mxu0 0
    %3611 = vmatpush1.bf16.msra.mxu0 0
    %3612 = vmatprep.subr.bf16.mxu0 0
    %3613 = vmatpush1.bf16.msra.mxu0 0
    %3614 = vmatprep.subr.bf16.mxu0 0
    %3615 = vmatpush1.bf16.msra.mxu0 0
    %3616 = vmatprep.subr.bf16.mxu0 0
    %3617 = vmatpush1.bf16.msra.mxu0 0
    %3618 = vmatprep.subr.bf16.mxu0 0
    %3619 = vmatpush1.bf16.msra.mxu0 0
    %3620 = vmatprep.subr.bf16.mxu0 0
    %3621 = vmatpush1.bf16.msra.mxu0 0
    %3622 = vmatprep.subr.bf16.mxu0 0
    %3623 = vmatpush1.bf16.msra.mxu0 %v3606
    %3624 = vmatprep.subr.bf16.mxu0 0
    %3625 = vmatpush2.bf16.msra.mxu0 0
    %3626 = vmatprep.subr.bf16.mxu0 0
    %3627 = vmatpush2.bf16.msra.mxu0 0
    %3628 = vmatprep.subr.bf16.mxu0 0
    %3629 = vmatpush2.bf16.msra.mxu0 0
    %3630 = vmatprep.subr.bf16.mxu0 0
    %3631 = vmatpush2.bf16.msra.mxu0 0
    %3632 = vmatprep.subr.bf16.mxu0 0
    %3633 = vmatpush2.bf16.msra.mxu0 0
    %3634 = vmatprep.subr.bf16.mxu0 0
    %3635 = vmatpush2.bf16.msra.mxu0 0
    %3636 = vmatprep.subr.bf16.mxu0 0
    %3637 = vmatpush2.bf16.msra.mxu0 0
    %3638 = vmatprep.subr.bf16.mxu0 0
    %3639 = vmatpush2.bf16.msra.mxu0 0
    %3640 = vmatprep.mubr.bf16.mxu0 0
    %3641 = vmatmul.mubr.bf16.gmra.mxu0 %v3603
    %v3642 = vpop.f32.mrf.mxu0
    %v3643 = vadd.f32 0.0, %v3642
    %v3644 = vpop.f32.mrf.mxu0
    %v3645 = vpop.f32.mrf.mxu0
    %v3646 = vadd.f32 0.0, %v3645
    %v3647 = vpop.f32.mrf.mxu0
    %3648 = vdwg.mxu0
    %v3649 = vrcp.pop %v3595
    %v3650 = vrcp.pop %v3598
    %v3651 = vmul.f32 %v3643, %v3649
    %v3652 = vmul.f32 %v3646, %v3650
    %v3653 = vpack.c.bf16 %v3652, %v3651
    %v3655 = vsel %vm143, %v3653, 0
    %3657 = vmatprep.subr.bf16.mxu0 0
    %3658 = vmatpush1.bf16.msra.mxu0 0
    %3659 = vmatprep.subr.bf16.mxu0 0
    %3660 = vmatpush1.bf16.msra.mxu0 0
    %3661 = vmatprep.subr.bf16.mxu0 0
    %3662 = vmatpush1.bf16.msra.mxu0 0
    %3663 = vmatprep.subr.bf16.mxu0 0
    %3664 = vmatpush1.bf16.msra.mxu0 0
    %3665 = vmatprep.subr.bf16.mxu0 0
    %3666 = vmatpush1.bf16.msra.mxu0 0
    %3667 = vmatprep.subr.bf16.mxu0 0
    %3668 = vmatpush1.bf16.msra.mxu0 0
    %3669 = vmatprep.subr.bf16.mxu0 0
    %3670 = vmatpush1.bf16.msra.mxu0 0
    %3671 = vmatprep.subr.bf16.mxu0 0
    %3672 = vmatpush1.bf16.msra.mxu0 %v2948
    %3673 = vmatprep.subr.bf16.mxu0 0
    %3674 = vmatpush2.bf16.msra.mxu0 0
    %3675 = vmatprep.subr.bf16.mxu0 0
    %3676 = vmatpush2.bf16.msra.mxu0 0
    %3677 = vmatprep.subr.bf16.mxu0 0
    %3678 = vmatpush2.bf16.msra.mxu0 0
    %3679 = vmatprep.subr.bf16.mxu0 0
    %3680 = vmatpush2.bf16.msra.mxu0 0
    %3681 = vmatprep.subr.bf16.mxu0 0
    %3682 = vmatpush2.bf16.msra.mxu0 0
    %3683 = vmatprep.subr.bf16.mxu0 0
    %3684 = vmatpush2.bf16.msra.mxu0 0
    %3685 = vmatprep.subr.bf16.mxu0 0
    %3686 = vmatpush2.bf16.msra.mxu0 0
    %3687 = vmatprep.subr.bf16.mxu0 0
    %3688 = vmatpush2.bf16.msra.mxu0 0
    %3689 = vmatprep.mubr.bf16.mxu0 0
    %3690 = vmatmul.mubr.bf16.gmra.mxu0 %v3655
    %v3691 = vpop.f32.mrf.mxu0
    %v3692 = vadd.f32 0.0, %v3691
    %v3693 = vpop.f32.mrf.mxu0
    %v3694 = vpop.f32.mrf.mxu0
    %v3695 = vadd.f32 0.0, %v3694
    %v3696 = vpop.f32.mrf.mxu0
    %3697 = vdwg.mxu0
    %v3699 = vsel %vm143, %v3525, 0
    %3701 = vmatprep.subr.bf16.mxu0 0
    %3702 = vmatpush1.bf16.msra.mxu0 0
    %3703 = vmatprep.subr.bf16.mxu0 0
    %3704 = vmatpush1.bf16.msra.mxu0 0
    %3705 = vmatprep.subr.bf16.mxu0 0
    %3706 = vmatpush1.bf16.msra.mxu0 0
    %3707 = vmatprep.subr.bf16.mxu0 0
    %3708 = vmatpush1.bf16.msra.mxu0 0
    %3709 = vmatprep.subr.bf16.mxu0 0
    %3710 = vmatpush1.bf16.msra.mxu0 0
    %3711 = vmatprep.subr.bf16.mxu0 0
    %3712 = vmatpush1.bf16.msra.mxu0 0
    %3713 = vmatprep.subr.bf16.mxu0 0
    %3714 = vmatpush1.bf16.msra.mxu0 0
    %3715 = vmatprep.subr.bf16.mxu0 0
    %3716 = vmatpush1.bf16.msra.mxu0 %v2995
    %3717 = vmatprep.subr.bf16.mxu0 0
    %3718 = vmatpush2.bf16.msra.mxu0 0
    %3719 = vmatprep.subr.bf16.mxu0 0
    %3720 = vmatpush2.bf16.msra.mxu0 0
    %3721 = vmatprep.subr.bf16.mxu0 0
    %3722 = vmatpush2.bf16.msra.mxu0 0
    %3723 = vmatprep.subr.bf16.mxu0 0
    %3724 = vmatpush2.bf16.msra.mxu0 0
    %3725 = vmatprep.subr.bf16.mxu0 0
    %3726 = vmatpush2.bf16.msra.mxu0 0
    %3727 = vmatprep.subr.bf16.mxu0 0
    %3728 = vmatpush2.bf16.msra.mxu0 0
    %3729 = vmatprep.subr.bf16.mxu0 0
    %3730 = vmatpush2.bf16.msra.mxu0 0
    %3731 = vmatprep.subr.bf16.mxu0 0
    %3732 = vmatpush2.bf16.msra.mxu0 0
    %3733 = vmatprep.mubr.bf16.mxu0 0
    %3734 = vmatmul.mubr.bf16.gmra.mxu0 %v3699
    %v3735 = vpop.f32.mrf.mxu0
    %v3736 = vadd.f32 %v3692, %v3735
    %v3737 = vpop.f32.mrf.mxu0
    %v3738 = vpop.f32.mrf.mxu0
    %v3739 = vadd.f32 %v3695, %v3738
    %v3740 = vpop.f32.mrf.mxu0
    %3741 = vdwg.mxu0
    %3742 = vrot.lane.b32.xlu0 %v3398, 112
    %v3743 = vpop.permute.xlu0 %3742
    %3744 = vrot.lane.b32.xlu0 %v3398, 80
    %v3745 = vpop.permute.xlu0 %3744
    %v3747 = vsel %vm143, %v3743, 0
    %v3750 = vsel %vm143, %v3745, 0
    %3752 = vmatprep.subr.bf16.mxu0 0
    %3753 = vmatpush1.bf16.xpose.msra.mxu0 0
    %3754 = vmatprep.subr.bf16.mxu0 0
    %3755 = vmatpush1.bf16.xpose.msra.mxu0 0
    %3756 = vmatprep.subr.bf16.mxu0 0
    %3757 = vmatpush1.bf16.xpose.msra.mxu0 0
    %3758 = vmatprep.subr.bf16.mxu0 0
    %3759 = vmatpush1.bf16.xpose.msra.mxu0 0
    %3760 = vmatprep.subr.bf16.mxu0 0
    %3761 = vmatpush1.bf16.xpose.msra.mxu0 0
    %3762 = vmatprep.subr.bf16.mxu0 0
    %3763 = vmatpush1.bf16.xpose.msra.mxu0 0
    %3764 = vmatprep.subr.bf16.mxu0 0
    %3765 = vmatpush1.bf16.xpose.msra.mxu0 0
    %3766 = vmatprep.subr.bf16.mxu0 0
    %3767 = vmatpush1.bf16.xpose.msra.mxu0 %v3750
    %3768 = vmatprep.subr.bf16.mxu0 0
    %3769 = vmatpush2.bf16.xpose.msra.mxu0 0
    %3770 = vmatprep.subr.bf16.mxu0 0
    %3771 = vmatpush2.bf16.xpose.msra.mxu0 0
    %3772 = vmatprep.subr.bf16.mxu0 0
    %3773 = vmatpush2.bf16.xpose.msra.mxu0 0
    %3774 = vmatprep.subr.bf16.mxu0 0
    %3775 = vmatpush2.bf16.xpose.msra.mxu0 0
    %3776 = vmatprep.subr.bf16.mxu0 0
    %3777 = vmatpush2.bf16.xpose.msra.mxu0 0
    %3778 = vmatprep.subr.bf16.mxu0 0
    %3779 = vmatpush2.bf16.xpose.msra.mxu0 0
    %3780 = vmatprep.subr.bf16.mxu0 0
    %3781 = vmatpush2.bf16.xpose.msra.mxu0 0
    %3782 = vmatprep.subr.bf16.mxu0 0
    %3783 = vmatpush2.bf16.xpose.msra.mxu0 0
    %3784 = vmatprep.mubr.bf16.mxu0 0
    %3785 = vmatmul.mubr.bf16.gmra.mxu0 %v3747
    %v3786 = vpop.f32.mrf.mxu0
    %v3787 = vadd.f32 0.0, %v3786
    %v3788 = vpop.f32.mrf.mxu0
    %v3789 = vpop.f32.mrf.mxu0
    %v3790 = vadd.f32 0.0, %v3789
    %v3791 = vpop.f32.mrf.mxu0
    %3792 = vdwg.mxu0
    %v3793 = vmul.f32 %v3787, 0.35355338
    %v3794 = vmul.f32 %v3790, 0.35355338
    %v3795 = vsel %vm2589, %v3793, -1e+30
    %v3796 = vsel %vm2590, %v3794, -1e+30
    %v3797 = vsel %vm2736, %v3795, -inf
    %3798 = vmax.xlane.f32.xlu0 %v3797
    %v3799 = vpop.xlane.xlu0 %3798
    %v3800 = vsel %vm2740, %v3796, -inf
    %3801 = vmax.xlane.f32.xlu0 %v3800
    %v3802 = vpop.xlane.xlu0 %3801
    %v3803 = vsub.f32 %v3795, %v3799
    %v3804 = vsub.f32 %v3796, %v3802
    %v3805 = vmul.f32 %v3803, 1.442695
    %v3806 = vpow.pop %v3805
    %v3807 = vmul.f32 %v3804, 1.442695
    %v3808 = vpow.pop %v3807
    %v3809 = vsel %vm2736, %v3806, 0.0
    %3810 = vadd.xlane.f32.xlu0 %v3809
    %v3811 = vpop.xlane.xlu0 %3810
    %v3812 = vsel %vm2740, %v3808, 0.0
    %3813 = vadd.xlane.f32.xlu0 %v3812
    %v3814 = vpop.xlane.xlu0 %3813
    %v3815 = vpack.c.bf16 %v3808, %v3806
    %3816 = vrot.lane.b32.xlu0 %v3398, 48
    %v3817 = vpop.permute.xlu0 %3816
    %v3819 = vsel %vm2736, %v3815, 0
    %v3822 = vand.u32 %v3817, %v2764
    %3824 = vmatprep.subr.bf16.mxu0 0
    %3825 = vmatpush1.bf16.msra.mxu0 0
    %3826 = vmatprep.subr.bf16.mxu0 0
    %3827 = vmatpush1.bf16.msra.mxu0 0
    %3828 = vmatprep.subr.bf16.mxu0 0
    %3829 = vmatpush1.bf16.msra.mxu0 0
    %3830 = vmatprep.subr.bf16.mxu0 0
    %3831 = vmatpush1.bf16.msra.mxu0 0
    %3832 = vmatprep.subr.bf16.mxu0 0
    %3833 = vmatpush1.bf16.msra.mxu0 0
    %3834 = vmatprep.subr.bf16.mxu0 0
    %3835 = vmatpush1.bf16.msra.mxu0 0
    %3836 = vmatprep.subr.bf16.mxu0 0
    %3837 = vmatpush1.bf16.msra.mxu0 0
    %3838 = vmatprep.subr.bf16.mxu0 0
    %3839 = vmatpush1.bf16.msra.mxu0 %v3822
    %3840 = vmatprep.subr.bf16.mxu0 0
    %3841 = vmatpush2.bf16.msra.mxu0 0
    %3842 = vmatprep.subr.bf16.mxu0 0
    %3843 = vmatpush2.bf16.msra.mxu0 0
    %3844 = vmatprep.subr.bf16.mxu0 0
    %3845 = vmatpush2.bf16.msra.mxu0 0
    %3846 = vmatprep.subr.bf16.mxu0 0
    %3847 = vmatpush2.bf16.msra.mxu0 0
    %3848 = vmatprep.subr.bf16.mxu0 0
    %3849 = vmatpush2.bf16.msra.mxu0 0
    %3850 = vmatprep.subr.bf16.mxu0 0
    %3851 = vmatpush2.bf16.msra.mxu0 0
    %3852 = vmatprep.subr.bf16.mxu0 0
    %3853 = vmatpush2.bf16.msra.mxu0 0
    %3854 = vmatprep.subr.bf16.mxu0 0
    %3855 = vmatpush2.bf16.msra.mxu0 0
    %3856 = vmatprep.mubr.bf16.mxu0 0
    %3857 = vmatmul.mubr.bf16.gmra.mxu0 %v3819
    %v3858 = vpop.f32.mrf.mxu0
    %v3859 = vadd.f32 0.0, %v3858
    %v3860 = vpop.f32.mrf.mxu0
    %v3861 = vpop.f32.mrf.mxu0
    %v3862 = vadd.f32 0.0, %v3861
    %v3863 = vpop.f32.mrf.mxu0
    %3864 = vdwg.mxu0
    %v3865 = vrcp.pop %v3811
    %v3866 = vrcp.pop %v3814
    %v3867 = vmul.f32 %v3859, %v3865
    %v3868 = vmul.f32 %v3862, %v3866
    %v3869 = vpack.c.bf16 %v3868, %v3867
    %v3871 = vsel %vm143, %v3869, 0
    %3873 = vmatprep.subr.bf16.mxu0 0
    %3874 = vmatpush1.bf16.msra.mxu0 0
    %3875 = vmatprep.subr.bf16.mxu0 0
    %3876 = vmatpush1.bf16.msra.mxu0 0
    %3877 = vmatprep.subr.bf16.mxu0 0
    %3878 = vmatpush1.bf16.msra.mxu0 0
    %3879 = vmatprep.subr.bf16.mxu0 0
    %3880 = vmatpush1.bf16.msra.mxu0 0
    %3881 = vmatprep.subr.bf16.mxu0 0
    %3882 = vmatpush1.bf16.msra.mxu0 0
    %3883 = vmatprep.subr.bf16.mxu0 0
    %3884 = vmatpush1.bf16.msra.mxu0 0
    %3885 = vmatprep.subr.bf16.mxu0 0
    %3886 = vmatpush1.bf16.msra.mxu0 0
    %3887 = vmatprep.subr.bf16.mxu0 0
    %3888 = vmatpush1.bf16.msra.mxu0 %v3171
    %3889 = vmatprep.subr.bf16.mxu0 0
    %3890 = vmatpush2.bf16.msra.mxu0 0
    %3891 = vmatprep.subr.bf16.mxu0 0
    %3892 = vmatpush2.bf16.msra.mxu0 0
    %3893 = vmatprep.subr.bf16.mxu0 0
    %3894 = vmatpush2.bf16.msra.mxu0 0
    %3895 = vmatprep.subr.bf16.mxu0 0
    %3896 = vmatpush2.bf16.msra.mxu0 0
    %3897 = vmatprep.subr.bf16.mxu0 0
    %3898 = vmatpush2.bf16.msra.mxu0 0
    %3899 = vmatprep.subr.bf16.mxu0 0
    %3900 = vmatpush2.bf16.msra.mxu0 0
    %3901 = vmatprep.subr.bf16.mxu0 0
    %3902 = vmatpush2.bf16.msra.mxu0 0
    %3903 = vmatprep.subr.bf16.mxu0 0
    %3904 = vmatpush2.bf16.msra.mxu0 0
    %3905 = vmatprep.mubr.bf16.mxu0 0
    %3906 = vmatmul.mubr.bf16.gmra.mxu0 %v3871
    %v3907 = vpop.f32.mrf.mxu0
    %v3908 = vadd.f32 0.0, %v3907
    %v3909 = vpop.f32.mrf.mxu0
    %v3910 = vpop.f32.mrf.mxu0
    %v3911 = vadd.f32 0.0, %v3910
    %v3912 = vpop.f32.mrf.mxu0
    %3913 = vdwg.mxu0
    %v3914 = vadd.f32 %v3736, %v3908
    %v3915 = vadd.f32 %v3739, %v3911
    %3916 = vrot.lane.b32.xlu0 %v3398, 104
    %v3917 = vpop.permute.xlu0 %3916
    %3918 = vrot.lane.b32.xlu0 %v3398, 72
    %v3919 = vpop.permute.xlu0 %3918
    %v3921 = vsel %vm143, %v3917, 0
    %v3924 = vsel %vm143, %v3919, 0
    %3926 = vmatprep.subr.bf16.mxu0 0
    %3927 = vmatpush1.bf16.xpose.msra.mxu0 0
    %3928 = vmatprep.subr.bf16.mxu0 0
    %3929 = vmatpush1.bf16.xpose.msra.mxu0 0
    %3930 = vmatprep.subr.bf16.mxu0 0
    %3931 = vmatpush1.bf16.xpose.msra.mxu0 0
    %3932 = vmatprep.subr.bf16.mxu0 0
    %3933 = vmatpush1.bf16.xpose.msra.mxu0 0
    %3934 = vmatprep.subr.bf16.mxu0 0
    %3935 = vmatpush1.bf16.xpose.msra.mxu0 0
    %3936 = vmatprep.subr.bf16.mxu0 0
    %3937 = vmatpush1.bf16.xpose.msra.mxu0 0
    %3938 = vmatprep.subr.bf16.mxu0 0
    %3939 = vmatpush1.bf16.xpose.msra.mxu0 0
    %3940 = vmatprep.subr.bf16.mxu0 0
    %3941 = vmatpush1.bf16.xpose.msra.mxu0 %v3924
    %3942 = vmatprep.subr.bf16.mxu0 0
    %3943 = vmatpush2.bf16.xpose.msra.mxu0 0
    %3944 = vmatprep.subr.bf16.mxu0 0
    %3945 = vmatpush2.bf16.xpose.msra.mxu0 0
    %3946 = vmatprep.subr.bf16.mxu0 0
    %3947 = vmatpush2.bf16.xpose.msra.mxu0 0
    %3948 = vmatprep.subr.bf16.mxu0 0
    %3949 = vmatpush2.bf16.xpose.msra.mxu0 0
    %3950 = vmatprep.subr.bf16.mxu0 0
    %3951 = vmatpush2.bf16.xpose.msra.mxu0 0
    %3952 = vmatprep.subr.bf16.mxu0 0
    %3953 = vmatpush2.bf16.xpose.msra.mxu0 0
    %3954 = vmatprep.subr.bf16.mxu0 0
    %3955 = vmatpush2.bf16.xpose.msra.mxu0 0
    %3956 = vmatprep.subr.bf16.mxu0 0
    %3957 = vmatpush2.bf16.xpose.msra.mxu0 0
    %3958 = vmatprep.mubr.bf16.mxu0 0
    %3959 = vmatmul.mubr.bf16.gmra.mxu0 %v3921
    %v3960 = vpop.f32.mrf.mxu0
    %v3961 = vadd.f32 0.0, %v3960
    %v3962 = vpop.f32.mrf.mxu0
    %v3963 = vpop.f32.mrf.mxu0
    %v3964 = vadd.f32 0.0, %v3963
    %v3965 = vpop.f32.mrf.mxu0
    %3966 = vdwg.mxu0
    %v3967 = vmul.f32 %v3961, 0.35355338
    %v3968 = vmul.f32 %v3964, 0.35355338
    %v3969 = vsel %vm2589, %v3967, -1e+30
    %v3970 = vsel %vm2590, %v3968, -1e+30
    %v3971 = vsel %vm2736, %v3969, -inf
    %3972 = vmax.xlane.f32.xlu0 %v3971
    %v3973 = vpop.xlane.xlu0 %3972
    %v3974 = vsel %vm2740, %v3970, -inf
    %3975 = vmax.xlane.f32.xlu0 %v3974
    %v3976 = vpop.xlane.xlu0 %3975
    %v3977 = vsub.f32 %v3969, %v3973
    %v3978 = vsub.f32 %v3970, %v3976
    %v3979 = vmul.f32 %v3977, 1.442695
    %v3980 = vpow.pop %v3979
    %v3981 = vmul.f32 %v3978, 1.442695
    %v3982 = vpow.pop %v3981
    %v3983 = vsel %vm2736, %v3980, 0.0
    %3984 = vadd.xlane.f32.xlu0 %v3983
    %v3985 = vpop.xlane.xlu0 %3984
    %v3986 = vsel %vm2740, %v3982, 0.0
    %3987 = vadd.xlane.f32.xlu0 %v3986
    %v3988 = vpop.xlane.xlu0 %3987
    %v3989 = vpack.c.bf16 %v3982, %v3980
    %3990 = vrot.lane.b32.xlu0 %v3398, 40
    %v3991 = vpop.permute.xlu0 %3990
    %v3993 = vsel %vm2736, %v3989, 0
    %v3996 = vand.u32 %v3991, %v2764
    %3998 = vmatprep.subr.bf16.mxu0 0
    %3999 = vmatpush1.bf16.msra.mxu0 0
    %4000 = vmatprep.subr.bf16.mxu0 0
    %4001 = vmatpush1.bf16.msra.mxu0 0
    %4002 = vmatprep.subr.bf16.mxu0 0
    %4003 = vmatpush1.bf16.msra.mxu0 0
    %4004 = vmatprep.subr.bf16.mxu0 0
    %4005 = vmatpush1.bf16.msra.mxu0 0
    %4006 = vmatprep.subr.bf16.mxu0 0
    %4007 = vmatpush1.bf16.msra.mxu0 0
    %4008 = vmatprep.subr.bf16.mxu0 0
    %4009 = vmatpush1.bf16.msra.mxu0 0
    %4010 = vmatprep.subr.bf16.mxu0 0
    %4011 = vmatpush1.bf16.msra.mxu0 0
    %4012 = vmatprep.subr.bf16.mxu0 0
    %4013 = vmatpush1.bf16.msra.mxu0 %v3996
    %4014 = vmatprep.subr.bf16.mxu0 0
    %4015 = vmatpush2.bf16.msra.mxu0 0
    %4016 = vmatprep.subr.bf16.mxu0 0
    %4017 = vmatpush2.bf16.msra.mxu0 0
    %4018 = vmatprep.subr.bf16.mxu0 0
    %4019 = vmatpush2.bf16.msra.mxu0 0
    %4020 = vmatprep.subr.bf16.mxu0 0
    %4021 = vmatpush2.bf16.msra.mxu0 0
    %4022 = vmatprep.subr.bf16.mxu0 0
    %4023 = vmatpush2.bf16.msra.mxu0 0
    %4024 = vmatprep.subr.bf16.mxu0 0
    %4025 = vmatpush2.bf16.msra.mxu0 0
    %4026 = vmatprep.subr.bf16.mxu0 0
    %4027 = vmatpush2.bf16.msra.mxu0 0
    %4028 = vmatprep.subr.bf16.mxu0 0
    %4029 = vmatpush2.bf16.msra.mxu0 0
    %4030 = vmatprep.mubr.bf16.mxu0 0
    %4031 = vmatmul.mubr.bf16.gmra.mxu0 %v3993
    %v4032 = vpop.f32.mrf.mxu0
    %v4033 = vadd.f32 0.0, %v4032
    %v4034 = vpop.f32.mrf.mxu0
    %v4035 = vpop.f32.mrf.mxu0
    %v4036 = vadd.f32 0.0, %v4035
    %v4037 = vpop.f32.mrf.mxu0
    %4038 = vdwg.mxu0
    %v4039 = vrcp.pop %v3985
    %v4040 = vrcp.pop %v3988
    %v4041 = vmul.f32 %v4033, %v4039
    %v4042 = vmul.f32 %v4036, %v4040
    %v4043 = vpack.c.bf16 %v4042, %v4041
    %v4045 = vsel %vm143, %v4043, 0
    %4047 = vmatprep.subr.bf16.mxu0 0
    %4048 = vmatpush1.bf16.msra.mxu0 0
    %4049 = vmatprep.subr.bf16.mxu0 0
    %4050 = vmatpush1.bf16.msra.mxu0 0
    %4051 = vmatprep.subr.bf16.mxu0 0
    %4052 = vmatpush1.bf16.msra.mxu0 0
    %4053 = vmatprep.subr.bf16.mxu0 0
    %4054 = vmatpush1.bf16.msra.mxu0 0
    %4055 = vmatprep.subr.bf16.mxu0 0
    %4056 = vmatpush1.bf16.msra.mxu0 0
    %4057 = vmatprep.subr.bf16.mxu0 0
    %4058 = vmatpush1.bf16.msra.mxu0 0
    %4059 = vmatprep.subr.bf16.mxu0 0
    %4060 = vmatpush1.bf16.msra.mxu0 0
    %4061 = vmatprep.subr.bf16.mxu0 0
    %4062 = vmatpush1.bf16.msra.mxu0 %v3349
    %4063 = vmatprep.subr.bf16.mxu0 0
    %4064 = vmatpush2.bf16.msra.mxu0 0
    %4065 = vmatprep.subr.bf16.mxu0 0
    %4066 = vmatpush2.bf16.msra.mxu0 0
    %4067 = vmatprep.subr.bf16.mxu0 0
    %4068 = vmatpush2.bf16.msra.mxu0 0
    %4069 = vmatprep.subr.bf16.mxu0 0
    %4070 = vmatpush2.bf16.msra.mxu0 0
    %4071 = vmatprep.subr.bf16.mxu0 0
    %4072 = vmatpush2.bf16.msra.mxu0 0
    %4073 = vmatprep.subr.bf16.mxu0 0
    %4074 = vmatpush2.bf16.msra.mxu0 0
    %4075 = vmatprep.subr.bf16.mxu0 0
    %4076 = vmatpush2.bf16.msra.mxu0 0
    %4077 = vmatprep.subr.bf16.mxu0 0
    %4078 = vmatpush2.bf16.msra.mxu0 0
    %4079 = vmatprep.mubr.bf16.mxu0 0
    %4080 = vmatmul.mubr.bf16.gmra.mxu0 %v4045
    %v4081 = vpop.f32.mrf.mxu0
    %v4082 = vadd.f32 0.0, %v4081
    %v4083 = vpop.f32.mrf.mxu0
    %v4084 = vpop.f32.mrf.mxu0
    %v4085 = vadd.f32 0.0, %v4084
    %v4086 = vpop.f32.mrf.mxu0
    %4087 = vdwg.mxu0
    %v4088 = vadd.f32 %v3914, %v4082
    %v4089 = vadd.f32 %v3915, %v4085
    %4090 = vst.msk [vmem:[#allocation4 + $0x9] sm:$0xff] %vm605, %v4088
    %4091 = vst.msk [vmem:[#allocation4 + $0x11] sm:$0x1] %vm2575, %v4089
    %v4092 = vld [vmem:[#allocation4] sm:$0xff]
    %v4093 = vld [vmem:[#allocation4 + $0x8] sm:$0xff]
    %v4094 = vld [vmem:[#allocation4 + $0x10] sm:$0x3]
    %v4095 = vld [vmem:[%s35] sm:$0x1]
    %v4097 = vlaneseq
    %v4098 = vshrl.u32 %v4097, 7
    %v4099 = vsub.s32 0, %v4098
    %v4100 = vrot.slane %v4095, %v4099
    %v4102 = vadd.f32 %v4092, %v4100
    %v4103 = vadd.f32 %v4093, %v4100
    %v4104 = vadd.f32 %v4094, %v4100
    %v4105 = vadd.f32 %v2581, %v4102
    %v4106 = vadd.f32 %v2582, %v4103
    %v4107 = vadd.f32 %v2583, %v4104
    %v4108 = vld [vmem:[%s37] sm:$0x1]
    %v4109 = vld [vmem:[%s39] sm:$0x1]
    %v4110 = vsel %vm605, %v4105, 0.0
    %4111 = vadd.xlane.f32.xlu0 %v4110
    %v4112 = vpop.xlane.xlu0 %4111
    %v4113 = vsel %vm605, %v4106, 0.0
    %4114 = vadd.xlane.f32.xlu0 %v4113
    %v4115 = vpop.xlane.xlu0 %4114
    %vm4116 = vcmask 254976
    %v4117 = vsel %vm4116, %v4107, 0.0
    %4118 = vadd.xlane.f32.xlu0 %v4117
    %v4119 = vpop.xlane.xlu0 %4118
    %v4120 = vrcp.pop 32.0
    %v4121 = vmul.f32 %v4112, %v4120
    %v4122 = vmul.f32 %v4115, %v4120
    %v4123 = vmul.f32 %v4119, %v4120
    %v4124 = vsub.f32 %v4105, %v4121
    %v4125 = vsub.f32 %v4106, %v4122
    %v4126 = vsub.f32 %v4107, %v4123
    %v4127 = vmul.f32 %v4124, %v4124
    %v4128 = vmul.f32 %v4125, %v4125
    %v4129 = vmul.f32 %v4126, %v4126
    %v4130 = vsel %vm605, %v4127, 0.0
    %4131 = vadd.xlane.f32.xlu0 %v4130
    %v4132 = vpop.xlane.xlu0 %4131
    %v4133 = vsel %vm605, %v4128, 0.0
    %4134 = vadd.xlane.f32.xlu0 %v4133
    %v4135 = vpop.xlane.xlu0 %4134
    %v4136 = vsel %vm4116, %v4129, 0.0
    %4137 = vadd.xlane.f32.xlu0 %v4136
    %v4138 = vpop.xlane.xlu0 %4137
    %v4139 = vmul.f32 %v4132, %v4120
    %v4140 = vmul.f32 %v4135, %v4120
    %v4141 = vmul.f32 %v4138, %v4120
    %v4142 = vadd.f32 %v4139, 1e-05
    %v4143 = vadd.f32 %v4140, 1e-05
    %v4144 = vadd.f32 %v4141, 1e-05
    %v4145 = vrsqrt.pop %v4142
    %v4146 = vrsqrt.pop %v4143
    %v4147 = vrsqrt.pop %v4144
    %v4148 = vmul.f32 %v4124, %v4145
    %v4149 = vmul.f32 %v4125, %v4146
    %v4150 = vmul.f32 %v4126, %v4147
    %v4152 = vlaneseq
    %v4153 = vshrl.u32 %v4152, 7
    %v4154 = vsub.s32 0, %v4153
    %v4155 = vrot.slane %v4108, %v4154
    %v4157 = vmul.f32 %v4148, %v4155
    %v4158 = vmul.f32 %v4149, %v4155
    %v4159 = vmul.f32 %v4150, %v4155
    %v4161 = vlaneseq
    %v4162 = vshrl.u32 %v4161, 7
    %v4163 = vsub.s32 0, %v4162
    %v4164 = vrot.slane %v4109, %v4163
    %v4166 = vadd.f32 %v4157, %v4164
    %v4167 = vadd.f32 %v4158, %v4164
    %v4168 = vadd.f32 %v4159, %v4164
    %v4169 = vpack.c.bf16 %v4167, %v4166
    %v4170 = vpack.c.bf16 %v4168, %v4168
    %v4171 = vld [vmem:[%s41] sm:$0xf]
    %v4172 = vld [vmem:[%s41 + $0x4] sm:$0xf]
    %v4173 = vld [vmem:[%s41 + $0x8] sm:$0xf]
    %v4174 = vld [vmem:[%s41 + $0xc] sm:$0xf]
    %v4175 = vld [vmem:[%s43] sm:$0x1]
    %v4177 = vlaneseq
    %v4178 = vshrl.u32 %v4177, 7
    %v4179 = vsub.s32 0, %v4178
    %v4180 = vrot.slane %v4175, %v4179
    %v4186 = vunpack.c.l.b16 %v4171
    %v4187 = vunpack.c.l.b16 %v4172
    %v4188 = vunpack.c.l.b16 %v4173
    %v4189 = vunpack.c.l.b16 %v4174
    %v4190 = vpack.c.b16 %v4187, %v4186
    %v4191 = vpack.c.b16 %v4189, %v4188
    %v4195 = vsel %vm605, %v4169, 0
    %v4198 = vsel %vm605, %v4170, 0
    %4200 = vmatprep.subr.bf16.mxu0 0
    %4201 = vmatpush1.bf16.msra.mxu0 0
    %4202 = vmatprep.subr.bf16.mxu0 0
    %4203 = vmatpush1.bf16.msra.mxu0 0
    %4204 = vmatprep.subr.bf16.mxu0 0
    %4205 = vmatpush1.bf16.msra.mxu0 0
    %4206 = vmatprep.subr.bf16.mxu0 0
    %4207 = vmatpush1.bf16.msra.mxu0 0
    %4208 = vmatprep.subr.bf16.mxu0 0
    %4209 = vmatpush1.bf16.msra.mxu0 0
    %4210 = vmatprep.subr.bf16.mxu0 0
    %4211 = vmatpush1.bf16.msra.mxu0 0
    %4212 = vmatprep.subr.bf16.mxu0 0
    %4213 = vmatpush1.bf16.msra.mxu0 %v4191
    %4214 = vmatprep.subr.bf16.mxu0 0
    %4215 = vmatpush1.bf16.msra.mxu0 %v4190
    %4216 = vmatprep.subr.bf16.mxu0 0
    %4217 = vmatpush2.bf16.msra.mxu0 0
    %4218 = vmatprep.subr.bf16.mxu0 0
    %4219 = vmatpush2.bf16.msra.mxu0 0
    %4220 = vmatprep.subr.bf16.mxu0 0
    %4221 = vmatpush2.bf16.msra.mxu0 0
    %4222 = vmatprep.subr.bf16.mxu0 0
    %4223 = vmatpush2.bf16.msra.mxu0 0
    %4224 = vmatprep.subr.bf16.mxu0 0
    %4225 = vmatpush2.bf16.msra.mxu0 0
    %4226 = vmatprep.subr.bf16.mxu0 0
    %4227 = vmatpush2.bf16.msra.mxu0 0
    %4228 = vmatprep.subr.bf16.mxu0 0
    %4229 = vmatpush2.bf16.msra.mxu0 0
    %4230 = vmatprep.subr.bf16.mxu0 0
    %4231 = vmatpush2.bf16.msra.mxu0 0
    %4232 = vmatprep.mubr.bf16.mxu0 0
    %4233 = vmatmul.mubr.bf16.gmra.mxu0 %v4195
    %v4234 = vpop.f32.mrf.mxu0
    %v4235 = vadd.f32 %v4180, %v4234
    %v4236 = vpop.f32.mrf.mxu0
    %v4237 = vpop.f32.mrf.mxu0
    %v4238 = vadd.f32 %v4180, %v4237
    %v4239 = vpop.f32.mrf.mxu0
    %4240 = vmatprep.mubr.bf16.mxu0 0
    %4241 = vmatmul.mubr.bf16.gmra.mxu0 %v4198
    %v4242 = vpop.f32.mrf.mxu0
    %v4243 = vadd.f32 %v4180, %v4242
    %v4244 = vpop.f32.mrf.mxu0
    %v4245 = vpop.f32.mrf.mxu0
    %v4246 = vpop.f32.mrf.mxu0
    %4247 = vdwg.mxu0
    %v4248 = vmul.f32 %v4235, 0.5
    %v4249 = vmul.f32 %v4238, 0.5
    %v4250 = vmul.f32 %v4243, 0.5
    %v4251 = vmul.f32 %v4235, 0.70710677
    %v4252 = vmul.f32 %v4238, 0.70710677
    %v4253 = vmul.f32 %v4243, 0.70710677
    %vm4254 = vcmp.ge.f32.partialorder %v4251, 0.0
    %vm4255 = vcmp.ge.f32.partialorder %v4252, 0.0
    %vm4256 = vcmp.ge.f32.partialorder %v4253, 0.0
    %v4257 = vsel %vm4254, 1.0, -1.0
    %v4258 = vsel %vm4255, 1.0, -1.0
    %v4259 = vsel %vm4256, 1.0, -1.0
    %v4260 = vand.u32 2147483647, %v4251
    %v4261 = vand.u32 2147483647, %v4252
    %v4262 = vand.u32 2147483647, %v4253
    %v4263 = vmul.f32 %v4260, 0.3275911
    %v4264 = vmul.f32 %v4261, 0.3275911
    %v4265 = vmul.f32 %v4262, 0.3275911
    %v4266 = vadd.f32 %v4263, 1.0
    %v4267 = vadd.f32 %v4264, 1.0
    %v4268 = vadd.f32 %v4265, 1.0
    %v4269 = vrcp.pop %v4266
    %v4270 = vmul.f32 1.0, %v4269
    %v4271 = vrcp.pop %v4267
    %v4272 = vmul.f32 1.0, %v4271
    %v4273 = vrcp.pop %v4268
    %v4274 = vmul.f32 1.0, %v4273
    %v4275 = vmul.f32 %v4270, 1.0614054
    %v4276 = vmul.f32 %v4272, 1.0614054
    %v4277 = vmul.f32 %v4274, 1.0614054
    %v4278 = vadd.f32 %v4275, -1.4531521
    %v4279 = vadd.f32 %v4276, -1.4531521
    %v4280 = vadd.f32 %v4277, -1.4531521
    %v4281 = vmul.f32 %v4278, %v4270
    %v4282 = vmul.f32 %v4279, %v4272
    %v4283 = vmul.f32 %v4280, %v4274
    %v4284 = vadd.f32 %v4281, 1.4214138
    %v4285 = vadd.f32 %v4282, 1.4214138
    %v4286 = vadd.f32 %v4283, 1.4214138
    %v4287 = vmul.f32 %v4284, %v4270
    %v4288 = vmul.f32 %v4285, %v4272
    %v4289 = vmul.f32 %v4286, %v4274
    %v4290 = vadd.f32 %v4287, -0.28449672
    %v4291 = vadd.f32 %v4288, -0.28449672
    %v4292 = vadd.f32 %v4289, -0.28449672
    %v4293 = vmul.f32 %v4290, %v4270
    %v4294 = vmul.f32 %v4291, %v4272
    %v4295 = vmul.f32 %v4292, %v4274
    %v4296 = vadd.f32 %v4293, 0.2548296
    %v4297 = vadd.f32 %v4294, 0.2548296
    %v4298 = vadd.f32 %v4295, 0.2548296
    %v4299 = vmul.f32 %v4296, %v4270
    %v4300 = vmul.f32 %v4297, %v4272
    %v4301 = vmul.f32 %v4298, %v4274
    %v4302 = vsub.f32 0.0, %v4260
    %v4303 = vsub.f32 0.0, %v4261
    %v4304 = vsub.f32 0.0, %v4262
    %v4305 = vmul.f32 %v4302, %v4260
    %v4306 = vmul.f32 %v4303, %v4261
    %v4307 = vmul.f32 %v4304, %v4262
    %v4308 = vmul.f32 %v4305, 1.442695
    %v4309 = vpow.pop %v4308
    %v4310 = vmul.f32 %v4306, 1.442695
    %v4311 = vpow.pop %v4310
    %v4312 = vmul.f32 %v4307, 1.442695
    %v4313 = vpow.pop %v4312
    %v4314 = vmul.f32 %v4299, %v4309
    %v4315 = vmul.f32 %v4300, %v4311
    %v4316 = vmul.f32 %v4301, %v4313
    %v4317 = vsub.f32 1.0, %v4314
    %v4318 = vsub.f32 1.0, %v4315
    %v4319 = vsub.f32 1.0, %v4316
    %v4320 = vmul.f32 %v4257, %v4317
    %v4321 = vmul.f32 %v4258, %v4318
    %v4322 = vmul.f32 %v4259, %v4319
    %v4323 = vadd.f32 %v4320, 1.0
    %v4324 = vadd.f32 %v4321, 1.0
    %v4325 = vadd.f32 %v4322, 1.0
    %v4326 = vmul.f32 %v4248, %v4323
    %v4327 = vmul.f32 %v4249, %v4324
    %v4328 = vmul.f32 %v4250, %v4325
    %v4329 = vpack.c.bf16 %v4327, %v4326
    %v4330 = vpack.c.bf16 %v4328, %v4328
    %v4331 = vld [vmem:[%s45] sm:$0xf]
    %v4332 = vld [vmem:[%s45 + $0x4] sm:$0xf]
    %v4333 = vld [vmem:[%s45 + $0x8] sm:$0xf]
    %v4334 = vld [vmem:[%s45 + $0xc] sm:$0xf]
    %v4335 = vld [vmem:[%s45 + $0x10] sm:$0xf]
    %v4336 = vld [vmem:[%s45 + $0x14] sm:$0xf]
    %v4337 = vld [vmem:[%s45 + $0x18] sm:$0xf]
    %v4338 = vld [vmem:[%s45 + $0x1c] sm:$0xf]
    %v4339 = vld [vmem:[%s45 + $0x20] sm:$0xf]
    %v4340 = vld [vmem:[%s45 + $0x24] sm:$0xf]
    %v4341 = vld [vmem:[%s45 + $0x28] sm:$0xf]
    %v4342 = vld [vmem:[%s45 + $0x2c] sm:$0xf]
    %v4343 = vld [vmem:[%s45 + $0x30] sm:$0xf]
    %v4344 = vld [vmem:[%s45 + $0x34] sm:$0xf]
    %v4345 = vld [vmem:[%s45 + $0x38] sm:$0xf]
    %v4346 = vld [vmem:[%s45 + $0x3c] sm:$0xf]
    %v4347 = vld [vmem:[%s47] sm:$0x1]
    %v4349 = vlaneseq
    %v4350 = vshrl.u32 %v4349, 7
    %v4351 = vsub.s32 0, %v4350
    %v4352 = vrot.slane %v4347, %v4351
    %v4370 = vunpack.c.l.b16 %v4331
    %v4371 = vunpack.c.l.b16 %v4332
    %v4372 = vunpack.c.l.b16 %v4333
    %v4373 = vunpack.c.l.b16 %v4334
    %v4374 = vunpack.c.l.b16 %v4335
    %v4375 = vunpack.c.l.b16 %v4336
    %v4376 = vunpack.c.l.b16 %v4337
    %v4377 = vunpack.c.l.b16 %v4338
    %v4378 = vunpack.c.l.b16 %v4339
    %v4379 = vunpack.c.l.b16 %v4340
    %v4380 = vunpack.c.l.b16 %v4341
    %v4381 = vunpack.c.l.b16 %v4342
    %v4382 = vunpack.c.l.b16 %v4343
    %v4383 = vunpack.c.l.b16 %v4344
    %v4384 = vunpack.c.l.b16 %v4345
    %v4385 = vunpack.c.l.b16 %v4346
    %v4386 = vpack.c.b16 %v4371, %v4370
    %v4387 = vpack.c.b16 %v4373, %v4372
    %v4388 = vpack.c.b16 %v4375, %v4374
    %v4389 = vpack.c.b16 %v4377, %v4376
    %v4390 = vpack.c.b16 %v4379, %v4378
    %v4391 = vpack.c.b16 %v4381, %v4380
    %v4392 = vpack.c.b16 %v4383, %v4382
    %v4393 = vpack.c.b16 %v4385, %v4384
    %4402 = vmatprep.subr.bf16.mxu0 0
    %4403 = vmatpush1.bf16.msra.mxu0 %v4393
    %4404 = vmatprep.subr.bf16.mxu0 0
    %4405 = vmatpush1.bf16.msra.mxu0 %v4392
    %4406 = vmatprep.subr.bf16.mxu0 0
    %4407 = vmatpush1.bf16.msra.mxu0 %v4391
    %4408 = vmatprep.subr.bf16.mxu0 0
    %4409 = vmatpush1.bf16.msra.mxu0 %v4390
    %4410 = vmatprep.subr.bf16.mxu0 0
    %4411 = vmatpush1.bf16.msra.mxu0 %v4389
    %4412 = vmatprep.subr.bf16.mxu0 0
    %4413 = vmatpush1.bf16.msra.mxu0 %v4388
    %4414 = vmatprep.subr.bf16.mxu0 0
    %4415 = vmatpush1.bf16.msra.mxu0 %v4387
    %4416 = vmatprep.subr.bf16.mxu0 0
    %4417 = vmatpush1.bf16.msra.mxu0 %v4386
    %4418 = vmatprep.subr.bf16.mxu0 0
    %4419 = vmatpush2.bf16.msra.mxu0 0
    %4420 = vmatprep.subr.bf16.mxu0 0
    %4421 = vmatpush2.bf16.msra.mxu0 0
    %4422 = vmatprep.subr.bf16.mxu0 0
    %4423 = vmatpush2.bf16.msra.mxu0 0
    %4424 = vmatprep.subr.bf16.mxu0 0
    %4425 = vmatpush2.bf16.msra.mxu0 0
    %4426 = vmatprep.subr.bf16.mxu0 0
    %4427 = vmatpush2.bf16.msra.mxu0 0
    %4428 = vmatprep.subr.bf16.mxu0 0
    %4429 = vmatpush2.bf16.msra.mxu0 0
    %4430 = vmatprep.subr.bf16.mxu0 0
    %4431 = vmatpush2.bf16.msra.mxu0 0
    %4432 = vmatprep.subr.bf16.mxu0 0
    %4433 = vmatpush2.bf16.msra.mxu0 0
    %4434 = vmatprep.mubr.bf16.mxu0 0
    %4435 = vmatmul.mubr.bf16.gmra.mxu0 %v4329
    %v4436 = vpop.f32.mrf.mxu0
    %v4437 = vadd.f32 %v4352, %v4436
    %v4438 = vpop.f32.mrf.mxu0
    %v4439 = vpop.f32.mrf.mxu0
    %v4440 = vadd.f32 %v4352, %v4439
    %v4441 = vpop.f32.mrf.mxu0
    %4442 = vmatprep.mubr.bf16.mxu0 0
    %4443 = vmatmul.mubr.bf16.gmra.mxu0 %v4330
    %v4444 = vpop.f32.mrf.mxu0
    %v4445 = vadd.f32 %v4352, %v4444
    %v4446 = vpop.f32.mrf.mxu0
    %v4447 = vpop.f32.mrf.mxu0
    %v4448 = vpop.f32.mrf.mxu0
    %4449 = vdwg.mxu0
    %v4450 = vadd.f32 %v4166, %v4437
    %v4451 = vadd.f32 %v4167, %v4440
    %v4452 = vadd.f32 %v4168, %v4445
    %v4453 = vld [vmem:[%s49] sm:$0x1]
    %v4454 = vld [vmem:[%s51] sm:$0x1]
    %v4455 = vsel %vm605, %v4450, 0.0
    %4456 = vadd.xlane.f32.xlu0 %v4455
    %v4457 = vpop.xlane.xlu0 %4456
    %v4458 = vsel %vm605, %v4451, 0.0
    %4459 = vadd.xlane.f32.xlu0 %v4458
    %v4460 = vpop.xlane.xlu0 %4459
    %v4461 = vsel %vm4116, %v4452, 0.0
    %4462 = vadd.xlane.f32.xlu0 %v4461
    %v4463 = vpop.xlane.xlu0 %4462
    %v4464 = vmul.f32 %v4457, %v4120
    %v4465 = vmul.f32 %v4460, %v4120
    %v4466 = vmul.f32 %v4463, %v4120
    %v4467 = vsub.f32 %v4450, %v4464
    %v4468 = vsub.f32 %v4451, %v4465
    %v4469 = vsub.f32 %v4452, %v4466
    %v4470 = vmul.f32 %v4467, %v4467
    %v4471 = vmul.f32 %v4468, %v4468
    %v4472 = vmul.f32 %v4469, %v4469
    %v4473 = vsel %vm605, %v4470, 0.0
    %4474 = vadd.xlane.f32.xlu0 %v4473
    %v4475 = vpop.xlane.xlu0 %4474
    %v4476 = vsel %vm605, %v4471, 0.0
    %4477 = vadd.xlane.f32.xlu0 %v4476
    %v4478 = vpop.xlane.xlu0 %4477
    %v4479 = vsel %vm4116, %v4472, 0.0
    %4480 = vadd.xlane.f32.xlu0 %v4479
    %v4481 = vpop.xlane.xlu0 %4480
    %v4482 = vmul.f32 %v4475, %v4120
    %v4483 = vmul.f32 %v4478, %v4120
    %v4484 = vmul.f32 %v4481, %v4120
    %v4485 = vadd.f32 %v4482, 1e-05
    %v4486 = vadd.f32 %v4483, 1e-05
    %v4487 = vadd.f32 %v4484, 1e-05
    %v4488 = vrsqrt.pop %v4485
    %v4489 = vrsqrt.pop %v4486
    %v4490 = vrsqrt.pop %v4487
    %v4491 = vmul.f32 %v4467, %v4488
    %v4492 = vmul.f32 %v4468, %v4489
    %v4493 = vmul.f32 %v4469, %v4490
    %v4495 = vlaneseq
    %v4496 = vshrl.u32 %v4495, 7
    %v4497 = vsub.s32 0, %v4496
    %v4498 = vrot.slane %v4453, %v4497
    %v4500 = vmul.f32 %v4491, %v4498
    %v4501 = vmul.f32 %v4492, %v4498
    %v4502 = vmul.f32 %v4493, %v4498
    %v4504 = vlaneseq
    %v4505 = vshrl.u32 %v4504, 7
    %v4506 = vsub.s32 0, %v4505
    %v4507 = vrot.slane %v4454, %v4506
    %v4509 = vadd.f32 %v4500, %v4507
    %v4510 = vadd.f32 %v4501, %v4507
    %v4511 = vadd.f32 %v4502, %v4507
    %v4512 = vpack.c.bf16 %v4510, %v4509
    %v4513 = vpack.c.bf16 %v4511, %v4511
    %s4514 = scalar_lea.vmem %s29, 16
    %v4515 = vld [vmem:[%s4514] sm:$0xf]
    %v4516 = vld [vmem:[%s4514 + $0x4] sm:$0xf]
    %v4517 = vld [vmem:[%s4514 + $0x8] sm:$0xf]
    %v4518 = vld [vmem:[%s4514 + $0xc] sm:$0xf]
    %s4519 = scalar_lea.vmem %s31, 1
    %v4520 = vld [vmem:[%s4519] sm:$0x1]
    %v4522 = vlaneseq
    %v4523 = vshrl.u32 %v4522, 7
    %v4524 = vsub.s32 0, %v4523
    %v4525 = vrot.slane %v4520, %v4524
    %v4531 = vunpack.c.l.b16 %v4515
    %v4532 = vunpack.c.l.b16 %v4516
    %v4533 = vunpack.c.l.b16 %v4517
    %v4534 = vunpack.c.l.b16 %v4518
    %v4535 = vpack.c.b16 %v4532, %v4531
    %v4536 = vpack.c.b16 %v4534, %v4533
    %v4540 = vsel %vm605, %v4512, 0
    %v4543 = vsel %vm605, %v4513, 0
    %4545 = vmatprep.subr.bf16.mxu0 0
    %4546 = vmatpush1.bf16.msra.mxu0 0
    %4547 = vmatprep.subr.bf16.mxu0 0
    %4548 = vmatpush1.bf16.msra.mxu0 0
    %4549 = vmatprep.subr.bf16.mxu0 0
    %4550 = vmatpush1.bf16.msra.mxu0 0
    %4551 = vmatprep.subr.bf16.mxu0 0
    %4552 = vmatpush1.bf16.msra.mxu0 0
    %4553 = vmatprep.subr.bf16.mxu0 0
    %4554 = vmatpush1.bf16.msra.mxu0 0
    %4555 = vmatprep.subr.bf16.mxu0 0
    %4556 = vmatpush1.bf16.msra.mxu0 0
    %4557 = vmatprep.subr.bf16.mxu0 0
    %4558 = vmatpush1.bf16.msra.mxu0 %v4536
    %4559 = vmatprep.subr.bf16.mxu0 0
    %4560 = vmatpush1.bf16.msra.mxu0 %v4535
    %4561 = vmatprep.subr.bf16.mxu0 0
    %4562 = vmatpush2.bf16.msra.mxu0 0
    %4563 = vmatprep.subr.bf16.mxu0 0
    %4564 = vmatpush2.bf16.msra.mxu0 0
    %4565 = vmatprep.subr.bf16.mxu0 0
    %4566 = vmatpush2.bf16.msra.mxu0 0
    %4567 = vmatprep.subr.bf16.mxu0 0
    %4568 = vmatpush2.bf16.msra.mxu0 0
    %4569 = vmatprep.subr.bf16.mxu0 0
    %4570 = vmatpush2.bf16.msra.mxu0 0
    %4571 = vmatprep.subr.bf16.mxu0 0
    %4572 = vmatpush2.bf16.msra.mxu0 0
    %4573 = vmatprep.subr.bf16.mxu0 0
    %4574 = vmatpush2.bf16.msra.mxu0 0
    %4575 = vmatprep.subr.bf16.mxu0 0
    %4576 = vmatpush2.bf16.msra.mxu0 0
    %4577 = vmatprep.mubr.bf16.mxu0 0
    %4578 = vmatmul.mubr.bf16.gmra.mxu0 %v4540
    %v4579 = vpop.f32.mrf.mxu0
    %v4580 = vadd.f32 %v4525, %v4579
    %v4581 = vpop.f32.mrf.mxu0
    %v4582 = vpop.f32.mrf.mxu0
    %v4583 = vadd.f32 %v4525, %v4582
    %v4584 = vpop.f32.mrf.mxu0
    %4585 = vmatprep.mubr.bf16.mxu0 0
    %4586 = vmatmul.mubr.bf16.gmra.mxu0 %v4543
    %v4587 = vpop.f32.mrf.mxu0
    %v4588 = vadd.f32 %v4525, %v4587
    %v4589 = vpop.f32.mrf.mxu0
    %v4590 = vpop.f32.mrf.mxu0
    %v4591 = vpop.f32.mrf.mxu0
    %4592 = vdwg.mxu0
    %4593 = vst.msk [vmem:[#allocation3] sm:$0xff] %vm2670, %v4580
    %4594 = vst.msk [vmem:[#allocation3 + $0x8] sm:$0xff] %vm2670, %v4583
    %4595 = vst.msk [vmem:[#allocation3 + $0x10] sm:$0x3] %vm2673, %v4588
    %s4596 = scalar_lea.vmem %s33, 32
    %v4597 = vld [vmem:[%s4596] sm:$0xff]
    %v4598 = vld [vmem:[%s4596 + $0x8] sm:$0xff]
    %v4599 = vld [vmem:[%s4596 + $0x10] sm:$0xff]
    %v4600 = vld [vmem:[%s4596 + $0x18] sm:$0xff]
    %v4601 = vld [vmem:[#allocation3] sm:$0xff]
    %v4602 = vld [vmem:[#allocation3 + $0x8] sm:$0x1]
    %v4603 = vpack.c.bf16 %v4602, %v4601
    %4605 = vrot.lane.b32.xlu0 %v4603, 96
    %v4606 = vpop.permute.xlu0 %4605
    %v4608 = vsel %vm143, %v4603, 0
    %v4611 = vsel %vm143, %v4606, 0
    %4613 = vmatprep.subr.bf16.mxu0 0
    %4614 = vmatpush1.bf16.xpose.msra.mxu0 0
    %4615 = vmatprep.subr.bf16.mxu0 0
    %4616 = vmatpush1.bf16.xpose.msra.mxu0 0
    %4617 = vmatprep.subr.bf16.mxu0 0
    %4618 = vmatpush1.bf16.xpose.msra.mxu0 0
    %4619 = vmatprep.subr.bf16.mxu0 0
    %4620 = vmatpush1.bf16.xpose.msra.mxu0 0
    %4621 = vmatprep.subr.bf16.mxu0 0
    %4622 = vmatpush1.bf16.xpose.msra.mxu0 0
    %4623 = vmatprep.subr.bf16.mxu0 0
    %4624 = vmatpush1.bf16.xpose.msra.mxu0 0
    %4625 = vmatprep.subr.bf16.mxu0 0
    %4626 = vmatpush1.bf16.xpose.msra.mxu0 0
    %4627 = vmatprep.subr.bf16.mxu0 0
    %4628 = vmatpush1.bf16.xpose.msra.mxu0 %v4611
    %4629 = vmatprep.subr.bf16.mxu0 0
    %4630 = vmatpush2.bf16.xpose.msra.mxu0 0
    %4631 = vmatprep.subr.bf16.mxu0 0
    %4632 = vmatpush2.bf16.xpose.msra.mxu0 0
    %4633 = vmatprep.subr.bf16.mxu0 0
    %4634 = vmatpush2.bf16.xpose.msra.mxu0 0
    %4635 = vmatprep.subr.bf16.mxu0 0
    %4636 = vmatpush2.bf16.xpose.msra.mxu0 0
    %4637 = vmatprep.subr.bf16.mxu0 0
    %4638 = vmatpush2.bf16.xpose.msra.mxu0 0
    %4639 = vmatprep.subr.bf16.mxu0 0
    %4640 = vmatpush2.bf16.xpose.msra.mxu0 0
    %4641 = vmatprep.subr.bf16.mxu0 0
    %4642 = vmatpush2.bf16.xpose.msra.mxu0 0
    %4643 = vmatprep.subr.bf16.mxu0 0
    %4644 = vmatpush2.bf16.xpose.msra.mxu0 0
    %4645 = vmatprep.mubr.bf16.mxu0 0
    %4646 = vmatmul.mubr.bf16.gmra.mxu0 %v4608
    %v4647 = vpop.f32.mrf.mxu0
    %v4648 = vadd.f32 0.0, %v4647
    %v4649 = vpop.f32.mrf.mxu0
    %v4650 = vpop.f32.mrf.mxu0
    %v4651 = vadd.f32 0.0, %v4650
    %v4652 = vpop.f32.mrf.mxu0
    %4653 = vdwg.mxu0
    %v4654 = vmul.f32 %v4648, 0.35355338
    %v4655 = vmul.f32 %v4651, 0.35355338
    %v4656 = vsel %vm2589, %v4654, -1e+30
    %v4657 = vsel %vm2590, %v4655, -1e+30
    %v4658 = vsel %vm2736, %v4656, -inf
    %4659 = vmax.xlane.f32.xlu0 %v4658
    %v4660 = vpop.xlane.xlu0 %4659
    %v4661 = vsel %vm2740, %v4657, -inf
    %4662 = vmax.xlane.f32.xlu0 %v4661
    %v4663 = vpop.xlane.xlu0 %4662
    %v4664 = vsub.f32 %v4656, %v4660
    %v4665 = vsub.f32 %v4657, %v4663
    %v4666 = vmul.f32 %v4664, 1.442695
    %v4667 = vpow.pop %v4666
    %v4668 = vmul.f32 %v4665, 1.442695
    %v4669 = vpow.pop %v4668
    %v4670 = vsel %vm2736, %v4667, 0.0
    %4671 = vadd.xlane.f32.xlu0 %v4670
    %v4672 = vpop.xlane.xlu0 %4671
    %v4673 = vsel %vm2740, %v4669, 0.0
    %4674 = vadd.xlane.f32.xlu0 %v4673
    %v4675 = vpop.xlane.xlu0 %4674
    %v4676 = vpack.c.bf16 %v4669, %v4667
    %4677 = vrot.lane.b32.xlu0 %v4603, 64
    %v4678 = vpop.permute.xlu0 %4677
    %v4680 = vsel %vm2736, %v4676, 0
    %v4683 = vand.u32 %v4678, %v2764
    %4685 = vmatprep.subr.bf16.mxu0 0
    %4686 = vmatpush1.bf16.msra.mxu0 0
    %4687 = vmatprep.subr.bf16.mxu0 0
    %4688 = vmatpush1.bf16.msra.mxu0 0
    %4689 = vmatprep.subr.bf16.mxu0 0
    %4690 = vmatpush1.bf16.msra.mxu0 0
    %4691 = vmatprep.subr.bf16.mxu0 0
    %4692 = vmatpush1.bf16.msra.mxu0 0
    %4693 = vmatprep.subr.bf16.mxu0 0
    %4694 = vmatpush1.bf16.msra.mxu0 0
    %4695 = vmatprep.subr.bf16.mxu0 0
    %4696 = vmatpush1.bf16.msra.mxu0 0
    %4697 = vmatprep.subr.bf16.mxu0 0
    %4698 = vmatpush1.bf16.msra.mxu0 0
    %4699 = vmatprep.subr.bf16.mxu0 0
    %4700 = vmatpush1.bf16.msra.mxu0 %v4683
    %4701 = vmatprep.subr.bf16.mxu0 0
    %4702 = vmatpush2.bf16.msra.mxu0 0
    %4703 = vmatprep.subr.bf16.mxu0 0
    %4704 = vmatpush2.bf16.msra.mxu0 0
    %4705 = vmatprep.subr.bf16.mxu0 0
    %4706 = vmatpush2.bf16.msra.mxu0 0
    %4707 = vmatprep.subr.bf16.mxu0 0
    %4708 = vmatpush2.bf16.msra.mxu0 0
    %4709 = vmatprep.subr.bf16.mxu0 0
    %4710 = vmatpush2.bf16.msra.mxu0 0
    %4711 = vmatprep.subr.bf16.mxu0 0
    %4712 = vmatpush2.bf16.msra.mxu0 0
    %4713 = vmatprep.subr.bf16.mxu0 0
    %4714 = vmatpush2.bf16.msra.mxu0 0
    %4715 = vmatprep.subr.bf16.mxu0 0
    %4716 = vmatpush2.bf16.msra.mxu0 0
    %4717 = vmatprep.mubr.bf16.mxu0 0
    %4718 = vmatmul.mubr.bf16.gmra.mxu0 %v4680
    %v4719 = vpop.f32.mrf.mxu0
    %v4720 = vadd.f32 0.0, %v4719
    %v4721 = vpop.f32.mrf.mxu0
    %v4722 = vpop.f32.mrf.mxu0
    %v4723 = vadd.f32 0.0, %v4722
    %v4724 = vpop.f32.mrf.mxu0
    %4725 = vdwg.mxu0
    %v4726 = vrcp.pop %v4672
    %v4727 = vrcp.pop %v4675
    %v4728 = vmul.f32 %v4720, %v4726
    %v4729 = vmul.f32 %v4723, %v4727
    %v4730 = vpack.c.bf16 %v4729, %v4728
    %v4731 = vpack.c.bf16 %v4597, %v4597
    %4732 = vrot.lane.b32.xlu0 %v4603, 120
    %v4733 = vpop.permute.xlu0 %4732
    %4734 = vrot.lane.b32.xlu0 %v4603, 88
    %v4735 = vpop.permute.xlu0 %4734
    %v4737 = vsel %vm143, %v4733, 0
    %v4740 = vsel %vm143, %v4735, 0
    %4742 = vmatprep.subr.bf16.mxu0 0
    %4743 = vmatpush1.bf16.xpose.msra.mxu0 0
    %4744 = vmatprep.subr.bf16.mxu0 0
    %4745 = vmatpush1.bf16.xpose.msra.mxu0 0
    %4746 = vmatprep.subr.bf16.mxu0 0
    %4747 = vmatpush1.bf16.xpose.msra.mxu0 0
    %4748 = vmatprep.subr.bf16.mxu0 0
    %4749 = vmatpush1.bf16.xpose.msra.mxu0 0
    %4750 = vmatprep.subr.bf16.mxu0 0
    %4751 = vmatpush1.bf16.xpose.msra.mxu0 0
    %4752 = vmatprep.subr.bf16.mxu0 0
    %4753 = vmatpush1.bf16.xpose.msra.mxu0 0
    %4754 = vmatprep.subr.bf16.mxu0 0
    %4755 = vmatpush1.bf16.xpose.msra.mxu0 0
    %4756 = vmatprep.subr.bf16.mxu0 0
    %4757 = vmatpush1.bf16.xpose.msra.mxu0 %v4740
    %4758 = vmatprep.subr.bf16.mxu0 0
    %4759 = vmatpush2.bf16.xpose.msra.mxu0 0
    %4760 = vmatprep.subr.bf16.mxu0 0
    %4761 = vmatpush2.bf16.xpose.msra.mxu0 0
    %4762 = vmatprep.subr.bf16.mxu0 0
    %4763 = vmatpush2.bf16.xpose.msra.mxu0 0
    %4764 = vmatprep.subr.bf16.mxu0 0
    %4765 = vmatpush2.bf16.xpose.msra.mxu0 0
    %4766 = vmatprep.subr.bf16.mxu0 0
    %4767 = vmatpush2.bf16.xpose.msra.mxu0 0
    %4768 = vmatprep.subr.bf16.mxu0 0
    %4769 = vmatpush2.bf16.xpose.msra.mxu0 0
    %4770 = vmatprep.subr.bf16.mxu0 0
    %4771 = vmatpush2.bf16.xpose.msra.mxu0 0
    %4772 = vmatprep.subr.bf16.mxu0 0
    %4773 = vmatpush2.bf16.xpose.msra.mxu0 0
    %4774 = vmatprep.mubr.bf16.mxu0 0
    %4775 = vmatmul.mubr.bf16.gmra.mxu0 %v4737
    %v4776 = vpop.f32.mrf.mxu0
    %v4777 = vadd.f32 0.0, %v4776
    %v4778 = vpop.f32.mrf.mxu0
    %v4779 = vpop.f32.mrf.mxu0
    %v4780 = vadd.f32 0.0, %v4779
    %v4781 = vpop.f32.mrf.mxu0
    %4782 = vdwg.mxu0
    %v4783 = vmul.f32 %v4777, 0.35355338
    %v4784 = vmul.f32 %v4780, 0.35355338
    %v4785 = vsel %vm2589, %v4783, -1e+30
    %v4786 = vsel %vm2590, %v4784, -1e+30
    %v4787 = vsel %vm2736, %v4785, -inf
    %4788 = vmax.xlane.f32.xlu0 %v4787
    %v4789 = vpop.xlane.xlu0 %4788
    %v4790 = vsel %vm2740, %v4786, -inf
    %4791 = vmax.xlane.f32.xlu0 %v4790
    %v4792 = vpop.xlane.xlu0 %4791
    %v4793 = vsub.f32 %v4785, %v4789
    %v4794 = vsub.f32 %v4786, %v4792
    %v4795 = vmul.f32 %v4793, 1.442695
    %v4796 = vpow.pop %v4795
    %v4797 = vmul.f32 %v4794, 1.442695
    %v4798 = vpow.pop %v4797
    %v4799 = vsel %vm2736, %v4796, 0.0
    %4800 = vadd.xlane.f32.xlu0 %v4799
    %v4801 = vpop.xlane.xlu0 %4800
    %v4802 = vsel %vm2740, %v4798, 0.0
    %4803 = vadd.xlane.f32.xlu0 %v4802
    %v4804 = vpop.xlane.xlu0 %4803
    %v4805 = vpack.c.bf16 %v4798, %v4796
    %4806 = vrot.lane.b32.xlu0 %v4603, 56
    %v4807 = vpop.permute.xlu0 %4806
    %v4809 = vsel %vm2736, %v4805, 0
    %v4812 = vand.u32 %v4807, %v2764
    %4814 = vmatprep.subr.bf16.mxu0 0
    %4815 = vmatpush1.bf16.msra.mxu0 0
    %4816 = vmatprep.subr.bf16.mxu0 0
    %4817 = vmatpush1.bf16.msra.mxu0 0
    %4818 = vmatprep.subr.bf16.mxu0 0
    %4819 = vmatpush1.bf16.msra.mxu0 0
    %4820 = vmatprep.subr.bf16.mxu0 0
    %4821 = vmatpush1.bf16.msra.mxu0 0
    %4822 = vmatprep.subr.bf16.mxu0 0
    %4823 = vmatpush1.bf16.msra.mxu0 0
    %4824 = vmatprep.subr.bf16.mxu0 0
    %4825 = vmatpush1.bf16.msra.mxu0 0
    %4826 = vmatprep.subr.bf16.mxu0 0
    %4827 = vmatpush1.bf16.msra.mxu0 0
    %4828 = vmatprep.subr.bf16.mxu0 0
    %4829 = vmatpush1.bf16.msra.mxu0 %v4812
    %4830 = vmatprep.subr.bf16.mxu0 0
    %4831 = vmatpush2.bf16.msra.mxu0 0
    %4832 = vmatprep.subr.bf16.mxu0 0
    %4833 = vmatpush2.bf16.msra.mxu0 0
    %4834 = vmatprep.subr.bf16.mxu0 0
    %4835 = vmatpush2.bf16.msra.mxu0 0
    %4836 = vmatprep.subr.bf16.mxu0 0
    %4837 = vmatpush2.bf16.msra.mxu0 0
    %4838 = vmatprep.subr.bf16.mxu0 0
    %4839 = vmatpush2.bf16.msra.mxu0 0
    %4840 = vmatprep.subr.bf16.mxu0 0
    %4841 = vmatpush2.bf16.msra.mxu0 0
    %4842 = vmatprep.subr.bf16.mxu0 0
    %4843 = vmatpush2.bf16.msra.mxu0 0
    %4844 = vmatprep.subr.bf16.mxu0 0
    %4845 = vmatpush2.bf16.msra.mxu0 0
    %4846 = vmatprep.mubr.bf16.mxu0 0
    %4847 = vmatmul.mubr.bf16.gmra.mxu0 %v4809
    %v4848 = vpop.f32.mrf.mxu0
    %v4849 = vadd.f32 0.0, %v4848
    %v4850 = vpop.f32.mrf.mxu0
    %v4851 = vpop.f32.mrf.mxu0
    %v4852 = vadd.f32 0.0, %v4851
    %v4853 = vpop.f32.mrf.mxu0
    %4854 = vdwg.mxu0
    %v4855 = vrcp.pop %v4801
    %v4856 = vrcp.pop %v4804
    %v4857 = vmul.f32 %v4849, %v4855
    %v4858 = vmul.f32 %v4852, %v4856
    %v4859 = vpack.c.bf16 %v4858, %v4857
    %v4860 = vpack.c.bf16 %v4598, %v4598
    %v4862 = vsel %vm143, %v4859, 0
    %v4865 = vsel %vm2078, %v4860, 0
    %4867 = vmatprep.subr.bf16.mxu0 0
    %4868 = vmatpush1.bf16.msra.mxu0 0
    %4869 = vmatprep.subr.bf16.mxu0 0
    %4870 = vmatpush1.bf16.msra.mxu0 0
    %4871 = vmatprep.subr.bf16.mxu0 0
    %4872 = vmatpush1.bf16.msra.mxu0 0
    %4873 = vmatprep.subr.bf16.mxu0 0
    %4874 = vmatpush1.bf16.msra.mxu0 0
    %4875 = vmatprep.subr.bf16.mxu0 0
    %4876 = vmatpush1.bf16.msra.mxu0 0
    %4877 = vmatprep.subr.bf16.mxu0 0
    %4878 = vmatpush1.bf16.msra.mxu0 0
    %4879 = vmatprep.subr.bf16.mxu0 0
    %4880 = vmatpush1.bf16.msra.mxu0 0
    %4881 = vmatprep.subr.bf16.mxu0 0
    %4882 = vmatpush1.bf16.msra.mxu0 %v4865
    %4883 = vmatprep.subr.bf16.mxu0 0
    %4884 = vmatpush2.bf16.msra.mxu0 0
    %4885 = vmatprep.subr.bf16.mxu0 0
    %4886 = vmatpush2.bf16.msra.mxu0 0
    %4887 = vmatprep.subr.bf16.mxu0 0
    %4888 = vmatpush2.bf16.msra.mxu0 0
    %4889 = vmatprep.subr.bf16.mxu0 0
    %4890 = vmatpush2.bf16.msra.mxu0 0
    %4891 = vmatprep.subr.bf16.mxu0 0
    %4892 = vmatpush2.bf16.msra.mxu0 0
    %4893 = vmatprep.subr.bf16.mxu0 0
    %4894 = vmatpush2.bf16.msra.mxu0 0
    %4895 = vmatprep.subr.bf16.mxu0 0
    %4896 = vmatpush2.bf16.msra.mxu0 0
    %4897 = vmatprep.subr.bf16.mxu0 0
    %4898 = vmatpush2.bf16.msra.mxu0 0
    %4899 = vmatprep.mubr.bf16.mxu0 0
    %4900 = vmatmul.mubr.bf16.gmra.mxu0 %v4862
    %v4901 = vpop.f32.mrf.mxu0
    %v4902 = vadd.f32 0.0, %v4901
    %v4903 = vpop.f32.mrf.mxu0
    %v4904 = vpop.f32.mrf.mxu0
    %v4905 = vadd.f32 0.0, %v4904
    %v4906 = vpop.f32.mrf.mxu0
    %4907 = vdwg.mxu0
    %v4909 = vsel %vm143, %v4730, 0
    %v4912 = vsel %vm2078, %v4731, 0
    %4914 = vmatprep.subr.bf16.mxu0 0
    %4915 = vmatpush1.bf16.msra.mxu0 0
    %4916 = vmatprep.subr.bf16.mxu0 0
    %4917 = vmatpush1.bf16.msra.mxu0 0
    %4918 = vmatprep.subr.bf16.mxu0 0
    %4919 = vmatpush1.bf16.msra.mxu0 0
    %4920 = vmatprep.subr.bf16.mxu0 0
    %4921 = vmatpush1.bf16.msra.mxu0 0
    %4922 = vmatprep.subr.bf16.mxu0 0
    %4923 = vmatpush1.bf16.msra.mxu0 0
    %4924 = vmatprep.subr.bf16.mxu0 0
    %4925 = vmatpush1.bf16.msra.mxu0 0
    %4926 = vmatprep.subr.bf16.mxu0 0
    %4927 = vmatpush1.bf16.msra.mxu0 0
    %4928 = vmatprep.subr.bf16.mxu0 0
    %4929 = vmatpush1.bf16.msra.mxu0 %v4912
    %4930 = vmatprep.subr.bf16.mxu0 0
    %4931 = vmatpush2.bf16.msra.mxu0 0
    %4932 = vmatprep.subr.bf16.mxu0 0
    %4933 = vmatpush2.bf16.msra.mxu0 0
    %4934 = vmatprep.subr.bf16.mxu0 0
    %4935 = vmatpush2.bf16.msra.mxu0 0
    %4936 = vmatprep.subr.bf16.mxu0 0
    %4937 = vmatpush2.bf16.msra.mxu0 0
    %4938 = vmatprep.subr.bf16.mxu0 0
    %4939 = vmatpush2.bf16.msra.mxu0 0
    %4940 = vmatprep.subr.bf16.mxu0 0
    %4941 = vmatpush2.bf16.msra.mxu0 0
    %4942 = vmatprep.subr.bf16.mxu0 0
    %4943 = vmatpush2.bf16.msra.mxu0 0
    %4944 = vmatprep.subr.bf16.mxu0 0
    %4945 = vmatpush2.bf16.msra.mxu0 0
    %4946 = vmatprep.mubr.bf16.mxu0 0
    %4947 = vmatmul.mubr.bf16.gmra.mxu0 %v4909
    %v4948 = vpop.f32.mrf.mxu0
    %v4949 = vadd.f32 %v4902, %v4948
    %v4950 = vpop.f32.mrf.mxu0
    %v4951 = vpop.f32.mrf.mxu0
    %v4952 = vadd.f32 %v4905, %v4951
    %v4953 = vpop.f32.mrf.mxu0
    %4954 = vdwg.mxu0
    %4955 = vrot.lane.b32.xlu0 %v4603, 112
    %v4956 = vpop.permute.xlu0 %4955
    %4957 = vrot.lane.b32.xlu0 %v4603, 80
    %v4958 = vpop.permute.xlu0 %4957
    %v4960 = vsel %vm143, %v4956, 0
    %v4963 = vsel %vm143, %v4958, 0
    %4965 = vmatprep.subr.bf16.mxu0 0
    %4966 = vmatpush1.bf16.xpose.msra.mxu0 0
    %4967 = vmatprep.subr.bf16.mxu0 0
    %4968 = vmatpush1.bf16.xpose.msra.mxu0 0
    %4969 = vmatprep.subr.bf16.mxu0 0
    %4970 = vmatpush1.bf16.xpose.msra.mxu0 0
    %4971 = vmatprep.subr.bf16.mxu0 0
    %4972 = vmatpush1.bf16.xpose.msra.mxu0 0
    %4973 = vmatprep.subr.bf16.mxu0 0
    %4974 = vmatpush1.bf16.xpose.msra.mxu0 0
    %4975 = vmatprep.subr.bf16.mxu0 0
    %4976 = vmatpush1.bf16.xpose.msra.mxu0 0
    %4977 = vmatprep.subr.bf16.mxu0 0
    %4978 = vmatpush1.bf16.xpose.msra.mxu0 0
    %4979 = vmatprep.subr.bf16.mxu0 0
    %4980 = vmatpush1.bf16.xpose.msra.mxu0 %v4963
    %4981 = vmatprep.subr.bf16.mxu0 0
    %4982 = vmatpush2.bf16.xpose.msra.mxu0 0
    %4983 = vmatprep.subr.bf16.mxu0 0
    %4984 = vmatpush2.bf16.xpose.msra.mxu0 0
    %4985 = vmatprep.subr.bf16.mxu0 0
    %4986 = vmatpush2.bf16.xpose.msra.mxu0 0
    %4987 = vmatprep.subr.bf16.mxu0 0
    %4988 = vmatpush2.bf16.xpose.msra.mxu0 0
    %4989 = vmatprep.subr.bf16.mxu0 0
    %4990 = vmatpush2.bf16.xpose.msra.mxu0 0
    %4991 = vmatprep.subr.bf16.mxu0 0
    %4992 = vmatpush2.bf16.xpose.msra.mxu0 0
    %4993 = vmatprep.subr.bf16.mxu0 0
    %4994 = vmatpush2.bf16.xpose.msra.mxu0 0
    %4995 = vmatprep.subr.bf16.mxu0 0
    %4996 = vmatpush2.bf16.xpose.msra.mxu0 0
    %4997 = vmatprep.mubr.bf16.mxu0 0
    %4998 = vmatmul.mubr.bf16.gmra.mxu0 %v4960
    %v4999 = vpop.f32.mrf.mxu0
    %v5000 = vadd.f32 0.0, %v4999
    %v5001 = vpop.f32.mrf.mxu0
    %v5002 = vpop.f32.mrf.mxu0
    %v5003 = vadd.f32 0.0, %v5002
    %v5004 = vpop.f32.mrf.mxu0
    %5005 = vdwg.mxu0
    %v5006 = vmul.f32 %v5000, 0.35355338
    %v5007 = vmul.f32 %v5003, 0.35355338
    %v5008 = vsel %vm2589, %v5006, -1e+30
    %v5009 = vsel %vm2590, %v5007, -1e+30
    %v5010 = vsel %vm2736, %v5008, -inf
    %5011 = vmax.xlane.f32.xlu0 %v5010
    %v5012 = vpop.xlane.xlu0 %5011
    %v5013 = vsel %vm2740, %v5009, -inf
    %5014 = vmax.xlane.f32.xlu0 %v5013
    %v5015 = vpop.xlane.xlu0 %5014
    %v5016 = vsub.f32 %v5008, %v5012
    %v5017 = vsub.f32 %v5009, %v5015
    %v5018 = vmul.f32 %v5016, 1.442695
    %v5019 = vpow.pop %v5018
    %v5020 = vmul.f32 %v5017, 1.442695
    %v5021 = vpow.pop %v5020
    %v5022 = vsel %vm2736, %v5019, 0.0
    %5023 = vadd.xlane.f32.xlu0 %v5022
    %v5024 = vpop.xlane.xlu0 %5023
    %v5025 = vsel %vm2740, %v5021, 0.0
    %5026 = vadd.xlane.f32.xlu0 %v5025
    %v5027 = vpop.xlane.xlu0 %5026
    %v5028 = vpack.c.bf16 %v5021, %v5019
    %5029 = vrot.lane.b32.xlu0 %v4603, 48
    %v5030 = vpop.permute.xlu0 %5029
    %v5032 = vsel %vm2736, %v5028, 0
    %v5035 = vand.u32 %v5030, %v2764
    %5037 = vmatprep.subr.bf16.mxu0 0
    %5038 = vmatpush1.bf16.msra.mxu0 0
    %5039 = vmatprep.subr.bf16.mxu0 0
    %5040 = vmatpush1.bf16.msra.mxu0 0
    %5041 = vmatprep.subr.bf16.mxu0 0
    %5042 = vmatpush1.bf16.msra.mxu0 0
    %5043 = vmatprep.subr.bf16.mxu0 0
    %5044 = vmatpush1.bf16.msra.mxu0 0
    %5045 = vmatprep.subr.bf16.mxu0 0
    %5046 = vmatpush1.bf16.msra.mxu0 0
    %5047 = vmatprep.subr.bf16.mxu0 0
    %5048 = vmatpush1.bf16.msra.mxu0 0
    %5049 = vmatprep.subr.bf16.mxu0 0
    %5050 = vmatpush1.bf16.msra.mxu0 0
    %5051 = vmatprep.subr.bf16.mxu0 0
    %5052 = vmatpush1.bf16.msra.mxu0 %v5035
    %5053 = vmatprep.subr.bf16.mxu0 0
    %5054 = vmatpush2.bf16.msra.mxu0 0
    %5055 = vmatprep.subr.bf16.mxu0 0
    %5056 = vmatpush2.bf16.msra.mxu0 0
    %5057 = vmatprep.subr.bf16.mxu0 0
    %5058 = vmatpush2.bf16.msra.mxu0 0
    %5059 = vmatprep.subr.bf16.mxu0 0
    %5060 = vmatpush2.bf16.msra.mxu0 0
    %5061 = vmatprep.subr.bf16.mxu0 0
    %5062 = vmatpush2.bf16.msra.mxu0 0
    %5063 = vmatprep.subr.bf16.mxu0 0
    %5064 = vmatpush2.bf16.msra.mxu0 0
    %5065 = vmatprep.subr.bf16.mxu0 0
    %5066 = vmatpush2.bf16.msra.mxu0 0
    %5067 = vmatprep.subr.bf16.mxu0 0
    %5068 = vmatpush2.bf16.msra.mxu0 0
    %5069 = vmatprep.mubr.bf16.mxu0 0
    %5070 = vmatmul.mubr.bf16.gmra.mxu0 %v5032
    %v5071 = vpop.f32.mrf.mxu0
    %v5072 = vadd.f32 0.0, %v5071
    %v5073 = vpop.f32.mrf.mxu0
    %v5074 = vpop.f32.mrf.mxu0
    %v5075 = vadd.f32 0.0, %v5074
    %v5076 = vpop.f32.mrf.mxu0
    %5077 = vdwg.mxu0
    %v5078 = vrcp.pop %v5024
    %v5079 = vrcp.pop %v5027
    %v5080 = vmul.f32 %v5072, %v5078
    %v5081 = vmul.f32 %v5075, %v5079
    %v5082 = vpack.c.bf16 %v5081, %v5080
    %v5083 = vpack.c.bf16 %v4599, %v4599
    %v5085 = vsel %vm143, %v5082, 0
    %v5088 = vsel %vm2078, %v5083, 0
    %5090 = vmatprep.subr.bf16.mxu0 0
    %5091 = vmatpush1.bf16.msra.mxu0 0
    %5092 = vmatprep.subr.bf16.mxu0 0
    %5093 = vmatpush1.bf16.msra.mxu0 0
    %5094 = vmatprep.subr.bf16.mxu0 0
    %5095 = vmatpush1.bf16.msra.mxu0 0
    %5096 = vmatprep.subr.bf16.mxu0 0
    %5097 = vmatpush1.bf16.msra.mxu0 0
    %5098 = vmatprep.subr.bf16.mxu0 0
    %5099 = vmatpush1.bf16.msra.mxu0 0
    %5100 = vmatprep.subr.bf16.mxu0 0
    %5101 = vmatpush1.bf16.msra.mxu0 0
    %5102 = vmatprep.subr.bf16.mxu0 0
    %5103 = vmatpush1.bf16.msra.mxu0 0
    %5104 = vmatprep.subr.bf16.mxu0 0
    %5105 = vmatpush1.bf16.msra.mxu0 %v5088
    %5106 = vmatprep.subr.bf16.mxu0 0
    %5107 = vmatpush2.bf16.msra.mxu0 0
    %5108 = vmatprep.subr.bf16.mxu0 0
    %5109 = vmatpush2.bf16.msra.mxu0 0
    %5110 = vmatprep.subr.bf16.mxu0 0
    %5111 = vmatpush2.bf16.msra.mxu0 0
    %5112 = vmatprep.subr.bf16.mxu0 0
    %5113 = vmatpush2.bf16.msra.mxu0 0
    %5114 = vmatprep.subr.bf16.mxu0 0
    %5115 = vmatpush2.bf16.msra.mxu0 0
    %5116 = vmatprep.subr.bf16.mxu0 0
    %5117 = vmatpush2.bf16.msra.mxu0 0
    %5118 = vmatprep.subr.bf16.mxu0 0
    %5119 = vmatpush2.bf16.msra.mxu0 0
    %5120 = vmatprep.subr.bf16.mxu0 0
    %5121 = vmatpush2.bf16.msra.mxu0 0
    %5122 = vmatprep.mubr.bf16.mxu0 0
    %5123 = vmatmul.mubr.bf16.gmra.mxu0 %v5085
    %v5124 = vpop.f32.mrf.mxu0
    %v5125 = vadd.f32 0.0, %v5124
    %v5126 = vpop.f32.mrf.mxu0
    %v5127 = vpop.f32.mrf.mxu0
    %v5128 = vadd.f32 0.0, %v5127
    %v5129 = vpop.f32.mrf.mxu0
    %5130 = vdwg.mxu0
    %v5131 = vadd.f32 %v4949, %v5125
    %v5132 = vadd.f32 %v4952, %v5128
    %5133 = vrot.lane.b32.xlu0 %v4603, 104
    %v5134 = vpop.permute.xlu0 %5133
    %5135 = vrot.lane.b32.xlu0 %v4603, 72
    %v5136 = vpop.permute.xlu0 %5135
    %v5138 = vsel %vm143, %v5134, 0
    %v5141 = vsel %vm143, %v5136, 0
    %5143 = vmatprep.subr.bf16.mxu0 0
    %5144 = vmatpush1.bf16.xpose.msra.mxu0 0
    %5145 = vmatprep.subr.bf16.mxu0 0
    %5146 = vmatpush1.bf16.xpose.msra.mxu0 0
    %5147 = vmatprep.subr.bf16.mxu0 0
    %5148 = vmatpush1.bf16.xpose.msra.mxu0 0
    %5149 = vmatprep.subr.bf16.mxu0 0
    %5150 = vmatpush1.bf16.xpose.msra.mxu0 0
    %5151 = vmatprep.subr.bf16.mxu0 0
    %5152 = vmatpush1.bf16.xpose.msra.mxu0 0
    %5153 = vmatprep.subr.bf16.mxu0 0
    %5154 = vmatpush1.bf16.xpose.msra.mxu0 0
    %5155 = vmatprep.subr.bf16.mxu0 0
    %5156 = vmatpush1.bf16.xpose.msra.mxu0 0
    %5157 = vmatprep.subr.bf16.mxu0 0
    %5158 = vmatpush1.bf16.xpose.msra.mxu0 %v5141
    %5159 = vmatprep.subr.bf16.mxu0 0
    %5160 = vmatpush2.bf16.xpose.msra.mxu0 0
    %5161 = vmatprep.subr.bf16.mxu0 0
    %5162 = vmatpush2.bf16.xpose.msra.mxu0 0
    %5163 = vmatprep.subr.bf16.mxu0 0
    %5164 = vmatpush2.bf16.xpose.msra.mxu0 0
    %5165 = vmatprep.subr.bf16.mxu0 0
    %5166 = vmatpush2.bf16.xpose.msra.mxu0 0
    %5167 = vmatprep.subr.bf16.mxu0 0
    %5168 = vmatpush2.bf16.xpose.msra.mxu0 0
    %5169 = vmatprep.subr.bf16.mxu0 0
    %5170 = vmatpush2.bf16.xpose.msra.mxu0 0
    %5171 = vmatprep.subr.bf16.mxu0 0
    %5172 = vmatpush2.bf16.xpose.msra.mxu0 0
    %5173 = vmatprep.subr.bf16.mxu0 0
    %5174 = vmatpush2.bf16.xpose.msra.mxu0 0
    %5175 = vmatprep.mubr.bf16.mxu0 0
    %5176 = vmatmul.mubr.bf16.gmra.mxu0 %v5138
    %v5177 = vpop.f32.mrf.mxu0
    %v5178 = vadd.f32 0.0, %v5177
    %v5179 = vpop.f32.mrf.mxu0
    %v5180 = vpop.f32.mrf.mxu0
    %v5181 = vadd.f32 0.0, %v5180
    %v5182 = vpop.f32.mrf.mxu0
    %5183 = vdwg.mxu0
    %v5184 = vmul.f32 %v5178, 0.35355338
    %v5185 = vmul.f32 %v5181, 0.35355338
    %v5186 = vsel %vm2589, %v5184, -1e+30
    %v5187 = vsel %vm2590, %v5185, -1e+30
    %v5188 = vsel %vm2736, %v5186, -inf
    %5189 = vmax.xlane.f32.xlu0 %v5188
    %v5190 = vpop.xlane.xlu0 %5189
    %v5191 = vsel %vm2740, %v5187, -inf
    %5192 = vmax.xlane.f32.xlu0 %v5191
    %v5193 = vpop.xlane.xlu0 %5192
    %v5194 = vsub.f32 %v5186, %v5190
    %v5195 = vsub.f32 %v5187, %v5193
    %v5196 = vmul.f32 %v5194, 1.442695
    %v5197 = vpow.pop %v5196
    %v5198 = vmul.f32 %v5195, 1.442695
    %v5199 = vpow.pop %v5198
    %v5200 = vsel %vm2736, %v5197, 0.0
    %5201 = vadd.xlane.f32.xlu0 %v5200
    %v5202 = vpop.xlane.xlu0 %5201
    %v5203 = vsel %vm2740, %v5199, 0.0
    %5204 = vadd.xlane.f32.xlu0 %v5203
    %v5205 = vpop.xlane.xlu0 %5204
    %v5206 = vpack.c.bf16 %v5199, %v5197
    %5207 = vrot.lane.b32.xlu0 %v4603, 40
    %v5208 = vpop.permute.xlu0 %5207
    %v5210 = vsel %vm2736, %v5206, 0
    %v5213 = vand.u32 %v5208, %v2764
    %5215 = vmatprep.subr.bf16.mxu0 0
    %5216 = vmatpush1.bf16.msra.mxu0 0
    %5217 = vmatprep.subr.bf16.mxu0 0
    %5218 = vmatpush1.bf16.msra.mxu0 0
    %5219 = vmatprep.subr.bf16.mxu0 0
    %5220 = vmatpush1.bf16.msra.mxu0 0
    %5221 = vmatprep.subr.bf16.mxu0 0
    %5222 = vmatpush1.bf16.msra.mxu0 0
    %5223 = vmatprep.subr.bf16.mxu0 0
    %5224 = vmatpush1.bf16.msra.mxu0 0
    %5225 = vmatprep.subr.bf16.mxu0 0
    %5226 = vmatpush1.bf16.msra.mxu0 0
    %5227 = vmatprep.subr.bf16.mxu0 0
    %5228 = vmatpush1.bf16.msra.mxu0 0
    %5229 = vmatprep.subr.bf16.mxu0 0
    %5230 = vmatpush1.bf16.msra.mxu0 %v5213
    %5231 = vmatprep.subr.bf16.mxu0 0
    %5232 = vmatpush2.bf16.msra.mxu0 0
    %5233 = vmatprep.subr.bf16.mxu0 0
    %5234 = vmatpush2.bf16.msra.mxu0 0
    %5235 = vmatprep.subr.bf16.mxu0 0
    %5236 = vmatpush2.bf16.msra.mxu0 0
    %5237 = vmatprep.subr.bf16.mxu0 0
    %5238 = vmatpush2.bf16.msra.mxu0 0
    %5239 = vmatprep.subr.bf16.mxu0 0
    %5240 = vmatpush2.bf16.msra.mxu0 0
    %5241 = vmatprep.subr.bf16.mxu0 0
    %5242 = vmatpush2.bf16.msra.mxu0 0
    %5243 = vmatprep.subr.bf16.mxu0 0
    %5244 = vmatpush2.bf16.msra.mxu0 0
    %5245 = vmatprep.subr.bf16.mxu0 0
    %5246 = vmatpush2.bf16.msra.mxu0 0
    %5247 = vmatprep.mubr.bf16.mxu0 0
    %5248 = vmatmul.mubr.bf16.gmra.mxu0 %v5210
    %v5249 = vpop.f32.mrf.mxu0
    %v5250 = vadd.f32 0.0, %v5249
    %v5251 = vpop.f32.mrf.mxu0
    %v5252 = vpop.f32.mrf.mxu0
    %v5253 = vadd.f32 0.0, %v5252
    %v5254 = vpop.f32.mrf.mxu0
    %5255 = vdwg.mxu0
    %v5256 = vrcp.pop %v5202
    %v5257 = vrcp.pop %v5205
    %v5258 = vmul.f32 %v5250, %v5256
    %v5259 = vmul.f32 %v5253, %v5257
    %v5260 = vpack.c.bf16 %v5259, %v5258
    %v5261 = vpack.c.bf16 %v4600, %v4600
    %v5263 = vsel %vm143, %v5260, 0
    %v5266 = vsel %vm2078, %v5261, 0
    %5268 = vmatprep.subr.bf16.mxu0 0
    %5269 = vmatpush1.bf16.msra.mxu0 0
    %5270 = vmatprep.subr.bf16.mxu0 0
    %5271 = vmatpush1.bf16.msra.mxu0 0
    %5272 = vmatprep.subr.bf16.mxu0 0
    %5273 = vmatpush1.bf16.msra.mxu0 0
    %5274 = vmatprep.subr.bf16.mxu0 0
    %5275 = vmatpush1.bf16.msra.mxu0 0
    %5276 = vmatprep.subr.bf16.mxu0 0
    %5277 = vmatpush1.bf16.msra.mxu0 0
    %5278 = vmatprep.subr.bf16.mxu0 0
    %5279 = vmatpush1.bf16.msra.mxu0 0
    %5280 = vmatprep.subr.bf16.mxu0 0
    %5281 = vmatpush1.bf16.msra.mxu0 0
    %5282 = vmatprep.subr.bf16.mxu0 0
    %5283 = vmatpush1.bf16.msra.mxu0 %v5266
    %5284 = vmatprep.subr.bf16.mxu0 0
    %5285 = vmatpush2.bf16.msra.mxu0 0
    %5286 = vmatprep.subr.bf16.mxu0 0
    %5287 = vmatpush2.bf16.msra.mxu0 0
    %5288 = vmatprep.subr.bf16.mxu0 0
    %5289 = vmatpush2.bf16.msra.mxu0 0
    %5290 = vmatprep.subr.bf16.mxu0 0
    %5291 = vmatpush2.bf16.msra.mxu0 0
    %5292 = vmatprep.subr.bf16.mxu0 0
    %5293 = vmatpush2.bf16.msra.mxu0 0
    %5294 = vmatprep.subr.bf16.mxu0 0
    %5295 = vmatpush2.bf16.msra.mxu0 0
    %5296 = vmatprep.subr.bf16.mxu0 0
    %5297 = vmatpush2.bf16.msra.mxu0 0
    %5298 = vmatprep.subr.bf16.mxu0 0
    %5299 = vmatpush2.bf16.msra.mxu0 0
    %5300 = vmatprep.mubr.bf16.mxu0 0
    %5301 = vmatmul.mubr.bf16.gmra.mxu0 %v5263
    %v5302 = vpop.f32.mrf.mxu0
    %v5303 = vadd.f32 0.0, %v5302
    %v5304 = vpop.f32.mrf.mxu0
    %v5305 = vpop.f32.mrf.mxu0
    %v5306 = vadd.f32 0.0, %v5305
    %v5307 = vpop.f32.mrf.mxu0
    %5308 = vdwg.mxu0
    %v5309 = vadd.f32 %v5131, %v5303
    %v5310 = vadd.f32 %v5132, %v5306
    %5311 = vst.msk [vmem:[#allocation4] sm:$0xff] %vm605, %v5309
    %5312 = vst.msk [vmem:[#allocation4 + $0x8] sm:$0x1] %vm2575, %v5310
    %v5313 = vld [vmem:[#allocation3 + $0x9] sm:$0xff]
    %v5314 = vld [vmem:[#allocation3 + $0x11] sm:$0x1]
    %v5315 = vpack.c.bf16 %v5314, %v5313
    %5317 = vrot.lane.b32.xlu0 %v5315, 96
    %v5318 = vpop.permute.xlu0 %5317
    %v5320 = vsel %vm143, %v5315, 0
    %v5323 = vsel %vm143, %v5318, 0
    %5325 = vmatprep.subr.bf16.mxu0 0
    %5326 = vmatpush1.bf16.xpose.msra.mxu0 0
    %5327 = vmatprep.subr.bf16.mxu0 0
    %5328 = vmatpush1.bf16.xpose.msra.mxu0 0
    %5329 = vmatprep.subr.bf16.mxu0 0
    %5330 = vmatpush1.bf16.xpose.msra.mxu0 0
    %5331 = vmatprep.subr.bf16.mxu0 0
    %5332 = vmatpush1.bf16.xpose.msra.mxu0 0
    %5333 = vmatprep.subr.bf16.mxu0 0
    %5334 = vmatpush1.bf16.xpose.msra.mxu0 0
    %5335 = vmatprep.subr.bf16.mxu0 0
    %5336 = vmatpush1.bf16.xpose.msra.mxu0 0
    %5337 = vmatprep.subr.bf16.mxu0 0
    %5338 = vmatpush1.bf16.xpose.msra.mxu0 0
    %5339 = vmatprep.subr.bf16.mxu0 0
    %5340 = vmatpush1.bf16.xpose.msra.mxu0 %v5323
    %5341 = vmatprep.subr.bf16.mxu0 0
    %5342 = vmatpush2.bf16.xpose.msra.mxu0 0
    %5343 = vmatprep.subr.bf16.mxu0 0
    %5344 = vmatpush2.bf16.xpose.msra.mxu0 0
    %5345 = vmatprep.subr.bf16.mxu0 0
    %5346 = vmatpush2.bf16.xpose.msra.mxu0 0
    %5347 = vmatprep.subr.bf16.mxu0 0
    %5348 = vmatpush2.bf16.xpose.msra.mxu0 0
    %5349 = vmatprep.subr.bf16.mxu0 0
    %5350 = vmatpush2.bf16.xpose.msra.mxu0 0
    %5351 = vmatprep.subr.bf16.mxu0 0
    %5352 = vmatpush2.bf16.xpose.msra.mxu0 0
    %5353 = vmatprep.subr.bf16.mxu0 0
    %5354 = vmatpush2.bf16.xpose.msra.mxu0 0
    %5355 = vmatprep.subr.bf16.mxu0 0
    %5356 = vmatpush2.bf16.xpose.msra.mxu0 0
    %5357 = vmatprep.mubr.bf16.mxu0 0
    %5358 = vmatmul.mubr.bf16.gmra.mxu0 %v5320
    %v5359 = vpop.f32.mrf.mxu0
    %v5360 = vadd.f32 0.0, %v5359
    %v5361 = vpop.f32.mrf.mxu0
    %v5362 = vpop.f32.mrf.mxu0
    %v5363 = vadd.f32 0.0, %v5362
    %v5364 = vpop.f32.mrf.mxu0
    %5365 = vdwg.mxu0
    %v5366 = vmul.f32 %v5360, 0.35355338
    %v5367 = vmul.f32 %v5363, 0.35355338
    %v5368 = vsel %vm2589, %v5366, -1e+30
    %v5369 = vsel %vm2590, %v5367, -1e+30
    %v5370 = vsel %vm2736, %v5368, -inf
    %5371 = vmax.xlane.f32.xlu0 %v5370
    %v5372 = vpop.xlane.xlu0 %5371
    %v5373 = vsel %vm2740, %v5369, -inf
    %5374 = vmax.xlane.f32.xlu0 %v5373
    %v5375 = vpop.xlane.xlu0 %5374
    %v5376 = vsub.f32 %v5368, %v5372
    %v5377 = vsub.f32 %v5369, %v5375
    %v5378 = vmul.f32 %v5376, 1.442695
    %v5379 = vpow.pop %v5378
    %v5380 = vmul.f32 %v5377, 1.442695
    %v5381 = vpow.pop %v5380
    %v5382 = vsel %vm2736, %v5379, 0.0
    %5383 = vadd.xlane.f32.xlu0 %v5382
    %v5384 = vpop.xlane.xlu0 %5383
    %v5385 = vsel %vm2740, %v5381, 0.0
    %5386 = vadd.xlane.f32.xlu0 %v5385
    %v5387 = vpop.xlane.xlu0 %5386
    %v5388 = vpack.c.bf16 %v5381, %v5379
    %5389 = vrot.lane.b32.xlu0 %v5315, 64
    %v5390 = vpop.permute.xlu0 %5389
    %v5392 = vsel %vm2736, %v5388, 0
    %v5395 = vand.u32 %v5390, %v2764
    %5397 = vmatprep.subr.bf16.mxu0 0
    %5398 = vmatpush1.bf16.msra.mxu0 0
    %5399 = vmatprep.subr.bf16.mxu0 0
    %5400 = vmatpush1.bf16.msra.mxu0 0
    %5401 = vmatprep.subr.bf16.mxu0 0
    %5402 = vmatpush1.bf16.msra.mxu0 0
    %5403 = vmatprep.subr.bf16.mxu0 0
    %5404 = vmatpush1.bf16.msra.mxu0 0
    %5405 = vmatprep.subr.bf16.mxu0 0
    %5406 = vmatpush1.bf16.msra.mxu0 0
    %5407 = vmatprep.subr.bf16.mxu0 0
    %5408 = vmatpush1.bf16.msra.mxu0 0
    %5409 = vmatprep.subr.bf16.mxu0 0
    %5410 = vmatpush1.bf16.msra.mxu0 0
    %5411 = vmatprep.subr.bf16.mxu0 0
    %5412 = vmatpush1.bf16.msra.mxu0 %v5395
    %5413 = vmatprep.subr.bf16.mxu0 0
    %5414 = vmatpush2.bf16.msra.mxu0 0
    %5415 = vmatprep.subr.bf16.mxu0 0
    %5416 = vmatpush2.bf16.msra.mxu0 0
    %5417 = vmatprep.subr.bf16.mxu0 0
    %5418 = vmatpush2.bf16.msra.mxu0 0
    %5419 = vmatprep.subr.bf16.mxu0 0
    %5420 = vmatpush2.bf16.msra.mxu0 0
    %5421 = vmatprep.subr.bf16.mxu0 0
    %5422 = vmatpush2.bf16.msra.mxu0 0
    %5423 = vmatprep.subr.bf16.mxu0 0
    %5424 = vmatpush2.bf16.msra.mxu0 0
    %5425 = vmatprep.subr.bf16.mxu0 0
    %5426 = vmatpush2.bf16.msra.mxu0 0
    %5427 = vmatprep.subr.bf16.mxu0 0
    %5428 = vmatpush2.bf16.msra.mxu0 0
    %5429 = vmatprep.mubr.bf16.mxu0 0
    %5430 = vmatmul.mubr.bf16.gmra.mxu0 %v5392
    %v5431 = vpop.f32.mrf.mxu0
    %v5432 = vadd.f32 0.0, %v5431
    %v5433 = vpop.f32.mrf.mxu0
    %v5434 = vpop.f32.mrf.mxu0
    %v5435 = vadd.f32 0.0, %v5434
    %v5436 = vpop.f32.mrf.mxu0
    %5437 = vdwg.mxu0
    %v5438 = vrcp.pop %v5384
    %v5439 = vrcp.pop %v5387
    %v5440 = vmul.f32 %v5432, %v5438
    %v5441 = vmul.f32 %v5435, %v5439
    %v5442 = vpack.c.bf16 %v5441, %v5440
    %5443 = vrot.lane.b32.xlu0 %v5315, 120
    %v5444 = vpop.permute.xlu0 %5443
    %5445 = vrot.lane.b32.xlu0 %v5315, 88
    %v5446 = vpop.permute.xlu0 %5445
    %v5448 = vsel %vm143, %v5444, 0
    %v5451 = vsel %vm143, %v5446, 0
    %5453 = vmatprep.subr.bf16.mxu0 0
    %5454 = vmatpush1.bf16.xpose.msra.mxu0 0
    %5455 = vmatprep.subr.bf16.mxu0 0
    %5456 = vmatpush1.bf16.xpose.msra.mxu0 0
    %5457 = vmatprep.subr.bf16.mxu0 0
    %5458 = vmatpush1.bf16.xpose.msra.mxu0 0
    %5459 = vmatprep.subr.bf16.mxu0 0
    %5460 = vmatpush1.bf16.xpose.msra.mxu0 0
    %5461 = vmatprep.subr.bf16.mxu0 0
    %5462 = vmatpush1.bf16.xpose.msra.mxu0 0
    %5463 = vmatprep.subr.bf16.mxu0 0
    %5464 = vmatpush1.bf16.xpose.msra.mxu0 0
    %5465 = vmatprep.subr.bf16.mxu0 0
    %5466 = vmatpush1.bf16.xpose.msra.mxu0 0
    %5467 = vmatprep.subr.bf16.mxu0 0
    %5468 = vmatpush1.bf16.xpose.msra.mxu0 %v5451
    %5469 = vmatprep.subr.bf16.mxu0 0
    %5470 = vmatpush2.bf16.xpose.msra.mxu0 0
    %5471 = vmatprep.subr.bf16.mxu0 0
    %5472 = vmatpush2.bf16.xpose.msra.mxu0 0
    %5473 = vmatprep.subr.bf16.mxu0 0
    %5474 = vmatpush2.bf16.xpose.msra.mxu0 0
    %5475 = vmatprep.subr.bf16.mxu0 0
    %5476 = vmatpush2.bf16.xpose.msra.mxu0 0
    %5477 = vmatprep.subr.bf16.mxu0 0
    %5478 = vmatpush2.bf16.xpose.msra.mxu0 0
    %5479 = vmatprep.subr.bf16.mxu0 0
    %5480 = vmatpush2.bf16.xpose.msra.mxu0 0
    %5481 = vmatprep.subr.bf16.mxu0 0
    %5482 = vmatpush2.bf16.xpose.msra.mxu0 0
    %5483 = vmatprep.subr.bf16.mxu0 0
    %5484 = vmatpush2.bf16.xpose.msra.mxu0 0
    %5485 = vmatprep.mubr.bf16.mxu0 0
    %5486 = vmatmul.mubr.bf16.gmra.mxu0 %v5448
    %v5487 = vpop.f32.mrf.mxu0
    %v5488 = vadd.f32 0.0, %v5487
    %v5489 = vpop.f32.mrf.mxu0
    %v5490 = vpop.f32.mrf.mxu0
    %v5491 = vadd.f32 0.0, %v5490
    %v5492 = vpop.f32.mrf.mxu0
    %5493 = vdwg.mxu0
    %v5494 = vmul.f32 %v5488, 0.35355338
    %v5495 = vmul.f32 %v5491, 0.35355338
    %v5496 = vsel %vm2589, %v5494, -1e+30
    %v5497 = vsel %vm2590, %v5495, -1e+30
    %v5498 = vsel %vm2736, %v5496, -inf
    %5499 = vmax.xlane.f32.xlu0 %v5498
    %v5500 = vpop.xlane.xlu0 %5499
    %v5501 = vsel %vm2740, %v5497, -inf
    %5502 = vmax.xlane.f32.xlu0 %v5501
    %v5503 = vpop.xlane.xlu0 %5502
    %v5504 = vsub.f32 %v5496, %v5500
    %v5505 = vsub.f32 %v5497, %v5503
    %v5506 = vmul.f32 %v5504, 1.442695
    %v5507 = vpow.pop %v5506
    %v5508 = vmul.f32 %v5505, 1.442695
    %v5509 = vpow.pop %v5508
    %v5510 = vsel %vm2736, %v5507, 0.0
    %5511 = vadd.xlane.f32.xlu0 %v5510
    %v5512 = vpop.xlane.xlu0 %5511
    %v5513 = vsel %vm2740, %v5509, 0.0
    %5514 = vadd.xlane.f32.xlu0 %v5513
    %v5515 = vpop.xlane.xlu0 %5514
    %v5516 = vpack.c.bf16 %v5509, %v5507
    %5517 = vrot.lane.b32.xlu0 %v5315, 56
    %v5518 = vpop.permute.xlu0 %5517
    %v5520 = vsel %vm2736, %v5516, 0
    %v5523 = vand.u32 %v5518, %v2764
    %5525 = vmatprep.subr.bf16.mxu0 0
    %5526 = vmatpush1.bf16.msra.mxu0 0
    %5527 = vmatprep.subr.bf16.mxu0 0
    %5528 = vmatpush1.bf16.msra.mxu0 0
    %5529 = vmatprep.subr.bf16.mxu0 0
    %5530 = vmatpush1.bf16.msra.mxu0 0
    %5531 = vmatprep.subr.bf16.mxu0 0
    %5532 = vmatpush1.bf16.msra.mxu0 0
    %5533 = vmatprep.subr.bf16.mxu0 0
    %5534 = vmatpush1.bf16.msra.mxu0 0
    %5535 = vmatprep.subr.bf16.mxu0 0
    %5536 = vmatpush1.bf16.msra.mxu0 0
    %5537 = vmatprep.subr.bf16.mxu0 0
    %5538 = vmatpush1.bf16.msra.mxu0 0
    %5539 = vmatprep.subr.bf16.mxu0 0
    %5540 = vmatpush1.bf16.msra.mxu0 %v5523
    %5541 = vmatprep.subr.bf16.mxu0 0
    %5542 = vmatpush2.bf16.msra.mxu0 0
    %5543 = vmatprep.subr.bf16.mxu0 0
    %5544 = vmatpush2.bf16.msra.mxu0 0
    %5545 = vmatprep.subr.bf16.mxu0 0
    %5546 = vmatpush2.bf16.msra.mxu0 0
    %5547 = vmatprep.subr.bf16.mxu0 0
    %5548 = vmatpush2.bf16.msra.mxu0 0
    %5549 = vmatprep.subr.bf16.mxu0 0
    %5550 = vmatpush2.bf16.msra.mxu0 0
    %5551 = vmatprep.subr.bf16.mxu0 0
    %5552 = vmatpush2.bf16.msra.mxu0 0
    %5553 = vmatprep.subr.bf16.mxu0 0
    %5554 = vmatpush2.bf16.msra.mxu0 0
    %5555 = vmatprep.subr.bf16.mxu0 0
    %5556 = vmatpush2.bf16.msra.mxu0 0
    %5557 = vmatprep.mubr.bf16.mxu0 0
    %5558 = vmatmul.mubr.bf16.gmra.mxu0 %v5520
    %v5559 = vpop.f32.mrf.mxu0
    %v5560 = vadd.f32 0.0, %v5559
    %v5561 = vpop.f32.mrf.mxu0
    %v5562 = vpop.f32.mrf.mxu0
    %v5563 = vadd.f32 0.0, %v5562
    %v5564 = vpop.f32.mrf.mxu0
    %5565 = vdwg.mxu0
    %v5566 = vrcp.pop %v5512
    %v5567 = vrcp.pop %v5515
    %v5568 = vmul.f32 %v5560, %v5566
    %v5569 = vmul.f32 %v5563, %v5567
    %v5570 = vpack.c.bf16 %v5569, %v5568
    %v5572 = vsel %vm143, %v5570, 0
    %5574 = vmatprep.subr.bf16.mxu0 0
    %5575 = vmatpush1.bf16.msra.mxu0 0
    %5576 = vmatprep.subr.bf16.mxu0 0
    %5577 = vmatpush1.bf16.msra.mxu0 0
    %5578 = vmatprep.subr.bf16.mxu0 0
    %5579 = vmatpush1.bf16.msra.mxu0 0
    %5580 = vmatprep.subr.bf16.mxu0 0
    %5581 = vmatpush1.bf16.msra.mxu0 0
    %5582 = vmatprep.subr.bf16.mxu0 0
    %5583 = vmatpush1.bf16.msra.mxu0 0
    %5584 = vmatprep.subr.bf16.mxu0 0
    %5585 = vmatpush1.bf16.msra.mxu0 0
    %5586 = vmatprep.subr.bf16.mxu0 0
    %5587 = vmatpush1.bf16.msra.mxu0 0
    %5588 = vmatprep.subr.bf16.mxu0 0
    %5589 = vmatpush1.bf16.msra.mxu0 %v4865
    %5590 = vmatprep.subr.bf16.mxu0 0
    %5591 = vmatpush2.bf16.msra.mxu0 0
    %5592 = vmatprep.subr.bf16.mxu0 0
    %5593 = vmatpush2.bf16.msra.mxu0 0
    %5594 = vmatprep.subr.bf16.mxu0 0
    %5595 = vmatpush2.bf16.msra.mxu0 0
    %5596 = vmatprep.subr.bf16.mxu0 0
    %5597 = vmatpush2.bf16.msra.mxu0 0
    %5598 = vmatprep.subr.bf16.mxu0 0
    %5599 = vmatpush2.bf16.msra.mxu0 0
    %5600 = vmatprep.subr.bf16.mxu0 0
    %5601 = vmatpush2.bf16.msra.mxu0 0
    %5602 = vmatprep.subr.bf16.mxu0 0
    %5603 = vmatpush2.bf16.msra.mxu0 0
    %5604 = vmatprep.subr.bf16.mxu0 0
    %5605 = vmatpush2.bf16.msra.mxu0 0
    %5606 = vmatprep.mubr.bf16.mxu0 0
    %5607 = vmatmul.mubr.bf16.gmra.mxu0 %v5572
    %v5608 = vpop.f32.mrf.mxu0
    %v5609 = vadd.f32 0.0, %v5608
    %v5610 = vpop.f32.mrf.mxu0
    %v5611 = vpop.f32.mrf.mxu0
    %v5612 = vadd.f32 0.0, %v5611
    %v5613 = vpop.f32.mrf.mxu0
    %5614 = vdwg.mxu0
    %v5616 = vsel %vm143, %v5442, 0
    %5618 = vmatprep.subr.bf16.mxu0 0
    %5619 = vmatpush1.bf16.msra.mxu0 0
    %5620 = vmatprep.subr.bf16.mxu0 0
    %5621 = vmatpush1.bf16.msra.mxu0 0
    %5622 = vmatprep.subr.bf16.mxu0 0
    %5623 = vmatpush1.bf16.msra.mxu0 0
    %5624 = vmatprep.subr.bf16.mxu0 0
    %5625 = vmatpush1.bf16.msra.mxu0 0
    %5626 = vmatprep.subr.bf16.mxu0 0
    %5627 = vmatpush1.bf16.msra.mxu0 0
    %5628 = vmatprep.subr.bf16.mxu0 0
    %5629 = vmatpush1.bf16.msra.mxu0 0
    %5630 = vmatprep.subr.bf16.mxu0 0
    %5631 = vmatpush1.bf16.msra.mxu0 0
    %5632 = vmatprep.subr.bf16.mxu0 0
    %5633 = vmatpush1.bf16.msra.mxu0 %v4912
    %5634 = vmatprep.subr.bf16.mxu0 0
    %5635 = vmatpush2.bf16.msra.mxu0 0
    %5636 = vmatprep.subr.bf16.mxu0 0
    %5637 = vmatpush2.bf16.msra.mxu0 0
    %5638 = vmatprep.subr.bf16.mxu0 0
    %5639 = vmatpush2.bf16.msra.mxu0 0
    %5640 = vmatprep.subr.bf16.mxu0 0
    %5641 = vmatpush2.bf16.msra.mxu0 0
    %5642 = vmatprep.subr.bf16.mxu0 0
    %5643 = vmatpush2.bf16.msra.mxu0 0
    %5644 = vmatprep.subr.bf16.mxu0 0
    %5645 = vmatpush2.bf16.msra.mxu0 0
    %5646 = vmatprep.subr.bf16.mxu0 0
    %5647 = vmatpush2.bf16.msra.mxu0 0
    %5648 = vmatprep.subr.bf16.mxu0 0
    %5649 = vmatpush2.bf16.msra.mxu0 0
    %5650 = vmatprep.mubr.bf16.mxu0 0
    %5651 = vmatmul.mubr.bf16.gmra.mxu0 %v5616
    %v5652 = vpop.f32.mrf.mxu0
    %v5653 = vadd.f32 %v5609, %v5652
    %v5654 = vpop.f32.mrf.mxu0
    %v5655 = vpop.f32.mrf.mxu0
    %v5656 = vadd.f32 %v5612, %v5655
    %v5657 = vpop.f32.mrf.mxu0
    %5658 = vdwg.mxu0
    %5659 = vrot.lane.b32.xlu0 %v5315, 112
    %v5660 = vpop.permute.xlu0 %5659
    %5661 = vrot.lane.b32.xlu0 %v5315, 80
    %v5662 = vpop.permute.xlu0 %5661
    %v5664 = vsel %vm143, %v5660, 0
    %v5667 = vsel %vm143, %v5662, 0
    %5669 = vmatprep.subr.bf16.mxu0 0
    %5670 = vmatpush1.bf16.xpose.msra.mxu0 0
    %5671 = vmatprep.subr.bf16.mxu0 0
    %5672 = vmatpush1.bf16.xpose.msra.mxu0 0
    %5673 = vmatprep.subr.bf16.mxu0 0
    %5674 = vmatpush1.bf16.xpose.msra.mxu0 0
    %5675 = vmatprep.subr.bf16.mxu0 0
    %5676 = vmatpush1.bf16.xpose.msra.mxu0 0
    %5677 = vmatprep.subr.bf16.mxu0 0
    %5678 = vmatpush1.bf16.xpose.msra.mxu0 0
    %5679 = vmatprep.subr.bf16.mxu0 0
    %5680 = vmatpush1.bf16.xpose.msra.mxu0 0
    %5681 = vmatprep.subr.bf16.mxu0 0
    %5682 = vmatpush1.bf16.xpose.msra.mxu0 0
    %5683 = vmatprep.subr.bf16.mxu0 0
    %5684 = vmatpush1.bf16.xpose.msra.mxu0 %v5667
    %5685 = vmatprep.subr.bf16.mxu0 0
    %5686 = vmatpush2.bf16.xpose.msra.mxu0 0
    %5687 = vmatprep.subr.bf16.mxu0 0
    %5688 = vmatpush2.bf16.xpose.msra.mxu0 0
    %5689 = vmatprep.subr.bf16.mxu0 0
    %5690 = vmatpush2.bf16.xpose.msra.mxu0 0
    %5691 = vmatprep.subr.bf16.mxu0 0
    %5692 = vmatpush2.bf16.xpose.msra.mxu0 0
    %5693 = vmatprep.subr.bf16.mxu0 0
    %5694 = vmatpush2.bf16.xpose.msra.mxu0 0
    %5695 = vmatprep.subr.bf16.mxu0 0
    %5696 = vmatpush2.bf16.xpose.msra.mxu0 0
    %5697 = vmatprep.subr.bf16.mxu0 0
    %5698 = vmatpush2.bf16.xpose.msra.mxu0 0
    %5699 = vmatprep.subr.bf16.mxu0 0
    %5700 = vmatpush2.bf16.xpose.msra.mxu0 0
    %5701 = vmatprep.mubr.bf16.mxu0 0
    %5702 = vmatmul.mubr.bf16.gmra.mxu0 %v5664
    %v5703 = vpop.f32.mrf.mxu0
    %v5704 = vadd.f32 0.0, %v5703
    %v5705 = vpop.f32.mrf.mxu0
    %v5706 = vpop.f32.mrf.mxu0
    %v5707 = vadd.f32 0.0, %v5706
    %v5708 = vpop.f32.mrf.mxu0
    %5709 = vdwg.mxu0
    %v5710 = vmul.f32 %v5704, 0.35355338
    %v5711 = vmul.f32 %v5707, 0.35355338
    %v5712 = vsel %vm2589, %v5710, -1e+30
    %v5713 = vsel %vm2590, %v5711, -1e+30
    %v5714 = vsel %vm2736, %v5712, -inf
    %5715 = vmax.xlane.f32.xlu0 %v5714
    %v5716 = vpop.xlane.xlu0 %5715
    %v5717 = vsel %vm2740, %v5713, -inf
    %5718 = vmax.xlane.f32.xlu0 %v5717
    %v5719 = vpop.xlane.xlu0 %5718
    %v5720 = vsub.f32 %v5712, %v5716
    %v5721 = vsub.f32 %v5713, %v5719
    %v5722 = vmul.f32 %v5720, 1.442695
    %v5723 = vpow.pop %v5722
    %v5724 = vmul.f32 %v5721, 1.442695
    %v5725 = vpow.pop %v5724
    %v5726 = vsel %vm2736, %v5723, 0.0
    %5727 = vadd.xlane.f32.xlu0 %v5726
    %v5728 = vpop.xlane.xlu0 %5727
    %v5729 = vsel %vm2740, %v5725, 0.0
    %5730 = vadd.xlane.f32.xlu0 %v5729
    %v5731 = vpop.xlane.xlu0 %5730
    %v5732 = vpack.c.bf16 %v5725, %v5723
    %5733 = vrot.lane.b32.xlu0 %v5315, 48
    %v5734 = vpop.permute.xlu0 %5733
    %v5736 = vsel %vm2736, %v5732, 0
    %v5739 = vand.u32 %v5734, %v2764
    %5741 = vmatprep.subr.bf16.mxu0 0
    %5742 = vmatpush1.bf16.msra.mxu0 0
    %5743 = vmatprep.subr.bf16.mxu0 0
    %5744 = vmatpush1.bf16.msra.mxu0 0
    %5745 = vmatprep.subr.bf16.mxu0 0
    %5746 = vmatpush1.bf16.msra.mxu0 0
    %5747 = vmatprep.subr.bf16.mxu0 0
    %5748 = vmatpush1.bf16.msra.mxu0 0
    %5749 = vmatprep.subr.bf16.mxu0 0
    %5750 = vmatpush1.bf16.msra.mxu0 0
    %5751 = vmatprep.subr.bf16.mxu0 0
    %5752 = vmatpush1.bf16.msra.mxu0 0
    %5753 = vmatprep.subr.bf16.mxu0 0
    %5754 = vmatpush1.bf16.msra.mxu0 0
    %5755 = vmatprep.subr.bf16.mxu0 0
    %5756 = vmatpush1.bf16.msra.mxu0 %v5739
    %5757 = vmatprep.subr.bf16.mxu0 0
    %5758 = vmatpush2.bf16.msra.mxu0 0
    %5759 = vmatprep.subr.bf16.mxu0 0
    %5760 = vmatpush2.bf16.msra.mxu0 0
    %5761 = vmatprep.subr.bf16.mxu0 0
    %5762 = vmatpush2.bf16.msra.mxu0 0
    %5763 = vmatprep.subr.bf16.mxu0 0
    %5764 = vmatpush2.bf16.msra.mxu0 0
    %5765 = vmatprep.subr.bf16.mxu0 0
    %5766 = vmatpush2.bf16.msra.mxu0 0
    %5767 = vmatprep.subr.bf16.mxu0 0
    %5768 = vmatpush2.bf16.msra.mxu0 0
    %5769 = vmatprep.subr.bf16.mxu0 0
    %5770 = vmatpush2.bf16.msra.mxu0 0
    %5771 = vmatprep.subr.bf16.mxu0 0
    %5772 = vmatpush2.bf16.msra.mxu0 0
    %5773 = vmatprep.mubr.bf16.mxu0 0
    %5774 = vmatmul.mubr.bf16.gmra.mxu0 %v5736
    %v5775 = vpop.f32.mrf.mxu0
    %v5776 = vadd.f32 0.0, %v5775
    %v5777 = vpop.f32.mrf.mxu0
    %v5778 = vpop.f32.mrf.mxu0
    %v5779 = vadd.f32 0.0, %v5778
    %v5780 = vpop.f32.mrf.mxu0
    %5781 = vdwg.mxu0
    %v5782 = vrcp.pop %v5728
    %v5783 = vrcp.pop %v5731
    %v5784 = vmul.f32 %v5776, %v5782
    %v5785 = vmul.f32 %v5779, %v5783
    %v5786 = vpack.c.bf16 %v5785, %v5784
    %v5788 = vsel %vm143, %v5786, 0
    %5790 = vmatprep.subr.bf16.mxu0 0
    %5791 = vmatpush1.bf16.msra.mxu0 0
    %5792 = vmatprep.subr.bf16.mxu0 0
    %5793 = vmatpush1.bf16.msra.mxu0 0
    %5794 = vmatprep.subr.bf16.mxu0 0
    %5795 = vmatpush1.bf16.msra.mxu0 0
    %5796 = vmatprep.subr.bf16.mxu0 0
    %5797 = vmatpush1.bf16.msra.mxu0 0
    %5798 = vmatprep.subr.bf16.mxu0 0
    %5799 = vmatpush1.bf16.msra.mxu0 0
    %5800 = vmatprep.subr.bf16.mxu0 0
    %5801 = vmatpush1.bf16.msra.mxu0 0
    %5802 = vmatprep.subr.bf16.mxu0 0
    %5803 = vmatpush1.bf16.msra.mxu0 0
    %5804 = vmatprep.subr.bf16.mxu0 0
    %5805 = vmatpush1.bf16.msra.mxu0 %v5088
    %5806 = vmatprep.subr.bf16.mxu0 0
    %5807 = vmatpush2.bf16.msra.mxu0 0
    %5808 = vmatprep.subr.bf16.mxu0 0
    %5809 = vmatpush2.bf16.msra.mxu0 0
    %5810 = vmatprep.subr.bf16.mxu0 0
    %5811 = vmatpush2.bf16.msra.mxu0 0
    %5812 = vmatprep.subr.bf16.mxu0 0
    %5813 = vmatpush2.bf16.msra.mxu0 0
    %5814 = vmatprep.subr.bf16.mxu0 0
    %5815 = vmatpush2.bf16.msra.mxu0 0
    %5816 = vmatprep.subr.bf16.mxu0 0
    %5817 = vmatpush2.bf16.msra.mxu0 0
    %5818 = vmatprep.subr.bf16.mxu0 0
    %5819 = vmatpush2.bf16.msra.mxu0 0
    %5820 = vmatprep.subr.bf16.mxu0 0
    %5821 = vmatpush2.bf16.msra.mxu0 0
    %5822 = vmatprep.mubr.bf16.mxu0 0
    %5823 = vmatmul.mubr.bf16.gmra.mxu0 %v5788
    %v5824 = vpop.f32.mrf.mxu0
    %v5825 = vadd.f32 0.0, %v5824
    %v5826 = vpop.f32.mrf.mxu0
    %v5827 = vpop.f32.mrf.mxu0
    %v5828 = vadd.f32 0.0, %v5827
    %v5829 = vpop.f32.mrf.mxu0
    %5830 = vdwg.mxu0
    %v5831 = vadd.f32 %v5653, %v5825
    %v5832 = vadd.f32 %v5656, %v5828
    %5833 = vrot.lane.b32.xlu0 %v5315, 104
    %v5834 = vpop.permute.xlu0 %5833
    %5835 = vrot.lane.b32.xlu0 %v5315, 72
    %v5836 = vpop.permute.xlu0 %5835
    %v5838 = vsel %vm143, %v5834, 0
    %v5841 = vsel %vm143, %v5836, 0
    %5843 = vmatprep.subr.bf16.mxu0 0
    %5844 = vmatpush1.bf16.xpose.msra.mxu0 0
    %5845 = vmatprep.subr.bf16.mxu0 0
    %5846 = vmatpush1.bf16.xpose.msra.mxu0 0
    %5847 = vmatprep.subr.bf16.mxu0 0
    %5848 = vmatpush1.bf16.xpose.msra.mxu0 0
    %5849 = vmatprep.subr.bf16.mxu0 0
    %5850 = vmatpush1.bf16.xpose.msra.mxu0 0
    %5851 = vmatprep.subr.bf16.mxu0 0
    %5852 = vmatpush1.bf16.xpose.msra.mxu0 0
    %5853 = vmatprep.subr.bf16.mxu0 0
    %5854 = vmatpush1.bf16.xpose.msra.mxu0 0
    %5855 = vmatprep.subr.bf16.mxu0 0
    %5856 = vmatpush1.bf16.xpose.msra.mxu0 0
    %5857 = vmatprep.subr.bf16.mxu0 0
    %5858 = vmatpush1.bf16.xpose.msra.mxu0 %v5841
    %5859 = vmatprep.subr.bf16.mxu0 0
    %5860 = vmatpush2.bf16.xpose.msra.mxu0 0
    %5861 = vmatprep.subr.bf16.mxu0 0
    %5862 = vmatpush2.bf16.xpose.msra.mxu0 0
    %5863 = vmatprep.subr.bf16.mxu0 0
    %5864 = vmatpush2.bf16.xpose.msra.mxu0 0
    %5865 = vmatprep.subr.bf16.mxu0 0
    %5866 = vmatpush2.bf16.xpose.msra.mxu0 0
    %5867 = vmatprep.subr.bf16.mxu0 0
    %5868 = vmatpush2.bf16.xpose.msra.mxu0 0
    %5869 = vmatprep.subr.bf16.mxu0 0
    %5870 = vmatpush2.bf16.xpose.msra.mxu0 0
    %5871 = vmatprep.subr.bf16.mxu0 0
    %5872 = vmatpush2.bf16.xpose.msra.mxu0 0
    %5873 = vmatprep.subr.bf16.mxu0 0
    %5874 = vmatpush2.bf16.xpose.msra.mxu0 0
    %5875 = vmatprep.mubr.bf16.mxu0 0
    %5876 = vmatmul.mubr.bf16.gmra.mxu0 %v5838
    %v5877 = vpop.f32.mrf.mxu0
    %v5878 = vadd.f32 0.0, %v5877
    %v5879 = vpop.f32.mrf.mxu0
    %v5880 = vpop.f32.mrf.mxu0
    %v5881 = vadd.f32 0.0, %v5880
    %v5882 = vpop.f32.mrf.mxu0
    %5883 = vdwg.mxu0
    %v5884 = vmul.f32 %v5878, 0.35355338
    %v5885 = vmul.f32 %v5881, 0.35355338
    %v5886 = vsel %vm2589, %v5884, -1e+30
    %v5887 = vsel %vm2590, %v5885, -1e+30
    %v5888 = vsel %vm2736, %v5886, -inf
    %5889 = vmax.xlane.f32.xlu0 %v5888
    %v5890 = vpop.xlane.xlu0 %5889
    %v5891 = vsel %vm2740, %v5887, -inf
    %5892 = vmax.xlane.f32.xlu0 %v5891
    %v5893 = vpop.xlane.xlu0 %5892
    %v5894 = vsub.f32 %v5886, %v5890
    %v5895 = vsub.f32 %v5887, %v5893
    %v5896 = vmul.f32 %v5894, 1.442695
    %v5897 = vpow.pop %v5896
    %v5898 = vmul.f32 %v5895, 1.442695
    %v5899 = vpow.pop %v5898
    %v5900 = vsel %vm2736, %v5897, 0.0
    %5901 = vadd.xlane.f32.xlu0 %v5900
    %v5902 = vpop.xlane.xlu0 %5901
    %v5903 = vsel %vm2740, %v5899, 0.0
    %5904 = vadd.xlane.f32.xlu0 %v5903
    %v5905 = vpop.xlane.xlu0 %5904
    %v5906 = vpack.c.bf16 %v5899, %v5897
    %5907 = vrot.lane.b32.xlu0 %v5315, 40
    %v5908 = vpop.permute.xlu0 %5907
    %v5910 = vsel %vm2736, %v5906, 0
    %v5913 = vand.u32 %v5908, %v2764
    %5915 = vmatprep.subr.bf16.mxu0 0
    %5916 = vmatpush1.bf16.msra.mxu0 0
    %5917 = vmatprep.subr.bf16.mxu0 0
    %5918 = vmatpush1.bf16.msra.mxu0 0
    %5919 = vmatprep.subr.bf16.mxu0 0
    %5920 = vmatpush1.bf16.msra.mxu0 0
    %5921 = vmatprep.subr.bf16.mxu0 0
    %5922 = vmatpush1.bf16.msra.mxu0 0
    %5923 = vmatprep.subr.bf16.mxu0 0
    %5924 = vmatpush1.bf16.msra.mxu0 0
    %5925 = vmatprep.subr.bf16.mxu0 0
    %5926 = vmatpush1.bf16.msra.mxu0 0
    %5927 = vmatprep.subr.bf16.mxu0 0
    %5928 = vmatpush1.bf16.msra.mxu0 0
    %5929 = vmatprep.subr.bf16.mxu0 0
    %5930 = vmatpush1.bf16.msra.mxu0 %v5913
    %5931 = vmatprep.subr.bf16.mxu0 0
    %5932 = vmatpush2.bf16.msra.mxu0 0
    %5933 = vmatprep.subr.bf16.mxu0 0
    %5934 = vmatpush2.bf16.msra.mxu0 0
    %5935 = vmatprep.subr.bf16.mxu0 0
    %5936 = vmatpush2.bf16.msra.mxu0 0
    %5937 = vmatprep.subr.bf16.mxu0 0
    %5938 = vmatpush2.bf16.msra.mxu0 0
    %5939 = vmatprep.subr.bf16.mxu0 0
    %5940 = vmatpush2.bf16.msra.mxu0 0
    %5941 = vmatprep.subr.bf16.mxu0 0
    %5942 = vmatpush2.bf16.msra.mxu0 0
    %5943 = vmatprep.subr.bf16.mxu0 0
    %5944 = vmatpush2.bf16.msra.mxu0 0
    %5945 = vmatprep.subr.bf16.mxu0 0
    %5946 = vmatpush2.bf16.msra.mxu0 0
    %5947 = vmatprep.mubr.bf16.mxu0 0
    %5948 = vmatmul.mubr.bf16.gmra.mxu0 %v5910
    %v5949 = vpop.f32.mrf.mxu0
    %v5950 = vadd.f32 0.0, %v5949
    %v5951 = vpop.f32.mrf.mxu0
    %v5952 = vpop.f32.mrf.mxu0
    %v5953 = vadd.f32 0.0, %v5952
    %v5954 = vpop.f32.mrf.mxu0
    %5955 = vdwg.mxu0
    %v5956 = vrcp.pop %v5902
    %v5957 = vrcp.pop %v5905
    %v5958 = vmul.f32 %v5950, %v5956
    %v5959 = vmul.f32 %v5953, %v5957
    %v5960 = vpack.c.bf16 %v5959, %v5958
    %v5962 = vsel %vm143, %v5960, 0
    %5964 = vmatprep.subr.bf16.mxu0 0
    %5965 = vmatpush1.bf16.msra.mxu0 0
    %5966 = vmatprep.subr.bf16.mxu0 0
    %5967 = vmatpush1.bf16.msra.mxu0 0
    %5968 = vmatprep.subr.bf16.mxu0 0
    %5969 = vmatpush1.bf16.msra.mxu0 0
    %5970 = vmatprep.subr.bf16.mxu0 0
    %5971 = vmatpush1.bf16.msra.mxu0 0
    %5972 = vmatprep.subr.bf16.mxu0 0
    %5973 = vmatpush1.bf16.msra.mxu0 0
    %5974 = vmatprep.subr.bf16.mxu0 0
    %5975 = vmatpush1.bf16.msra.mxu0 0
    %5976 = vmatprep.subr.bf16.mxu0 0
    %5977 = vmatpush1.bf16.msra.mxu0 0
    %5978 = vmatprep.subr.bf16.mxu0 0
    %5979 = vmatpush1.bf16.msra.mxu0 %v5266
    %5980 = vmatprep.subr.bf16.mxu0 0
    %5981 = vmatpush2.bf16.msra.mxu0 0
    %5982 = vmatprep.subr.bf16.mxu0 0
    %5983 = vmatpush2.bf16.msra.mxu0 0
    %5984 = vmatprep.subr.bf16.mxu0 0
    %5985 = vmatpush2.bf16.msra.mxu0 0
    %5986 = vmatprep.subr.bf16.mxu0 0
    %5987 = vmatpush2.bf16.msra.mxu0 0
    %5988 = vmatprep.subr.bf16.mxu0 0
    %5989 = vmatpush2.bf16.msra.mxu0 0
    %5990 = vmatprep.subr.bf16.mxu0 0
    %5991 = vmatpush2.bf16.msra.mxu0 0
    %5992 = vmatprep.subr.bf16.mxu0 0
    %5993 = vmatpush2.bf16.msra.mxu0 0
    %5994 = vmatprep.subr.bf16.mxu0 0
    %5995 = vmatpush2.bf16.msra.mxu0 0
    %5996 = vmatprep.mubr.bf16.mxu0 0
    %5997 = vmatmul.mubr.bf16.gmra.mxu0 %v5962
    %v5998 = vpop.f32.mrf.mxu0
    %v5999 = vadd.f32 0.0, %v5998
    %v6000 = vpop.f32.mrf.mxu0
    %v6001 = vpop.f32.mrf.mxu0
    %v6002 = vadd.f32 0.0, %v6001
    %v6003 = vpop.f32.mrf.mxu0
    %6004 = vdwg.mxu0
    %v6005 = vadd.f32 %v5831, %v5999
    %v6006 = vadd.f32 %v5832, %v6002
    %6007 = vst.msk [vmem:[#allocation4 + $0x9] sm:$0xff] %vm605, %v6005
    %6008 = vst.msk [vmem:[#allocation4 + $0x11] sm:$0x1] %vm2575, %v6006
    %v6009 = vld [vmem:[#allocation4] sm:$0xff]
    %v6010 = vld [vmem:[#allocation4 + $0x8] sm:$0xff]
    %v6011 = vld [vmem:[#allocation4 + $0x10] sm:$0x3]
    %s6012 = scalar_lea.vmem %s35, 1
    %v6013 = vld [vmem:[%s6012] sm:$0x1]
    %v6015 = vlaneseq
    %v6016 = vshrl.u32 %v6015, 7
    %v6017 = vsub.s32 0, %v6016
    %v6018 = vrot.slane %v6013, %v6017
    %v6020 = vadd.f32 %v6009, %v6018
    %v6021 = vadd.f32 %v6010, %v6018
    %v6022 = vadd.f32 %v6011, %v6018
    %v6023 = vadd.f32 %v4509, %v6020
    %v6024 = vadd.f32 %v4510, %v6021
    %v6025 = vadd.f32 %v4511, %v6022
    %s6026 = scalar_lea.vmem %s37, 1
    %v6027 = vld [vmem:[%s6026] sm:$0x1]
    %s6028 = scalar_lea.vmem %s39, 1
    %v6029 = vld [vmem:[%s6028] sm:$0x1]
    %v6030 = vsel %vm605, %v6023, 0.0
    %6031 = vadd.xlane.f32.xlu0 %v6030
    %v6032 = vpop.xlane.xlu0 %6031
    %v6033 = vsel %vm605, %v6024, 0.0
    %6034 = vadd.xlane.f32.xlu0 %v6033
    %v6035 = vpop.xlane.xlu0 %6034
    %v6036 = vsel %vm4116, %v6025, 0.0
    %6037 = vadd.xlane.f32.xlu0 %v6036
    %v6038 = vpop.xlane.xlu0 %6037
    %v6039 = vmul.f32 %v6032, %v4120
    %v6040 = vmul.f32 %v6035, %v4120
    %v6041 = vmul.f32 %v6038, %v4120
    %v6042 = vsub.f32 %v6023, %v6039
    %v6043 = vsub.f32 %v6024, %v6040
    %v6044 = vsub.f32 %v6025, %v6041
    %v6045 = vmul.f32 %v6042, %v6042
    %v6046 = vmul.f32 %v6043, %v6043
    %v6047 = vmul.f32 %v6044, %v6044
    %v6048 = vsel %vm605, %v6045, 0.0
    %6049 = vadd.xlane.f32.xlu0 %v6048
    %v6050 = vpop.xlane.xlu0 %6049
    %v6051 = vsel %vm605, %v6046, 0.0
    %6052 = vadd.xlane.f32.xlu0 %v6051
    %v6053 = vpop.xlane.xlu0 %6052
    %v6054 = vsel %vm4116, %v6047, 0.0
    %6055 = vadd.xlane.f32.xlu0 %v6054
    %v6056 = vpop.xlane.xlu0 %6055
    %v6057 = vmul.f32 %v6050, %v4120
    %v6058 = vmul.f32 %v6053, %v4120
    %v6059 = vmul.f32 %v6056, %v4120
    %v6060 = vadd.f32 %v6057, 1e-05
    %v6061 = vadd.f32 %v6058, 1e-05
    %v6062 = vadd.f32 %v6059, 1e-05
    %v6063 = vrsqrt.pop %v6060
    %v6064 = vrsqrt.pop %v6061
    %v6065 = vrsqrt.pop %v6062
    %v6066 = vmul.f32 %v6042, %v6063
    %v6067 = vmul.f32 %v6043, %v6064
    %v6068 = vmul.f32 %v6044, %v6065
    %v6070 = vlaneseq
    %v6071 = vshrl.u32 %v6070, 7
    %v6072 = vsub.s32 0, %v6071
    %v6073 = vrot.slane %v6027, %v6072
    %v6075 = vmul.f32 %v6066, %v6073
    %v6076 = vmul.f32 %v6067, %v6073
    %v6077 = vmul.f32 %v6068, %v6073
    %v6079 = vlaneseq
    %v6080 = vshrl.u32 %v6079, 7
    %v6081 = vsub.s32 0, %v6080
    %v6082 = vrot.slane %v6029, %v6081
    %v6084 = vadd.f32 %v6075, %v6082
    %v6085 = vadd.f32 %v6076, %v6082
    %v6086 = vadd.f32 %v6077, %v6082
    %v6087 = vpack.c.bf16 %v6085, %v6084
    %v6088 = vpack.c.bf16 %v6086, %v6086
    %s6089 = scalar_lea.vmem %s41, 16
    %v6090 = vld [vmem:[%s6089] sm:$0xf]
    %v6091 = vld [vmem:[%s6089 + $0x4] sm:$0xf]
    %v6092 = vld [vmem:[%s6089 + $0x8] sm:$0xf]
    %v6093 = vld [vmem:[%s6089 + $0xc] sm:$0xf]
    %s6094 = scalar_lea.vmem %s43, 1
    %v6095 = vld [vmem:[%s6094] sm:$0x1]
    %v6097 = vlaneseq
    %v6098 = vshrl.u32 %v6097, 7
    %v6099 = vsub.s32 0, %v6098
    %v6100 = vrot.slane %v6095, %v6099
    %v6106 = vunpack.c.l.b16 %v6090
    %v6107 = vunpack.c.l.b16 %v6091
    %v6108 = vunpack.c.l.b16 %v6092
    %v6109 = vunpack.c.l.b16 %v6093
    %v6110 = vpack.c.b16 %v6107, %v6106
    %v6111 = vpack.c.b16 %v6109, %v6108
    %v6115 = vsel %vm605, %v6087, 0
    %v6118 = vsel %vm605, %v6088, 0
    %6120 = vmatprep.subr.bf16.mxu0 0
    %6121 = vmatpush1.bf16.msra.mxu0 0
    %6122 = vmatprep.subr.bf16.mxu0 0
    %6123 = vmatpush1.bf16.msra.mxu0 0
    %6124 = vmatprep.subr.bf16.mxu0 0
    %6125 = vmatpush1.bf16.msra.mxu0 0
    %6126 = vmatprep.subr.bf16.mxu0 0
    %6127 = vmatpush1.bf16.msra.mxu0 0
    %6128 = vmatprep.subr.bf16.mxu0 0
    %6129 = vmatpush1.bf16.msra.mxu0 0
    %6130 = vmatprep.subr.bf16.mxu0 0
    %6131 = vmatpush1.bf16.msra.mxu0 0
    %6132 = vmatprep.subr.bf16.mxu0 0
    %6133 = vmatpush1.bf16.msra.mxu0 %v6111
    %6134 = vmatprep.subr.bf16.mxu0 0
    %6135 = vmatpush1.bf16.msra.mxu0 %v6110
    %6136 = vmatprep.subr.bf16.mxu0 0
    %6137 = vmatpush2.bf16.msra.mxu0 0
    %6138 = vmatprep.subr.bf16.mxu0 0
    %6139 = vmatpush2.bf16.msra.mxu0 0
    %6140 = vmatprep.subr.bf16.mxu0 0
    %6141 = vmatpush2.bf16.msra.mxu0 0
    %6142 = vmatprep.subr.bf16.mxu0 0
    %6143 = vmatpush2.bf16.msra.mxu0 0
    %6144 = vmatprep.subr.bf16.mxu0 0
    %6145 = vmatpush2.bf16.msra.mxu0 0
    %6146 = vmatprep.subr.bf16.mxu0 0
    %6147 = vmatpush2.bf16.msra.mxu0 0
    %6148 = vmatprep.subr.bf16.mxu0 0
    %6149 = vmatpush2.bf16.msra.mxu0 0
    %6150 = vmatprep.subr.bf16.mxu0 0
    %6151 = vmatpush2.bf16.msra.mxu0 0
    %6152 = vmatprep.mubr.bf16.mxu0 0
    %6153 = vmatmul.mubr.bf16.gmra.mxu0 %v6115
    %v6154 = vpop.f32.mrf.mxu0
    %v6155 = vadd.f32 %v6100, %v6154
    %v6156 = vpop.f32.mrf.mxu0
    %v6157 = vpop.f32.mrf.mxu0
    %v6158 = vadd.f32 %v6100, %v6157
    %v6159 = vpop.f32.mrf.mxu0
    %6160 = vmatprep.mubr.bf16.mxu0 0
    %6161 = vmatmul.mubr.bf16.gmra.mxu0 %v6118
    %v6162 = vpop.f32.mrf.mxu0
    %v6163 = vadd.f32 %v6100, %v6162
    %v6164 = vpop.f32.mrf.mxu0
    %v6165 = vpop.f32.mrf.mxu0
    %v6166 = vpop.f32.mrf.mxu0
    %6167 = vdwg.mxu0
    %v6168 = vmul.f32 %v6155, 0.5
    %v6169 = vmul.f32 %v6158, 0.5
    %v6170 = vmul.f32 %v6163, 0.5
    %v6171 = vmul.f32 %v6155, 0.70710677
    %v6172 = vmul.f32 %v6158, 0.70710677
    %v6173 = vmul.f32 %v6163, 0.70710677
    %vm6174 = vcmp.ge.f32.partialorder %v6171, 0.0
    %vm6175 = vcmp.ge.f32.partialorder %v6172, 0.0
    %vm6176 = vcmp.ge.f32.partialorder %v6173, 0.0
    %v6177 = vsel %vm6174, 1.0, -1.0
    %v6178 = vsel %vm6175, 1.0, -1.0
    %v6179 = vsel %vm6176, 1.0, -1.0
    %v6180 = vand.u32 2147483647, %v6171
    %v6181 = vand.u32 2147483647, %v6172
    %v6182 = vand.u32 2147483647, %v6173
    %v6183 = vmul.f32 %v6180, 0.3275911
    %v6184 = vmul.f32 %v6181, 0.3275911
    %v6185 = vmul.f32 %v6182, 0.3275911
    %v6186 = vadd.f32 %v6183, 1.0
    %v6187 = vadd.f32 %v6184, 1.0
    %v6188 = vadd.f32 %v6185, 1.0
    %v6189 = vrcp.pop %v6186
    %v6190 = vmul.f32 1.0, %v6189
    %v6191 = vrcp.pop %v6187
    %v6192 = vmul.f32 1.0, %v6191
    %v6193 = vrcp.pop %v6188
    %v6194 = vmul.f32 1.0, %v6193
    %v6195 = vmul.f32 %v6190, 1.0614054
    %v6196 = vmul.f32 %v6192, 1.0614054
    %v6197 = vmul.f32 %v6194, 1.0614054
    %v6198 = vadd.f32 %v6195, -1.4531521
    %v6199 = vadd.f32 %v6196, -1.4531521
    %v6200 = vadd.f32 %v6197, -1.4531521
    %v6201 = vmul.f32 %v6198, %v6190
    %v6202 = vmul.f32 %v6199, %v6192
    %v6203 = vmul.f32 %v6200, %v6194
    %v6204 = vadd.f32 %v6201, 1.4214138
    %v6205 = vadd.f32 %v6202, 1.4214138
    %v6206 = vadd.f32 %v6203, 1.4214138
    %v6207 = vmul.f32 %v6204, %v6190
    %v6208 = vmul.f32 %v6205, %v6192
    %v6209 = vmul.f32 %v6206, %v6194
    %v6210 = vadd.f32 %v6207, -0.28449672
    %v6211 = vadd.f32 %v6208, -0.28449672
    %v6212 = vadd.f32 %v6209, -0.28449672
    %v6213 = vmul.f32 %v6210, %v6190
    %v6214 = vmul.f32 %v6211, %v6192
    %v6215 = vmul.f32 %v6212, %v6194
    %v6216 = vadd.f32 %v6213, 0.2548296
    %v6217 = vadd.f32 %v6214, 0.2548296
    %v6218 = vadd.f32 %v6215, 0.2548296
    %v6219 = vmul.f32 %v6216, %v6190
    %v6220 = vmul.f32 %v6217, %v6192
    %v6221 = vmul.f32 %v6218, %v6194
    %v6222 = vsub.f32 0.0, %v6180
    %v6223 = vsub.f32 0.0, %v6181
    %v6224 = vsub.f32 0.0, %v6182
    %v6225 = vmul.f32 %v6222, %v6180
    %v6226 = vmul.f32 %v6223, %v6181
    %v6227 = vmul.f32 %v6224, %v6182
    %v6228 = vmul.f32 %v6225, 1.442695
    %v6229 = vpow.pop %v6228
    %v6230 = vmul.f32 %v6226, 1.442695
    %v6231 = vpow.pop %v6230
    %v6232 = vmul.f32 %v6227, 1.442695
    %v6233 = vpow.pop %v6232
    %v6234 = vmul.f32 %v6219, %v6229
    %v6235 = vmul.f32 %v6220, %v6231
    %v6236 = vmul.f32 %v6221, %v6233
    %v6237 = vsub.f32 1.0, %v6234
    %v6238 = vsub.f32 1.0, %v6235
    %v6239 = vsub.f32 1.0, %v6236
    %v6240 = vmul.f32 %v6177, %v6237
    %v6241 = vmul.f32 %v6178, %v6238
    %v6242 = vmul.f32 %v6179, %v6239
    %v6243 = vadd.f32 %v6240, 1.0
    %v6244 = vadd.f32 %v6241, 1.0
    %v6245 = vadd.f32 %v6242, 1.0
    %v6246 = vmul.f32 %v6168, %v6243
    %v6247 = vmul.f32 %v6169, %v6244
    %v6248 = vmul.f32 %v6170, %v6245
    %v6249 = vpack.c.bf16 %v6247, %v6246
    %v6250 = vpack.c.bf16 %v6248, %v6248
    %s6251 = scalar_lea.vmem %s45, 64
    %v6252 = vld [vmem:[%s6251] sm:$0xf]
    %v6253 = vld [vmem:[%s6251 + $0x4] sm:$0xf]
    %v6254 = vld [vmem:[%s6251 + $0x8] sm:$0xf]
    %v6255 = vld [vmem:[%s6251 + $0xc] sm:$0xf]
    %v6256 = vld [vmem:[%s6251 + $0x10] sm:$0xf]
    %v6257 = vld [vmem:[%s6251 + $0x14] sm:$0xf]
    %v6258 = vld [vmem:[%s6251 + $0x18] sm:$0xf]
    %v6259 = vld [vmem:[%s6251 + $0x1c] sm:$0xf]
    %v6260 = vld [vmem:[%s6251 + $0x20] sm:$0xf]
    %v6261 = vld [vmem:[%s6251 + $0x24] sm:$0xf]
    %v6262 = vld [vmem:[%s6251 + $0x28] sm:$0xf]
    %v6263 = vld [vmem:[%s6251 + $0x2c] sm:$0xf]
    %v6264 = vld [vmem:[%s6251 + $0x30] sm:$0xf]
    %v6265 = vld [vmem:[%s6251 + $0x34] sm:$0xf]
    %v6266 = vld [vmem:[%s6251 + $0x38] sm:$0xf]
    %v6267 = vld [vmem:[%s6251 + $0x3c] sm:$0xf]
    %s6268 = scalar_lea.vmem %s47, 1
    %v6269 = vld [vmem:[%s6268] sm:$0x1]
    %v6271 = vlaneseq
    %v6272 = vshrl.u32 %v6271, 7
    %v6273 = vsub.s32 0, %v6272
    %v6274 = vrot.slane %v6269, %v6273
    %v6292 = vunpack.c.l.b16 %v6252
    %v6293 = vunpack.c.l.b16 %v6253
    %v6294 = vunpack.c.l.b16 %v6254
    %v6295 = vunpack.c.l.b16 %v6255
    %v6296 = vunpack.c.l.b16 %v6256
    %v6297 = vunpack.c.l.b16 %v6257
    %v6298 = vunpack.c.l.b16 %v6258
    %v6299 = vunpack.c.l.b16 %v6259
    %v6300 = vunpack.c.l.b16 %v6260
    %v6301 = vunpack.c.l.b16 %v6261
    %v6302 = vunpack.c.l.b16 %v6262
    %v6303 = vunpack.c.l.b16 %v6263
    %v6304 = vunpack.c.l.b16 %v6264
    %v6305 = vunpack.c.l.b16 %v6265
    %v6306 = vunpack.c.l.b16 %v6266
    %v6307 = vunpack.c.l.b16 %v6267
    %v6308 = vpack.c.b16 %v6293, %v6292
    %v6309 = vpack.c.b16 %v6295, %v6294
    %v6310 = vpack.c.b16 %v6297, %v6296
    %v6311 = vpack.c.b16 %v6299, %v6298
    %v6312 = vpack.c.b16 %v6301, %v6300
    %v6313 = vpack.c.b16 %v6303, %v6302
    %v6314 = vpack.c.b16 %v6305, %v6304
    %v6315 = vpack.c.b16 %v6307, %v6306
    %6324 = vmatprep.subr.bf16.mxu0 0
    %6325 = vmatpush1.bf16.msra.mxu0 %v6315
    %6326 = vmatprep.subr.bf16.mxu0 0
    %6327 = vmatpush1.bf16.msra.mxu0 %v6314
    %6328 = vmatprep.subr.bf16.mxu0 0
    %6329 = vmatpush1.bf16.msra.mxu0 %v6313
    %6330 = vmatprep.subr.bf16.mxu0 0
    %6331 = vmatpush1.bf16.msra.mxu0 %v6312
    %6332 = vmatprep.subr.bf16.mxu0 0
    %6333 = vmatpush1.bf16.msra.mxu0 %v6311
    %6334 = vmatprep.subr.bf16.mxu0 0
    %6335 = vmatpush1.bf16.msra.mxu0 %v6310
    %6336 = vmatprep.subr.bf16.mxu0 0
    %6337 = vmatpush1.bf16.msra.mxu0 %v6309
    %6338 = vmatprep.subr.bf16.mxu0 0
    %6339 = vmatpush1.bf16.msra.mxu0 %v6308
    %6340 = vmatprep.subr.bf16.mxu0 0
    %6341 = vmatpush2.bf16.msra.mxu0 0
    %6342 = vmatprep.subr.bf16.mxu0 0
    %6343 = vmatpush2.bf16.msra.mxu0 0
    %6344 = vmatprep.subr.bf16.mxu0 0
    %6345 = vmatpush2.bf16.msra.mxu0 0
    %6346 = vmatprep.subr.bf16.mxu0 0
    %6347 = vmatpush2.bf16.msra.mxu0 0
    %6348 = vmatprep.subr.bf16.mxu0 0
    %6349 = vmatpush2.bf16.msra.mxu0 0
    %6350 = vmatprep.subr.bf16.mxu0 0
    %6351 = vmatpush2.bf16.msra.mxu0 0
    %6352 = vmatprep.subr.bf16.mxu0 0
    %6353 = vmatpush2.bf16.msra.mxu0 0
    %6354 = vmatprep.subr.bf16.mxu0 0
    %6355 = vmatpush2.bf16.msra.mxu0 0
    %6356 = vmatprep.mubr.bf16.mxu0 0
    %6357 = vmatmul.mubr.bf16.gmra.mxu0 %v6249
    %v6358 = vpop.f32.mrf.mxu0
    %v6359 = vadd.f32 %v6274, %v6358
    %v6360 = vpop.f32.mrf.mxu0
    %v6361 = vpop.f32.mrf.mxu0
    %v6362 = vadd.f32 %v6274, %v6361
    %v6363 = vpop.f32.mrf.mxu0
    %6364 = vmatprep.mubr.bf16.mxu0 0
    %6365 = vmatmul.mubr.bf16.gmra.mxu0 %v6250
    %v6366 = vpop.f32.mrf.mxu0
    %v6367 = vadd.f32 %v6274, %v6366
    %v6368 = vpop.f32.mrf.mxu0
    %v6369 = vpop.f32.mrf.mxu0
    %v6370 = vpop.f32.mrf.mxu0
    %6371 = vdwg.mxu0
    %v6372 = vadd.f32 %v6084, %v6359
    %v6373 = vadd.f32 %v6085, %v6362
    %v6374 = vadd.f32 %v6086, %v6367
    %s6375 = scalar_lea.vmem %s49, 1
    %v6376 = vld [vmem:[%s6375] sm:$0x1]
    %s6377 = scalar_lea.vmem %s51, 1
    %v6378 = vld [vmem:[%s6377] sm:$0x1]
    %v6379 = vsel %vm605, %v6372, 0.0
    %6380 = vadd.xlane.f32.xlu0 %v6379
    %v6381 = vpop.xlane.xlu0 %6380
    %v6382 = vsel %vm605, %v6373, 0.0
    %6383 = vadd.xlane.f32.xlu0 %v6382
    %v6384 = vpop.xlane.xlu0 %6383
    %v6385 = vsel %vm4116, %v6374, 0.0
    %6386 = vadd.xlane.f32.xlu0 %v6385
    %v6387 = vpop.xlane.xlu0 %6386
    %v6388 = vmul.f32 %v6381, %v4120
    %v6389 = vmul.f32 %v6384, %v4120
    %v6390 = vmul.f32 %v6387, %v4120
    %v6391 = vsub.f32 %v6372, %v6388
    %v6392 = vsub.f32 %v6373, %v6389
    %v6393 = vsub.f32 %v6374, %v6390
    %v6394 = vmul.f32 %v6391, %v6391
    %v6395 = vmul.f32 %v6392, %v6392
    %v6396 = vmul.f32 %v6393, %v6393
    %v6397 = vsel %vm605, %v6394, 0.0
    %6398 = vadd.xlane.f32.xlu0 %v6397
    %v6399 = vpop.xlane.xlu0 %6398
    %v6400 = vsel %vm605, %v6395, 0.0
    %6401 = vadd.xlane.f32.xlu0 %v6400
    %v6402 = vpop.xlane.xlu0 %6401
    %v6403 = vsel %vm4116, %v6396, 0.0
    %6404 = vadd.xlane.f32.xlu0 %v6403
    %v6405 = vpop.xlane.xlu0 %6404
    %v6406 = vmul.f32 %v6399, %v4120
    %v6407 = vmul.f32 %v6402, %v4120
    %v6408 = vmul.f32 %v6405, %v4120
    %v6409 = vadd.f32 %v6406, 1e-05
    %v6410 = vadd.f32 %v6407, 1e-05
    %v6411 = vadd.f32 %v6408, 1e-05
    %v6412 = vrsqrt.pop %v6409
    %v6413 = vrsqrt.pop %v6410
    %v6414 = vrsqrt.pop %v6411
    %v6415 = vmul.f32 %v6391, %v6412
    %v6416 = vmul.f32 %v6392, %v6413
    %v6417 = vmul.f32 %v6393, %v6414
    %v6419 = vlaneseq
    %v6420 = vshrl.u32 %v6419, 7
    %v6421 = vsub.s32 0, %v6420
    %v6422 = vrot.slane %v6376, %v6421
    %v6424 = vmul.f32 %v6415, %v6422
    %v6425 = vmul.f32 %v6416, %v6422
    %v6426 = vmul.f32 %v6417, %v6422
    %v6428 = vlaneseq
    %v6429 = vshrl.u32 %v6428, 7
    %v6430 = vsub.s32 0, %v6429
    %v6431 = vrot.slane %v6378, %v6430
    %v6433 = vadd.f32 %v6424, %v6431
    %v6434 = vadd.f32 %v6425, %v6431
    %v6435 = vadd.f32 %v6426, %v6431
    %v6436 = vpack.c.bf16 %v6434, %v6433
    %v6437 = vpack.c.bf16 %v6435, %v6435
    %v6438 = vld [vmem:[%s53] sm:$0xf]
    %v6439 = vld [vmem:[%s53 + $0x4] sm:$0xf]
    %v6440 = vld [vmem:[%s53 + $0x8] sm:$0xf]
    %v6441 = vld [vmem:[%s53 + $0xc] sm:$0xf]
    %v6442 = vld [vmem:[#allocation5] sm:$0x1]
    %v6444 = vlaneseq
    %v6445 = vshrl.u32 %v6444, 7
    %v6446 = vsub.s32 0, %v6445
    %v6447 = vrot.slane %v6442, %v6446
    %v6453 = vunpack.c.l.b16 %v6438
    %v6454 = vunpack.c.l.b16 %v6439
    %v6455 = vunpack.c.l.b16 %v6440
    %v6456 = vunpack.c.l.b16 %v6441
    %v6457 = vpack.c.b16 %v6454, %v6453
    %v6458 = vpack.c.b16 %v6456, %v6455
    %v6462 = vsel %vm605, %v6436, 0
    %v6465 = vsel %vm605, %v6437, 0
    %6467 = vmatprep.subr.bf16.mxu0 0
    %6468 = vmatpush1.bf16.msra.mxu0 0
    %6469 = vmatprep.subr.bf16.mxu0 0
    %6470 = vmatpush1.bf16.msra.mxu0 0
    %6471 = vmatprep.subr.bf16.mxu0 0
    %6472 = vmatpush1.bf16.msra.mxu0 0
    %6473 = vmatprep.subr.bf16.mxu0 0
    %6474 = vmatpush1.bf16.msra.mxu0 0
    %6475 = vmatprep.subr.bf16.mxu0 0
    %6476 = vmatpush1.bf16.msra.mxu0 0
    %6477 = vmatprep.subr.bf16.mxu0 0
    %6478 = vmatpush1.bf16.msra.mxu0 0
    %6479 = vmatprep.subr.bf16.mxu0 0
    %6480 = vmatpush1.bf16.msra.mxu0 %v6458
    %6481 = vmatprep.subr.bf16.mxu0 0
    %6482 = vmatpush1.bf16.msra.mxu0 %v6457
    %6483 = vmatprep.subr.bf16.mxu0 0
    %6484 = vmatpush2.bf16.msra.mxu0 0
    %6485 = vmatprep.subr.bf16.mxu0 0
    %6486 = vmatpush2.bf16.msra.mxu0 0
    %6487 = vmatprep.subr.bf16.mxu0 0
    %6488 = vmatpush2.bf16.msra.mxu0 0
    %6489 = vmatprep.subr.bf16.mxu0 0
    %6490 = vmatpush2.bf16.msra.mxu0 0
    %6491 = vmatprep.subr.bf16.mxu0 0
    %6492 = vmatpush2.bf16.msra.mxu0 0
    %6493 = vmatprep.subr.bf16.mxu0 0
    %6494 = vmatpush2.bf16.msra.mxu0 0
    %6495 = vmatprep.subr.bf16.mxu0 0
    %6496 = vmatpush2.bf16.msra.mxu0 0
    %6497 = vmatprep.subr.bf16.mxu0 0
    %6498 = vmatpush2.bf16.msra.mxu0 0
    %6499 = vmatprep.mubr.bf16.mxu0 0
    %6500 = vmatmul.mubr.bf16.gmra.mxu0 %v6462
    %v6501 = vpop.f32.mrf.mxu0
    %v6502 = vadd.f32 %v6447, %v6501
    %v6503 = vpop.f32.mrf.mxu0
    %v6504 = vpop.f32.mrf.mxu0
    %v6505 = vadd.f32 %v6447, %v6504
    %v6506 = vpop.f32.mrf.mxu0
    %6507 = vmatprep.mubr.bf16.mxu0 0
    %6508 = vmatmul.mubr.bf16.gmra.mxu0 %v6465
    %v6509 = vpop.f32.mrf.mxu0
    %v6510 = vadd.f32 %v6447, %v6509
    %v6511 = vpop.f32.mrf.mxu0
    %v6512 = vpop.f32.mrf.mxu0
    %v6513 = vpop.f32.mrf.mxu0
    %6514 = vdwg.mxu0
    %vm6515 = vcmask 367616
    %6516 = vst.msk [vmem:[%s59] sm:$0xff] %vm6515, %v6502
    %6517 = vst.msk [vmem:[%s59 + $0x8] sm:$0xff] %vm6515, %v6505
    %vm6518 = vcmask 361472
    %6519 = vst.msk [vmem:[%s59 + $0x10] sm:$0x3] %vm6518, %v6510
    // Predicated region
    $region118: #{gpt_with_cae_forward.1} parent=1 // pred_check
      _
    $region119: #{gpt_with_cae_forward.1} parent=1 // pred_check_branch
      %6521 = sbr.rel (0) target = $region121
    $region120: #{gpt_with_cae_forward.1} parent=1 // pred_region
      _
    $region121: #{gpt_with_cae_forward.1} parent=1 // pred_fallthru
      _
    // Predicated region
    $region122: #{gpt_with_cae_forward.1} parent=1 // pred_check
      _
    $region123: #{gpt_with_cae_forward.1} parent=1 // pred_check_branch
      %6523 = sbr.rel (0) target = $region125
    $region124: #{gpt_with_cae_forward.1} parent=1 // pred_region
      _
    $region125: #{gpt_with_cae_forward.1} parent=1 // pred_fallthru
      _
    // Predicated region
    $region126: #{gpt_with_cae_forward.1} parent=1 // pred_check
      _
    $region127: #{gpt_with_cae_forward.1} parent=1 // pred_check_branch
      %6525 = sbr.rel (0) target = $region129
    $region128: #{gpt_with_cae_forward.1} parent=1 // pred_region
      _
    $region129: #{gpt_with_cae_forward.1} parent=1 // pred_fallthru
      _
    // Predicated region
    $region130: #{gpt_with_cae_forward.1} parent=1 // pred_check
      _
    $region131: #{gpt_with_cae_forward.1} parent=1 // pred_check_branch
      %6527 = sbr.rel (0) target = $region133
    $region132: #{gpt_with_cae_forward.1} parent=1 // pred_region
      _
    $region133: #{gpt_with_cae_forward.1} parent=1 // pred_fallthru
      _
    %6528 = vsyncpa [#allocation6], 1

</llo_original>
